<compile_context>
chip_gen: v6e
topology: v6e:2x2x1
jax: 0.10.0
libtpu: 0.0.40
codegen_flags: <defaults>
</compile_context>

<pallas_src>
import math

import jax
import jax.numpy as jnp
import numpy as np
from jax import lax
from jax.experimental import pallas as pl
from jax.experimental.pallas import tpu as pltpu

# ----------------------- synthetic SMN configuration ------------------------
B = 2             # batch_size
U = 3             # max_num_utterance (history turns)
L = 16            # max_sentence_length
E = 32            # word_embedding_size
H = 32            # rnn_units (utterance GRU hidden / A-matrix dim / final GRU hidden)
C = 8             # convolutional_channels
F_LIN = 16        # final_rnn_units (per-utterance matching vector size)
NUM_LABELS = 2    # output_labels
V = 64            # vocabulary size
KH = KW = 3       # conv kernel_size == pool kernel_size
SH = SW = 3       # pool stride
LC = L - KH + 1                 # conv output spatial size (valid, stride 1, dilation 1)
HP = (LC - KH) // SH + 1        # pooled height
WP = (LC - KW) // SW + 1        # pooled width
FLAT = C * HP * WP              # linear input features (= 128)
UB = U * B                      # utterance rows
NALL = B + UB                   # response + all utterances batched through the GRU
H3 = 3 * H                      # concatenated GRU gate width
JW = (LC - KW + 1) * C          # width of the shifted column-pool slices


# ------------------------------ fused SMN kernel ------------------------------
def smn_fused_kernel(resp_ref, hist_ref,                        # (B, L) i32, (B, U, L) i32
                     emb_ref, w_gi_u_ref,                       # (V, E), (V, 3H) = emb @ Wih_u
                     whh_u_ref, bih_u_ref, bhh_u_ref,           # (H, 3H), (1, 3H), (1, 3H)
                     a_ref,                                     # (H, H)
                     band_ref, cbias_ref,                       # (KH, 2L, LC*C), (1, LC*C)
                     wlr_ref, lin_b_ref,                        # (HP, JW, F_LIN), (1, F_LIN)
                     wih_f_ref, whh_f_ref, bih_f_ref, bhh_f_ref,  # final GRU (gate-concat)
                     wout_ref, bout_ref,                        # (H, NUM_LABELS), (1, NUM_LABELS)
                     o_ref,                                     # (B, NUM_LABELS)
                     hs_ref):                                   # VMEM scratch (NALL, L, H)
    # ---------- stage 0: in-kernel embedding gather via one-hot MXU matmuls -----------
    # packing: rows 0..B-1 = responses, rows B + b*U + u = history[b, u] (batch-major).
    ids_nm = jnp.concatenate([resp_ref[...], hist_ref[...].reshape(UB, L)], axis=0)  # (NALL, L)
    iota_nm = lax.broadcasted_iota(jnp.int32, (NALL, L, V), 2)
    oh_nm = (ids_nm[:, :, None] == iota_nm).astype(jnp.float32)                      # (NALL, L, V)
    emb_nm = jnp.dot(oh_nm.reshape(NALL * L, V), emb_ref[...],
                     preferred_element_type=jnp.float32,
                     precision=lax.Precision.HIGHEST).reshape(NALL, L, E)

    # time-major one-hot -> hoisted GRU input gates, contiguous per-step slices
    ids_tm = ids_nm.T                                                                 # (L, NALL)
    iota_tm = lax.broadcasted_iota(jnp.int32, (L, NALL, V), 2)
    oh_tm = (ids_tm[:, :, None] == iota_tm).astype(jnp.float32)                       # (L, NALL, V)
    gi_all = (jnp.dot(oh_tm.reshape(L * NALL, V), w_gi_u_ref[...],
                      preferred_element_type=jnp.float32,
                      precision=lax.Precision.HIGHEST)
              + bih_u_ref[...]).reshape(L, NALL, H3)                                  # (L, NALL, 3H)

    # ---------- stage 1: shared utterance GRU over response + all utterances ----------
    whh_u = whh_u_ref[...]
    bhh_u = bhh_u_ref[...]
    h = jnp.zeros((NALL, H), jnp.float32)
    for t in range(L):                                           # statically unrolled
        gi = gi_all[t]                                           # (NALL, 3H), contiguous tile
        gh = jnp.dot(h, whh_u, preferred_element_type=jnp.float32) + bhh_u
        rz = jax.nn.sigmoid(gi[:, :2 * H] + gh[:, :2 * H])
        r = rz[:, :H]
        z = rz[:, H:]
        n = jnp.tanh(gi[:, 2 * H:] + r * gh[:, 2 * H:])
        h = (1.0 - z) * n + z * h
        hs_ref[:, t, :] = h                                      # store off the critical path
    hs = hs_ref[...]                                             # (NALL, L, H), n-major

    # ---------- stage 2: matching matrices, 2 matmuls per batch element ----------------
    ta_all = jnp.dot(hs[B:].reshape(UB * L, H), a_ref[...],
                     preferred_element_type=jnp.float32)         # (UB*L, H)
    m12_parts = []
    for b in range(B):                                           # B = 2, statically unrolled
        ue_b = emb_nm[B + b * U: B + (b + 1) * U].reshape(U * L, E)   # (U*L, E)
        re_b = emb_nm[b]                                              # (L, E)
        rg_b = hs[b]                                                  # (L, H)
        ta_b = ta_all[b * U * L: (b + 1) * U * L]                     # (U*L, H)
        m1_b = jnp.einsum('ie,je->ij', ue_b, re_b,
                          preferred_element_type=jnp.float32)         # (U*L, L)
        m2_b = jnp.einsum('ik,jk->ij', ta_b, rg_b,
                          preferred_element_type=jnp.float32)         # (U*L, L)
        m12_parts.append(jnp.concatenate([m1_b, m2_b], axis=-1))      # (U*L, 2L)
    m12 = jnp.concatenate(m12_parts, axis=0).reshape(UB, L, 2 * L)    # n = b*U + u

    # ---------- stage 3: 2-channel 3x3 valid conv = 3 banded accumulating matmuls ------
    conv_acc = jnp.zeros((UB * LC, LC * C), jnp.float32)
    for di in range(KH):
        conv_acc = conv_acc + jnp.dot(
            m12[:, di:di + LC, :].reshape(UB * LC, 2 * L), band_ref[di],
            preferred_element_type=jnp.float32)
    conv = jnp.maximum(conv_acc + cbias_ref[...], 0.0).reshape(UB, LC, LC * C)

    # ---------- stage 4: 3x3 / stride-3 max-pool + linear + tanh -----------------------
    wlr = wlr_ref[...]                                           # (HP, JW, F_LIN), zero-folded
    acc = jnp.zeros((UB, F_LIN), jnp.float32)
    for hp in range(HP):
        rmax = jnp.maximum(jnp.maximum(conv[:, SH * hp, :], conv[:, SH * hp + 1, :]),
                           conv[:, SH * hp + 2, :])              # (UB, LC*C) row-window max
        jmax = jnp.maximum(jnp.maximum(rmax[:, :JW], rmax[:, C:C + JW]),
                           rmax[:, 2 * C:2 * C + JW])            # (UB, JW) col-window max
        acc = acc + jnp.dot(jmax, wlr[hp], preferred_element_type=jnp.float32)
    mv = jnp.tanh(acc + lin_b_ref[...])                          # (UB, F_LIN), n = b*U + u

    # ---------- stage 5: final GRU over the U matching vectors + output linear ---------
    gi_f = (jnp.dot(mv, wih_f_ref[...], preferred_element_type=jnp.float32)
            + bih_f_ref[...])                                    # (UB, 3H) hoisted
    whh_f = whh_f_ref[...]
    bhh_f = bhh_f_ref[...]
    hf = jnp.zeros((B, H), jnp.float32)
    for u in range(U):                                           # statically unrolled
        gi = jnp.concatenate([gi_f[b * U + u: b * U + u + 1] for b in range(B)], axis=0)
        gh = jnp.dot(hf, whh_f, preferred_element_type=jnp.float32) + bhh_f
        rz = jax.nn.sigmoid(gi[:, :2 * H] + gh[:, :2 * H])
        r = rz[:, :H]
        z = rz[:, H:]
        n = jnp.tanh(gi[:, 2 * H:] + r * gh[:, 2 * H:])
        hf = (1.0 - z) * n + z * hf
    o_ref[...] = (jnp.dot(hf, wout_ref[...], preferred_element_type=jnp.float32)
                  + bout_ref[...])


# ------------------- one-time (init) parameter packing -------------------------
def _cat_gate_w(w):   # (3, in, H) -> (in, 3H), gate order r|z|n
    return jnp.concatenate([w[0], w[1], w[2]], axis=1)


def _cat_gate_b(b):   # (3, 1, H) -> (1, 3H)
    return jnp.concatenate([b[0], b[1], b[2]], axis=1)


def pack_params(p):
    """Precompute every kernel-layout parameter ONCE (hoisted out of the per-call path)."""
    wih_u = _cat_gate_w(p['wih_u'])
    whh_u = _cat_gate_w(p['whh_u'])
    bih_u = _cat_gate_b(p['bih_u'])
    bhh_u = _cat_gate_b(p['bhh_u'])
    # fold the embedding table into the utterance-GRU input weights (exact, init-time)
    w_gi_u = jnp.dot(p['emb'], wih_u, precision=lax.Precision.HIGHEST)      # (V, 3H)

    wih_f = _cat_gate_w(p['wih_f'])
    whh_f = _cat_gate_w(p['whh_f'])
    bih_f = _cat_gate_b(p['bih_f'])
    bhh_f = _cat_gate_b(p['bhh_f'])

    # banded conv weights split by row offset di:
    #   band[di, ch*L + l, j*C + c] = conv_w[c, ch, di, l - j]  (0 <= l - j < KW)
    conv_w = np.asarray(p['conv_w'])                                        # (C, 2, KH, KW)
    band = np.zeros((KH, 2 * L, LC * C), np.float32)
    for c in range(C):
        for ch in range(2):
            for di in range(KH):
                for dj in range(KW):
                    for j in range(LC):
                        band[di, ch * L + j + dj, j * C + c] = conv_w[c, ch, di, dj]
    cbias = np.tile(np.asarray(p['conv_b']), LC).reshape(1, LC * C).astype(np.float32)

    # linear weight with the stride-3 column selection folded in (zeros elsewhere);
    # PyTorch pooled flatten order is (c, hp, kj): flat = c*HP*WP + hp*WP + kj.
    lin_w = np.asarray(p['lin_w'])                                          # (F_LIN, FLAT)
    wlr = np.zeros((HP, JW, F_LIN), np.float32)
    for hp in range(HP):
        for kj in range(WP):
            for c in range(C):
                wlr[hp, kj * SW * C + c, :] = lin_w[:, c * HP * WP + hp * WP + kj]

    return dict(
        emb=p['emb'], w_gi_u=w_gi_u, whh_u=whh_u, bih_u=bih_u, bhh_u=bhh_u,
        A=p['A'], band=jnp.asarray(band), cbias=jnp.asarray(cbias),
        wlr=jnp.asarray(wlr), lin_b=p['lin_b'].reshape(1, F_LIN),
        wih_f=wih_f, whh_f=whh_f, bih_f=bih_f, bhh_f=bhh_f,
        wout=p['wout'].T, bout=p['bout'].reshape(1, NUM_LABELS),
    )


@jax.jit
def smn_forward_pallas(history, response, packed):
    # Single fused pallas_call, grid=(); whole working set (<1 MiB) lives in VMEM.
    # TODO(synk): on v7x the second TensorCore idles at this toy size; for production
    # batches add a leading 'parallel' grid axis over batch to use both TCs.
    return pl.pallas_call(
        smn_fused_kernel,
        out_shape=jax.ShapeDtypeStruct((B, NUM_LABELS), jnp.float32),
        scratch_shapes=[pltpu.VMEM((NALL, L, H), jnp.float32)],
    )(response, history, packed['emb'], packed['w_gi_u'], packed['whh_u'],
      packed['bih_u'], packed['bhh_u'], packed['A'], packed['band'], packed['cbias'],
      packed['wlr'], packed['lin_b'], packed['wih_f'], packed['whh_f'],
      packed['bih_f'], packed['bhh_f'], packed['wout'], packed['bout'])


# --------------------------- plain-JAX reference ------------------------------
def _gru_ref(x, wih, whh, bih, bhh):
    n, t_len, _ = x.shape
    hh = whh.shape[-1]
    h = jnp.zeros((n, hh), jnp.float32)
    hs = []
    for t in range(t_len):
        x_t = x[:, t, :]
        r = jax.nn.sigmoid(x_t @ wih[0] + bih[0] + h @ whh[0] + bhh[0])
        z = jax.nn.sigmoid(x_t @ wih[1] + bih[1] + h @ whh[1] + bhh[1])
        nn_ = jnp.tanh(x_t @ wih[2] + bih[2] + r * (h @ whh[2] + bhh[2]))
        h = (1.0 - z) * nn_ + z * h
        hs.append(h)
    return jnp.stack(hs, axis=1), h


def smn_forward_ref(history, response, p):
    hist_emb = p['emb'][history]
    resp_emb = p['emb'][response]
    resp_gru, _ = _gru_ref(resp_emb, p['wih_u'], p['whh_u'], p['bih_u'], p['bhh_u'])
    mvs = []
    for u in range(U):
        ue = hist_emb[:, u]
        m1 = jnp.einsum('bie,bje->bij', ue, resp_emb)
        ug, _ = _gru_ref(ue, p['wih_u'], p['whh_u'], p['bih_u'], p['bhh_u'])
        m2 = jnp.einsum('bik,bjk->bij', jnp.einsum('bih,hk->bik', ug, p['A']), resp_gru)
        mat = jnp.stack([m1, m2], axis=1)   # NCHW
        conv = lax.conv_general_dilated(mat, p['conv_w'], (1, 1), 'VALID',
                                        dimension_numbers=('NCHW', 'OIHW', 'NCHW'))
        conv = jnp.maximum(conv + p['conv_b'].reshape(1, C, 1, 1), 0.0)
        pooled = lax.reduce_window(conv, -jnp.inf, lax.max,
                                   (1, 1, KH, KW), (1, 1, SH, SW), 'VALID')
        mv = jnp.tanh(pooled.reshape(B, -1) @ p['lin_w'].T + p['lin_b'])
        mvs.append(mv)
    seq = jnp.stack(mvs, axis=1)            # (B, U, F_LIN)
    _, h_last = _gru_ref(seq, p['wih_f'], p['whh_f'], p['bih_f'], p['bhh_f'])
    return h_last @ p['wout'].T + p['bout']


# ------------------------ deterministic parameter init ------------------------
def make_params(key):
    ks = jax.random.split(key, 18)

    def uni(k, shape, b):
        return jax.random.uniform(k, shape, jnp.float32, minval=-b, maxval=b)

    emb = uni(ks[0], (V, E), 0.25).at[0].set(0.0)   # pad token row zeroed
    p = dict(
        emb=emb,
        wih_u=jax.random.normal(ks[1], (3, E, H), jnp.float32) / math.sqrt(E),
        whh_u=jax.random.normal(ks[2], (3, H, H), jnp.float32) / math.sqrt(H),
        bih_u=uni(ks[3], (3, 1, H), 0.1),
        bhh_u=uni(ks[4], (3, 1, H), 0.1),
        A=uni(ks[5], (H, H), math.sqrt(6.0 / (2 * H))),
        conv_w=jax.random.normal(ks[6], (C, 2, KH, KW), jnp.float32) * math.sqrt(2.0 / (2 * KH * KW)),
        conv_b=uni(ks[7], (C,), 0.1),
        lin_w=uni(ks[8], (F_LIN, FLAT), math.sqrt(6.0 / (F_LIN + FLAT))),
        lin_b=uni(ks[9], (F_LIN,), 0.1),
        wih_f=jax.random.normal(ks[10], (3, F_LIN, H), jnp.float32) / math.sqrt(F_LIN),
        whh_f=jax.random.normal(ks[11], (3, H, H), jnp.float32) / math.sqrt(H),
        bih_f=uni(ks[12], (3, 1, H), 0.1),
        bhh_f=uni(ks[13], (3, 1, H), 0.1),
        wout=uni(ks[14], (NUM_LABELS, H), math.sqrt(6.0 / (NUM_LABELS + H))),
        bout=uni(ks[15], (NUM_LABELS,), 0.1),
    )
    return p, ks[16], ks[17]


if __name__ == "__main__":
    key = jax.random.PRNGKey(0)
    params, k_hist, k_resp = make_params(key)
    packed = pack_params(params)                      # one-time packing (not per-call)
    history = jax.random.randint(k_hist, (B, U, L), 0, V, dtype=jnp.int32)
    response = jax.random.randint(k_resp, (B, L), 0, V, dtype=jnp.int32)

    logits = smn_forward_pallas(history, response, packed)
    logits = jax.block_until_ready(logits)

    ref = smn_forward_ref(history, response, params)
    assert logits.shape == (B, NUM_LABELS)
    np.testing.assert_allclose(np.asarray(logits), np.asarray(ref), rtol=2e-2, atol=2e-2)
    print("KERNEL_OK")
</pallas_src>

<mosaic_0001>
module attributes {stable_mosaic.version = 11 : i64} {
  func.func @smn_fused_kernel(%arg0: memref<2x16xi32, #tpu.memory_space<vmem>>, %arg1: memref<2x3x16xi32, #tpu.memory_space<vmem>>, %arg2: memref<64x32xf32, #tpu.memory_space<vmem>>, %arg3: memref<64x96xf32, #tpu.memory_space<vmem>>, %arg4: memref<32x96xf32, #tpu.memory_space<vmem>>, %arg5: memref<1x96xf32, #tpu.memory_space<vmem>>, %arg6: memref<1x96xf32, #tpu.memory_space<vmem>>, %arg7: memref<32x32xf32, #tpu.memory_space<vmem>>, %arg8: memref<3x32x112xf32, #tpu.memory_space<vmem>>, %arg9: memref<1x112xf32, #tpu.memory_space<vmem>>, %arg10: memref<4x96x16xf32, #tpu.memory_space<vmem>>, %arg11: memref<1x16xf32, #tpu.memory_space<vmem>>, %arg12: memref<16x96xf32, #tpu.memory_space<vmem>>, %arg13: memref<32x96xf32, #tpu.memory_space<vmem>>, %arg14: memref<1x96xf32, #tpu.memory_space<vmem>>, %arg15: memref<1x96xf32, #tpu.memory_space<vmem>>, %arg16: memref<32x2xf32, #tpu.memory_space<vmem>>, %arg17: memref<1x2xf32, #tpu.memory_space<vmem>>, %arg18: memref<2x2xf32, #tpu.memory_space<vmem>>, %arg19: memref<8x16x32xf32, #tpu.memory_space<vmem>>) attributes {dimension_semantics = [], scalar_prefetch = 0 : i64, scratch_operands = 1 : i64, tpu.core_type = #tpu.core_type<tc>} {
    %c0 = arith.constant 0 : index
    %c0_0 = arith.constant 0 : index
    %0 = vector.load %arg0[%c0, %c0_0] : memref<2x16xi32, #tpu.memory_space<vmem>>, vector<2x16xi32>
    %c0_1 = arith.constant 0 : index
    %c0_2 = arith.constant 0 : index
    %c0_3 = arith.constant 0 : index
    %1 = vector.load %arg1[%c0_1, %c0_2, %c0_3] : memref<2x3x16xi32, #tpu.memory_space<vmem>>, vector<2x3x16xi32>
    %2 = vector.shape_cast %1 : vector<2x3x16xi32> to vector<6x16xi32>
    %3 = tpu.concatenate %0, %2 in 0 : vector<2x16xi32>, vector<6x16xi32> -> vector<8x16xi32>
    %4 = tpu.iota {dimensions = array<i32: 2>} : vector<8x16x64xi32>
    %5 = vector.shape_cast %3 : vector<8x16xi32> to vector<8x16x1xi32>
    %6 = vector.broadcast %5 : vector<8x16x1xi32> to vector<8x16x64xi32>
    %7 = arith.cmpi eq, %6, %4 : vector<8x16x64xi32>
    %8 = arith.extui %7 : vector<8x16x64xi1> to vector<8x16x64xi32>
    %9 = arith.sitofp %8 : vector<8x16x64xi32> to vector<8x16x64xf32>
    %10 = vector.shape_cast %9 : vector<8x16x64xf32> to vector<128x64xf32>
    %c0_4 = arith.constant 0 : index
    %c0_5 = arith.constant 0 : index
    %11 = vector.load %arg2[%c0_4, %c0_5] : memref<64x32xf32, #tpu.memory_space<vmem>>, vector<64x32xf32>
    %cst = arith.constant dense<0.000000e+00> : vector<128x32xf32>
    %12 = tpu.matmul %10, %11, %cst {dimension_numbers = #tpu.dot_dimension_numbers<[1], [0], [0], [1], [0, 0, 1, 1], [], []>, precision = #tpu.contract_precision<fp32>} : vector<128x64xf32>, vector<64x32xf32>, vector<128x32xf32> -> vector<128x32xf32>
    %13 = vector.shape_cast %12 : vector<128x32xf32> to vector<8x16x32xf32>
    %14 = tpu.transpose %3, [1, 0] : vector<8x16xi32> -> vector<16x8xi32>
    %15 = tpu.iota {dimensions = array<i32: 2>} : vector<16x8x64xi32>
    %16 = vector.shape_cast %14 : vector<16x8xi32> to vector<16x8x1xi32>
    %17 = vector.broadcast %16 : vector<16x8x1xi32> to vector<16x8x64xi32>
    %18 = arith.cmpi eq, %17, %15 : vector<16x8x64xi32>
    %19 = arith.extui %18 : vector<16x8x64xi1> to vector<16x8x64xi32>
    %20 = arith.sitofp %19 : vector<16x8x64xi32> to vector<16x8x64xf32>
    %21 = vector.shape_cast %20 : vector<16x8x64xf32> to vector<128x64xf32>
    %c0_6 = arith.constant 0 : index
    %c0_7 = arith.constant 0 : index
    %22 = vector.load %arg3[%c0_6, %c0_7] : memref<64x96xf32, #tpu.memory_space<vmem>>, vector<64x96xf32>
    %cst_8 = arith.constant dense<0.000000e+00> : vector<128x96xf32>
    %23 = tpu.matmul %21, %22, %cst_8 {dimension_numbers = #tpu.dot_dimension_numbers<[1], [0], [0], [1], [0, 0, 1, 1], [], []>, precision = #tpu.contract_precision<fp32>} : vector<128x64xf32>, vector<64x96xf32>, vector<128x96xf32> -> vector<128x96xf32>
    %c0_9 = arith.constant 0 : index
    %c0_10 = arith.constant 0 : index
    %24 = vector.load %arg5[%c0_9, %c0_10] : memref<1x96xf32, #tpu.memory_space<vmem>>, vector<1x96xf32>
    %25 = vector.broadcast %24 : vector<1x96xf32> to vector<128x96xf32>
    %26 = arith.addf %23, %25 : vector<128x96xf32>
    %27 = vector.shape_cast %26 : vector<128x96xf32> to vector<16x8x96xf32>
    %c0_11 = arith.constant 0 : index
    %c0_12 = arith.constant 0 : index
    %28 = vector.load %arg4[%c0_11, %c0_12] : memref<32x96xf32, #tpu.memory_space<vmem>>, vector<32x96xf32>
    %c0_13 = arith.constant 0 : index
    %c0_14 = arith.constant 0 : index
    %29 = vector.load %arg6[%c0_13, %c0_14] : memref<1x96xf32, #tpu.memory_space<vmem>>, vector<1x96xf32>
    %cst_15 = arith.constant 0.000000e+00 : f32
    %30 = vector.broadcast %cst_15 : f32 to vector<8x32xf32>
    %31 = vector.extract_strided_slice %27 {offsets = [0, 0, 0], sizes = [1, 8, 96], strides = [1, 1, 1]} : vector<16x8x96xf32> to vector<1x8x96xf32>
    %32 = vector.shape_cast %31 : vector<1x8x96xf32> to vector<8x96xf32>
    %cst_16 = arith.constant dense<0.000000e+00> : vector<8x96xf32>
    %33 = tpu.matmul %30, %28, %cst_16 {dimension_numbers = #tpu.dot_dimension_numbers<[1], [0], [0], [1], [0, 0, 1, 1], [], []>} : vector<8x32xf32>, vector<32x96xf32>, vector<8x96xf32> -> vector<8x96xf32>
    %34 = vector.broadcast %29 : vector<1x96xf32> to vector<8x96xf32>
    %35 = arith.addf %33, %34 : vector<8x96xf32>
    %36 = vector.extract_strided_slice %32 {offsets = [0, 0], sizes = [8, 64], strides = [1, 1]} : vector<8x96xf32> to vector<8x64xf32>
    %37 = vector.extract_strided_slice %35 {offsets = [0, 0], sizes = [8, 64], strides = [1, 1]} : vector<8x96xf32> to vector<8x64xf32>
    %38 = arith.addf %36, %37 : vector<8x64xf32>
    %39 = arith.negf %38 : vector<8x64xf32>
    %40 = math.exp %39 : vector<8x64xf32>
    %cst_17 = arith.constant 1.000000e+00 : f32
    %41 = vector.broadcast %cst_17 : f32 to vector<8x64xf32>
    %42 = arith.addf %41, %40 : vector<8x64xf32>
    %43 = arith.divf %41, %42 : vector<8x64xf32>
    %44 = vector.extract_strided_slice %43 {offsets = [0, 0], sizes = [8, 32], strides = [1, 1]} : vector<8x64xf32> to vector<8x32xf32>
    %45 = vector.extract_strided_slice %43 {offsets = [0, 32], sizes = [8, 32], strides = [1, 1]} : vector<8x64xf32> to vector<8x32xf32>
    %46 = vector.extract_strided_slice %32 {offsets = [0, 64], sizes = [8, 32], strides = [1, 1]} : vector<8x96xf32> to vector<8x32xf32>
    %47 = vector.extract_strided_slice %35 {offsets = [0, 64], sizes = [8, 32], strides = [1, 1]} : vector<8x96xf32> to vector<8x32xf32>
    %48 = arith.mulf %44, %47 : vector<8x32xf32>
    %49 = arith.addf %46, %48 : vector<8x32xf32>
    %50 = math.tanh %49 : vector<8x32xf32>
    %cst_18 = arith.constant 1.000000e+00 : f32
    %51 = vector.broadcast %cst_18 : f32 to vector<8x32xf32>
    %52 = arith.subf %51, %45 : vector<8x32xf32>
    %53 = arith.mulf %52, %50 : vector<8x32xf32>
    %54 = arith.mulf %45, %30 : vector<8x32xf32>
    %55 = arith.addf %53, %54 : vector<8x32xf32>
    %c0_19 = arith.constant 0 : index
    %c0_20 = arith.constant 0 : index
    %c0_21 = arith.constant 0 : index
    %56 = vector.load %arg19[%c0_19, %c0_20, %c0_21] : memref<8x16x32xf32, #tpu.memory_space<vmem>>, vector<8x1x32xf32>
    %57 = vector.shape_cast %56 : vector<8x1x32xf32> to vector<8x32xf32>
    %58 = vector.shape_cast %55 : vector<8x32xf32> to vector<8x1x32xf32>
    tpu.vector_store %arg19[%c0_19, %c0_20, %c0_21], %58 {strides = array<i32>} : memref<8x16x32xf32, #tpu.memory_space<vmem>>, vector<8x1x32xf32>,
    %59 = vector.extract_strided_slice %27 {offsets = [1, 0, 0], sizes = [1, 8, 96], strides = [1, 1, 1]} : vector<16x8x96xf32> to vector<1x8x96xf32>
    %60 = vector.shape_cast %59 : vector<1x8x96xf32> to vector<8x96xf32>
    %cst_22 = arith.constant dense<0.000000e+00> : vector<8x96xf32>
    %61 = tpu.matmul %55, %28, %cst_22 {dimension_numbers = #tpu.dot_dimension_numbers<[1], [0], [0], [1], [0, 0, 1, 1], [], []>} : vector<8x32xf32>, vector<32x96xf32>, vector<8x96xf32> -> vector<8x96xf32>
    %62 = vector.broadcast %29 : vector<1x96xf32> to vector<8x96xf32>
    %63 = arith.addf %61, %62 : vector<8x96xf32>
    %64 = vector.extract_strided_slice %60 {offsets = [0, 0], sizes = [8, 64], strides = [1, 1]} : vector<8x96xf32> to vector<8x64xf32>
    %65 = vector.extract_strided_slice %63 {offsets = [0, 0], sizes = [8, 64], strides = [1, 1]} : vector<8x96xf32> to vector<8x64xf32>
    %66 = arith.addf %64, %65 : vector<8x64xf32>
    %67 = arith.negf %66 : vector<8x64xf32>
    %68 = math.exp %67 : vector<8x64xf32>
    %cst_23 = arith.constant 1.000000e+00 : f32
    %69 = vector.broadcast %cst_23 : f32 to vector<8x64xf32>
    %70 = arith.addf %69, %68 : vector<8x64xf32>
    %71 = arith.divf %69, %70 : vector<8x64xf32>
    %72 = vector.extract_strided_slice %71 {offsets = [0, 0], sizes = [8, 32], strides = [1, 1]} : vector<8x64xf32> to vector<8x32xf32>
    %73 = vector.extract_strided_slice %71 {offsets = [0, 32], sizes = [8, 32], strides = [1, 1]} : vector<8x64xf32> to vector<8x32xf32>
    %74 = vector.extract_strided_slice %60 {offsets = [0, 64], sizes = [8, 32], strides = [1, 1]} : vector<8x96xf32> to vector<8x32xf32>
    %75 = vector.extract_strided_slice %63 {offsets = [0, 64], sizes = [8, 32], strides = [1, 1]} : vector<8x96xf32> to vector<8x32xf32>
    %76 = arith.mulf %72, %75 : vector<8x32xf32>
    %77 = arith.addf %74, %76 : vector<8x32xf32>
    %78 = math.tanh %77 : vector<8x32xf32>
    %cst_24 = arith.constant 1.000000e+00 : f32
    %79 = vector.broadcast %cst_24 : f32 to vector<8x32xf32>
    %80 = arith.subf %79, %73 : vector<8x32xf32>
    %81 = arith.mulf %80, %78 : vector<8x32xf32>
    %82 = arith.mulf %73, %55 : vector<8x32xf32>
    %83 = arith.addf %81, %82 : vector<8x32xf32>
    %c0_25 = arith.constant 0 : index
    %c1 = arith.constant 1 : index
    %c0_26 = arith.constant 0 : index
    %84 = vector.load %arg19[%c0_25, %c1, %c0_26] : memref<8x16x32xf32, #tpu.memory_space<vmem>>, vector<8x1x32xf32>
    %85 = vector.shape_cast %84 : vector<8x1x32xf32> to vector<8x32xf32>
    %86 = vector.shape_cast %83 : vector<8x32xf32> to vector<8x1x32xf32>
    tpu.vector_store %arg19[%c0_25, %c1, %c0_26], %86 {strides = array<i32>} : memref<8x16x32xf32, #tpu.memory_space<vmem>>, vector<8x1x32xf32>,
    %87 = vector.extract_strided_slice %27 {offsets = [2, 0, 0], sizes = [1, 8, 96], strides = [1, 1, 1]} : vector<16x8x96xf32> to vector<1x8x96xf32>
    %88 = vector.shape_cast %87 : vector<1x8x96xf32> to vector<8x96xf32>
    %cst_27 = arith.constant dense<0.000000e+00> : vector<8x96xf32>
    %89 = tpu.matmul %83, %28, %cst_27 {dimension_numbers = #tpu.dot_dimension_numbers<[1], [0], [0], [1], [0, 0, 1, 1], [], []>} : vector<8x32xf32>, vector<32x96xf32>, vector<8x96xf32> -> vector<8x96xf32>
    %90 = vector.broadcast %29 : vector<1x96xf32> to vector<8x96xf32>
    %91 = arith.addf %89, %90 : vector<8x96xf32>
    %92 = vector.extract_strided_slice %88 {offsets = [0, 0], sizes = [8, 64], strides = [1, 1]} : vector<8x96xf32> to vector<8x64xf32>
    %93 = vector.extract_strided_slice %91 {offsets = [0, 0], sizes = [8, 64], strides = [1, 1]} : vector<8x96xf32> to vector<8x64xf32>
    %94 = arith.addf %92, %93 : vector<8x64xf32>
    %95 = arith.negf %94 : vector<8x64xf32>
    %96 = math.exp %95 : vector<8x64xf32>
    %cst_28 = arith.constant 1.000000e+00 : f32
    %97 = vector.broadcast %cst_28 : f32 to vector<8x64xf32>
    %98 = arith.addf %97, %96 : vector<8x64xf32>
    %99 = arith.divf %97, %98 : vector<8x64xf32>
    %100 = vector.extract_strided_slice %99 {offsets = [0, 0], sizes = [8, 32], strides = [1, 1]} : vector<8x64xf32> to vector<8x32xf32>
    %101 = vector.extract_strided_slice %99 {offsets = [0, 32], sizes = [8, 32], strides = [1, 1]} : vector<8x64xf32> to vector<8x32xf32>
    %102 = vector.extract_strided_slice %88 {offsets = [0, 64], sizes = [8, 32], strides = [1, 1]} : vector<8x96xf32> to vector<8x32xf32>
    %103 = vector.extract_strided_slice %91 {offsets = [0, 64], sizes = [8, 32], strides = [1, 1]} : vector<8x96xf32> to vector<8x32xf32>
    %104 = arith.mulf %100, %103 : vector<8x32xf32>
    %105 = arith.addf %102, %104 : vector<8x32xf32>
    %106 = math.tanh %105 : vector<8x32xf32>
    %cst_29 = arith.constant 1.000000e+00 : f32
    %107 = vector.broadcast %cst_29 : f32 to vector<8x32xf32>
    %108 = arith.subf %107, %101 : vector<8x32xf32>
    %109 = arith.mulf %108, %106 : vector<8x32xf32>
    %110 = arith.mulf %101, %83 : vector<8x32xf32>
    %111 = arith.addf %109, %110 : vector<8x32xf32>
    %c0_30 = arith.constant 0 : index
    %c2 = arith.constant 2 : index
    %c0_31 = arith.constant 0 : index
    %112 = vector.load %arg19[%c0_30, %c2, %c0_31] : memref<8x16x32xf32, #tpu.memory_space<vmem>>, vector<8x1x32xf32>
    %113 = vector.shape_cast %112 : vector<8x1x32xf32> to vector<8x32xf32>
    %114 = vector.shape_cast %111 : vector<8x32xf32> to vector<8x1x32xf32>
    tpu.vector_store %arg19[%c0_30, %c2, %c0_31], %114 {strides = array<i32>} : memref<8x16x32xf32, #tpu.memory_space<vmem>>, vector<8x1x32xf32>,
    %115 = vector.extract_strided_slice %27 {offsets = [3, 0, 0], sizes = [1, 8, 96], strides = [1, 1, 1]} : vector<16x8x96xf32> to vector<1x8x96xf32>
    %116 = vector.shape_cast %115 : vector<1x8x96xf32> to vector<8x96xf32>
    %cst_32 = arith.constant dense<0.000000e+00> : vector<8x96xf32>
    %117 = tpu.matmul %111, %28, %cst_32 {dimension_numbers = #tpu.dot_dimension_numbers<[1], [0], [0], [1], [0, 0, 1, 1], [], []>} : vector<8x32xf32>, vector<32x96xf32>, vector<8x96xf32> -> vector<8x96xf32>
    %118 = vector.broadcast %29 : vector<1x96xf32> to vector<8x96xf32>
    %119 = arith.addf %117, %118 : vector<8x96xf32>
    %120 = vector.extract_strided_slice %116 {offsets = [0, 0], sizes = [8, 64], strides = [1, 1]} : vector<8x96xf32> to vector<8x64xf32>
    %121 = vector.extract_strided_slice %119 {offsets = [0, 0], sizes = [8, 64], strides = [1, 1]} : vector<8x96xf32> to vector<8x64xf32>
    %122 = arith.addf %120, %121 : vector<8x64xf32>
    %123 = arith.negf %122 : vector<8x64xf32>
    %124 = math.exp %123 : vector<8x64xf32>
    %cst_33 = arith.constant 1.000000e+00 : f32
    %125 = vector.broadcast %cst_33 : f32 to vector<8x64xf32>
    %126 = arith.addf %125, %124 : vector<8x64xf32>
    %127 = arith.divf %125, %126 : vector<8x64xf32>
    %128 = vector.extract_strided_slice %127 {offsets = [0, 0], sizes = [8, 32], strides = [1, 1]} : vector<8x64xf32> to vector<8x32xf32>
    %129 = vector.extract_strided_slice %127 {offsets = [0, 32], sizes = [8, 32], strides = [1, 1]} : vector<8x64xf32> to vector<8x32xf32>
    %130 = vector.extract_strided_slice %116 {offsets = [0, 64], sizes = [8, 32], strides = [1, 1]} : vector<8x96xf32> to vector<8x32xf32>
    %131 = vector.extract_strided_slice %119 {offsets = [0, 64], sizes = [8, 32], strides = [1, 1]} : vector<8x96xf32> to vector<8x32xf32>
    %132 = arith.mulf %128, %131 : vector<8x32xf32>
    %133 = arith.addf %130, %132 : vector<8x32xf32>
    %134 = math.tanh %133 : vector<8x32xf32>
    %cst_34 = arith.constant 1.000000e+00 : f32
    %135 = vector.broadcast %cst_34 : f32 to vector<8x32xf32>
    %136 = arith.subf %135, %129 : vector<8x32xf32>
    %137 = arith.mulf %136, %134 : vector<8x32xf32>
    %138 = arith.mulf %129, %111 : vector<8x32xf32>
    %139 = arith.addf %137, %138 : vector<8x32xf32>
    %c0_35 = arith.constant 0 : index
    %c3 = arith.constant 3 : index
    %c0_36 = arith.constant 0 : index
    %140 = vector.load %arg19[%c0_35, %c3, %c0_36] : memref<8x16x32xf32, #tpu.memory_space<vmem>>, vector<8x1x32xf32>
    %141 = vector.shape_cast %140 : vector<8x1x32xf32> to vector<8x32xf32>
    %142 = vector.shape_cast %139 : vector<8x32xf32> to vector<8x1x32xf32>
    tpu.vector_store %arg19[%c0_35, %c3, %c0_36], %142 {strides = array<i32>} : memref<8x16x32xf32, #tpu.memory_space<vmem>>, vector<8x1x32xf32>,
    %143 = vector.extract_strided_slice %27 {offsets = [4, 0, 0], sizes = [1, 8, 96], strides = [1, 1, 1]} : vector<16x8x96xf32> to vector<1x8x96xf32>
    %144 = vector.shape_cast %143 : vector<1x8x96xf32> to vector<8x96xf32>
    %cst_37 = arith.constant dense<0.000000e+00> : vector<8x96xf32>
    %145 = tpu.matmul %139, %28, %cst_37 {dimension_numbers = #tpu.dot_dimension_numbers<[1], [0], [0], [1], [0, 0, 1, 1], [], []>} : vector<8x32xf32>, vector<32x96xf32>, vector<8x96xf32> -> vector<8x96xf32>
    %146 = vector.broadcast %29 : vector<1x96xf32> to vector<8x96xf32>
    %147 = arith.addf %145, %146 : vector<8x96xf32>
    %148 = vector.extract_strided_slice %144 {offsets = [0, 0], sizes = [8, 64], strides = [1, 1]} : vector<8x96xf32> to vector<8x64xf32>
    %149 = vector.extract_strided_slice %147 {offsets = [0, 0], sizes = [8, 64], strides = [1, 1]} : vector<8x96xf32> to vector<8x64xf32>
    %150 = arith.addf %148, %149 : vector<8x64xf32>
    %151 = arith.negf %150 : vector<8x64xf32>
    %152 = math.exp %151 : vector<8x64xf32>
    %cst_38 = arith.constant 1.000000e+00 : f32
    %153 = vector.broadcast %cst_38 : f32 to vector<8x64xf32>
    %154 = arith.addf %153, %152 : vector<8x64xf32>
    %155 = arith.divf %153, %154 : vector<8x64xf32>
    %156 = vector.extract_strided_slice %155 {offsets = [0, 0], sizes = [8, 32], strides = [1, 1]} : vector<8x64xf32> to vector<8x32xf32>
    %157 = vector.extract_strided_slice %155 {offsets = [0, 32], sizes = [8, 32], strides = [1, 1]} : vector<8x64xf32> to vector<8x32xf32>
    %158 = vector.extract_strided_slice %144 {offsets = [0, 64], sizes = [8, 32], strides = [1, 1]} : vector<8x96xf32> to vector<8x32xf32>
    %159 = vector.extract_strided_slice %147 {offsets = [0, 64], sizes = [8, 32], strides = [1, 1]} : vector<8x96xf32> to vector<8x32xf32>
    %160 = arith.mulf %156, %159 : vector<8x32xf32>
    %161 = arith.addf %158, %160 : vector<8x32xf32>
    %162 = math.tanh %161 : vector<8x32xf32>
    %cst_39 = arith.constant 1.000000e+00 : f32
    %163 = vector.broadcast %cst_39 : f32 to vector<8x32xf32>
    %164 = arith.subf %163, %157 : vector<8x32xf32>
    %165 = arith.mulf %164, %162 : vector<8x32xf32>
    %166 = arith.mulf %157, %139 : vector<8x32xf32>
    %167 = arith.addf %165, %166 : vector<8x32xf32>
    %c0_40 = arith.constant 0 : index
    %c4 = arith.constant 4 : index
    %c0_41 = arith.constant 0 : index
    %168 = vector.load %arg19[%c0_40, %c4, %c0_41] : memref<8x16x32xf32, #tpu.memory_space<vmem>>, vector<8x1x32xf32>
    %169 = vector.shape_cast %168 : vector<8x1x32xf32> to vector<8x32xf32>
    %170 = vector.shape_cast %167 : vector<8x32xf32> to vector<8x1x32xf32>
    tpu.vector_store %arg19[%c0_40, %c4, %c0_41], %170 {strides = array<i32>} : memref<8x16x32xf32, #tpu.memory_space<vmem>>, vector<8x1x32xf32>,
    %171 = vector.extract_strided_slice %27 {offsets = [5, 0, 0], sizes = [1, 8, 96], strides = [1, 1, 1]} : vector<16x8x96xf32> to vector<1x8x96xf32>
    %172 = vector.shape_cast %171 : vector<1x8x96xf32> to vector<8x96xf32>
    %cst_42 = arith.constant dense<0.000000e+00> : vector<8x96xf32>
    %173 = tpu.matmul %167, %28, %cst_42 {dimension_numbers = #tpu.dot_dimension_numbers<[1], [0], [0], [1], [0, 0, 1, 1], [], []>} : vector<8x32xf32>, vector<32x96xf32>, vector<8x96xf32> -> vector<8x96xf32>
    %174 = vector.broadcast %29 : vector<1x96xf32> to vector<8x96xf32>
    %175 = arith.addf %173, %174 : vector<8x96xf32>
    %176 = vector.extract_strided_slice %172 {offsets = [0, 0], sizes = [8, 64], strides = [1, 1]} : vector<8x96xf32> to vector<8x64xf32>
    %177 = vector.extract_strided_slice %175 {offsets = [0, 0], sizes = [8, 64], strides = [1, 1]} : vector<8x96xf32> to vector<8x64xf32>
    %178 = arith.addf %176, %177 : vector<8x64xf32>
    %179 = arith.negf %178 : vector<8x64xf32>
    %180 = math.exp %179 : vector<8x64xf32>
    %cst_43 = arith.constant 1.000000e+00 : f32
    %181 = vector.broadcast %cst_43 : f32 to vector<8x64xf32>
    %182 = arith.addf %181, %180 : vector<8x64xf32>
    %183 = arith.divf %181, %182 : vector<8x64xf32>
    %184 = vector.extract_strided_slice %183 {offsets = [0, 0], sizes = [8, 32], strides = [1, 1]} : vector<8x64xf32> to vector<8x32xf32>
    %185 = vector.extract_strided_slice %183 {offsets = [0, 32], sizes = [8, 32], strides = [1, 1]} : vector<8x64xf32> to vector<8x32xf32>
    %186 = vector.extract_strided_slice %172 {offsets = [0, 64], sizes = [8, 32], strides = [1, 1]} : vector<8x96xf32> to vector<8x32xf32>
    %187 = vector.extract_strided_slice %175 {offsets = [0, 64], sizes = [8, 32], strides = [1, 1]} : vector<8x96xf32> to vector<8x32xf32>
    %188 = arith.mulf %184, %187 : vector<8x32xf32>
    %189 = arith.addf %186, %188 : vector<8x32xf32>
    %190 = math.tanh %189 : vector<8x32xf32>
    %cst_44 = arith.constant 1.000000e+00 : f32
    %191 = vector.broadcast %cst_44 : f32 to vector<8x32xf32>
    %192 = arith.subf %191, %185 : vector<8x32xf32>
    %193 = arith.mulf %192, %190 : vector<8x32xf32>
    %194 = arith.mulf %185, %167 : vector<8x32xf32>
    %195 = arith.addf %193, %194 : vector<8x32xf32>
    %c0_45 = arith.constant 0 : index
    %c5 = arith.constant 5 : index
    %c0_46 = arith.constant 0 : index
    %196 = vector.load %arg19[%c0_45, %c5, %c0_46] : memref<8x16x32xf32, #tpu.memory_space<vmem>>, vector<8x1x32xf32>
    %197 = vector.shape_cast %196 : vector<8x1x32xf32> to vector<8x32xf32>
    %198 = vector.shape_cast %195 : vector<8x32xf32> to vector<8x1x32xf32>
    tpu.vector_store %arg19[%c0_45, %c5, %c0_46], %198 {strides = array<i32>} : memref<8x16x32xf32, #tpu.memory_space<vmem>>, vector<8x1x32xf32>,
    %199 = vector.extract_strided_slice %27 {offsets = [6, 0, 0], sizes = [1, 8, 96], strides = [1, 1, 1]} : vector<16x8x96xf32> to vector<1x8x96xf32>
    %200 = vector.shape_cast %199 : vector<1x8x96xf32> to vector<8x96xf32>
    %cst_47 = arith.constant dense<0.000000e+00> : vector<8x96xf32>
    %201 = tpu.matmul %195, %28, %cst_47 {dimension_numbers = #tpu.dot_dimension_numbers<[1], [0], [0], [1], [0, 0, 1, 1], [], []>} : vector<8x32xf32>, vector<32x96xf32>, vector<8x96xf32> -> vector<8x96xf32>
    %202 = vector.broadcast %29 : vector<1x96xf32> to vector<8x96xf32>
    %203 = arith.addf %201, %202 : vector<8x96xf32>
    %204 = vector.extract_strided_slice %200 {offsets = [0, 0], sizes = [8, 64], strides = [1, 1]} : vector<8x96xf32> to vector<8x64xf32>
    %205 = vector.extract_strided_slice %203 {offsets = [0, 0], sizes = [8, 64], strides = [1, 1]} : vector<8x96xf32> to vector<8x64xf32>
    %206 = arith.addf %204, %205 : vector<8x64xf32>
    %207 = arith.negf %206 : vector<8x64xf32>
    %208 = math.exp %207 : vector<8x64xf32>
    %cst_48 = arith.constant 1.000000e+00 : f32
    %209 = vector.broadcast %cst_48 : f32 to vector<8x64xf32>
    %210 = arith.addf %209, %208 : vector<8x64xf32>
    %211 = arith.divf %209, %210 : vector<8x64xf32>
    %212 = vector.extract_strided_slice %211 {offsets = [0, 0], sizes = [8, 32], strides = [1, 1]} : vector<8x64xf32> to vector<8x32xf32>
    %213 = vector.extract_strided_slice %211 {offsets = [0, 32], sizes = [8, 32], strides = [1, 1]} : vector<8x64xf32> to vector<8x32xf32>
    %214 = vector.extract_strided_slice %200 {offsets = [0, 64], sizes = [8, 32], strides = [1, 1]} : vector<8x96xf32> to vector<8x32xf32>
    %215 = vector.extract_strided_slice %203 {offsets = [0, 64], sizes = [8, 32], strides = [1, 1]} : vector<8x96xf32> to vector<8x32xf32>
    %216 = arith.mulf %212, %215 : vector<8x32xf32>
    %217 = arith.addf %214, %216 : vector<8x32xf32>
    %218 = math.tanh %217 : vector<8x32xf32>
    %cst_49 = arith.constant 1.000000e+00 : f32
    %219 = vector.broadcast %cst_49 : f32 to vector<8x32xf32>
    %220 = arith.subf %219, %213 : vector<8x32xf32>
    %221 = arith.mulf %220, %218 : vector<8x32xf32>
    %222 = arith.mulf %213, %195 : vector<8x32xf32>
    %223 = arith.addf %221, %222 : vector<8x32xf32>
    %c0_50 = arith.constant 0 : index
    %c6 = arith.constant 6 : index
    %c0_51 = arith.constant 0 : index
    %224 = vector.load %arg19[%c0_50, %c6, %c0_51] : memref<8x16x32xf32, #tpu.memory_space<vmem>>, vector<8x1x32xf32>
    %225 = vector.shape_cast %224 : vector<8x1x32xf32> to vector<8x32xf32>
    %226 = vector.shape_cast %223 : vector<8x32xf32> to vector<8x1x32xf32>
    tpu.vector_store %arg19[%c0_50, %c6, %c0_51], %226 {strides = array<i32>} : memref<8x16x32xf32, #tpu.memory_space<vmem>>, vector<8x1x32xf32>,
    %227 = vector.extract_strided_slice %27 {offsets = [7, 0, 0], sizes = [1, 8, 96], strides = [1, 1, 1]} : vector<16x8x96xf32> to vector<1x8x96xf32>
    %228 = vector.shape_cast %227 : vector<1x8x96xf32> to vector<8x96xf32>
    %cst_52 = arith.constant dense<0.000000e+00> : vector<8x96xf32>
    %229 = tpu.matmul %223, %28, %cst_52 {dimension_numbers = #tpu.dot_dimension_numbers<[1], [0], [0], [1], [0, 0, 1, 1], [], []>} : vector<8x32xf32>, vector<32x96xf32>, vector<8x96xf32> -> vector<8x96xf32>
    %230 = vector.broadcast %29 : vector<1x96xf32> to vector<8x96xf32>
    %231 = arith.addf %229, %230 : vector<8x96xf32>
    %232 = vector.extract_strided_slice %228 {offsets = [0, 0], sizes = [8, 64], strides = [1, 1]} : vector<8x96xf32> to vector<8x64xf32>
    %233 = vector.extract_strided_slice %231 {offsets = [0, 0], sizes = [8, 64], strides = [1, 1]} : vector<8x96xf32> to vector<8x64xf32>
    %234 = arith.addf %232, %233 : vector<8x64xf32>
    %235 = arith.negf %234 : vector<8x64xf32>
    %236 = math.exp %235 : vector<8x64xf32>
    %cst_53 = arith.constant 1.000000e+00 : f32
    %237 = vector.broadcast %cst_53 : f32 to vector<8x64xf32>
    %238 = arith.addf %237, %236 : vector<8x64xf32>
    %239 = arith.divf %237, %238 : vector<8x64xf32>
    %240 = vector.extract_strided_slice %239 {offsets = [0, 0], sizes = [8, 32], strides = [1, 1]} : vector<8x64xf32> to vector<8x32xf32>
    %241 = vector.extract_strided_slice %239 {offsets = [0, 32], sizes = [8, 32], strides = [1, 1]} : vector<8x64xf32> to vector<8x32xf32>
    %242 = vector.extract_strided_slice %228 {offsets = [0, 64], sizes = [8, 32], strides = [1, 1]} : vector<8x96xf32> to vector<8x32xf32>
    %243 = vector.extract_strided_slice %231 {offsets = [0, 64], sizes = [8, 32], strides = [1, 1]} : vector<8x96xf32> to vector<8x32xf32>
    %244 = arith.mulf %240, %243 : vector<8x32xf32>
    %245 = arith.addf %242, %244 : vector<8x32xf32>
    %246 = math.tanh %245 : vector<8x32xf32>
    %cst_54 = arith.constant 1.000000e+00 : f32
    %247 = vector.broadcast %cst_54 : f32 to vector<8x32xf32>
    %248 = arith.subf %247, %241 : vector<8x32xf32>
    %249 = arith.mulf %248, %246 : vector<8x32xf32>
    %250 = arith.mulf %241, %223 : vector<8x32xf32>
    %251 = arith.addf %249, %250 : vector<8x32xf32>
    %c0_55 = arith.constant 0 : index
    %c7 = arith.constant 7 : index
    %c0_56 = arith.constant 0 : index
    %252 = vector.load %arg19[%c0_55, %c7, %c0_56] : memref<8x16x32xf32, #tpu.memory_space<vmem>>, vector<8x1x32xf32>
    %253 = vector.shape_cast %252 : vector<8x1x32xf32> to vector<8x32xf32>
    %254 = vector.shape_cast %251 : vector<8x32xf32> to vector<8x1x32xf32>
    tpu.vector_store %arg19[%c0_55, %c7, %c0_56], %254 {strides = array<i32>} : memref<8x16x32xf32, #tpu.memory_space<vmem>>, vector<8x1x32xf32>,
    %255 = vector.extract_strided_slice %27 {offsets = [8, 0, 0], sizes = [1, 8, 96], strides = [1, 1, 1]} : vector<16x8x96xf32> to vector<1x8x96xf32>
    %256 = vector.shape_cast %255 : vector<1x8x96xf32> to vector<8x96xf32>
    %cst_57 = arith.constant dense<0.000000e+00> : vector<8x96xf32>
    %257 = tpu.matmul %251, %28, %cst_57 {dimension_numbers = #tpu.dot_dimension_numbers<[1], [0], [0], [1], [0, 0, 1, 1], [], []>} : vector<8x32xf32>, vector<32x96xf32>, vector<8x96xf32> -> vector<8x96xf32>
    %258 = vector.broadcast %29 : vector<1x96xf32> to vector<8x96xf32>
    %259 = arith.addf %257, %258 : vector<8x96xf32>
    %260 = vector.extract_strided_slice %256 {offsets = [0, 0], sizes = [8, 64], strides = [1, 1]} : vector<8x96xf32> to vector<8x64xf32>
    %261 = vector.extract_strided_slice %259 {offsets = [0, 0], sizes = [8, 64], strides = [1, 1]} : vector<8x96xf32> to vector<8x64xf32>
    %262 = arith.addf %260, %261 : vector<8x64xf32>
    %263 = arith.negf %262 : vector<8x64xf32>
    %264 = math.exp %263 : vector<8x64xf32>
    %cst_58 = arith.constant 1.000000e+00 : f32
    %265 = vector.broadcast %cst_58 : f32 to vector<8x64xf32>
    %266 = arith.addf %265, %264 : vector<8x64xf32>
    %267 = arith.divf %265, %266 : vector<8x64xf32>
    %268 = vector.extract_strided_slice %267 {offsets = [0, 0], sizes = [8, 32], strides = [1, 1]} : vector<8x64xf32> to vector<8x32xf32>
    %269 = vector.extract_strided_slice %267 {offsets = [0, 32], sizes = [8, 32], strides = [1, 1]} : vector<8x64xf32> to vector<8x32xf32>
    %270 = vector.extract_strided_slice %256 {offsets = [0, 64], sizes = [8, 32], strides = [1, 1]} : vector<8x96xf32> to vector<8x32xf32>
    %271 = vector.extract_strided_slice %259 {offsets = [0, 64], sizes = [8, 32], strides = [1, 1]} : vector<8x96xf32> to vector<8x32xf32>
    %272 = arith.mulf %268, %271 : vector<8x32xf32>
    %273 = arith.addf %270, %272 : vector<8x32xf32>
    %274 = math.tanh %273 : vector<8x32xf32>
    %cst_59 = arith.constant 1.000000e+00 : f32
    %275 = vector.broadcast %cst_59 : f32 to vector<8x32xf32>
    %276 = arith.subf %275, %269 : vector<8x32xf32>
    %277 = arith.mulf %276, %274 : vector<8x32xf32>
    %278 = arith.mulf %269, %251 : vector<8x32xf32>
    %279 = arith.addf %277, %278 : vector<8x32xf32>
    %c0_60 = arith.constant 0 : index
    %c8 = arith.constant 8 : index
    %c0_61 = arith.constant 0 : index
    %280 = vector.load %arg19[%c0_60, %c8, %c0_61] : memref<8x16x32xf32, #tpu.memory_space<vmem>>, vector<8x1x32xf32>
    %281 = vector.shape_cast %280 : vector<8x1x32xf32> to vector<8x32xf32>
    %282 = vector.shape_cast %279 : vector<8x32xf32> to vector<8x1x32xf32>
    tpu.vector_store %arg19[%c0_60, %c8, %c0_61], %282 {strides = array<i32>} : memref<8x16x32xf32, #tpu.memory_space<vmem>>, vector<8x1x32xf32>,
    %283 = vector.extract_strided_slice %27 {offsets = [9, 0, 0], sizes = [1, 8, 96], strides = [1, 1, 1]} : vector<16x8x96xf32> to vector<1x8x96xf32>
    %284 = vector.shape_cast %283 : vector<1x8x96xf32> to vector<8x96xf32>
    %cst_62 = arith.constant dense<0.000000e+00> : vector<8x96xf32>
    %285 = tpu.matmul %279, %28, %cst_62 {dimension_numbers = #tpu.dot_dimension_numbers<[1], [0], [0], [1], [0, 0, 1, 1], [], []>} : vector<8x32xf32>, vector<32x96xf32>, vector<8x96xf32> -> vector<8x96xf32>
    %286 = vector.broadcast %29 : vector<1x96xf32> to vector<8x96xf32>
    %287 = arith.addf %285, %286 : vector<8x96xf32>
    %288 = vector.extract_strided_slice %284 {offsets = [0, 0], sizes = [8, 64], strides = [1, 1]} : vector<8x96xf32> to vector<8x64xf32>
    %289 = vector.extract_strided_slice %287 {offsets = [0, 0], sizes = [8, 64], strides = [1, 1]} : vector<8x96xf32> to vector<8x64xf32>
    %290 = arith.addf %288, %289 : vector<8x64xf32>
    %291 = arith.negf %290 : vector<8x64xf32>
    %292 = math.exp %291 : vector<8x64xf32>
    %cst_63 = arith.constant 1.000000e+00 : f32
    %293 = vector.broadcast %cst_63 : f32 to vector<8x64xf32>
    %294 = arith.addf %293, %292 : vector<8x64xf32>
    %295 = arith.divf %293, %294 : vector<8x64xf32>
    %296 = vector.extract_strided_slice %295 {offsets = [0, 0], sizes = [8, 32], strides = [1, 1]} : vector<8x64xf32> to vector<8x32xf32>
    %297 = vector.extract_strided_slice %295 {offsets = [0, 32], sizes = [8, 32], strides = [1, 1]} : vector<8x64xf32> to vector<8x32xf32>
    %298 = vector.extract_strided_slice %284 {offsets = [0, 64], sizes = [8, 32], strides = [1, 1]} : vector<8x96xf32> to vector<8x32xf32>
    %299 = vector.extract_strided_slice %287 {offsets = [0, 64], sizes = [8, 32], strides = [1, 1]} : vector<8x96xf32> to vector<8x32xf32>
    %300 = arith.mulf %296, %299 : vector<8x32xf32>
    %301 = arith.addf %298, %300 : vector<8x32xf32>
    %302 = math.tanh %301 : vector<8x32xf32>
    %cst_64 = arith.constant 1.000000e+00 : f32
    %303 = vector.broadcast %cst_64 : f32 to vector<8x32xf32>
    %304 = arith.subf %303, %297 : vector<8x32xf32>
    %305 = arith.mulf %304, %302 : vector<8x32xf32>
    %306 = arith.mulf %297, %279 : vector<8x32xf32>
    %307 = arith.addf %305, %306 : vector<8x32xf32>
    %c0_65 = arith.constant 0 : index
    %c9 = arith.constant 9 : index
    %c0_66 = arith.constant 0 : index
    %308 = vector.load %arg19[%c0_65, %c9, %c0_66] : memref<8x16x32xf32, #tpu.memory_space<vmem>>, vector<8x1x32xf32>
    %309 = vector.shape_cast %308 : vector<8x1x32xf32> to vector<8x32xf32>
    %310 = vector.shape_cast %307 : vector<8x32xf32> to vector<8x1x32xf32>
    tpu.vector_store %arg19[%c0_65, %c9, %c0_66], %310 {strides = array<i32>} : memref<8x16x32xf32, #tpu.memory_space<vmem>>, vector<8x1x32xf32>,
    %311 = vector.extract_strided_slice %27 {offsets = [10, 0, 0], sizes = [1, 8, 96], strides = [1, 1, 1]} : vector<16x8x96xf32> to vector<1x8x96xf32>
    %312 = vector.shape_cast %311 : vector<1x8x96xf32> to vector<8x96xf32>
    %cst_67 = arith.constant dense<0.000000e+00> : vector<8x96xf32>
    %313 = tpu.matmul %307, %28, %cst_67 {dimension_numbers = #tpu.dot_dimension_numbers<[1], [0], [0], [1], [0, 0, 1, 1], [], []>} : vector<8x32xf32>, vector<32x96xf32>, vector<8x96xf32> -> vector<8x96xf32>
    %314 = vector.broadcast %29 : vector<1x96xf32> to vector<8x96xf32>
    %315 = arith.addf %313, %314 : vector<8x96xf32>
    %316 = vector.extract_strided_slice %312 {offsets = [0, 0], sizes = [8, 64], strides = [1, 1]} : vector<8x96xf32> to vector<8x64xf32>
    %317 = vector.extract_strided_slice %315 {offsets = [0, 0], sizes = [8, 64], strides = [1, 1]} : vector<8x96xf32> to vector<8x64xf32>
    %318 = arith.addf %316, %317 : vector<8x64xf32>
    %319 = arith.negf %318 : vector<8x64xf32>
    %320 = math.exp %319 : vector<8x64xf32>
    %cst_68 = arith.constant 1.000000e+00 : f32
    %321 = vector.broadcast %cst_68 : f32 to vector<8x64xf32>
    %322 = arith.addf %321, %320 : vector<8x64xf32>
    %323 = arith.divf %321, %322 : vector<8x64xf32>
    %324 = vector.extract_strided_slice %323 {offsets = [0, 0], sizes = [8, 32], strides = [1, 1]} : vector<8x64xf32> to vector<8x32xf32>
    %325 = vector.extract_strided_slice %323 {offsets = [0, 32], sizes = [8, 32], strides = [1, 1]} : vector<8x64xf32> to vector<8x32xf32>
    %326 = vector.extract_strided_slice %312 {offsets = [0, 64], sizes = [8, 32], strides = [1, 1]} : vector<8x96xf32> to vector<8x32xf32>
    %327 = vector.extract_strided_slice %315 {offsets = [0, 64], sizes = [8, 32], strides = [1, 1]} : vector<8x96xf32> to vector<8x32xf32>
    %328 = arith.mulf %324, %327 : vector<8x32xf32>
    %329 = arith.addf %326, %328 : vector<8x32xf32>
    %330 = math.tanh %329 : vector<8x32xf32>
    %cst_69 = arith.constant 1.000000e+00 : f32
    %331 = vector.broadcast %cst_69 : f32 to vector<8x32xf32>
    %332 = arith.subf %331, %325 : vector<8x32xf32>
    %333 = arith.mulf %332, %330 : vector<8x32xf32>
    %334 = arith.mulf %325, %307 : vector<8x32xf32>
    %335 = arith.addf %333, %334 : vector<8x32xf32>
    %c0_70 = arith.constant 0 : index
    %c10 = arith.constant 10 : index
    %c0_71 = arith.constant 0 : index
    %336 = vector.load %arg19[%c0_70, %c10, %c0_71] : memref<8x16x32xf32, #tpu.memory_space<vmem>>, vector<8x1x32xf32>
    %337 = vector.shape_cast %336 : vector<8x1x32xf32> to vector<8x32xf32>
    %338 = vector.shape_cast %335 : vector<8x32xf32> to vector<8x1x32xf32>
    tpu.vector_store %arg19[%c0_70, %c10, %c0_71], %338 {strides = array<i32>} : memref<8x16x32xf32, #tpu.memory_space<vmem>>, vector<8x1x32xf32>,
    %339 = vector.extract_strided_slice %27 {offsets = [11, 0, 0], sizes = [1, 8, 96], strides = [1, 1, 1]} : vector<16x8x96xf32> to vector<1x8x96xf32>
    %340 = vector.shape_cast %339 : vector<1x8x96xf32> to vector<8x96xf32>
    %cst_72 = arith.constant dense<0.000000e+00> : vector<8x96xf32>
    %341 = tpu.matmul %335, %28, %cst_72 {dimension_numbers = #tpu.dot_dimension_numbers<[1], [0], [0], [1], [0, 0, 1, 1], [], []>} : vector<8x32xf32>, vector<32x96xf32>, vector<8x96xf32> -> vector<8x96xf32>
    %342 = vector.broadcast %29 : vector<1x96xf32> to vector<8x96xf32>
    %343 = arith.addf %341, %342 : vector<8x96xf32>
    %344 = vector.extract_strided_slice %340 {offsets = [0, 0], sizes = [8, 64], strides = [1, 1]} : vector<8x96xf32> to vector<8x64xf32>
    %345 = vector.extract_strided_slice %343 {offsets = [0, 0], sizes = [8, 64], strides = [1, 1]} : vector<8x96xf32> to vector<8x64xf32>
    %346 = arith.addf %344, %345 : vector<8x64xf32>
    %347 = arith.negf %346 : vector<8x64xf32>
    %348 = math.exp %347 : vector<8x64xf32>
    %cst_73 = arith.constant 1.000000e+00 : f32
    %349 = vector.broadcast %cst_73 : f32 to vector<8x64xf32>
    %350 = arith.addf %349, %348 : vector<8x64xf32>
    %351 = arith.divf %349, %350 : vector<8x64xf32>
    %352 = vector.extract_strided_slice %351 {offsets = [0, 0], sizes = [8, 32], strides = [1, 1]} : vector<8x64xf32> to vector<8x32xf32>
    %353 = vector.extract_strided_slice %351 {offsets = [0, 32], sizes = [8, 32], strides = [1, 1]} : vector<8x64xf32> to vector<8x32xf32>
    %354 = vector.extract_strided_slice %340 {offsets = [0, 64], sizes = [8, 32], strides = [1, 1]} : vector<8x96xf32> to vector<8x32xf32>
    %355 = vector.extract_strided_slice %343 {offsets = [0, 64], sizes = [8, 32], strides = [1, 1]} : vector<8x96xf32> to vector<8x32xf32>
    %356 = arith.mulf %352, %355 : vector<8x32xf32>
    %357 = arith.addf %354, %356 : vector<8x32xf32>
    %358 = math.tanh %357 : vector<8x32xf32>
    %cst_74 = arith.constant 1.000000e+00 : f32
    %359 = vector.broadcast %cst_74 : f32 to vector<8x32xf32>
    %360 = arith.subf %359, %353 : vector<8x32xf32>
    %361 = arith.mulf %360, %358 : vector<8x32xf32>
    %362 = arith.mulf %353, %335 : vector<8x32xf32>
    %363 = arith.addf %361, %362 : vector<8x32xf32>
    %c0_75 = arith.constant 0 : index
    %c11 = arith.constant 11 : index
    %c0_76 = arith.constant 0 : index
    %364 = vector.load %arg19[%c0_75, %c11, %c0_76] : memref<8x16x32xf32, #tpu.memory_space<vmem>>, vector<8x1x32xf32>
    %365 = vector.shape_cast %364 : vector<8x1x32xf32> to vector<8x32xf32>
    %366 = vector.shape_cast %363 : vector<8x32xf32> to vector<8x1x32xf32>
    tpu.vector_store %arg19[%c0_75, %c11, %c0_76], %366 {strides = array<i32>} : memref<8x16x32xf32, #tpu.memory_space<vmem>>, vector<8x1x32xf32>,
    %367 = vector.extract_strided_slice %27 {offsets = [12, 0, 0], sizes = [1, 8, 96], strides = [1, 1, 1]} : vector<16x8x96xf32> to vector<1x8x96xf32>
    %368 = vector.shape_cast %367 : vector<1x8x96xf32> to vector<8x96xf32>
    %cst_77 = arith.constant dense<0.000000e+00> : vector<8x96xf32>
    %369 = tpu.matmul %363, %28, %cst_77 {dimension_numbers = #tpu.dot_dimension_numbers<[1], [0], [0], [1], [0, 0, 1, 1], [], []>} : vector<8x32xf32>, vector<32x96xf32>, vector<8x96xf32> -> vector<8x96xf32>
    %370 = vector.broadcast %29 : vector<1x96xf32> to vector<8x96xf32>
    %371 = arith.addf %369, %370 : vector<8x96xf32>
    %372 = vector.extract_strided_slice %368 {offsets = [0, 0], sizes = [8, 64], strides = [1, 1]} : vector<8x96xf32> to vector<8x64xf32>
    %373 = vector.extract_strided_slice %371 {offsets = [0, 0], sizes = [8, 64], strides = [1, 1]} : vector<8x96xf32> to vector<8x64xf32>
    %374 = arith.addf %372, %373 : vector<8x64xf32>
    %375 = arith.negf %374 : vector<8x64xf32>
    %376 = math.exp %375 : vector<8x64xf32>
    %cst_78 = arith.constant 1.000000e+00 : f32
    %377 = vector.broadcast %cst_78 : f32 to vector<8x64xf32>
    %378 = arith.addf %377, %376 : vector<8x64xf32>
    %379 = arith.divf %377, %378 : vector<8x64xf32>
    %380 = vector.extract_strided_slice %379 {offsets = [0, 0], sizes = [8, 32], strides = [1, 1]} : vector<8x64xf32> to vector<8x32xf32>
    %381 = vector.extract_strided_slice %379 {offsets = [0, 32], sizes = [8, 32], strides = [1, 1]} : vector<8x64xf32> to vector<8x32xf32>
    %382 = vector.extract_strided_slice %368 {offsets = [0, 64], sizes = [8, 32], strides = [1, 1]} : vector<8x96xf32> to vector<8x32xf32>
    %383 = vector.extract_strided_slice %371 {offsets = [0, 64], sizes = [8, 32], strides = [1, 1]} : vector<8x96xf32> to vector<8x32xf32>
    %384 = arith.mulf %380, %383 : vector<8x32xf32>
    %385 = arith.addf %382, %384 : vector<8x32xf32>
    %386 = math.tanh %385 : vector<8x32xf32>
    %cst_79 = arith.constant 1.000000e+00 : f32
    %387 = vector.broadcast %cst_79 : f32 to vector<8x32xf32>
    %388 = arith.subf %387, %381 : vector<8x32xf32>
    %389 = arith.mulf %388, %386 : vector<8x32xf32>
    %390 = arith.mulf %381, %363 : vector<8x32xf32>
    %391 = arith.addf %389, %390 : vector<8x32xf32>
    %c0_80 = arith.constant 0 : index
    %c12 = arith.constant 12 : index
    %c0_81 = arith.constant 0 : index
    %392 = vector.load %arg19[%c0_80, %c12, %c0_81] : memref<8x16x32xf32, #tpu.memory_space<vmem>>, vector<8x1x32xf32>
    %393 = vector.shape_cast %392 : vector<8x1x32xf32> to vector<8x32xf32>
    %394 = vector.shape_cast %391 : vector<8x32xf32> to vector<8x1x32xf32>
    tpu.vector_store %arg19[%c0_80, %c12, %c0_81], %394 {strides = array<i32>} : memref<8x16x32xf32, #tpu.memory_space<vmem>>, vector<8x1x32xf32>,
    %395 = vector.extract_strided_slice %27 {offsets = [13, 0, 0], sizes = [1, 8, 96], strides = [1, 1, 1]} : vector<16x8x96xf32> to vector<1x8x96xf32>
    %396 = vector.shape_cast %395 : vector<1x8x96xf32> to vector<8x96xf32>
    %cst_82 = arith.constant dense<0.000000e+00> : vector<8x96xf32>
    %397 = tpu.matmul %391, %28, %cst_82 {dimension_numbers = #tpu.dot_dimension_numbers<[1], [0], [0], [1], [0, 0, 1, 1], [], []>} : vector<8x32xf32>, vector<32x96xf32>, vector<8x96xf32> -> vector<8x96xf32>
    %398 = vector.broadcast %29 : vector<1x96xf32> to vector<8x96xf32>
    %399 = arith.addf %397, %398 : vector<8x96xf32>
    %400 = vector.extract_strided_slice %396 {offsets = [0, 0], sizes = [8, 64], strides = [1, 1]} : vector<8x96xf32> to vector<8x64xf32>
    %401 = vector.extract_strided_slice %399 {offsets = [0, 0], sizes = [8, 64], strides = [1, 1]} : vector<8x96xf32> to vector<8x64xf32>
    %402 = arith.addf %400, %401 : vector<8x64xf32>
    %403 = arith.negf %402 : vector<8x64xf32>
    %404 = math.exp %403 : vector<8x64xf32>
    %cst_83 = arith.constant 1.000000e+00 : f32
    %405 = vector.broadcast %cst_83 : f32 to vector<8x64xf32>
    %406 = arith.addf %405, %404 : vector<8x64xf32>
    %407 = arith.divf %405, %406 : vector<8x64xf32>
    %408 = vector.extract_strided_slice %407 {offsets = [0, 0], sizes = [8, 32], strides = [1, 1]} : vector<8x64xf32> to vector<8x32xf32>
    %409 = vector.extract_strided_slice %407 {offsets = [0, 32], sizes = [8, 32], strides = [1, 1]} : vector<8x64xf32> to vector<8x32xf32>
    %410 = vector.extract_strided_slice %396 {offsets = [0, 64], sizes = [8, 32], strides = [1, 1]} : vector<8x96xf32> to vector<8x32xf32>
    %411 = vector.extract_strided_slice %399 {offsets = [0, 64], sizes = [8, 32], strides = [1, 1]} : vector<8x96xf32> to vector<8x32xf32>
    %412 = arith.mulf %408, %411 : vector<8x32xf32>
    %413 = arith.addf %410, %412 : vector<8x32xf32>
    %414 = math.tanh %413 : vector<8x32xf32>
    %cst_84 = arith.constant 1.000000e+00 : f32
    %415 = vector.broadcast %cst_84 : f32 to vector<8x32xf32>
    %416 = arith.subf %415, %409 : vector<8x32xf32>
    %417 = arith.mulf %416, %414 : vector<8x32xf32>
    %418 = arith.mulf %409, %391 : vector<8x32xf32>
    %419 = arith.addf %417, %418 : vector<8x32xf32>
    %c0_85 = arith.constant 0 : index
    %c13 = arith.constant 13 : index
    %c0_86 = arith.constant 0 : index
    %420 = vector.load %arg19[%c0_85, %c13, %c0_86] : memref<8x16x32xf32, #tpu.memory_space<vmem>>, vector<8x1x32xf32>
    %421 = vector.shape_cast %420 : vector<8x1x32xf32> to vector<8x32xf32>
    %422 = vector.shape_cast %419 : vector<8x32xf32> to vector<8x1x32xf32>
    tpu.vector_store %arg19[%c0_85, %c13, %c0_86], %422 {strides = array<i32>} : memref<8x16x32xf32, #tpu.memory_space<vmem>>, vector<8x1x32xf32>,
    %423 = vector.extract_strided_slice %27 {offsets = [14, 0, 0], sizes = [1, 8, 96], strides = [1, 1, 1]} : vector<16x8x96xf32> to vector<1x8x96xf32>
    %424 = vector.shape_cast %423 : vector<1x8x96xf32> to vector<8x96xf32>
    %cst_87 = arith.constant dense<0.000000e+00> : vector<8x96xf32>
    %425 = tpu.matmul %419, %28, %cst_87 {dimension_numbers = #tpu.dot_dimension_numbers<[1], [0], [0], [1], [0, 0, 1, 1], [], []>} : vector<8x32xf32>, vector<32x96xf32>, vector<8x96xf32> -> vector<8x96xf32>
    %426 = vector.broadcast %29 : vector<1x96xf32> to vector<8x96xf32>
    %427 = arith.addf %425, %426 : vector<8x96xf32>
    %428 = vector.extract_strided_slice %424 {offsets = [0, 0], sizes = [8, 64], strides = [1, 1]} : vector<8x96xf32> to vector<8x64xf32>
    %429 = vector.extract_strided_slice %427 {offsets = [0, 0], sizes = [8, 64], strides = [1, 1]} : vector<8x96xf32> to vector<8x64xf32>
    %430 = arith.addf %428, %429 : vector<8x64xf32>
    %431 = arith.negf %430 : vector<8x64xf32>
    %432 = math.exp %431 : vector<8x64xf32>
    %cst_88 = arith.constant 1.000000e+00 : f32
    %433 = vector.broadcast %cst_88 : f32 to vector<8x64xf32>
    %434 = arith.addf %433, %432 : vector<8x64xf32>
    %435 = arith.divf %433, %434 : vector<8x64xf32>
    %436 = vector.extract_strided_slice %435 {offsets = [0, 0], sizes = [8, 32], strides = [1, 1]} : vector<8x64xf32> to vector<8x32xf32>
    %437 = vector.extract_strided_slice %435 {offsets = [0, 32], sizes = [8, 32], strides = [1, 1]} : vector<8x64xf32> to vector<8x32xf32>
    %438 = vector.extract_strided_slice %424 {offsets = [0, 64], sizes = [8, 32], strides = [1, 1]} : vector<8x96xf32> to vector<8x32xf32>
    %439 = vector.extract_strided_slice %427 {offsets = [0, 64], sizes = [8, 32], strides = [1, 1]} : vector<8x96xf32> to vector<8x32xf32>
    %440 = arith.mulf %436, %439 : vector<8x32xf32>
    %441 = arith.addf %438, %440 : vector<8x32xf32>
    %442 = math.tanh %441 : vector<8x32xf32>
    %cst_89 = arith.constant 1.000000e+00 : f32
    %443 = vector.broadcast %cst_89 : f32 to vector<8x32xf32>
    %444 = arith.subf %443, %437 : vector<8x32xf32>
    %445 = arith.mulf %444, %442 : vector<8x32xf32>
    %446 = arith.mulf %437, %419 : vector<8x32xf32>
    %447 = arith.addf %445, %446 : vector<8x32xf32>
    %c0_90 = arith.constant 0 : index
    %c14 = arith.constant 14 : index
    %c0_91 = arith.constant 0 : index
    %448 = vector.load %arg19[%c0_90, %c14, %c0_91] : memref<8x16x32xf32, #tpu.memory_space<vmem>>, vector<8x1x32xf32>
    %449 = vector.shape_cast %448 : vector<8x1x32xf32> to vector<8x32xf32>
    %450 = vector.shape_cast %447 : vector<8x32xf32> to vector<8x1x32xf32>
    tpu.vector_store %arg19[%c0_90, %c14, %c0_91], %450 {strides = array<i32>} : memref<8x16x32xf32, #tpu.memory_space<vmem>>, vector<8x1x32xf32>,
    %451 = vector.extract_strided_slice %27 {offsets = [15, 0, 0], sizes = [1, 8, 96], strides = [1, 1, 1]} : vector<16x8x96xf32> to vector<1x8x96xf32>
    %452 = vector.shape_cast %451 : vector<1x8x96xf32> to vector<8x96xf32>
    %cst_92 = arith.constant dense<0.000000e+00> : vector<8x96xf32>
    %453 = tpu.matmul %447, %28, %cst_92 {dimension_numbers = #tpu.dot_dimension_numbers<[1], [0], [0], [1], [0, 0, 1, 1], [], []>} : vector<8x32xf32>, vector<32x96xf32>, vector<8x96xf32> -> vector<8x96xf32>
    %454 = vector.broadcast %29 : vector<1x96xf32> to vector<8x96xf32>
    %455 = arith.addf %453, %454 : vector<8x96xf32>
    %456 = vector.extract_strided_slice %452 {offsets = [0, 0], sizes = [8, 64], strides = [1, 1]} : vector<8x96xf32> to vector<8x64xf32>
    %457 = vector.extract_strided_slice %455 {offsets = [0, 0], sizes = [8, 64], strides = [1, 1]} : vector<8x96xf32> to vector<8x64xf32>
    %458 = arith.addf %456, %457 : vector<8x64xf32>
    %459 = arith.negf %458 : vector<8x64xf32>
    %460 = math.exp %459 : vector<8x64xf32>
    %cst_93 = arith.constant 1.000000e+00 : f32
    %461 = vector.broadcast %cst_93 : f32 to vector<8x64xf32>
    %462 = arith.addf %461, %460 : vector<8x64xf32>
    %463 = arith.divf %461, %462 : vector<8x64xf32>
    %464 = vector.extract_strided_slice %463 {offsets = [0, 0], sizes = [8, 32], strides = [1, 1]} : vector<8x64xf32> to vector<8x32xf32>
    %465 = vector.extract_strided_slice %463 {offsets = [0, 32], sizes = [8, 32], strides = [1, 1]} : vector<8x64xf32> to vector<8x32xf32>
    %466 = vector.extract_strided_slice %452 {offsets = [0, 64], sizes = [8, 32], strides = [1, 1]} : vector<8x96xf32> to vector<8x32xf32>
    %467 = vector.extract_strided_slice %455 {offsets = [0, 64], sizes = [8, 32], strides = [1, 1]} : vector<8x96xf32> to vector<8x32xf32>
    %468 = arith.mulf %464, %467 : vector<8x32xf32>
    %469 = arith.addf %466, %468 : vector<8x32xf32>
    %470 = math.tanh %469 : vector<8x32xf32>
    %cst_94 = arith.constant 1.000000e+00 : f32
    %471 = vector.broadcast %cst_94 : f32 to vector<8x32xf32>
    %472 = arith.subf %471, %465 : vector<8x32xf32>
    %473 = arith.mulf %472, %470 : vector<8x32xf32>
    %474 = arith.mulf %465, %447 : vector<8x32xf32>
    %475 = arith.addf %473, %474 : vector<8x32xf32>
    %c0_95 = arith.constant 0 : index
    %c15 = arith.constant 15 : index
    %c0_96 = arith.constant 0 : index
    %476 = vector.load %arg19[%c0_95, %c15, %c0_96] : memref<8x16x32xf32, #tpu.memory_space<vmem>>, vector<8x1x32xf32>
    %477 = vector.shape_cast %476 : vector<8x1x32xf32> to vector<8x32xf32>
    %478 = vector.shape_cast %475 : vector<8x32xf32> to vector<8x1x32xf32>
    tpu.vector_store %arg19[%c0_95, %c15, %c0_96], %478 {strides = array<i32>} : memref<8x16x32xf32, #tpu.memory_space<vmem>>, vector<8x1x32xf32>,
    %c0_97 = arith.constant 0 : index
    %c0_98 = arith.constant 0 : index
    %c0_99 = arith.constant 0 : index
    %479 = vector.load %arg19[%c0_97, %c0_98, %c0_99] : memref<8x16x32xf32, #tpu.memory_space<vmem>>, vector<8x16x32xf32>
    %480 = vector.extract_strided_slice %479 {offsets = [2, 0, 0], sizes = [6, 16, 32], strides = [1, 1, 1]} : vector<8x16x32xf32> to vector<6x16x32xf32>
    %481 = vector.shape_cast %480 : vector<6x16x32xf32> to vector<96x32xf32>
    %c0_100 = arith.constant 0 : index
    %c0_101 = arith.constant 0 : index
    %482 = vector.load %arg7[%c0_100, %c0_101] : memref<32x32xf32, #tpu.memory_space<vmem>>, vector<32x32xf32>
    %cst_102 = arith.constant dense<0.000000e+00> : vector<96x32xf32>
    %483 = tpu.matmul %481, %482, %cst_102 {dimension_numbers = #tpu.dot_dimension_numbers<[1], [0], [0], [1], [0, 0, 1, 1], [], []>} : vector<96x32xf32>, vector<32x32xf32>, vector<96x32xf32> -> vector<96x32xf32>
    %484 = vector.extract_strided_slice %13 {offsets = [2, 0, 0], sizes = [3, 16, 32], strides = [1, 1, 1]} : vector<8x16x32xf32> to vector<3x16x32xf32>
    %485 = vector.shape_cast %484 : vector<3x16x32xf32> to vector<48x32xf32>
    %486 = vector.extract_strided_slice %13 {offsets = [0, 0, 0], sizes = [1, 16, 32], strides = [1, 1, 1]} : vector<8x16x32xf32> to vector<1x16x32xf32>
    %487 = vector.shape_cast %486 : vector<1x16x32xf32> to vector<16x32xf32>
    %488 = vector.extract_strided_slice %479 {offsets = [0, 0, 0], sizes = [1, 16, 32], strides = [1, 1, 1]} : vector<8x16x32xf32> to vector<1x16x32xf32>
    %489 = vector.shape_cast %488 : vector<1x16x32xf32> to vector<16x32xf32>
    %490 = vector.extract_strided_slice %483 {offsets = [0, 0], sizes = [48, 32], strides = [1, 1]} : vector<96x32xf32> to vector<48x32xf32>
    "tpu.trace_start"() <{level = 10 : i32, message = "ie,je->ij"}> : () -> ()
    %cst_103 = arith.constant dense<0.000000e+00> : vector<48x16xf32>
    %491 = tpu.matmul %485, %487, %cst_103 {dimension_numbers = #tpu.dot_dimension_numbers<[1], [1], [0], [0], [0, 0, 1, 0], [], []>} : vector<48x32xf32>, vector<16x32xf32>, vector<48x16xf32> -> vector<48x16xf32>
    "tpu.trace_stop"() : () -> ()
    "tpu.trace_start"() <{level = 10 : i32, message = "ik,jk->ij"}> : () -> ()
    %cst_104 = arith.constant dense<0.000000e+00> : vector<48x16xf32>
    %492 = tpu.matmul %490, %489, %cst_104 {dimension_numbers = #tpu.dot_dimension_numbers<[1], [1], [0], [0], [0, 0, 1, 0], [], []>} : vector<48x32xf32>, vector<16x32xf32>, vector<48x16xf32> -> vector<48x16xf32>
    "tpu.trace_stop"() : () -> ()
    %493 = tpu.concatenate %491, %492 in 1 : vector<48x16xf32>, vector<48x16xf32> -> vector<48x32xf32>
    %494 = vector.extract_strided_slice %13 {offsets = [5, 0, 0], sizes = [3, 16, 32], strides = [1, 1, 1]} : vector<8x16x32xf32> to vector<3x16x32xf32>
    %495 = vector.shape_cast %494 : vector<3x16x32xf32> to vector<48x32xf32>
    %496 = vector.extract_strided_slice %13 {offsets = [1, 0, 0], sizes = [1, 16, 32], strides = [1, 1, 1]} : vector<8x16x32xf32> to vector<1x16x32xf32>
    %497 = vector.shape_cast %496 : vector<1x16x32xf32> to vector<16x32xf32>
    %498 = vector.extract_strided_slice %479 {offsets = [1, 0, 0], sizes = [1, 16, 32], strides = [1, 1, 1]} : vector<8x16x32xf32> to vector<1x16x32xf32>
    %499 = vector.shape_cast %498 : vector<1x16x32xf32> to vector<16x32xf32>
    %500 = vector.extract_strided_slice %483 {offsets = [48, 0], sizes = [48, 32], strides = [1, 1]} : vector<96x32xf32> to vector<48x32xf32>
    "tpu.trace_start"() <{level = 10 : i32, message = "ie,je->ij"}> : () -> ()
    %cst_105 = arith.constant dense<0.000000e+00> : vector<48x16xf32>
    %501 = tpu.matmul %495, %497, %cst_105 {dimension_numbers = #tpu.dot_dimension_numbers<[1], [1], [0], [0], [0, 0, 1, 0], [], []>} : vector<48x32xf32>, vector<16x32xf32>, vector<48x16xf32> -> vector<48x16xf32>
    "tpu.trace_stop"() : () -> ()
    "tpu.trace_start"() <{level = 10 : i32, message = "ik,jk->ij"}> : () -> ()
    %cst_106 = arith.constant dense<0.000000e+00> : vector<48x16xf32>
    %502 = tpu.matmul %500, %499, %cst_106 {dimension_numbers = #tpu.dot_dimension_numbers<[1], [1], [0], [0], [0, 0, 1, 0], [], []>} : vector<48x32xf32>, vector<16x32xf32>, vector<48x16xf32> -> vector<48x16xf32>
    "tpu.trace_stop"() : () -> ()
    %503 = tpu.concatenate %501, %502 in 1 : vector<48x16xf32>, vector<48x16xf32> -> vector<48x32xf32>
    %504 = tpu.concatenate %493, %503 in 0 : vector<48x32xf32>, vector<48x32xf32> -> vector<96x32xf32>
    %505 = vector.shape_cast %504 : vector<96x32xf32> to vector<6x16x32xf32>
    %cst_107 = arith.constant 0.000000e+00 : f32
    %506 = vector.broadcast %cst_107 : f32 to vector<84x112xf32>
    %507 = vector.extract_strided_slice %505 {offsets = [0, 0, 0], sizes = [6, 14, 32], strides = [1, 1, 1]} : vector<6x16x32xf32> to vector<6x14x32xf32>
    %508 = vector.shape_cast %507 : vector<6x14x32xf32> to vector<84x32xf32>
    %c0_108 = arith.constant 0 : index
    %c0_109 = arith.constant 0 : index
    %c0_110 = arith.constant 0 : index
    %509 = vector.load %arg8[%c0_108, %c0_109, %c0_110] : memref<3x32x112xf32, #tpu.memory_space<vmem>>, vector<1x32x112xf32>
    %510 = vector.shape_cast %509 : vector<1x32x112xf32> to vector<32x112xf32>
    %cst_111 = arith.constant dense<0.000000e+00> : vector<84x112xf32>
    %511 = tpu.matmul %508, %510, %cst_111 {dimension_numbers = #tpu.dot_dimension_numbers<[1], [0], [0], [1], [0, 0, 1, 1], [], []>} : vector<84x32xf32>, vector<32x112xf32>, vector<84x112xf32> -> vector<84x112xf32>
    %512 = arith.addf %506, %511 : vector<84x112xf32>
    %513 = vector.extract_strided_slice %505 {offsets = [0, 1, 0], sizes = [6, 14, 32], strides = [1, 1, 1]} : vector<6x16x32xf32> to vector<6x14x32xf32>
    %514 = vector.shape_cast %513 : vector<6x14x32xf32> to vector<84x32xf32>
    %c1_112 = arith.constant 1 : index
    %c0_113 = arith.constant 0 : index
    %c0_114 = arith.constant 0 : index
    %515 = vector.load %arg8[%c1_112, %c0_113, %c0_114] : memref<3x32x112xf32, #tpu.memory_space<vmem>>, vector<1x32x112xf32>
    %516 = vector.shape_cast %515 : vector<1x32x112xf32> to vector<32x112xf32>
    %cst_115 = arith.constant dense<0.000000e+00> : vector<84x112xf32>
    %517 = tpu.matmul %514, %516, %cst_115 {dimension_numbers = #tpu.dot_dimension_numbers<[1], [0], [0], [1], [0, 0, 1, 1], [], []>} : vector<84x32xf32>, vector<32x112xf32>, vector<84x112xf32> -> vector<84x112xf32>
    %518 = arith.addf %512, %517 : vector<84x112xf32>
    %519 = vector.extract_strided_slice %505 {offsets = [0, 2, 0], sizes = [6, 14, 32], strides = [1, 1, 1]} : vector<6x16x32xf32> to vector<6x14x32xf32>
    %520 = vector.shape_cast %519 : vector<6x14x32xf32> to vector<84x32xf32>
    %c2_116 = arith.constant 2 : index
    %c0_117 = arith.constant 0 : index
    %c0_118 = arith.constant 0 : index
    %521 = vector.load %arg8[%c2_116, %c0_117, %c0_118] : memref<3x32x112xf32, #tpu.memory_space<vmem>>, vector<1x32x112xf32>
    %522 = vector.shape_cast %521 : vector<1x32x112xf32> to vector<32x112xf32>
    %cst_119 = arith.constant dense<0.000000e+00> : vector<84x112xf32>
    %523 = tpu.matmul %520, %522, %cst_119 {dimension_numbers = #tpu.dot_dimension_numbers<[1], [0], [0], [1], [0, 0, 1, 1], [], []>} : vector<84x32xf32>, vector<32x112xf32>, vector<84x112xf32> -> vector<84x112xf32>
    %524 = arith.addf %518, %523 : vector<84x112xf32>
    %c0_120 = arith.constant 0 : index
    %c0_121 = arith.constant 0 : index
    %525 = vector.load %arg9[%c0_120, %c0_121] : memref<1x112xf32, #tpu.memory_space<vmem>>, vector<1x112xf32>
    %526 = vector.broadcast %525 : vector<1x112xf32> to vector<84x112xf32>
    %527 = arith.addf %524, %526 : vector<84x112xf32>
    %cst_122 = arith.constant 0.000000e+00 : f32
    %528 = vector.broadcast %cst_122 : f32 to vector<84x112xf32>
    %529 = arith.maximumf %527, %528 : vector<84x112xf32>
    %530 = vector.shape_cast %529 : vector<84x112xf32> to vector<6x14x112xf32>
    %c0_123 = arith.constant 0 : index
    %c0_124 = arith.constant 0 : index
    %c0_125 = arith.constant 0 : index
    %531 = vector.load %arg10[%c0_123, %c0_124, %c0_125] : memref<4x96x16xf32, #tpu.memory_space<vmem>>, vector<4x96x16xf32>
    %cst_126 = arith.constant 0.000000e+00 : f32
    %532 = vector.broadcast %cst_126 : f32 to vector<6x16xf32>
    %533 = vector.extract_strided_slice %530 {offsets = [0, 0, 0], sizes = [6, 1, 112], strides = [1, 1, 1]} : vector<6x14x112xf32> to vector<6x1x112xf32>
    %534 = vector.shape_cast %533 : vector<6x1x112xf32> to vector<6x112xf32>
    %535 = vector.extract_strided_slice %530 {offsets = [0, 1, 0], sizes = [6, 1, 112], strides = [1, 1, 1]} : vector<6x14x112xf32> to vector<6x1x112xf32>
    %536 = vector.shape_cast %535 : vector<6x1x112xf32> to vector<6x112xf32>
    %537 = arith.maximumf %534, %536 : vector<6x112xf32>
    %538 = vector.extract_strided_slice %530 {offsets = [0, 2, 0], sizes = [6, 1, 112], strides = [1, 1, 1]} : vector<6x14x112xf32> to vector<6x1x112xf32>
    %539 = vector.shape_cast %538 : vector<6x1x112xf32> to vector<6x112xf32>
    %540 = arith.maximumf %537, %539 : vector<6x112xf32>
    %541 = vector.extract_strided_slice %540 {offsets = [0, 0], sizes = [6, 96], strides = [1, 1]} : vector<6x112xf32> to vector<6x96xf32>
    %542 = vector.extract_strided_slice %540 {offsets = [0, 8], sizes = [6, 96], strides = [1, 1]} : vector<6x112xf32> to vector<6x96xf32>
    %543 = arith.maximumf %541, %542 : vector<6x96xf32>
    %544 = vector.extract_strided_slice %540 {offsets = [0, 16], sizes = [6, 96], strides = [1, 1]} : vector<6x112xf32> to vector<6x96xf32>
    %545 = arith.maximumf %543, %544 : vector<6x96xf32>
    %546 = vector.extract_strided_slice %531 {offsets = [0, 0, 0], sizes = [1, 96, 16], strides = [1, 1, 1]} : vector<4x96x16xf32> to vector<1x96x16xf32>
    %547 = vector.shape_cast %546 : vector<1x96x16xf32> to vector<96x16xf32>
    %cst_127 = arith.constant dense<0.000000e+00> : vector<6x16xf32>
    %548 = tpu.matmul %545, %547, %cst_127 {dimension_numbers = #tpu.dot_dimension_numbers<[1], [0], [0], [1], [0, 0, 1, 1], [], []>} : vector<6x96xf32>, vector<96x16xf32>, vector<6x16xf32> -> vector<6x16xf32>
    %549 = arith.addf %532, %548 : vector<6x16xf32>
    %550 = vector.extract_strided_slice %530 {offsets = [0, 3, 0], sizes = [6, 1, 112], strides = [1, 1, 1]} : vector<6x14x112xf32> to vector<6x1x112xf32>
    %551 = vector.shape_cast %550 : vector<6x1x112xf32> to vector<6x112xf32>
    %552 = vector.extract_strided_slice %530 {offsets = [0, 4, 0], sizes = [6, 1, 112], strides = [1, 1, 1]} : vector<6x14x112xf32> to vector<6x1x112xf32>
    %553 = vector.shape_cast %552 : vector<6x1x112xf32> to vector<6x112xf32>
    %554 = arith.maximumf %551, %553 : vector<6x112xf32>
    %555 = vector.extract_strided_slice %530 {offsets = [0, 5, 0], sizes = [6, 1, 112], strides = [1, 1, 1]} : vector<6x14x112xf32> to vector<6x1x112xf32>
    %556 = vector.shape_cast %555 : vector<6x1x112xf32> to vector<6x112xf32>
    %557 = arith.maximumf %554, %556 : vector<6x112xf32>
    %558 = vector.extract_strided_slice %557 {offsets = [0, 0], sizes = [6, 96], strides = [1, 1]} : vector<6x112xf32> to vector<6x96xf32>
    %559 = vector.extract_strided_slice %557 {offsets = [0, 8], sizes = [6, 96], strides = [1, 1]} : vector<6x112xf32> to vector<6x96xf32>
    %560 = arith.maximumf %558, %559 : vector<6x96xf32>
    %561 = vector.extract_strided_slice %557 {offsets = [0, 16], sizes = [6, 96], strides = [1, 1]} : vector<6x112xf32> to vector<6x96xf32>
    %562 = arith.maximumf %560, %561 : vector<6x96xf32>
    %563 = vector.extract_strided_slice %531 {offsets = [1, 0, 0], sizes = [1, 96, 16], strides = [1, 1, 1]} : vector<4x96x16xf32> to vector<1x96x16xf32>
    %564 = vector.shape_cast %563 : vector<1x96x16xf32> to vector<96x16xf32>
    %cst_128 = arith.constant dense<0.000000e+00> : vector<6x16xf32>
    %565 = tpu.matmul %562, %564, %cst_128 {dimension_numbers = #tpu.dot_dimension_numbers<[1], [0], [0], [1], [0, 0, 1, 1], [], []>} : vector<6x96xf32>, vector<96x16xf32>, vector<6x16xf32> -> vector<6x16xf32>
    %566 = arith.addf %549, %565 : vector<6x16xf32>
    %567 = vector.extract_strided_slice %530 {offsets = [0, 6, 0], sizes = [6, 1, 112], strides = [1, 1, 1]} : vector<6x14x112xf32> to vector<6x1x112xf32>
    %568 = vector.shape_cast %567 : vector<6x1x112xf32> to vector<6x112xf32>
    %569 = vector.extract_strided_slice %530 {offsets = [0, 7, 0], sizes = [6, 1, 112], strides = [1, 1, 1]} : vector<6x14x112xf32> to vector<6x1x112xf32>
    %570 = vector.shape_cast %569 : vector<6x1x112xf32> to vector<6x112xf32>
    %571 = arith.maximumf %568, %570 : vector<6x112xf32>
    %572 = vector.extract_strided_slice %530 {offsets = [0, 8, 0], sizes = [6, 1, 112], strides = [1, 1, 1]} : vector<6x14x112xf32> to vector<6x1x112xf32>
    %573 = vector.shape_cast %572 : vector<6x1x112xf32> to vector<6x112xf32>
    %574 = arith.maximumf %571, %573 : vector<6x112xf32>
    %575 = vector.extract_strided_slice %574 {offsets = [0, 0], sizes = [6, 96], strides = [1, 1]} : vector<6x112xf32> to vector<6x96xf32>
    %576 = vector.extract_strided_slice %574 {offsets = [0, 8], sizes = [6, 96], strides = [1, 1]} : vector<6x112xf32> to vector<6x96xf32>
    %577 = arith.maximumf %575, %576 : vector<6x96xf32>
    %578 = vector.extract_strided_slice %574 {offsets = [0, 16], sizes = [6, 96], strides = [1, 1]} : vector<6x112xf32> to vector<6x96xf32>
    %579 = arith.maximumf %577, %578 : vector<6x96xf32>
    %580 = vector.extract_strided_slice %531 {offsets = [2, 0, 0], sizes = [1, 96, 16], strides = [1, 1, 1]} : vector<4x96x16xf32> to vector<1x96x16xf32>
    %581 = vector.shape_cast %580 : vector<1x96x16xf32> to vector<96x16xf32>
    %cst_129 = arith.constant dense<0.000000e+00> : vector<6x16xf32>
    %582 = tpu.matmul %579, %581, %cst_129 {dimension_numbers = #tpu.dot_dimension_numbers<[1], [0], [0], [1], [0, 0, 1, 1], [], []>} : vector<6x96xf32>, vector<96x16xf32>, vector<6x16xf32> -> vector<6x16xf32>
    %583 = arith.addf %566, %582 : vector<6x16xf32>
    %584 = vector.extract_strided_slice %530 {offsets = [0, 9, 0], sizes = [6, 1, 112], strides = [1, 1, 1]} : vector<6x14x112xf32> to vector<6x1x112xf32>
    %585 = vector.shape_cast %584 : vector<6x1x112xf32> to vector<6x112xf32>
    %586 = vector.extract_strided_slice %530 {offsets = [0, 10, 0], sizes = [6, 1, 112], strides = [1, 1, 1]} : vector<6x14x112xf32> to vector<6x1x112xf32>
    %587 = vector.shape_cast %586 : vector<6x1x112xf32> to vector<6x112xf32>
    %588 = arith.maximumf %585, %587 : vector<6x112xf32>
    %589 = vector.extract_strided_slice %530 {offsets = [0, 11, 0], sizes = [6, 1, 112], strides = [1, 1, 1]} : vector<6x14x112xf32> to vector<6x1x112xf32>
    %590 = vector.shape_cast %589 : vector<6x1x112xf32> to vector<6x112xf32>
    %591 = arith.maximumf %588, %590 : vector<6x112xf32>
    %592 = vector.extract_strided_slice %591 {offsets = [0, 0], sizes = [6, 96], strides = [1, 1]} : vector<6x112xf32> to vector<6x96xf32>
    %593 = vector.extract_strided_slice %591 {offsets = [0, 8], sizes = [6, 96], strides = [1, 1]} : vector<6x112xf32> to vector<6x96xf32>
    %594 = arith.maximumf %592, %593 : vector<6x96xf32>
    %595 = vector.extract_strided_slice %591 {offsets = [0, 16], sizes = [6, 96], strides = [1, 1]} : vector<6x112xf32> to vector<6x96xf32>
    %596 = arith.maximumf %594, %595 : vector<6x96xf32>
    %597 = vector.extract_strided_slice %531 {offsets = [3, 0, 0], sizes = [1, 96, 16], strides = [1, 1, 1]} : vector<4x96x16xf32> to vector<1x96x16xf32>
    %598 = vector.shape_cast %597 : vector<1x96x16xf32> to vector<96x16xf32>
    %cst_130 = arith.constant dense<0.000000e+00> : vector<6x16xf32>
    %599 = tpu.matmul %596, %598, %cst_130 {dimension_numbers = #tpu.dot_dimension_numbers<[1], [0], [0], [1], [0, 0, 1, 1], [], []>} : vector<6x96xf32>, vector<96x16xf32>, vector<6x16xf32> -> vector<6x16xf32>
    %600 = arith.addf %583, %599 : vector<6x16xf32>
    %c0_131 = arith.constant 0 : index
    %c0_132 = arith.constant 0 : index
    %601 = vector.load %arg11[%c0_131, %c0_132] : memref<1x16xf32, #tpu.memory_space<vmem>>, vector<1x16xf32>
    %602 = vector.broadcast %601 : vector<1x16xf32> to vector<6x16xf32>
    %603 = arith.addf %600, %602 : vector<6x16xf32>
    %604 = math.tanh %603 : vector<6x16xf32>
    %c0_133 = arith.constant 0 : index
    %c0_134 = arith.constant 0 : index
    %605 = vector.load %arg12[%c0_133, %c0_134] : memref<16x96xf32, #tpu.memory_space<vmem>>, vector<16x96xf32>
    %cst_135 = arith.constant dense<0.000000e+00> : vector<6x96xf32>
    %606 = tpu.matmul %604, %605, %cst_135 {dimension_numbers = #tpu.dot_dimension_numbers<[1], [0], [0], [1], [0, 0, 1, 1], [], []>} : vector<6x16xf32>, vector<16x96xf32>, vector<6x96xf32> -> vector<6x96xf32>
    %c0_136 = arith.constant 0 : index
    %c0_137 = arith.constant 0 : index
    %607 = vector.load %arg14[%c0_136, %c0_137] : memref<1x96xf32, #tpu.memory_space<vmem>>, vector<1x96xf32>
    %608 = vector.broadcast %607 : vector<1x96xf32> to vector<6x96xf32>
    %609 = arith.addf %606, %608 : vector<6x96xf32>
    %c0_138 = arith.constant 0 : index
    %c0_139 = arith.constant 0 : index
    %610 = vector.load %arg13[%c0_138, %c0_139] : memref<32x96xf32, #tpu.memory_space<vmem>>, vector<32x96xf32>
    %c0_140 = arith.constant 0 : index
    %c0_141 = arith.constant 0 : index
    %611 = vector.load %arg15[%c0_140, %c0_141] : memref<1x96xf32, #tpu.memory_space<vmem>>, vector<1x96xf32>
    %cst_142 = arith.constant 0.000000e+00 : f32
    %612 = vector.broadcast %cst_142 : f32 to vector<2x32xf32>
    %613 = vector.extract_strided_slice %609 {offsets = [0, 0], sizes = [1, 96], strides = [1, 1]} : vector<6x96xf32> to vector<1x96xf32>
    %614 = vector.extract_strided_slice %609 {offsets = [3, 0], sizes = [1, 96], strides = [1, 1]} : vector<6x96xf32> to vector<1x96xf32>
    %615 = tpu.concatenate %613, %614 in 0 : vector<1x96xf32>, vector<1x96xf32> -> vector<2x96xf32>
    %cst_143 = arith.constant dense<0.000000e+00> : vector<2x96xf32>
    %616 = tpu.matmul %612, %610, %cst_143 {dimension_numbers = #tpu.dot_dimension_numbers<[1], [0], [0], [1], [0, 0, 1, 1], [], []>} : vector<2x32xf32>, vector<32x96xf32>, vector<2x96xf32> -> vector<2x96xf32>
    %617 = vector.broadcast %611 : vector<1x96xf32> to vector<2x96xf32>
    %618 = arith.addf %616, %617 : vector<2x96xf32>
    %619 = vector.extract_strided_slice %615 {offsets = [0, 0], sizes = [2, 64], strides = [1, 1]} : vector<2x96xf32> to vector<2x64xf32>
    %620 = vector.extract_strided_slice %618 {offsets = [0, 0], sizes = [2, 64], strides = [1, 1]} : vector<2x96xf32> to vector<2x64xf32>
    %621 = arith.addf %619, %620 : vector<2x64xf32>
    %622 = arith.negf %621 : vector<2x64xf32>
    %623 = math.exp %622 : vector<2x64xf32>
    %cst_144 = arith.constant 1.000000e+00 : f32
    %624 = vector.broadcast %cst_144 : f32 to vector<2x64xf32>
    %625 = arith.addf %624, %623 : vector<2x64xf32>
    %626 = arith.divf %624, %625 : vector<2x64xf32>
    %627 = vector.extract_strided_slice %626 {offsets = [0, 0], sizes = [2, 32], strides = [1, 1]} : vector<2x64xf32> to vector<2x32xf32>
    %628 = vector.extract_strided_slice %626 {offsets = [0, 32], sizes = [2, 32], strides = [1, 1]} : vector<2x64xf32> to vector<2x32xf32>
    %629 = vector.extract_strided_slice %615 {offsets = [0, 64], sizes = [2, 32], strides = [1, 1]} : vector<2x96xf32> to vector<2x32xf32>
    %630 = vector.extract_strided_slice %618 {offsets = [0, 64], sizes = [2, 32], strides = [1, 1]} : vector<2x96xf32> to vector<2x32xf32>
    %631 = arith.mulf %627, %630 : vector<2x32xf32>
    %632 = arith.addf %629, %631 : vector<2x32xf32>
    %633 = math.tanh %632 : vector<2x32xf32>
    %cst_145 = arith.constant 1.000000e+00 : f32
    %634 = vector.broadcast %cst_145 : f32 to vector<2x32xf32>
    %635 = arith.subf %634, %628 : vector<2x32xf32>
    %636 = arith.mulf %635, %633 : vector<2x32xf32>
    %637 = arith.mulf %628, %612 : vector<2x32xf32>
    %638 = arith.addf %636, %637 : vector<2x32xf32>
    %639 = vector.extract_strided_slice %609 {offsets = [1, 0], sizes = [1, 96], strides = [1, 1]} : vector<6x96xf32> to vector<1x96xf32>
    %640 = vector.extract_strided_slice %609 {offsets = [4, 0], sizes = [1, 96], strides = [1, 1]} : vector<6x96xf32> to vector<1x96xf32>
    %641 = tpu.concatenate %639, %640 in 0 : vector<1x96xf32>, vector<1x96xf32> -> vector<2x96xf32>
    %cst_146 = arith.constant dense<0.000000e+00> : vector<2x96xf32>
    %642 = tpu.matmul %638, %610, %cst_146 {dimension_numbers = #tpu.dot_dimension_numbers<[1], [0], [0], [1], [0, 0, 1, 1], [], []>} : vector<2x32xf32>, vector<32x96xf32>, vector<2x96xf32> -> vector<2x96xf32>
    %643 = vector.broadcast %611 : vector<1x96xf32> to vector<2x96xf32>
    %644 = arith.addf %642, %643 : vector<2x96xf32>
    %645 = vector.extract_strided_slice %641 {offsets = [0, 0], sizes = [2, 64], strides = [1, 1]} : vector<2x96xf32> to vector<2x64xf32>
    %646 = vector.extract_strided_slice %644 {offsets = [0, 0], sizes = [2, 64], strides = [1, 1]} : vector<2x96xf32> to vector<2x64xf32>
    %647 = arith.addf %645, %646 : vector<2x64xf32>
    %648 = arith.negf %647 : vector<2x64xf32>
    %649 = math.exp %648 : vector<2x64xf32>
    %cst_147 = arith.constant 1.000000e+00 : f32
    %650 = vector.broadcast %cst_147 : f32 to vector<2x64xf32>
    %651 = arith.addf %650, %649 : vector<2x64xf32>
    %652 = arith.divf %650, %651 : vector<2x64xf32>
    %653 = vector.extract_strided_slice %652 {offsets = [0, 0], sizes = [2, 32], strides = [1, 1]} : vector<2x64xf32> to vector<2x32xf32>
    %654 = vector.extract_strided_slice %652 {offsets = [0, 32], sizes = [2, 32], strides = [1, 1]} : vector<2x64xf32> to vector<2x32xf32>
    %655 = vector.extract_strided_slice %641 {offsets = [0, 64], sizes = [2, 32], strides = [1, 1]} : vector<2x96xf32> to vector<2x32xf32>
    %656 = vector.extract_strided_slice %644 {offsets = [0, 64], sizes = [2, 32], strides = [1, 1]} : vector<2x96xf32> to vector<2x32xf32>
    %657 = arith.mulf %653, %656 : vector<2x32xf32>
    %658 = arith.addf %655, %657 : vector<2x32xf32>
    %659 = math.tanh %658 : vector<2x32xf32>
    %cst_148 = arith.constant 1.000000e+00 : f32
    %660 = vector.broadcast %cst_148 : f32 to vector<2x32xf32>
    %661 = arith.subf %660, %654 : vector<2x32xf32>
    %662 = arith.mulf %661, %659 : vector<2x32xf32>
    %663 = arith.mulf %654, %638 : vector<2x32xf32>
    %664 = arith.addf %662, %663 : vector<2x32xf32>
    %665 = vector.extract_strided_slice %609 {offsets = [2, 0], sizes = [1, 96], strides = [1, 1]} : vector<6x96xf32> to vector<1x96xf32>
    %666 = vector.extract_strided_slice %609 {offsets = [5, 0], sizes = [1, 96], strides = [1, 1]} : vector<6x96xf32> to vector<1x96xf32>
    %667 = tpu.concatenate %665, %666 in 0 : vector<1x96xf32>, vector<1x96xf32> -> vector<2x96xf32>
    %cst_149 = arith.constant dense<0.000000e+00> : vector<2x96xf32>
    %668 = tpu.matmul %664, %610, %cst_149 {dimension_numbers = #tpu.dot_dimension_numbers<[1], [0], [0], [1], [0, 0, 1, 1], [], []>} : vector<2x32xf32>, vector<32x96xf32>, vector<2x96xf32> -> vector<2x96xf32>
    %669 = vector.broadcast %611 : vector<1x96xf32> to vector<2x96xf32>
    %670 = arith.addf %668, %669 : vector<2x96xf32>
    %671 = vector.extract_strided_slice %667 {offsets = [0, 0], sizes = [2, 64], strides = [1, 1]} : vector<2x96xf32> to vector<2x64xf32>
    %672 = vector.extract_strided_slice %670 {offsets = [0, 0], sizes = [2, 64], strides = [1, 1]} : vector<2x96xf32> to vector<2x64xf32>
    %673 = arith.addf %671, %672 : vector<2x64xf32>
    %674 = arith.negf %673 : vector<2x64xf32>
    %675 = math.exp %674 : vector<2x64xf32>
    %cst_150 = arith.constant 1.000000e+00 : f32
    %676 = vector.broadcast %cst_150 : f32 to vector<2x64xf32>
    %677 = arith.addf %676, %675 : vector<2x64xf32>
    %678 = arith.divf %676, %677 : vector<2x64xf32>
    %679 = vector.extract_strided_slice %678 {offsets = [0, 0], sizes = [2, 32], strides = [1, 1]} : vector<2x64xf32> to vector<2x32xf32>
    %680 = vector.extract_strided_slice %678 {offsets = [0, 32], sizes = [2, 32], strides = [1, 1]} : vector<2x64xf32> to vector<2x32xf32>
    %681 = vector.extract_strided_slice %667 {offsets = [0, 64], sizes = [2, 32], strides = [1, 1]} : vector<2x96xf32> to vector<2x32xf32>
    %682 = vector.extract_strided_slice %670 {offsets = [0, 64], sizes = [2, 32], strides = [1, 1]} : vector<2x96xf32> to vector<2x32xf32>
    %683 = arith.mulf %679, %682 : vector<2x32xf32>
    %684 = arith.addf %681, %683 : vector<2x32xf32>
    %685 = math.tanh %684 : vector<2x32xf32>
    %cst_151 = arith.constant 1.000000e+00 : f32
    %686 = vector.broadcast %cst_151 : f32 to vector<2x32xf32>
    %687 = arith.subf %686, %680 : vector<2x32xf32>
    %688 = arith.mulf %687, %685 : vector<2x32xf32>
    %689 = arith.mulf %680, %664 : vector<2x32xf32>
    %690 = arith.addf %688, %689 : vector<2x32xf32>
    %c0_152 = arith.constant 0 : index
    %c0_153 = arith.constant 0 : index
    %691 = vector.load %arg16[%c0_152, %c0_153] : memref<32x2xf32, #tpu.memory_space<vmem>>, vector<32x2xf32>
    %cst_154 = arith.constant dense<0.000000e+00> : vector<2x2xf32>
    %692 = tpu.matmul %690, %691, %cst_154 {dimension_numbers = #tpu.dot_dimension_numbers<[1], [0], [0], [1], [0, 0, 1, 1], [], []>} : vector<2x32xf32>, vector<32x2xf32>, vector<2x2xf32> -> vector<2x2xf32>
    %c0_155 = arith.constant 0 : index
    %c0_156 = arith.constant 0 : index
    %693 = vector.load %arg17[%c0_155, %c0_156] : memref<1x2xf32, #tpu.memory_space<vmem>>, vector<1x2xf32>
    %694 = vector.broadcast %693 : vector<1x2xf32> to vector<2x2xf32>
    %695 = arith.addf %692, %694 : vector<2x2xf32>
    %c0_157 = arith.constant 0 : index
    %c0_158 = arith.constant 0 : index
    %696 = vector.load %arg18[%c0_157, %c0_158] : memref<2x2xf32, #tpu.memory_space<vmem>>, vector<2x2xf32>
    tpu.vector_store %arg18[%c0_157, %c0_158], %695 {strides = array<i32>} : memref<2x2xf32, #tpu.memory_space<vmem>>, vector<2x2xf32>,
    return
  }
}

</mosaic_0001>

<llo_original>
// kernel: smn_forward_pallas.1
$region0: #{smn_forward_pallas.1}
  #allocation0 [shape = 'u32[]', space=smem, size = 0x4, offset = 0x4, fixed_abs, tag = 'smem constant byte address 0x4 - core index']
  #allocation1 [shape = 'u32[144,128]{1,0:T(1,128)}', space=vmem, size = 0x12000, scoped, tag = 'internal scratch']
  #allocation2 [shape = 'f32[8,16,32]{2,1,0:T(8,128)}', space=vmem, size = 0x10000, scoped, tag = 'scratch operand']
  %s0 = inlined_call_operand.vmem [shape: s32[2,16], index: 0, kind: input, shape index: {}]
  %s1 = inlined_call_operand.vmem [shape: s32[2,3,16], index: 1, kind: input, shape index: {}]
  %s2 = inlined_call_operand.vmem [shape: f32[64,32], index: 2, kind: input, shape index: {}]
  %s3 = inlined_call_operand.vmem [shape: f32[64,96], index: 3, kind: input, shape index: {}]
  %s4 = inlined_call_operand.vmem [shape: f32[32,96], index: 4, kind: input, shape index: {}]
  %s5 = inlined_call_operand.vmem [shape: f32[1,96], index: 5, kind: input, shape index: {}]
  %s6 = inlined_call_operand.vmem [shape: f32[1,96], index: 6, kind: input, shape index: {}]
  %s7 = inlined_call_operand.vmem [shape: f32[32,32], index: 7, kind: input, shape index: {}]
  %s8 = inlined_call_operand.vmem [shape: f32[3,32,112], index: 8, kind: input, shape index: {}]
  %s9 = inlined_call_operand.vmem [shape: f32[1,112], index: 9, kind: input, shape index: {}]
  %s10 = inlined_call_operand.vmem [shape: f32[4,96,16], index: 10, kind: input, shape index: {}]
  %s11 = inlined_call_operand.vmem [shape: f32[1,16], index: 11, kind: input, shape index: {}]
  %s12 = inlined_call_operand.vmem [shape: f32[16,96], index: 12, kind: input, shape index: {}]
  %s13 = inlined_call_operand.vmem [shape: f32[32,96], index: 13, kind: input, shape index: {}]
  %s14 = inlined_call_operand.vmem [shape: f32[1,96], index: 14, kind: input, shape index: {}]
  %s15 = inlined_call_operand.vmem [shape: f32[1,96], index: 15, kind: input, shape index: {}]
  %s16 = inlined_call_operand.vmem [shape: f32[32,2], index: 16, kind: input, shape index: {}]
  %s17 = inlined_call_operand.vmem [shape: f32[1,2], index: 17, kind: input, shape index: {}]
  %s18 = inlined_call_operand.hbm [shape: f32[2,2], index: 18, kind: output, shape index: {}]
  %s19 = sld [smem:[#allocation0]]
  $region82: #{smn_forward_pallas.1} parent=0
    _
  %s21 = ssub.s32 1, %s19
  %s22 = scalar_select 0, %s21, %s19
  $region1: #{smn_forward_pallas.1} parent=0
    #allocation3 [shape = 'u8[1024]{0}', space=vmem, size = 0x400, scoped, tag = 'output window, operand 0, single buffered']
    #allocation4 [shape = 's32[1]{0}', space=sflag, size = 0x4, scoped, tag = 'scoped memory for smn_forward_pallas.1']
    %23 = vsyncpa [#allocation4], 0
    // Predicated region
    $region2: #{smn_forward_pallas.1} parent=1 // pred_check
      _
    $region3: #{smn_forward_pallas.1} parent=1 // pred_check_branch
      %25 = sbr.rel (0) target = $region5
    $region4: #{smn_forward_pallas.1} parent=1 // pred_region
      _
    $region5: #{smn_forward_pallas.1} parent=1 // pred_fallthru
      _
    // Predicated region
    $region6: #{smn_forward_pallas.1} parent=1 // pred_check
      _
    $region7: #{smn_forward_pallas.1} parent=1 // pred_check_branch
      %27 = sbr.rel (0) target = $region9
    $region8: #{smn_forward_pallas.1} parent=1 // pred_region
      _
    $region9: #{smn_forward_pallas.1} parent=1 // pred_fallthru
      _
    // Predicated region
    $region10: #{smn_forward_pallas.1} parent=1 // pred_check
      _
    $region11: #{smn_forward_pallas.1} parent=1 // pred_check_branch
      %29 = sbr.rel (0) target = $region13
    $region12: #{smn_forward_pallas.1} parent=1 // pred_region
      _
    $region13: #{smn_forward_pallas.1} parent=1 // pred_fallthru
      _
    // Predicated region
    $region14: #{smn_forward_pallas.1} parent=1 // pred_check
      _
    $region15: #{smn_forward_pallas.1} parent=1 // pred_check_branch
      %31 = sbr.rel (0) target = $region17
    $region16: #{smn_forward_pallas.1} parent=1 // pred_region
      _
    $region17: #{smn_forward_pallas.1} parent=1 // pred_fallthru
      _
    // Predicated region
    $region18: #{smn_forward_pallas.1} parent=1 // pred_check
      _
    $region19: #{smn_forward_pallas.1} parent=1 // pred_check_branch
      %33 = sbr.rel (0) target = $region21
    $region20: #{smn_forward_pallas.1} parent=1 // pred_region
      _
    $region21: #{smn_forward_pallas.1} parent=1 // pred_fallthru
      _
    // Predicated region
    $region22: #{smn_forward_pallas.1} parent=1 // pred_check
      _
    $region23: #{smn_forward_pallas.1} parent=1 // pred_check_branch
      %35 = sbr.rel (0) target = $region25
    $region24: #{smn_forward_pallas.1} parent=1 // pred_region
      _
    $region25: #{smn_forward_pallas.1} parent=1 // pred_fallthru
      _
    // Predicated region
    $region26: #{smn_forward_pallas.1} parent=1 // pred_check
      _
    $region27: #{smn_forward_pallas.1} parent=1 // pred_check_branch
      %37 = sbr.rel (0) target = $region29
    $region28: #{smn_forward_pallas.1} parent=1 // pred_region
      _
    $region29: #{smn_forward_pallas.1} parent=1 // pred_fallthru
      _
    // Predicated region
    $region30: #{smn_forward_pallas.1} parent=1 // pred_check
      _
    $region31: #{smn_forward_pallas.1} parent=1 // pred_check_branch
      %39 = sbr.rel (0) target = $region33
    $region32: #{smn_forward_pallas.1} parent=1 // pred_region
      _
    $region33: #{smn_forward_pallas.1} parent=1 // pred_fallthru
      _
    // Predicated region
    $region34: #{smn_forward_pallas.1} parent=1 // pred_check
      _
    $region35: #{smn_forward_pallas.1} parent=1 // pred_check_branch
      %41 = sbr.rel (0) target = $region37
    $region36: #{smn_forward_pallas.1} parent=1 // pred_region
      _
    $region37: #{smn_forward_pallas.1} parent=1 // pred_fallthru
      _
    // Predicated region
    $region38: #{smn_forward_pallas.1} parent=1 // pred_check
      _
    $region39: #{smn_forward_pallas.1} parent=1 // pred_check_branch
      %43 = sbr.rel (0) target = $region41
    $region40: #{smn_forward_pallas.1} parent=1 // pred_region
      _
    $region41: #{smn_forward_pallas.1} parent=1 // pred_fallthru
      _
    // Predicated region
    $region42: #{smn_forward_pallas.1} parent=1 // pred_check
      _
    $region43: #{smn_forward_pallas.1} parent=1 // pred_check_branch
      %45 = sbr.rel (0) target = $region45
    $region44: #{smn_forward_pallas.1} parent=1 // pred_region
      _
    $region45: #{smn_forward_pallas.1} parent=1 // pred_fallthru
      _
    // Predicated region
    $region46: #{smn_forward_pallas.1} parent=1 // pred_check
      _
    $region47: #{smn_forward_pallas.1} parent=1 // pred_check_branch
      %47 = sbr.rel (0) target = $region49
    $region48: #{smn_forward_pallas.1} parent=1 // pred_region
      _
    $region49: #{smn_forward_pallas.1} parent=1 // pred_fallthru
      _
    // Predicated region
    $region50: #{smn_forward_pallas.1} parent=1 // pred_check
      _
    $region51: #{smn_forward_pallas.1} parent=1 // pred_check_branch
      %49 = sbr.rel (0) target = $region53
    $region52: #{smn_forward_pallas.1} parent=1 // pred_region
      _
    $region53: #{smn_forward_pallas.1} parent=1 // pred_fallthru
      _
    // Predicated region
    $region54: #{smn_forward_pallas.1} parent=1 // pred_check
      _
    $region55: #{smn_forward_pallas.1} parent=1 // pred_check_branch
      %51 = sbr.rel (0) target = $region57
    $region56: #{smn_forward_pallas.1} parent=1 // pred_region
      _
    $region57: #{smn_forward_pallas.1} parent=1 // pred_fallthru
      _
    // Predicated region
    $region58: #{smn_forward_pallas.1} parent=1 // pred_check
      _
    $region59: #{smn_forward_pallas.1} parent=1 // pred_check_branch
      %53 = sbr.rel (0) target = $region61
    $region60: #{smn_forward_pallas.1} parent=1 // pred_region
      _
    $region61: #{smn_forward_pallas.1} parent=1 // pred_fallthru
      _
    // Predicated region
    $region62: #{smn_forward_pallas.1} parent=1 // pred_check
      _
    $region63: #{smn_forward_pallas.1} parent=1 // pred_check_branch
      %55 = sbr.rel (0) target = $region65
    $region64: #{smn_forward_pallas.1} parent=1 // pred_region
      _
    $region65: #{smn_forward_pallas.1} parent=1 // pred_fallthru
      _
    // Predicated region
    $region66: #{smn_forward_pallas.1} parent=1 // pred_check
      _
    $region67: #{smn_forward_pallas.1} parent=1 // pred_check_branch
      %57 = sbr.rel (0) target = $region69
    $region68: #{smn_forward_pallas.1} parent=1 // pred_region
      _
    $region69: #{smn_forward_pallas.1} parent=1 // pred_fallthru
      _
    // Predicated region
    $region70: #{smn_forward_pallas.1} parent=1 // pred_check
      _
    $region71: #{smn_forward_pallas.1} parent=1 // pred_check_branch
      %59 = sbr.rel (0) target = $region73
    $region72: #{smn_forward_pallas.1} parent=1 // pred_region
      _
    $region73: #{smn_forward_pallas.1} parent=1 // pred_fallthru
      _
    %v60 = vld [vmem:[%s0] sm:$0x3]
    %v61 = vld [vmem:[%s1] sm:$0x7]
    %v62 = vld [vmem:[%s1 + $0x4] sm:$0x7]
    %v64 = vunpack.c.l.s4 1966171168
    %v65 = vunpack.c.0.s8 %v64
    %v66 = vlaneseq
    %v67 = vshrl.u32 %v66, 7
    %v68 = vsub.s32 %v65, %v67
    %v69 = vrot.slane %v61, %v68
    %v70 = vcombine.high %v69, %v69
    %v72 = vunpack.c.l.s4 1966171168
    %v73 = vunpack.c.0.s8 %v72
    %v74 = vlaneseq
    %v75 = vshrl.u32 %v74, 7
    %v76 = vsub.s32 %v73, %v75
    %v77 = vrot.slane %v69, %v76
    %v79 = vunpack.c.l.s4 1966171168
    %v80 = vunpack.c.0.s8 %v79
    %v81 = vlaneseq
    %v82 = vshrl.u32 %v81, 7
    %v83 = vsub.s32 %v80, %v82
    %v84 = vrot.slane %v70, %v83
    %v85 = vcombine.high %v77, %v77
    %v87 = vunpack.c.l.s4 1966171168
    %v88 = vunpack.c.0.s8 %v87
    %v89 = vlaneseq
    %v90 = vshrl.u32 %v89, 7
    %v91 = vsub.s32 %v88, %v90
    %v92 = vrot.slane %v62, %v91
    %v93 = vcombine.high %v92, %v92
    %v95 = vunpack.c.l.s4 1966171168
    %v96 = vunpack.c.0.s8 %v95
    %v97 = vlaneseq
    %v98 = vshrl.u32 %v97, 7
    %v99 = vsub.s32 %v96, %v98
    %v100 = vrot.slane %v92, %v99
    %v102 = vunpack.c.l.s4 1966171168
    %v103 = vunpack.c.0.s8 %v102
    %v104 = vlaneseq
    %v105 = vshrl.u32 %v104, 7
    %v106 = vsub.s32 %v103, %v105
    %v107 = vrot.slane %v93, %v106
    %v108 = vcombine.high %v100, %v100
    %v109 = vcombine.low %v77, %v84
    %v110 = vcombine.low %v85, %v100
    %v111 = vcombine.low %v107, %v108
    %v113 = vunpack.c.l.s4 1966171168
    %v114 = vunpack.c.0.s8 %v113
    %v115 = vlaneseq
    %v116 = vshrl.u32 %v115, 7
    %v117 = vsub.s32 %v114, %v116
    %v118 = vrot.slane %v109, %v117
    %v120 = vunpack.c.l.s4 1966171168
    %v121 = vunpack.c.0.s8 %v120
    %v122 = vlaneseq
    %v123 = vshrl.u32 %v122, 7
    %v124 = vsub.s32 %v121, %v123
    %v125 = vrot.slane %v110, %v124
    %v127 = vunpack.c.l.s4 1966171168
    %v128 = vunpack.c.0.s8 %v127
    %v129 = vlaneseq
    %v130 = vshrl.u32 %v129, 7
    %v131 = vsub.s32 %v128, %v130
    %v132 = vrot.slane %v111, %v131
    %v133 = vcombine.low %v118, %v118
    %v134 = vcombine.low %v125, %v132
    %v136 = vunpack.c.l.s4 1966171168
    %v137 = vunpack.c.0.s8 %v136
    %v138 = vlaneseq
    %v139 = vshrl.u32 %v138, 7
    %v140 = vsub.s32 %v137, %v139
    %v141 = vrot.slane %v133, %v140
    %v143 = vunpack.c.l.s4 1966171168
    %v144 = vunpack.c.0.s8 %v143
    %v145 = vlaneseq
    %v146 = vshrl.u32 %v145, 7
    %v147 = vsub.s32 %v144, %v146
    %v148 = vrot.slane %v134, %v147
    %v149 = vcombine.low %v141, %v148
    %vm150 = vcmask 1041408
    %v151 = vsel %vm150, %v60, %v149
    %v152 = vlaneseq
    %v153 = vand.u32 %v152, 127
    %v154 = vlaneseq
    %v155 = vshrl.u32 %v154, 7
    %v156 = vsub.s32 0, %v155
    %v157 = vrot.slane %v151, %v156
    %159 = vbcast.lane.b32.xlu0 %v157, 256
    %v160 = vpop.permute.xlu0 %159
    %s162 = sor.u32 256, 8
    %163 = vbcast.lane.b32.xlu0 %v157, %s162
    %v164 = vpop.permute.xlu0 %163
    %v165 = vlaneseq
    %v166 = vshrl.u32 %v165, 7
    %v167 = vsub.s32 1, %v166
    %v168 = vrot.slane %v151, %v167
    %170 = vbcast.lane.b32.xlu0 %v168, 256
    %v171 = vpop.permute.xlu0 %170
    %s173 = sor.u32 256, 8
    %174 = vbcast.lane.b32.xlu0 %v168, %s173
    %v175 = vpop.permute.xlu0 %174
    %v176 = vlaneseq
    %v177 = vshrl.u32 %v176, 7
    %v178 = vsub.s32 2, %v177
    %v179 = vrot.slane %v151, %v178
    %181 = vbcast.lane.b32.xlu0 %v179, 256
    %v182 = vpop.permute.xlu0 %181
    %s184 = sor.u32 256, 8
    %185 = vbcast.lane.b32.xlu0 %v179, %s184
    %v186 = vpop.permute.xlu0 %185
    %v187 = vlaneseq
    %v188 = vshrl.u32 %v187, 7
    %v189 = vsub.s32 3, %v188
    %v190 = vrot.slane %v151, %v189
    %192 = vbcast.lane.b32.xlu0 %v190, 256
    %v193 = vpop.permute.xlu0 %192
    %s195 = sor.u32 256, 8
    %196 = vbcast.lane.b32.xlu0 %v190, %s195
    %v197 = vpop.permute.xlu0 %196
    %v198 = vlaneseq
    %v199 = vshrl.u32 %v198, 7
    %v200 = vsub.s32 4, %v199
    %v201 = vrot.slane %v151, %v200
    %203 = vbcast.lane.b32.xlu0 %v201, 256
    %v204 = vpop.permute.xlu0 %203
    %s206 = sor.u32 256, 8
    %207 = vbcast.lane.b32.xlu0 %v201, %s206
    %v208 = vpop.permute.xlu0 %207
    %v209 = vlaneseq
    %v210 = vshrl.u32 %v209, 7
    %v211 = vsub.s32 5, %v210
    %v212 = vrot.slane %v151, %v211
    %214 = vbcast.lane.b32.xlu0 %v212, 256
    %v215 = vpop.permute.xlu0 %214
    %s217 = sor.u32 256, 8
    %218 = vbcast.lane.b32.xlu0 %v212, %s217
    %v219 = vpop.permute.xlu0 %218
    %v220 = vlaneseq
    %v221 = vshrl.u32 %v220, 7
    %v222 = vsub.s32 6, %v221
    %v223 = vrot.slane %v151, %v222
    %225 = vbcast.lane.b32.xlu0 %v223, 256
    %v226 = vpop.permute.xlu0 %225
    %s228 = sor.u32 256, 8
    %229 = vbcast.lane.b32.xlu0 %v223, %s228
    %v230 = vpop.permute.xlu0 %229
    %v231 = vlaneseq
    %v232 = vshrl.u32 %v231, 7
    %v233 = vsub.s32 7, %v232
    %v234 = vrot.slane %v151, %v233
    %236 = vbcast.lane.b32.xlu0 %v234, 256
    %v237 = vpop.permute.xlu0 %236
    %s239 = sor.u32 256, 8
    %240 = vbcast.lane.b32.xlu0 %v234, %s239
    %v241 = vpop.permute.xlu0 %240
    %vm242 = vcmp.eq.s32.totalorder %v160, %v153
    %vm243 = vcmp.eq.s32.totalorder %v164, %v153
    %vm244 = vcmp.eq.s32.totalorder %v171, %v153
    %vm245 = vcmp.eq.s32.totalorder %v175, %v153
    %vm246 = vcmp.eq.s32.totalorder %v182, %v153
    %vm247 = vcmp.eq.s32.totalorder %v186, %v153
    %vm248 = vcmp.eq.s32.totalorder %v193, %v153
    %vm249 = vcmp.eq.s32.totalorder %v197, %v153
    %vm250 = vcmp.eq.s32.totalorder %v204, %v153
    %vm251 = vcmp.eq.s32.totalorder %v208, %v153
    %vm252 = vcmp.eq.s32.totalorder %v215, %v153
    %vm253 = vcmp.eq.s32.totalorder %v219, %v153
    %vm254 = vcmp.eq.s32.totalorder %v226, %v153
    %vm255 = vcmp.eq.s32.totalorder %v230, %v153
    %vm256 = vcmp.eq.s32.totalorder %v237, %v153
    %vm257 = vcmp.eq.s32.totalorder %v241, %v153
    %v258 = vsel %vm242, 1, 0
    %v259 = vsel %vm243, 1, 0
    %v260 = vsel %vm244, 1, 0
    %v261 = vsel %vm245, 1, 0
    %v262 = vsel %vm246, 1, 0
    %v263 = vsel %vm247, 1, 0
    %v264 = vsel %vm248, 1, 0
    %v265 = vsel %vm249, 1, 0
    %v266 = vsel %vm250, 1, 0
    %v267 = vsel %vm251, 1, 0
    %v268 = vsel %vm252, 1, 0
    %v269 = vsel %vm253, 1, 0
    %v270 = vsel %vm254, 1, 0
    %v271 = vsel %vm255, 1, 0
    %v272 = vsel %vm256, 1, 0
    %v273 = vsel %vm257, 1, 0
    %v274 = vcvt.s32.f32 %v258
    %v275 = vcvt.s32.f32 %v259
    %v276 = vcvt.s32.f32 %v260
    %v277 = vcvt.s32.f32 %v261
    %v278 = vcvt.s32.f32 %v262
    %v279 = vcvt.s32.f32 %v263
    %v280 = vcvt.s32.f32 %v264
    %v281 = vcvt.s32.f32 %v265
    %v282 = vcvt.s32.f32 %v266
    %v283 = vcvt.s32.f32 %v267
    %v284 = vcvt.s32.f32 %v268
    %v285 = vcvt.s32.f32 %v269
    %v286 = vcvt.s32.f32 %v270
    %v287 = vcvt.s32.f32 %v271
    %v288 = vcvt.s32.f32 %v272
    %v289 = vcvt.s32.f32 %v273
    %v290 = vld [vmem:[%s2] sm:$0xff]
    %v291 = vld [vmem:[%s2 + $0x8] sm:$0xff]
    %v292 = vld [vmem:[%s2 + $0x10] sm:$0xff]
    %v293 = vld [vmem:[%s2 + $0x18] sm:$0xff]
    %v294 = vld [vmem:[%s2 + $0x20] sm:$0xff]
    %v295 = vld [vmem:[%s2 + $0x28] sm:$0xff]
    %v296 = vld [vmem:[%s2 + $0x30] sm:$0xff]
    %v297 = vld [vmem:[%s2 + $0x38] sm:$0xff]
    %vm298 = vcmask 523264
    %v300 = vsel %vm298, %v274, 0
    %v303 = vsel %vm298, %v275, 0
    %v306 = vsel %vm298, %v276, 0
    %v309 = vsel %vm298, %v277, 0
    %v312 = vsel %vm298, %v278, 0
    %v315 = vsel %vm298, %v279, 0
    %v318 = vsel %vm298, %v280, 0
    %v321 = vsel %vm298, %v281, 0
    %v324 = vsel %vm298, %v282, 0
    %v327 = vsel %vm298, %v283, 0
    %v330 = vsel %vm298, %v284, 0
    %v333 = vsel %vm298, %v285, 0
    %v336 = vsel %vm298, %v286, 0
    %v339 = vsel %vm298, %v287, 0
    %v342 = vsel %vm298, %v288, 0
    %v345 = vsel %vm298, %v289, 0
    %347 = vmatprep.subr.mxu0 0.0
    %348 = vmatpush1.msra.mxu0 0.0
    %349 = vmatprep.subr.mxu0 0.0
    %350 = vmatpush1.msra.mxu0 0.0
    %351 = vmatprep.subr.mxu0 0.0
    %352 = vmatpush1.msra.mxu0 0.0
    %353 = vmatprep.subr.mxu0 0.0
    %354 = vmatpush1.msra.mxu0 0.0
    %355 = vmatprep.subr.mxu0 0.0
    %356 = vmatpush1.msra.mxu0 0.0
    %357 = vmatprep.subr.mxu0 0.0
    %358 = vmatpush1.msra.mxu0 0.0
    %359 = vmatprep.subr.mxu0 0.0
    %360 = vmatpush1.msra.mxu0 0.0
    %361 = vmatprep.subr.mxu0 0.0
    %362 = vmatpush1.msra.mxu0 0.0
    %363 = vmatprep.subr.mxu0 0.0
    %v364 = vand.u32 %v297, 4294901760
    %365 = vmatpush1.msra.mxu0 %v364
    %366 = vmatprep.subr.mxu0 0.0
    %v367 = vand.u32 %v296, 4294901760
    %368 = vmatpush1.msra.mxu0 %v367
    %369 = vmatprep.subr.mxu0 0.0
    %v370 = vand.u32 %v295, 4294901760
    %371 = vmatpush1.msra.mxu0 %v370
    %372 = vmatprep.subr.mxu0 0.0
    %v373 = vand.u32 %v294, 4294901760
    %374 = vmatpush1.msra.mxu0 %v373
    %375 = vmatprep.subr.mxu0 0.0
    %v376 = vand.u32 %v293, 4294901760
    %377 = vmatpush1.msra.mxu0 %v376
    %378 = vmatprep.subr.mxu0 0.0
    %v379 = vand.u32 %v292, 4294901760
    %380 = vmatpush1.msra.mxu0 %v379
    %381 = vmatprep.subr.mxu0 0.0
    %v382 = vand.u32 %v291, 4294901760
    %383 = vmatpush1.msra.mxu0 %v382
    %384 = vmatprep.subr.mxu0 0.0
    %v385 = vand.u32 %v290, 4294901760
    %386 = vmatpush1.msra.mxu0 %v385
    %387 = vmatprep.subr.mxu0 0.0
    %388 = vmatpush2.msra.mxu0 0.0
    %389 = vmatprep.subr.mxu0 0.0
    %390 = vmatpush2.msra.mxu0 0.0
    %391 = vmatprep.subr.mxu0 0.0
    %392 = vmatpush2.msra.mxu0 0.0
    %393 = vmatprep.subr.mxu0 0.0
    %394 = vmatpush2.msra.mxu0 0.0
    %395 = vmatprep.subr.mxu0 0.0
    %396 = vmatpush2.msra.mxu0 0.0
    %397 = vmatprep.subr.mxu0 0.0
    %398 = vmatpush2.msra.mxu0 0.0
    %399 = vmatprep.subr.mxu0 0.0
    %400 = vmatpush2.msra.mxu0 0.0
    %401 = vmatprep.subr.mxu0 0.0
    %402 = vmatpush2.msra.mxu0 0.0
    %403 = vmatprep.subr.mxu0 0.0
    %404 = vmatpush2.msra.mxu0 0.0
    %405 = vmatprep.subr.mxu0 0.0
    %406 = vmatpush2.msra.mxu0 0.0
    %407 = vmatprep.subr.mxu0 0.0
    %408 = vmatpush2.msra.mxu0 0.0
    %409 = vmatprep.subr.mxu0 0.0
    %410 = vmatpush2.msra.mxu0 0.0
    %411 = vmatprep.subr.mxu0 0.0
    %412 = vmatpush2.msra.mxu0 0.0
    %413 = vmatprep.subr.mxu0 0.0
    %414 = vmatpush2.msra.mxu0 0.0
    %415 = vmatprep.subr.mxu0 0.0
    %416 = vmatpush2.msra.mxu0 0.0
    %417 = vmatprep.subr.mxu0 0.0
    %418 = vmatpush2.msra.mxu0 0.0
    %419 = vmatprep.mubr.f32.mxu0 0.0
    %v420 = vand.u32 %v300, 4294901760
    %v421 = vsub.f32 %v300, %v420
    %v422 = vand.u32 %v421, 4294901760
    %v423 = vsub.f32 %v421, %v422
    %v424 = vand.u32 %v423, 4294901760
    %425 = vmatmul.mubr.f32.gmra.mxu0 %v424
    %v426 = vpop.f32.mrf.mxu0
    %v427 = vadd.f32 0.0, %v426
    %v428 = vpop.f32.mrf.mxu0
    %429 = vmatprep.mubr.f32.mxu0 0.0
    %v430 = vand.u32 %v303, 4294901760
    %v431 = vsub.f32 %v303, %v430
    %v432 = vand.u32 %v431, 4294901760
    %v433 = vsub.f32 %v431, %v432
    %v434 = vand.u32 %v433, 4294901760
    %435 = vmatmul.mubr.f32.gmra.mxu0 %v434
    %v436 = vpop.f32.mrf.mxu0
    %v437 = vadd.f32 0.0, %v436
    %v438 = vpop.f32.mrf.mxu0
    %439 = vmatprep.mubr.f32.mxu0 0.0
    %v440 = vand.u32 %v306, 4294901760
    %v441 = vsub.f32 %v306, %v440
    %v442 = vand.u32 %v441, 4294901760
    %v443 = vsub.f32 %v441, %v442
    %v444 = vand.u32 %v443, 4294901760
    %445 = vmatmul.mubr.f32.gmra.mxu0 %v444
    %v446 = vpop.f32.mrf.mxu0
    %v447 = vadd.f32 0.0, %v446
    %v448 = vpop.f32.mrf.mxu0
    %449 = vmatprep.mubr.f32.mxu0 0.0
    %v450 = vand.u32 %v309, 4294901760
    %v451 = vsub.f32 %v309, %v450
    %v452 = vand.u32 %v451, 4294901760
    %v453 = vsub.f32 %v451, %v452
    %v454 = vand.u32 %v453, 4294901760
    %455 = vmatmul.mubr.f32.gmra.mxu0 %v454
    %v456 = vpop.f32.mrf.mxu0
    %v457 = vadd.f32 0.0, %v456
    %v458 = vpop.f32.mrf.mxu0
    %459 = vmatprep.mubr.f32.mxu0 0.0
    %v460 = vand.u32 %v312, 4294901760
    %v461 = vsub.f32 %v312, %v460
    %v462 = vand.u32 %v461, 4294901760
    %v463 = vsub.f32 %v461, %v462
    %v464 = vand.u32 %v463, 4294901760
    %465 = vmatmul.mubr.f32.gmra.mxu0 %v464
    %v466 = vpop.f32.mrf.mxu0
    %v467 = vadd.f32 0.0, %v466
    %v468 = vpop.f32.mrf.mxu0
    %469 = vmatprep.mubr.f32.mxu0 0.0
    %v470 = vand.u32 %v315, 4294901760
    %v471 = vsub.f32 %v315, %v470
    %v472 = vand.u32 %v471, 4294901760
    %v473 = vsub.f32 %v471, %v472
    %v474 = vand.u32 %v473, 4294901760
    %475 = vmatmul.mubr.f32.gmra.mxu0 %v474
    %v476 = vpop.f32.mrf.mxu0
    %v477 = vadd.f32 0.0, %v476
    %v478 = vpop.f32.mrf.mxu0
    %479 = vmatprep.mubr.f32.mxu0 0.0
    %v480 = vand.u32 %v318, 4294901760
    %v481 = vsub.f32 %v318, %v480
    %v482 = vand.u32 %v481, 4294901760
    %v483 = vsub.f32 %v481, %v482
    %v484 = vand.u32 %v483, 4294901760
    %485 = vmatmul.mubr.f32.gmra.mxu0 %v484
    %v486 = vpop.f32.mrf.mxu0
    %v487 = vadd.f32 0.0, %v486
    %v488 = vpop.f32.mrf.mxu0
    %489 = vmatprep.mubr.f32.mxu0 0.0
    %v490 = vand.u32 %v321, 4294901760
    %v491 = vsub.f32 %v321, %v490
    %v492 = vand.u32 %v491, 4294901760
    %v493 = vsub.f32 %v491, %v492
    %v494 = vand.u32 %v493, 4294901760
    %495 = vmatmul.mubr.f32.gmra.mxu0 %v494
    %v496 = vpop.f32.mrf.mxu0
    %v497 = vadd.f32 0.0, %v496
    %v498 = vpop.f32.mrf.mxu0
    %499 = vmatprep.mubr.f32.mxu0 0.0
    %v500 = vand.u32 %v324, 4294901760
    %v501 = vsub.f32 %v324, %v500
    %v502 = vand.u32 %v501, 4294901760
    %v503 = vsub.f32 %v501, %v502
    %v504 = vand.u32 %v503, 4294901760
    %505 = vmatmul.mubr.f32.gmra.mxu0 %v504
    %v506 = vpop.f32.mrf.mxu0
    %v507 = vadd.f32 0.0, %v506
    %v508 = vpop.f32.mrf.mxu0
    %509 = vmatprep.mubr.f32.mxu0 0.0
    %v510 = vand.u32 %v327, 4294901760
    %v511 = vsub.f32 %v327, %v510
    %v512 = vand.u32 %v511, 4294901760
    %v513 = vsub.f32 %v511, %v512
    %v514 = vand.u32 %v513, 4294901760
    %515 = vmatmul.mubr.f32.gmra.mxu0 %v514
    %v516 = vpop.f32.mrf.mxu0
    %v517 = vadd.f32 0.0, %v516
    %v518 = vpop.f32.mrf.mxu0
    %519 = vmatprep.mubr.f32.mxu0 0.0
    %v520 = vand.u32 %v330, 4294901760
    %v521 = vsub.f32 %v330, %v520
    %v522 = vand.u32 %v521, 4294901760
    %v523 = vsub.f32 %v521, %v522
    %v524 = vand.u32 %v523, 4294901760
    %525 = vmatmul.mubr.f32.gmra.mxu0 %v524
    %v526 = vpop.f32.mrf.mxu0
    %v527 = vadd.f32 0.0, %v526
    %v528 = vpop.f32.mrf.mxu0
    %529 = vmatprep.mubr.f32.mxu0 0.0
    %v530 = vand.u32 %v333, 4294901760
    %v531 = vsub.f32 %v333, %v530
    %v532 = vand.u32 %v531, 4294901760
    %v533 = vsub.f32 %v531, %v532
    %v534 = vand.u32 %v533, 4294901760
    %535 = vmatmul.mubr.f32.gmra.mxu0 %v534
    %v536 = vpop.f32.mrf.mxu0
    %v537 = vadd.f32 0.0, %v536
    %v538 = vpop.f32.mrf.mxu0
    %539 = vmatprep.mubr.f32.mxu0 0.0
    %v540 = vand.u32 %v336, 4294901760
    %v541 = vsub.f32 %v336, %v540
    %v542 = vand.u32 %v541, 4294901760
    %v543 = vsub.f32 %v541, %v542
    %v544 = vand.u32 %v543, 4294901760
    %545 = vmatmul.mubr.f32.gmra.mxu0 %v544
    %v546 = vpop.f32.mrf.mxu0
    %v547 = vadd.f32 0.0, %v546
    %v548 = vpop.f32.mrf.mxu0
    %549 = vmatprep.mubr.f32.mxu0 0.0
    %v550 = vand.u32 %v339, 4294901760
    %v551 = vsub.f32 %v339, %v550
    %v552 = vand.u32 %v551, 4294901760
    %v553 = vsub.f32 %v551, %v552
    %v554 = vand.u32 %v553, 4294901760
    %555 = vmatmul.mubr.f32.gmra.mxu0 %v554
    %v556 = vpop.f32.mrf.mxu0
    %v557 = vadd.f32 0.0, %v556
    %v558 = vpop.f32.mrf.mxu0
    %559 = vmatprep.mubr.f32.mxu0 0.0
    %v560 = vand.u32 %v342, 4294901760
    %v561 = vsub.f32 %v342, %v560
    %v562 = vand.u32 %v561, 4294901760
    %v563 = vsub.f32 %v561, %v562
    %v564 = vand.u32 %v563, 4294901760
    %565 = vmatmul.mubr.f32.gmra.mxu0 %v564
    %v566 = vpop.f32.mrf.mxu0
    %v567 = vadd.f32 0.0, %v566
    %v568 = vpop.f32.mrf.mxu0
    %569 = vmatprep.mubr.f32.mxu0 0.0
    %v570 = vand.u32 %v345, 4294901760
    %v571 = vsub.f32 %v345, %v570
    %v572 = vand.u32 %v571, 4294901760
    %v573 = vsub.f32 %v571, %v572
    %v574 = vand.u32 %v573, 4294901760
    %575 = vmatmul.mubr.f32.gmra.mxu0 %v574
    %v576 = vpop.f32.mrf.mxu0
    %v577 = vadd.f32 0.0, %v576
    %v578 = vpop.f32.mrf.mxu0
    %579 = vdwg.mxu0
    %580 = vmatprep.subr.mxu0 0.0
    %581 = vmatpush1.msra.mxu0 0.0
    %582 = vmatprep.subr.mxu0 0.0
    %583 = vmatpush1.msra.mxu0 0.0
    %584 = vmatprep.subr.mxu0 0.0
    %585 = vmatpush1.msra.mxu0 0.0
    %586 = vmatprep.subr.mxu0 0.0
    %587 = vmatpush1.msra.mxu0 0.0
    %588 = vmatprep.subr.mxu0 0.0
    %589 = vmatpush1.msra.mxu0 0.0
    %590 = vmatprep.subr.mxu0 0.0
    %591 = vmatpush1.msra.mxu0 0.0
    %592 = vmatprep.subr.mxu0 0.0
    %593 = vmatpush1.msra.mxu0 0.0
    %594 = vmatprep.subr.mxu0 0.0
    %595 = vmatpush1.msra.mxu0 0.0
    %596 = vmatprep.subr.mxu0 0.0
    %v597 = vand.u32 %v297, 4294901760
    %v598 = vsub.f32 %v297, %v597
    %v599 = vand.u32 %v598, 4294901760
    %v600 = vsub.f32 %v598, %v599
    %v601 = vand.u32 %v600, 4294901760
    %602 = vmatpush1.msra.mxu0 %v601
    %603 = vmatprep.subr.mxu0 0.0
    %v604 = vand.u32 %v296, 4294901760
    %v605 = vsub.f32 %v296, %v604
    %v606 = vand.u32 %v605, 4294901760
    %v607 = vsub.f32 %v605, %v606
    %v608 = vand.u32 %v607, 4294901760
    %609 = vmatpush1.msra.mxu0 %v608
    %610 = vmatprep.subr.mxu0 0.0
    %v611 = vand.u32 %v295, 4294901760
    %v612 = vsub.f32 %v295, %v611
    %v613 = vand.u32 %v612, 4294901760
    %v614 = vsub.f32 %v612, %v613
    %v615 = vand.u32 %v614, 4294901760
    %616 = vmatpush1.msra.mxu0 %v615
    %617 = vmatprep.subr.mxu0 0.0
    %v618 = vand.u32 %v294, 4294901760
    %v619 = vsub.f32 %v294, %v618
    %v620 = vand.u32 %v619, 4294901760
    %v621 = vsub.f32 %v619, %v620
    %v622 = vand.u32 %v621, 4294901760
    %623 = vmatpush1.msra.mxu0 %v622
    %624 = vmatprep.subr.mxu0 0.0
    %v625 = vand.u32 %v293, 4294901760
    %v626 = vsub.f32 %v293, %v625
    %v627 = vand.u32 %v626, 4294901760
    %v628 = vsub.f32 %v626, %v627
    %v629 = vand.u32 %v628, 4294901760
    %630 = vmatpush1.msra.mxu0 %v629
    %631 = vmatprep.subr.mxu0 0.0
    %v632 = vand.u32 %v292, 4294901760
    %v633 = vsub.f32 %v292, %v632
    %v634 = vand.u32 %v633, 4294901760
    %v635 = vsub.f32 %v633, %v634
    %v636 = vand.u32 %v635, 4294901760
    %637 = vmatpush1.msra.mxu0 %v636
    %638 = vmatprep.subr.mxu0 0.0
    %v639 = vand.u32 %v291, 4294901760
    %v640 = vsub.f32 %v291, %v639
    %v641 = vand.u32 %v640, 4294901760
    %v642 = vsub.f32 %v640, %v641
    %v643 = vand.u32 %v642, 4294901760
    %644 = vmatpush1.msra.mxu0 %v643
    %645 = vmatprep.subr.mxu0 0.0
    %v646 = vand.u32 %v290, 4294901760
    %v647 = vsub.f32 %v290, %v646
    %v648 = vand.u32 %v647, 4294901760
    %v649 = vsub.f32 %v647, %v648
    %v650 = vand.u32 %v649, 4294901760
    %651 = vmatpush1.msra.mxu0 %v650
    %652 = vmatprep.subr.mxu0 0.0
    %653 = vmatpush2.msra.mxu0 0.0
    %654 = vmatprep.subr.mxu0 0.0
    %655 = vmatpush2.msra.mxu0 0.0
    %656 = vmatprep.subr.mxu0 0.0
    %657 = vmatpush2.msra.mxu0 0.0
    %658 = vmatprep.subr.mxu0 0.0
    %659 = vmatpush2.msra.mxu0 0.0
    %660 = vmatprep.subr.mxu0 0.0
    %661 = vmatpush2.msra.mxu0 0.0
    %662 = vmatprep.subr.mxu0 0.0
    %663 = vmatpush2.msra.mxu0 0.0
    %664 = vmatprep.subr.mxu0 0.0
    %665 = vmatpush2.msra.mxu0 0.0
    %666 = vmatprep.subr.mxu0 0.0
    %667 = vmatpush2.msra.mxu0 0.0
    %668 = vmatprep.subr.mxu0 0.0
    %669 = vmatpush2.msra.mxu0 0.0
    %670 = vmatprep.subr.mxu0 0.0
    %671 = vmatpush2.msra.mxu0 0.0
    %672 = vmatprep.subr.mxu0 0.0
    %673 = vmatpush2.msra.mxu0 0.0
    %674 = vmatprep.subr.mxu0 0.0
    %675 = vmatpush2.msra.mxu0 0.0
    %676 = vmatprep.subr.mxu0 0.0
    %677 = vmatpush2.msra.mxu0 0.0
    %678 = vmatprep.subr.mxu0 0.0
    %679 = vmatpush2.msra.mxu0 0.0
    %680 = vmatprep.subr.mxu0 0.0
    %681 = vmatpush2.msra.mxu0 0.0
    %682 = vmatprep.subr.mxu0 0.0
    %683 = vmatpush2.msra.mxu0 0.0
    %684 = vmatprep.mubr.f32.mxu0 0.0
    %v685 = vand.u32 %v300, 4294901760
    %686 = vmatmul.mubr.f32.gmra.mxu0 %v685
    %v687 = vpop.f32.mrf.mxu0
    %v688 = vadd.f32 %v427, %v687
    %v689 = vpop.f32.mrf.mxu0
    %690 = vmatprep.mubr.f32.mxu0 0.0
    %v691 = vand.u32 %v303, 4294901760
    %692 = vmatmul.mubr.f32.gmra.mxu0 %v691
    %v693 = vpop.f32.mrf.mxu0
    %v694 = vadd.f32 %v437, %v693
    %v695 = vpop.f32.mrf.mxu0
    %696 = vmatprep.mubr.f32.mxu0 0.0
    %v697 = vand.u32 %v306, 4294901760
    %698 = vmatmul.mubr.f32.gmra.mxu0 %v697
    %v699 = vpop.f32.mrf.mxu0
    %v700 = vadd.f32 %v447, %v699
    %v701 = vpop.f32.mrf.mxu0
    %702 = vmatprep.mubr.f32.mxu0 0.0
    %v703 = vand.u32 %v309, 4294901760
    %704 = vmatmul.mubr.f32.gmra.mxu0 %v703
    %v705 = vpop.f32.mrf.mxu0
    %v706 = vadd.f32 %v457, %v705
    %v707 = vpop.f32.mrf.mxu0
    %708 = vmatprep.mubr.f32.mxu0 0.0
    %v709 = vand.u32 %v312, 4294901760
    %710 = vmatmul.mubr.f32.gmra.mxu0 %v709
    %v711 = vpop.f32.mrf.mxu0
    %v712 = vadd.f32 %v467, %v711
    %v713 = vpop.f32.mrf.mxu0
    %714 = vmatprep.mubr.f32.mxu0 0.0
    %v715 = vand.u32 %v315, 4294901760
    %716 = vmatmul.mubr.f32.gmra.mxu0 %v715
    %v717 = vpop.f32.mrf.mxu0
    %v718 = vadd.f32 %v477, %v717
    %v719 = vpop.f32.mrf.mxu0
    %720 = vmatprep.mubr.f32.mxu0 0.0
    %v721 = vand.u32 %v318, 4294901760
    %722 = vmatmul.mubr.f32.gmra.mxu0 %v721
    %v723 = vpop.f32.mrf.mxu0
    %v724 = vadd.f32 %v487, %v723
    %v725 = vpop.f32.mrf.mxu0
    %726 = vmatprep.mubr.f32.mxu0 0.0
    %v727 = vand.u32 %v321, 4294901760
    %728 = vmatmul.mubr.f32.gmra.mxu0 %v727
    %v729 = vpop.f32.mrf.mxu0
    %v730 = vadd.f32 %v497, %v729
    %v731 = vpop.f32.mrf.mxu0
    %732 = vmatprep.mubr.f32.mxu0 0.0
    %v733 = vand.u32 %v324, 4294901760
    %734 = vmatmul.mubr.f32.gmra.mxu0 %v733
    %v735 = vpop.f32.mrf.mxu0
    %v736 = vadd.f32 %v507, %v735
    %v737 = vpop.f32.mrf.mxu0
    %738 = vmatprep.mubr.f32.mxu0 0.0
    %v739 = vand.u32 %v327, 4294901760
    %740 = vmatmul.mubr.f32.gmra.mxu0 %v739
    %v741 = vpop.f32.mrf.mxu0
    %v742 = vadd.f32 %v517, %v741
    %v743 = vpop.f32.mrf.mxu0
    %744 = vmatprep.mubr.f32.mxu0 0.0
    %v745 = vand.u32 %v330, 4294901760
    %746 = vmatmul.mubr.f32.gmra.mxu0 %v745
    %v747 = vpop.f32.mrf.mxu0
    %v748 = vadd.f32 %v527, %v747
    %v749 = vpop.f32.mrf.mxu0
    %750 = vmatprep.mubr.f32.mxu0 0.0
    %v751 = vand.u32 %v333, 4294901760
    %752 = vmatmul.mubr.f32.gmra.mxu0 %v751
    %v753 = vpop.f32.mrf.mxu0
    %v754 = vadd.f32 %v537, %v753
    %v755 = vpop.f32.mrf.mxu0
    %756 = vmatprep.mubr.f32.mxu0 0.0
    %v757 = vand.u32 %v336, 4294901760
    %758 = vmatmul.mubr.f32.gmra.mxu0 %v757
    %v759 = vpop.f32.mrf.mxu0
    %v760 = vadd.f32 %v547, %v759
    %v761 = vpop.f32.mrf.mxu0
    %762 = vmatprep.mubr.f32.mxu0 0.0
    %v763 = vand.u32 %v339, 4294901760
    %764 = vmatmul.mubr.f32.gmra.mxu0 %v763
    %v765 = vpop.f32.mrf.mxu0
    %v766 = vadd.f32 %v557, %v765
    %v767 = vpop.f32.mrf.mxu0
    %768 = vmatprep.mubr.f32.mxu0 0.0
    %v769 = vand.u32 %v342, 4294901760
    %770 = vmatmul.mubr.f32.gmra.mxu0 %v769
    %v771 = vpop.f32.mrf.mxu0
    %v772 = vadd.f32 %v567, %v771
    %v773 = vpop.f32.mrf.mxu0
    %774 = vmatprep.mubr.f32.mxu0 0.0
    %v775 = vand.u32 %v345, 4294901760
    %776 = vmatmul.mubr.f32.gmra.mxu0 %v775
    %v777 = vpop.f32.mrf.mxu0
    %v778 = vadd.f32 %v577, %v777
    %v779 = vpop.f32.mrf.mxu0
    %780 = vdwg.mxu0
    %781 = vmatprep.subr.mxu0 0.0
    %782 = vmatpush1.msra.mxu0 0.0
    %783 = vmatprep.subr.mxu0 0.0
    %784 = vmatpush1.msra.mxu0 0.0
    %785 = vmatprep.subr.mxu0 0.0
    %786 = vmatpush1.msra.mxu0 0.0
    %787 = vmatprep.subr.mxu0 0.0
    %788 = vmatpush1.msra.mxu0 0.0
    %789 = vmatprep.subr.mxu0 0.0
    %790 = vmatpush1.msra.mxu0 0.0
    %791 = vmatprep.subr.mxu0 0.0
    %792 = vmatpush1.msra.mxu0 0.0
    %793 = vmatprep.subr.mxu0 0.0
    %794 = vmatpush1.msra.mxu0 0.0
    %795 = vmatprep.subr.mxu0 0.0
    %796 = vmatpush1.msra.mxu0 0.0
    %797 = vmatprep.subr.mxu0 0.0
    %v798 = vand.u32 %v297, 4294901760
    %v799 = vsub.f32 %v297, %v798
    %800 = vmatpush1.msra.mxu0 %v799
    %801 = vmatprep.subr.mxu0 0.0
    %v802 = vand.u32 %v296, 4294901760
    %v803 = vsub.f32 %v296, %v802
    %804 = vmatpush1.msra.mxu0 %v803
    %805 = vmatprep.subr.mxu0 0.0
    %v806 = vand.u32 %v295, 4294901760
    %v807 = vsub.f32 %v295, %v806
    %808 = vmatpush1.msra.mxu0 %v807
    %809 = vmatprep.subr.mxu0 0.0
    %v810 = vand.u32 %v294, 4294901760
    %v811 = vsub.f32 %v294, %v810
    %812 = vmatpush1.msra.mxu0 %v811
    %813 = vmatprep.subr.mxu0 0.0
    %v814 = vand.u32 %v293, 4294901760
    %v815 = vsub.f32 %v293, %v814
    %816 = vmatpush1.msra.mxu0 %v815
    %817 = vmatprep.subr.mxu0 0.0
    %v818 = vand.u32 %v292, 4294901760
    %v819 = vsub.f32 %v292, %v818
    %820 = vmatpush1.msra.mxu0 %v819
    %821 = vmatprep.subr.mxu0 0.0
    %v822 = vand.u32 %v291, 4294901760
    %v823 = vsub.f32 %v291, %v822
    %824 = vmatpush1.msra.mxu0 %v823
    %825 = vmatprep.subr.mxu0 0.0
    %v826 = vand.u32 %v290, 4294901760
    %v827 = vsub.f32 %v290, %v826
    %828 = vmatpush1.msra.mxu0 %v827
    %829 = vmatprep.subr.mxu0 0.0
    %830 = vmatpush2.msra.mxu0 0.0
    %831 = vmatprep.subr.mxu0 0.0
    %832 = vmatpush2.msra.mxu0 0.0
    %833 = vmatprep.subr.mxu0 0.0
    %834 = vmatpush2.msra.mxu0 0.0
    %835 = vmatprep.subr.mxu0 0.0
    %836 = vmatpush2.msra.mxu0 0.0
    %837 = vmatprep.subr.mxu0 0.0
    %838 = vmatpush2.msra.mxu0 0.0
    %839 = vmatprep.subr.mxu0 0.0
    %840 = vmatpush2.msra.mxu0 0.0
    %841 = vmatprep.subr.mxu0 0.0
    %842 = vmatpush2.msra.mxu0 0.0
    %843 = vmatprep.subr.mxu0 0.0
    %844 = vmatpush2.msra.mxu0 0.0
    %845 = vmatprep.subr.mxu0 0.0
    %846 = vmatpush2.msra.mxu0 0.0
    %847 = vmatprep.subr.mxu0 0.0
    %848 = vmatpush2.msra.mxu0 0.0
    %849 = vmatprep.subr.mxu0 0.0
    %850 = vmatpush2.msra.mxu0 0.0
    %851 = vmatprep.subr.mxu0 0.0
    %852 = vmatpush2.msra.mxu0 0.0
    %853 = vmatprep.subr.mxu0 0.0
    %854 = vmatpush2.msra.mxu0 0.0
    %855 = vmatprep.subr.mxu0 0.0
    %856 = vmatpush2.msra.mxu0 0.0
    %857 = vmatprep.subr.mxu0 0.0
    %858 = vmatpush2.msra.mxu0 0.0
    %859 = vmatprep.subr.mxu0 0.0
    %860 = vmatpush2.msra.mxu0 0.0
    %861 = vmatprep.mubr.f32.mxu0 0.0
    %v862 = vand.u32 %v300, 4294901760
    %v863 = vsub.f32 %v300, %v862
    %864 = vmatmul.mubr.f32.gmra.mxu0 %v863
    %v865 = vpop.f32.mrf.mxu0
    %v866 = vadd.f32 %v688, %v865
    %v867 = vpop.f32.mrf.mxu0
    %868 = vmatprep.mubr.f32.mxu0 0.0
    %v869 = vand.u32 %v303, 4294901760
    %v870 = vsub.f32 %v303, %v869
    %871 = vmatmul.mubr.f32.gmra.mxu0 %v870
    %v872 = vpop.f32.mrf.mxu0
    %v873 = vadd.f32 %v694, %v872
    %v874 = vpop.f32.mrf.mxu0
    %875 = vmatprep.mubr.f32.mxu0 0.0
    %v876 = vand.u32 %v306, 4294901760
    %v877 = vsub.f32 %v306, %v876
    %878 = vmatmul.mubr.f32.gmra.mxu0 %v877
    %v879 = vpop.f32.mrf.mxu0
    %v880 = vadd.f32 %v700, %v879
    %v881 = vpop.f32.mrf.mxu0
    %882 = vmatprep.mubr.f32.mxu0 0.0
    %v883 = vand.u32 %v309, 4294901760
    %v884 = vsub.f32 %v309, %v883
    %885 = vmatmul.mubr.f32.gmra.mxu0 %v884
    %v886 = vpop.f32.mrf.mxu0
    %v887 = vadd.f32 %v706, %v886
    %v888 = vpop.f32.mrf.mxu0
    %889 = vmatprep.mubr.f32.mxu0 0.0
    %v890 = vand.u32 %v312, 4294901760
    %v891 = vsub.f32 %v312, %v890
    %892 = vmatmul.mubr.f32.gmra.mxu0 %v891
    %v893 = vpop.f32.mrf.mxu0
    %v894 = vadd.f32 %v712, %v893
    %v895 = vpop.f32.mrf.mxu0
    %896 = vmatprep.mubr.f32.mxu0 0.0
    %v897 = vand.u32 %v315, 4294901760
    %v898 = vsub.f32 %v315, %v897
    %899 = vmatmul.mubr.f32.gmra.mxu0 %v898
    %v900 = vpop.f32.mrf.mxu0
    %v901 = vadd.f32 %v718, %v900
    %v902 = vpop.f32.mrf.mxu0
    %903 = vmatprep.mubr.f32.mxu0 0.0
    %v904 = vand.u32 %v318, 4294901760
    %v905 = vsub.f32 %v318, %v904
    %906 = vmatmul.mubr.f32.gmra.mxu0 %v905
    %v907 = vpop.f32.mrf.mxu0
    %v908 = vadd.f32 %v724, %v907
    %v909 = vpop.f32.mrf.mxu0
    %910 = vmatprep.mubr.f32.mxu0 0.0
    %v911 = vand.u32 %v321, 4294901760
    %v912 = vsub.f32 %v321, %v911
    %913 = vmatmul.mubr.f32.gmra.mxu0 %v912
    %v914 = vpop.f32.mrf.mxu0
    %v915 = vadd.f32 %v730, %v914
    %v916 = vpop.f32.mrf.mxu0
    %917 = vmatprep.mubr.f32.mxu0 0.0
    %v918 = vand.u32 %v324, 4294901760
    %v919 = vsub.f32 %v324, %v918
    %920 = vmatmul.mubr.f32.gmra.mxu0 %v919
    %v921 = vpop.f32.mrf.mxu0
    %v922 = vadd.f32 %v736, %v921
    %v923 = vpop.f32.mrf.mxu0
    %924 = vmatprep.mubr.f32.mxu0 0.0
    %v925 = vand.u32 %v327, 4294901760
    %v926 = vsub.f32 %v327, %v925
    %927 = vmatmul.mubr.f32.gmra.mxu0 %v926
    %v928 = vpop.f32.mrf.mxu0
    %v929 = vadd.f32 %v742, %v928
    %v930 = vpop.f32.mrf.mxu0
    %931 = vmatprep.mubr.f32.mxu0 0.0
    %v932 = vand.u32 %v330, 4294901760
    %v933 = vsub.f32 %v330, %v932
    %934 = vmatmul.mubr.f32.gmra.mxu0 %v933
    %v935 = vpop.f32.mrf.mxu0
    %v936 = vadd.f32 %v748, %v935
    %v937 = vpop.f32.mrf.mxu0
    %938 = vmatprep.mubr.f32.mxu0 0.0
    %v939 = vand.u32 %v333, 4294901760
    %v940 = vsub.f32 %v333, %v939
    %941 = vmatmul.mubr.f32.gmra.mxu0 %v940
    %v942 = vpop.f32.mrf.mxu0
    %v943 = vadd.f32 %v754, %v942
    %v944 = vpop.f32.mrf.mxu0
    %945 = vmatprep.mubr.f32.mxu0 0.0
    %v946 = vand.u32 %v336, 4294901760
    %v947 = vsub.f32 %v336, %v946
    %948 = vmatmul.mubr.f32.gmra.mxu0 %v947
    %v949 = vpop.f32.mrf.mxu0
    %v950 = vadd.f32 %v760, %v949
    %v951 = vpop.f32.mrf.mxu0
    %952 = vmatprep.mubr.f32.mxu0 0.0
    %v953 = vand.u32 %v339, 4294901760
    %v954 = vsub.f32 %v339, %v953
    %955 = vmatmul.mubr.f32.gmra.mxu0 %v954
    %v956 = vpop.f32.mrf.mxu0
    %v957 = vadd.f32 %v766, %v956
    %v958 = vpop.f32.mrf.mxu0
    %959 = vmatprep.mubr.f32.mxu0 0.0
    %v960 = vand.u32 %v342, 4294901760
    %v961 = vsub.f32 %v342, %v960
    %962 = vmatmul.mubr.f32.gmra.mxu0 %v961
    %v963 = vpop.f32.mrf.mxu0
    %v964 = vadd.f32 %v772, %v963
    %v965 = vpop.f32.mrf.mxu0
    %966 = vmatprep.mubr.f32.mxu0 0.0
    %v967 = vand.u32 %v345, 4294901760
    %v968 = vsub.f32 %v345, %v967
    %969 = vmatmul.mubr.f32.gmra.mxu0 %v968
    %v970 = vpop.f32.mrf.mxu0
    %v971 = vadd.f32 %v778, %v970
    %v972 = vpop.f32.mrf.mxu0
    %973 = vdwg.mxu0
    %974 = vmatprep.subr.mxu0 0.0
    %975 = vmatpush1.msra.mxu0 0.0
    %976 = vmatprep.subr.mxu0 0.0
    %977 = vmatpush1.msra.mxu0 0.0
    %978 = vmatprep.subr.mxu0 0.0
    %979 = vmatpush1.msra.mxu0 0.0
    %980 = vmatprep.subr.mxu0 0.0
    %981 = vmatpush1.msra.mxu0 0.0
    %982 = vmatprep.subr.mxu0 0.0
    %983 = vmatpush1.msra.mxu0 0.0
    %984 = vmatprep.subr.mxu0 0.0
    %985 = vmatpush1.msra.mxu0 0.0
    %986 = vmatprep.subr.mxu0 0.0
    %987 = vmatpush1.msra.mxu0 0.0
    %988 = vmatprep.subr.mxu0 0.0
    %989 = vmatpush1.msra.mxu0 0.0
    %990 = vmatprep.subr.mxu0 0.0
    %v991 = vand.u32 %v297, 4294901760
    %992 = vmatpush1.msra.mxu0 %v991
    %993 = vmatprep.subr.mxu0 0.0
    %v994 = vand.u32 %v296, 4294901760
    %995 = vmatpush1.msra.mxu0 %v994
    %996 = vmatprep.subr.mxu0 0.0
    %v997 = vand.u32 %v295, 4294901760
    %998 = vmatpush1.msra.mxu0 %v997
    %999 = vmatprep.subr.mxu0 0.0
    %v1000 = vand.u32 %v294, 4294901760
    %1001 = vmatpush1.msra.mxu0 %v1000
    %1002 = vmatprep.subr.mxu0 0.0
    %v1003 = vand.u32 %v293, 4294901760
    %1004 = vmatpush1.msra.mxu0 %v1003
    %1005 = vmatprep.subr.mxu0 0.0
    %v1006 = vand.u32 %v292, 4294901760
    %1007 = vmatpush1.msra.mxu0 %v1006
    %1008 = vmatprep.subr.mxu0 0.0
    %v1009 = vand.u32 %v291, 4294901760
    %1010 = vmatpush1.msra.mxu0 %v1009
    %1011 = vmatprep.subr.mxu0 0.0
    %v1012 = vand.u32 %v290, 4294901760
    %1013 = vmatpush1.msra.mxu0 %v1012
    %1014 = vmatprep.subr.mxu0 0.0
    %1015 = vmatpush2.msra.mxu0 0.0
    %1016 = vmatprep.subr.mxu0 0.0
    %1017 = vmatpush2.msra.mxu0 0.0
    %1018 = vmatprep.subr.mxu0 0.0
    %1019 = vmatpush2.msra.mxu0 0.0
    %1020 = vmatprep.subr.mxu0 0.0
    %1021 = vmatpush2.msra.mxu0 0.0
    %1022 = vmatprep.subr.mxu0 0.0
    %1023 = vmatpush2.msra.mxu0 0.0
    %1024 = vmatprep.subr.mxu0 0.0
    %1025 = vmatpush2.msra.mxu0 0.0
    %1026 = vmatprep.subr.mxu0 0.0
    %1027 = vmatpush2.msra.mxu0 0.0
    %1028 = vmatprep.subr.mxu0 0.0
    %1029 = vmatpush2.msra.mxu0 0.0
    %1030 = vmatprep.subr.mxu0 0.0
    %1031 = vmatpush2.msra.mxu0 0.0
    %1032 = vmatprep.subr.mxu0 0.0
    %1033 = vmatpush2.msra.mxu0 0.0
    %1034 = vmatprep.subr.mxu0 0.0
    %1035 = vmatpush2.msra.mxu0 0.0
    %1036 = vmatprep.subr.mxu0 0.0
    %1037 = vmatpush2.msra.mxu0 0.0
    %1038 = vmatprep.subr.mxu0 0.0
    %1039 = vmatpush2.msra.mxu0 0.0
    %1040 = vmatprep.subr.mxu0 0.0
    %1041 = vmatpush2.msra.mxu0 0.0
    %1042 = vmatprep.subr.mxu0 0.0
    %1043 = vmatpush2.msra.mxu0 0.0
    %1044 = vmatprep.subr.mxu0 0.0
    %1045 = vmatpush2.msra.mxu0 0.0
    %1046 = vmatprep.mubr.f32.mxu0 0.0
    %v1047 = vand.u32 %v300, 4294901760
    %v1048 = vsub.f32 %v300, %v1047
    %v1049 = vand.u32 %v1048, 4294901760
    %1050 = vmatmul.mubr.f32.gmra.mxu0 %v1049
    %v1051 = vpop.f32.mrf.mxu0
    %v1052 = vadd.f32 %v866, %v1051
    %v1053 = vpop.f32.mrf.mxu0
    %1054 = vmatprep.mubr.f32.mxu0 0.0
    %v1055 = vand.u32 %v303, 4294901760
    %v1056 = vsub.f32 %v303, %v1055
    %v1057 = vand.u32 %v1056, 4294901760
    %1058 = vmatmul.mubr.f32.gmra.mxu0 %v1057
    %v1059 = vpop.f32.mrf.mxu0
    %v1060 = vadd.f32 %v873, %v1059
    %v1061 = vpop.f32.mrf.mxu0
    %1062 = vmatprep.mubr.f32.mxu0 0.0
    %v1063 = vand.u32 %v306, 4294901760
    %v1064 = vsub.f32 %v306, %v1063
    %v1065 = vand.u32 %v1064, 4294901760
    %1066 = vmatmul.mubr.f32.gmra.mxu0 %v1065
    %v1067 = vpop.f32.mrf.mxu0
    %v1068 = vadd.f32 %v880, %v1067
    %v1069 = vpop.f32.mrf.mxu0
    %1070 = vmatprep.mubr.f32.mxu0 0.0
    %v1071 = vand.u32 %v309, 4294901760
    %v1072 = vsub.f32 %v309, %v1071
    %v1073 = vand.u32 %v1072, 4294901760
    %1074 = vmatmul.mubr.f32.gmra.mxu0 %v1073
    %v1075 = vpop.f32.mrf.mxu0
    %v1076 = vadd.f32 %v887, %v1075
    %v1077 = vpop.f32.mrf.mxu0
    %1078 = vmatprep.mubr.f32.mxu0 0.0
    %v1079 = vand.u32 %v312, 4294901760
    %v1080 = vsub.f32 %v312, %v1079
    %v1081 = vand.u32 %v1080, 4294901760
    %1082 = vmatmul.mubr.f32.gmra.mxu0 %v1081
    %v1083 = vpop.f32.mrf.mxu0
    %v1084 = vadd.f32 %v894, %v1083
    %v1085 = vpop.f32.mrf.mxu0
    %1086 = vmatprep.mubr.f32.mxu0 0.0
    %v1087 = vand.u32 %v315, 4294901760
    %v1088 = vsub.f32 %v315, %v1087
    %v1089 = vand.u32 %v1088, 4294901760
    %1090 = vmatmul.mubr.f32.gmra.mxu0 %v1089
    %v1091 = vpop.f32.mrf.mxu0
    %v1092 = vadd.f32 %v901, %v1091
    %v1093 = vpop.f32.mrf.mxu0
    %1094 = vmatprep.mubr.f32.mxu0 0.0
    %v1095 = vand.u32 %v318, 4294901760
    %v1096 = vsub.f32 %v318, %v1095
    %v1097 = vand.u32 %v1096, 4294901760
    %1098 = vmatmul.mubr.f32.gmra.mxu0 %v1097
    %v1099 = vpop.f32.mrf.mxu0
    %v1100 = vadd.f32 %v908, %v1099
    %v1101 = vpop.f32.mrf.mxu0
    %1102 = vmatprep.mubr.f32.mxu0 0.0
    %v1103 = vand.u32 %v321, 4294901760
    %v1104 = vsub.f32 %v321, %v1103
    %v1105 = vand.u32 %v1104, 4294901760
    %1106 = vmatmul.mubr.f32.gmra.mxu0 %v1105
    %v1107 = vpop.f32.mrf.mxu0
    %v1108 = vadd.f32 %v915, %v1107
    %v1109 = vpop.f32.mrf.mxu0
    %1110 = vmatprep.mubr.f32.mxu0 0.0
    %v1111 = vand.u32 %v324, 4294901760
    %v1112 = vsub.f32 %v324, %v1111
    %v1113 = vand.u32 %v1112, 4294901760
    %1114 = vmatmul.mubr.f32.gmra.mxu0 %v1113
    %v1115 = vpop.f32.mrf.mxu0
    %v1116 = vadd.f32 %v922, %v1115
    %v1117 = vpop.f32.mrf.mxu0
    %1118 = vmatprep.mubr.f32.mxu0 0.0
    %v1119 = vand.u32 %v327, 4294901760
    %v1120 = vsub.f32 %v327, %v1119
    %v1121 = vand.u32 %v1120, 4294901760
    %1122 = vmatmul.mubr.f32.gmra.mxu0 %v1121
    %v1123 = vpop.f32.mrf.mxu0
    %v1124 = vadd.f32 %v929, %v1123
    %v1125 = vpop.f32.mrf.mxu0
    %1126 = vmatprep.mubr.f32.mxu0 0.0
    %v1127 = vand.u32 %v330, 4294901760
    %v1128 = vsub.f32 %v330, %v1127
    %v1129 = vand.u32 %v1128, 4294901760
    %1130 = vmatmul.mubr.f32.gmra.mxu0 %v1129
    %v1131 = vpop.f32.mrf.mxu0
    %v1132 = vadd.f32 %v936, %v1131
    %v1133 = vpop.f32.mrf.mxu0
    %1134 = vmatprep.mubr.f32.mxu0 0.0
    %v1135 = vand.u32 %v333, 4294901760
    %v1136 = vsub.f32 %v333, %v1135
    %v1137 = vand.u32 %v1136, 4294901760
    %1138 = vmatmul.mubr.f32.gmra.mxu0 %v1137
    %v1139 = vpop.f32.mrf.mxu0
    %v1140 = vadd.f32 %v943, %v1139
    %v1141 = vpop.f32.mrf.mxu0
    %1142 = vmatprep.mubr.f32.mxu0 0.0
    %v1143 = vand.u32 %v336, 4294901760
    %v1144 = vsub.f32 %v336, %v1143
    %v1145 = vand.u32 %v1144, 4294901760
    %1146 = vmatmul.mubr.f32.gmra.mxu0 %v1145
    %v1147 = vpop.f32.mrf.mxu0
    %v1148 = vadd.f32 %v950, %v1147
    %v1149 = vpop.f32.mrf.mxu0
    %1150 = vmatprep.mubr.f32.mxu0 0.0
    %v1151 = vand.u32 %v339, 4294901760
    %v1152 = vsub.f32 %v339, %v1151
    %v1153 = vand.u32 %v1152, 4294901760
    %1154 = vmatmul.mubr.f32.gmra.mxu0 %v1153
    %v1155 = vpop.f32.mrf.mxu0
    %v1156 = vadd.f32 %v957, %v1155
    %v1157 = vpop.f32.mrf.mxu0
    %1158 = vmatprep.mubr.f32.mxu0 0.0
    %v1159 = vand.u32 %v342, 4294901760
    %v1160 = vsub.f32 %v342, %v1159
    %v1161 = vand.u32 %v1160, 4294901760
    %1162 = vmatmul.mubr.f32.gmra.mxu0 %v1161
    %v1163 = vpop.f32.mrf.mxu0
    %v1164 = vadd.f32 %v964, %v1163
    %v1165 = vpop.f32.mrf.mxu0
    %1166 = vmatprep.mubr.f32.mxu0 0.0
    %v1167 = vand.u32 %v345, 4294901760
    %v1168 = vsub.f32 %v345, %v1167
    %v1169 = vand.u32 %v1168, 4294901760
    %1170 = vmatmul.mubr.f32.gmra.mxu0 %v1169
    %v1171 = vpop.f32.mrf.mxu0
    %v1172 = vadd.f32 %v971, %v1171
    %v1173 = vpop.f32.mrf.mxu0
    %1174 = vdwg.mxu0
    %1175 = vmatprep.subr.mxu0 0.0
    %1176 = vmatpush1.msra.mxu0 0.0
    %1177 = vmatprep.subr.mxu0 0.0
    %1178 = vmatpush1.msra.mxu0 0.0
    %1179 = vmatprep.subr.mxu0 0.0
    %1180 = vmatpush1.msra.mxu0 0.0
    %1181 = vmatprep.subr.mxu0 0.0
    %1182 = vmatpush1.msra.mxu0 0.0
    %1183 = vmatprep.subr.mxu0 0.0
    %1184 = vmatpush1.msra.mxu0 0.0
    %1185 = vmatprep.subr.mxu0 0.0
    %1186 = vmatpush1.msra.mxu0 0.0
    %1187 = vmatprep.subr.mxu0 0.0
    %1188 = vmatpush1.msra.mxu0 0.0
    %1189 = vmatprep.subr.mxu0 0.0
    %1190 = vmatpush1.msra.mxu0 0.0
    %1191 = vmatprep.subr.mxu0 0.0
    %v1192 = vand.u32 %v297, 4294901760
    %v1193 = vsub.f32 %v297, %v1192
    %v1194 = vand.u32 %v1193, 4294901760
    %1195 = vmatpush1.msra.mxu0 %v1194
    %1196 = vmatprep.subr.mxu0 0.0
    %v1197 = vand.u32 %v296, 4294901760
    %v1198 = vsub.f32 %v296, %v1197
    %v1199 = vand.u32 %v1198, 4294901760
    %1200 = vmatpush1.msra.mxu0 %v1199
    %1201 = vmatprep.subr.mxu0 0.0
    %v1202 = vand.u32 %v295, 4294901760
    %v1203 = vsub.f32 %v295, %v1202
    %v1204 = vand.u32 %v1203, 4294901760
    %1205 = vmatpush1.msra.mxu0 %v1204
    %1206 = vmatprep.subr.mxu0 0.0
    %v1207 = vand.u32 %v294, 4294901760
    %v1208 = vsub.f32 %v294, %v1207
    %v1209 = vand.u32 %v1208, 4294901760
    %1210 = vmatpush1.msra.mxu0 %v1209
    %1211 = vmatprep.subr.mxu0 0.0
    %v1212 = vand.u32 %v293, 4294901760
    %v1213 = vsub.f32 %v293, %v1212
    %v1214 = vand.u32 %v1213, 4294901760
    %1215 = vmatpush1.msra.mxu0 %v1214
    %1216 = vmatprep.subr.mxu0 0.0
    %v1217 = vand.u32 %v292, 4294901760
    %v1218 = vsub.f32 %v292, %v1217
    %v1219 = vand.u32 %v1218, 4294901760
    %1220 = vmatpush1.msra.mxu0 %v1219
    %1221 = vmatprep.subr.mxu0 0.0
    %v1222 = vand.u32 %v291, 4294901760
    %v1223 = vsub.f32 %v291, %v1222
    %v1224 = vand.u32 %v1223, 4294901760
    %1225 = vmatpush1.msra.mxu0 %v1224
    %1226 = vmatprep.subr.mxu0 0.0
    %v1227 = vand.u32 %v290, 4294901760
    %v1228 = vsub.f32 %v290, %v1227
    %v1229 = vand.u32 %v1228, 4294901760
    %1230 = vmatpush1.msra.mxu0 %v1229
    %1231 = vmatprep.subr.mxu0 0.0
    %1232 = vmatpush2.msra.mxu0 0.0
    %1233 = vmatprep.subr.mxu0 0.0
    %1234 = vmatpush2.msra.mxu0 0.0
    %1235 = vmatprep.subr.mxu0 0.0
    %1236 = vmatpush2.msra.mxu0 0.0
    %1237 = vmatprep.subr.mxu0 0.0
    %1238 = vmatpush2.msra.mxu0 0.0
    %1239 = vmatprep.subr.mxu0 0.0
    %1240 = vmatpush2.msra.mxu0 0.0
    %1241 = vmatprep.subr.mxu0 0.0
    %1242 = vmatpush2.msra.mxu0 0.0
    %1243 = vmatprep.subr.mxu0 0.0
    %1244 = vmatpush2.msra.mxu0 0.0
    %1245 = vmatprep.subr.mxu0 0.0
    %1246 = vmatpush2.msra.mxu0 0.0
    %1247 = vmatprep.subr.mxu0 0.0
    %1248 = vmatpush2.msra.mxu0 0.0
    %1249 = vmatprep.subr.mxu0 0.0
    %1250 = vmatpush2.msra.mxu0 0.0
    %1251 = vmatprep.subr.mxu0 0.0
    %1252 = vmatpush2.msra.mxu0 0.0
    %1253 = vmatprep.subr.mxu0 0.0
    %1254 = vmatpush2.msra.mxu0 0.0
    %1255 = vmatprep.subr.mxu0 0.0
    %1256 = vmatpush2.msra.mxu0 0.0
    %1257 = vmatprep.subr.mxu0 0.0
    %1258 = vmatpush2.msra.mxu0 0.0
    %1259 = vmatprep.subr.mxu0 0.0
    %1260 = vmatpush2.msra.mxu0 0.0
    %1261 = vmatprep.subr.mxu0 0.0
    %1262 = vmatpush2.msra.mxu0 0.0
    %1263 = vmatprep.mubr.f32.mxu0 0.0
    %v1264 = vand.u32 %v300, 4294901760
    %1265 = vmatmul.mubr.f32.gmra.mxu0 %v1264
    %v1266 = vpop.f32.mrf.mxu0
    %v1267 = vadd.f32 %v1052, %v1266
    %v1268 = vpop.f32.mrf.mxu0
    %1269 = vmatprep.mubr.f32.mxu0 0.0
    %v1270 = vand.u32 %v303, 4294901760
    %1271 = vmatmul.mubr.f32.gmra.mxu0 %v1270
    %v1272 = vpop.f32.mrf.mxu0
    %v1273 = vadd.f32 %v1060, %v1272
    %v1274 = vpop.f32.mrf.mxu0
    %1275 = vmatprep.mubr.f32.mxu0 0.0
    %v1276 = vand.u32 %v306, 4294901760
    %1277 = vmatmul.mubr.f32.gmra.mxu0 %v1276
    %v1278 = vpop.f32.mrf.mxu0
    %v1279 = vadd.f32 %v1068, %v1278
    %v1280 = vpop.f32.mrf.mxu0
    %1281 = vmatprep.mubr.f32.mxu0 0.0
    %v1282 = vand.u32 %v309, 4294901760
    %1283 = vmatmul.mubr.f32.gmra.mxu0 %v1282
    %v1284 = vpop.f32.mrf.mxu0
    %v1285 = vadd.f32 %v1076, %v1284
    %v1286 = vpop.f32.mrf.mxu0
    %1287 = vmatprep.mubr.f32.mxu0 0.0
    %v1288 = vand.u32 %v312, 4294901760
    %1289 = vmatmul.mubr.f32.gmra.mxu0 %v1288
    %v1290 = vpop.f32.mrf.mxu0
    %v1291 = vadd.f32 %v1084, %v1290
    %v1292 = vpop.f32.mrf.mxu0
    %1293 = vmatprep.mubr.f32.mxu0 0.0
    %v1294 = vand.u32 %v315, 4294901760
    %1295 = vmatmul.mubr.f32.gmra.mxu0 %v1294
    %v1296 = vpop.f32.mrf.mxu0
    %v1297 = vadd.f32 %v1092, %v1296
    %v1298 = vpop.f32.mrf.mxu0
    %1299 = vmatprep.mubr.f32.mxu0 0.0
    %v1300 = vand.u32 %v318, 4294901760
    %1301 = vmatmul.mubr.f32.gmra.mxu0 %v1300
    %v1302 = vpop.f32.mrf.mxu0
    %v1303 = vadd.f32 %v1100, %v1302
    %v1304 = vpop.f32.mrf.mxu0
    %1305 = vmatprep.mubr.f32.mxu0 0.0
    %v1306 = vand.u32 %v321, 4294901760
    %1307 = vmatmul.mubr.f32.gmra.mxu0 %v1306
    %v1308 = vpop.f32.mrf.mxu0
    %v1309 = vadd.f32 %v1108, %v1308
    %v1310 = vpop.f32.mrf.mxu0
    %1311 = vmatprep.mubr.f32.mxu0 0.0
    %v1312 = vand.u32 %v324, 4294901760
    %1313 = vmatmul.mubr.f32.gmra.mxu0 %v1312
    %v1314 = vpop.f32.mrf.mxu0
    %v1315 = vadd.f32 %v1116, %v1314
    %v1316 = vpop.f32.mrf.mxu0
    %1317 = vmatprep.mubr.f32.mxu0 0.0
    %v1318 = vand.u32 %v327, 4294901760
    %1319 = vmatmul.mubr.f32.gmra.mxu0 %v1318
    %v1320 = vpop.f32.mrf.mxu0
    %v1321 = vadd.f32 %v1124, %v1320
    %v1322 = vpop.f32.mrf.mxu0
    %1323 = vmatprep.mubr.f32.mxu0 0.0
    %v1324 = vand.u32 %v330, 4294901760
    %1325 = vmatmul.mubr.f32.gmra.mxu0 %v1324
    %v1326 = vpop.f32.mrf.mxu0
    %v1327 = vadd.f32 %v1132, %v1326
    %v1328 = vpop.f32.mrf.mxu0
    %1329 = vmatprep.mubr.f32.mxu0 0.0
    %v1330 = vand.u32 %v333, 4294901760
    %1331 = vmatmul.mubr.f32.gmra.mxu0 %v1330
    %v1332 = vpop.f32.mrf.mxu0
    %v1333 = vadd.f32 %v1140, %v1332
    %v1334 = vpop.f32.mrf.mxu0
    %1335 = vmatprep.mubr.f32.mxu0 0.0
    %v1336 = vand.u32 %v336, 4294901760
    %1337 = vmatmul.mubr.f32.gmra.mxu0 %v1336
    %v1338 = vpop.f32.mrf.mxu0
    %v1339 = vadd.f32 %v1148, %v1338
    %v1340 = vpop.f32.mrf.mxu0
    %1341 = vmatprep.mubr.f32.mxu0 0.0
    %v1342 = vand.u32 %v339, 4294901760
    %1343 = vmatmul.mubr.f32.gmra.mxu0 %v1342
    %v1344 = vpop.f32.mrf.mxu0
    %v1345 = vadd.f32 %v1156, %v1344
    %v1346 = vpop.f32.mrf.mxu0
    %1347 = vmatprep.mubr.f32.mxu0 0.0
    %v1348 = vand.u32 %v342, 4294901760
    %1349 = vmatmul.mubr.f32.gmra.mxu0 %v1348
    %v1350 = vpop.f32.mrf.mxu0
    %v1351 = vadd.f32 %v1164, %v1350
    %v1352 = vpop.f32.mrf.mxu0
    %1353 = vmatprep.mubr.f32.mxu0 0.0
    %v1354 = vand.u32 %v345, 4294901760
    %1355 = vmatmul.mubr.f32.gmra.mxu0 %v1354
    %v1356 = vpop.f32.mrf.mxu0
    %v1357 = vadd.f32 %v1172, %v1356
    %v1358 = vpop.f32.mrf.mxu0
    %1359 = vdwg.mxu0
    %1360 = vmatprep.subr.mxu0 0.0
    %1361 = vmatpush1.msra.mxu0 0.0
    %1362 = vmatprep.subr.mxu0 0.0
    %1363 = vmatpush1.msra.mxu0 0.0
    %1364 = vmatprep.subr.mxu0 0.0
    %1365 = vmatpush1.msra.mxu0 0.0
    %1366 = vmatprep.subr.mxu0 0.0
    %1367 = vmatpush1.msra.mxu0 0.0
    %1368 = vmatprep.subr.mxu0 0.0
    %1369 = vmatpush1.msra.mxu0 0.0
    %1370 = vmatprep.subr.mxu0 0.0
    %1371 = vmatpush1.msra.mxu0 0.0
    %1372 = vmatprep.subr.mxu0 0.0
    %1373 = vmatpush1.msra.mxu0 0.0
    %1374 = vmatprep.subr.mxu0 0.0
    %1375 = vmatpush1.msra.mxu0 0.0
    %1376 = vmatprep.subr.mxu0 0.0
    %v1377 = vand.u32 %v297, 4294901760
    %1378 = vmatpush1.msra.mxu0 %v1377
    %1379 = vmatprep.subr.mxu0 0.0
    %v1380 = vand.u32 %v296, 4294901760
    %1381 = vmatpush1.msra.mxu0 %v1380
    %1382 = vmatprep.subr.mxu0 0.0
    %v1383 = vand.u32 %v295, 4294901760
    %1384 = vmatpush1.msra.mxu0 %v1383
    %1385 = vmatprep.subr.mxu0 0.0
    %v1386 = vand.u32 %v294, 4294901760
    %1387 = vmatpush1.msra.mxu0 %v1386
    %1388 = vmatprep.subr.mxu0 0.0
    %v1389 = vand.u32 %v293, 4294901760
    %1390 = vmatpush1.msra.mxu0 %v1389
    %1391 = vmatprep.subr.mxu0 0.0
    %v1392 = vand.u32 %v292, 4294901760
    %1393 = vmatpush1.msra.mxu0 %v1392
    %1394 = vmatprep.subr.mxu0 0.0
    %v1395 = vand.u32 %v291, 4294901760
    %1396 = vmatpush1.msra.mxu0 %v1395
    %1397 = vmatprep.subr.mxu0 0.0
    %v1398 = vand.u32 %v290, 4294901760
    %1399 = vmatpush1.msra.mxu0 %v1398
    %1400 = vmatprep.subr.mxu0 0.0
    %1401 = vmatpush2.msra.mxu0 0.0
    %1402 = vmatprep.subr.mxu0 0.0
    %1403 = vmatpush2.msra.mxu0 0.0
    %1404 = vmatprep.subr.mxu0 0.0
    %1405 = vmatpush2.msra.mxu0 0.0
    %1406 = vmatprep.subr.mxu0 0.0
    %1407 = vmatpush2.msra.mxu0 0.0
    %1408 = vmatprep.subr.mxu0 0.0
    %1409 = vmatpush2.msra.mxu0 0.0
    %1410 = vmatprep.subr.mxu0 0.0
    %1411 = vmatpush2.msra.mxu0 0.0
    %1412 = vmatprep.subr.mxu0 0.0
    %1413 = vmatpush2.msra.mxu0 0.0
    %1414 = vmatprep.subr.mxu0 0.0
    %1415 = vmatpush2.msra.mxu0 0.0
    %1416 = vmatprep.subr.mxu0 0.0
    %1417 = vmatpush2.msra.mxu0 0.0
    %1418 = vmatprep.subr.mxu0 0.0
    %1419 = vmatpush2.msra.mxu0 0.0
    %1420 = vmatprep.subr.mxu0 0.0
    %1421 = vmatpush2.msra.mxu0 0.0
    %1422 = vmatprep.subr.mxu0 0.0
    %1423 = vmatpush2.msra.mxu0 0.0
    %1424 = vmatprep.subr.mxu0 0.0
    %1425 = vmatpush2.msra.mxu0 0.0
    %1426 = vmatprep.subr.mxu0 0.0
    %1427 = vmatpush2.msra.mxu0 0.0
    %1428 = vmatprep.subr.mxu0 0.0
    %1429 = vmatpush2.msra.mxu0 0.0
    %1430 = vmatprep.subr.mxu0 0.0
    %1431 = vmatpush2.msra.mxu0 0.0
    %1432 = vmatprep.mubr.f32.mxu0 0.0
    %v1433 = vand.u32 %v300, 4294901760
    %1434 = vmatmul.mubr.f32.gmra.mxu0 %v1433
    %v1435 = vpop.f32.mrf.mxu0
    %v1436 = vadd.f32 %v1267, %v1435
    %v1437 = vpop.f32.mrf.mxu0
    %1438 = vmatprep.mubr.f32.mxu0 0.0
    %v1439 = vand.u32 %v303, 4294901760
    %1440 = vmatmul.mubr.f32.gmra.mxu0 %v1439
    %v1441 = vpop.f32.mrf.mxu0
    %v1442 = vadd.f32 %v1273, %v1441
    %v1443 = vpop.f32.mrf.mxu0
    %1444 = vmatprep.mubr.f32.mxu0 0.0
    %v1445 = vand.u32 %v306, 4294901760
    %1446 = vmatmul.mubr.f32.gmra.mxu0 %v1445
    %v1447 = vpop.f32.mrf.mxu0
    %v1448 = vadd.f32 %v1279, %v1447
    %v1449 = vpop.f32.mrf.mxu0
    %1450 = vmatprep.mubr.f32.mxu0 0.0
    %v1451 = vand.u32 %v309, 4294901760
    %1452 = vmatmul.mubr.f32.gmra.mxu0 %v1451
    %v1453 = vpop.f32.mrf.mxu0
    %v1454 = vadd.f32 %v1285, %v1453
    %v1455 = vpop.f32.mrf.mxu0
    %1456 = vmatprep.mubr.f32.mxu0 0.0
    %v1457 = vand.u32 %v312, 4294901760
    %1458 = vmatmul.mubr.f32.gmra.mxu0 %v1457
    %v1459 = vpop.f32.mrf.mxu0
    %v1460 = vadd.f32 %v1291, %v1459
    %v1461 = vpop.f32.mrf.mxu0
    %1462 = vmatprep.mubr.f32.mxu0 0.0
    %v1463 = vand.u32 %v315, 4294901760
    %1464 = vmatmul.mubr.f32.gmra.mxu0 %v1463
    %v1465 = vpop.f32.mrf.mxu0
    %v1466 = vadd.f32 %v1297, %v1465
    %v1467 = vpop.f32.mrf.mxu0
    %1468 = vmatprep.mubr.f32.mxu0 0.0
    %v1469 = vand.u32 %v318, 4294901760
    %1470 = vmatmul.mubr.f32.gmra.mxu0 %v1469
    %v1471 = vpop.f32.mrf.mxu0
    %v1472 = vadd.f32 %v1303, %v1471
    %v1473 = vpop.f32.mrf.mxu0
    %1474 = vmatprep.mubr.f32.mxu0 0.0
    %v1475 = vand.u32 %v321, 4294901760
    %1476 = vmatmul.mubr.f32.gmra.mxu0 %v1475
    %v1477 = vpop.f32.mrf.mxu0
    %v1478 = vadd.f32 %v1309, %v1477
    %v1479 = vpop.f32.mrf.mxu0
    %1480 = vmatprep.mubr.f32.mxu0 0.0
    %v1481 = vand.u32 %v324, 4294901760
    %1482 = vmatmul.mubr.f32.gmra.mxu0 %v1481
    %v1483 = vpop.f32.mrf.mxu0
    %v1484 = vadd.f32 %v1315, %v1483
    %v1485 = vpop.f32.mrf.mxu0
    %1486 = vmatprep.mubr.f32.mxu0 0.0
    %v1487 = vand.u32 %v327, 4294901760
    %1488 = vmatmul.mubr.f32.gmra.mxu0 %v1487
    %v1489 = vpop.f32.mrf.mxu0
    %v1490 = vadd.f32 %v1321, %v1489
    %v1491 = vpop.f32.mrf.mxu0
    %1492 = vmatprep.mubr.f32.mxu0 0.0
    %v1493 = vand.u32 %v330, 4294901760
    %1494 = vmatmul.mubr.f32.gmra.mxu0 %v1493
    %v1495 = vpop.f32.mrf.mxu0
    %v1496 = vadd.f32 %v1327, %v1495
    %v1497 = vpop.f32.mrf.mxu0
    %1498 = vmatprep.mubr.f32.mxu0 0.0
    %v1499 = vand.u32 %v333, 4294901760
    %1500 = vmatmul.mubr.f32.gmra.mxu0 %v1499
    %v1501 = vpop.f32.mrf.mxu0
    %v1502 = vadd.f32 %v1333, %v1501
    %v1503 = vpop.f32.mrf.mxu0
    %1504 = vmatprep.mubr.f32.mxu0 0.0
    %v1505 = vand.u32 %v336, 4294901760
    %1506 = vmatmul.mubr.f32.gmra.mxu0 %v1505
    %v1507 = vpop.f32.mrf.mxu0
    %v1508 = vadd.f32 %v1339, %v1507
    %v1509 = vpop.f32.mrf.mxu0
    %1510 = vmatprep.mubr.f32.mxu0 0.0
    %v1511 = vand.u32 %v339, 4294901760
    %1512 = vmatmul.mubr.f32.gmra.mxu0 %v1511
    %v1513 = vpop.f32.mrf.mxu0
    %v1514 = vadd.f32 %v1345, %v1513
    %v1515 = vpop.f32.mrf.mxu0
    %1516 = vmatprep.mubr.f32.mxu0 0.0
    %v1517 = vand.u32 %v342, 4294901760
    %1518 = vmatmul.mubr.f32.gmra.mxu0 %v1517
    %v1519 = vpop.f32.mrf.mxu0
    %v1520 = vadd.f32 %v1351, %v1519
    %v1521 = vpop.f32.mrf.mxu0
    %1522 = vmatprep.mubr.f32.mxu0 0.0
    %v1523 = vand.u32 %v345, 4294901760
    %1524 = vmatmul.mubr.f32.gmra.mxu0 %v1523
    %v1525 = vpop.f32.mrf.mxu0
    %v1526 = vadd.f32 %v1357, %v1525
    %v1527 = vpop.f32.mrf.mxu0
    %1528 = vdwg.mxu0
    %1529 = vxpose.xlu0.b32.start [1/16] %v151, 128
    %1530 = vxpose.xlu0.b32.cont [2/16] 0, 128
    %1531 = vxpose.xlu0.b32.cont [3/16] 0, 128
    %1532 = vxpose.xlu0.b32.cont [4/16] 0, 128
    %1533 = vxpose.xlu0.b32.cont [5/16] 0, 128
    %1534 = vxpose.xlu0.b32.cont [6/16] 0, 128
    %1535 = vxpose.xlu0.b32.cont [7/16] 0, 128
    %1536 = vxpose.xlu0.b32.cont [8/16] 0, 128
    %1537 = vxpose.xlu0.b32.cont [9/16] 0, 128
    %1538 = vxpose.xlu0.b32.cont [10/16] 0, 128
    %1539 = vxpose.xlu0.b32.cont [11/16] 0, 128
    %1540 = vxpose.xlu0.b32.cont [12/16] 0, 128
    %1541 = vxpose.xlu0.b32.cont [13/16] 0, 128
    %1542 = vxpose.xlu0.b32.cont [14/16] 0, 128
    %1543 = vxpose.xlu0.b32.cont [15/16] 0, 128
    %1544 = vxpose.xlu0.b32.end [16/16] 0, 128
    %v1545 = vpop.trf.xlu0
    %v1546 = vpop.trf.xlu0
    %v1547 = vpop.trf.xlu0
    %v1548 = vpop.trf.xlu0
    %v1549 = vpop.trf.xlu0
    %v1550 = vpop.trf.xlu0
    %v1551 = vpop.trf.xlu0
    %v1552 = vpop.trf.xlu0
    %v1553 = vpop.trf.xlu0
    %v1554 = vpop.trf.xlu0
    %v1555 = vpop.trf.xlu0
    %v1556 = vpop.trf.xlu0
    %v1557 = vpop.trf.xlu0
    %v1558 = vpop.trf.xlu0
    %v1559 = vpop.trf.xlu0
    %v1560 = vpop.trf.xlu0
    %v1561 = vlaneseq
    %v1562 = vshrl.u32 %v1561, 7
    %v1563 = vsub.s32 0, %v1562
    %v1564 = vrot.slane %v1545, %v1563
    %1566 = vbcast.lane.b32.xlu0 %v1564, 256
    %v1567 = vpop.permute.xlu0 %1566
    %v1568 = vlaneseq
    %v1569 = vshrl.u32 %v1568, 7
    %v1570 = vsub.s32 1, %v1569
    %v1571 = vrot.slane %v1545, %v1570
    %1573 = vbcast.lane.b32.xlu0 %v1571, 256
    %v1574 = vpop.permute.xlu0 %1573
    %v1575 = vlaneseq
    %v1576 = vshrl.u32 %v1575, 7
    %v1577 = vsub.s32 2, %v1576
    %v1578 = vrot.slane %v1545, %v1577
    %1580 = vbcast.lane.b32.xlu0 %v1578, 256
    %v1581 = vpop.permute.xlu0 %1580
    %v1582 = vlaneseq
    %v1583 = vshrl.u32 %v1582, 7
    %v1584 = vsub.s32 3, %v1583
    %v1585 = vrot.slane %v1545, %v1584
    %1587 = vbcast.lane.b32.xlu0 %v1585, 256
    %v1588 = vpop.permute.xlu0 %1587
    %v1589 = vlaneseq
    %v1590 = vshrl.u32 %v1589, 7
    %v1591 = vsub.s32 4, %v1590
    %v1592 = vrot.slane %v1545, %v1591
    %1594 = vbcast.lane.b32.xlu0 %v1592, 256
    %v1595 = vpop.permute.xlu0 %1594
    %v1596 = vlaneseq
    %v1597 = vshrl.u32 %v1596, 7
    %v1598 = vsub.s32 5, %v1597
    %v1599 = vrot.slane %v1545, %v1598
    %1601 = vbcast.lane.b32.xlu0 %v1599, 256
    %v1602 = vpop.permute.xlu0 %1601
    %v1603 = vlaneseq
    %v1604 = vshrl.u32 %v1603, 7
    %v1605 = vsub.s32 6, %v1604
    %v1606 = vrot.slane %v1545, %v1605
    %1608 = vbcast.lane.b32.xlu0 %v1606, 256
    %v1609 = vpop.permute.xlu0 %1608
    %v1610 = vlaneseq
    %v1611 = vshrl.u32 %v1610, 7
    %v1612 = vsub.s32 7, %v1611
    %v1613 = vrot.slane %v1545, %v1612
    %1615 = vbcast.lane.b32.xlu0 %v1613, 256
    %v1616 = vpop.permute.xlu0 %1615
    %v1617 = vlaneseq
    %v1618 = vshrl.u32 %v1617, 7
    %v1619 = vsub.s32 0, %v1618
    %v1620 = vrot.slane %v1546, %v1619
    %1622 = vbcast.lane.b32.xlu0 %v1620, 256
    %v1623 = vpop.permute.xlu0 %1622
    %v1624 = vlaneseq
    %v1625 = vshrl.u32 %v1624, 7
    %v1626 = vsub.s32 1, %v1625
    %v1627 = vrot.slane %v1546, %v1626
    %1629 = vbcast.lane.b32.xlu0 %v1627, 256
    %v1630 = vpop.permute.xlu0 %1629
    %v1631 = vlaneseq
    %v1632 = vshrl.u32 %v1631, 7
    %v1633 = vsub.s32 2, %v1632
    %v1634 = vrot.slane %v1546, %v1633
    %1636 = vbcast.lane.b32.xlu0 %v1634, 256
    %v1637 = vpop.permute.xlu0 %1636
    %v1638 = vlaneseq
    %v1639 = vshrl.u32 %v1638, 7
    %v1640 = vsub.s32 3, %v1639
    %v1641 = vrot.slane %v1546, %v1640
    %1643 = vbcast.lane.b32.xlu0 %v1641, 256
    %v1644 = vpop.permute.xlu0 %1643
    %v1645 = vlaneseq
    %v1646 = vshrl.u32 %v1645, 7
    %v1647 = vsub.s32 4, %v1646
    %v1648 = vrot.slane %v1546, %v1647
    %1650 = vbcast.lane.b32.xlu0 %v1648, 256
    %v1651 = vpop.permute.xlu0 %1650
    %v1652 = vlaneseq
    %v1653 = vshrl.u32 %v1652, 7
    %v1654 = vsub.s32 5, %v1653
    %v1655 = vrot.slane %v1546, %v1654
    %1657 = vbcast.lane.b32.xlu0 %v1655, 256
    %v1658 = vpop.permute.xlu0 %1657
    %v1659 = vlaneseq
    %v1660 = vshrl.u32 %v1659, 7
    %v1661 = vsub.s32 6, %v1660
    %v1662 = vrot.slane %v1546, %v1661
    %1664 = vbcast.lane.b32.xlu0 %v1662, 256
    %v1665 = vpop.permute.xlu0 %1664
    %v1666 = vlaneseq
    %v1667 = vshrl.u32 %v1666, 7
    %v1668 = vsub.s32 7, %v1667
    %v1669 = vrot.slane %v1546, %v1668
    %1671 = vbcast.lane.b32.xlu0 %v1669, 256
    %v1672 = vpop.permute.xlu0 %1671
    %vm1673 = vcmp.eq.s32.totalorder %v1567, %v153
    %vm1674 = vcmp.eq.s32.totalorder %v1574, %v153
    %vm1675 = vcmp.eq.s32.totalorder %v1581, %v153
    %vm1676 = vcmp.eq.s32.totalorder %v1588, %v153
    %vm1677 = vcmp.eq.s32.totalorder %v1595, %v153
    %vm1678 = vcmp.eq.s32.totalorder %v1602, %v153
    %vm1679 = vcmp.eq.s32.totalorder %v1609, %v153
    %vm1680 = vcmp.eq.s32.totalorder %v1616, %v153
    %vm1681 = vcmp.eq.s32.totalorder %v1623, %v153
    %vm1682 = vcmp.eq.s32.totalorder %v1630, %v153
    %vm1683 = vcmp.eq.s32.totalorder %v1637, %v153
    %vm1684 = vcmp.eq.s32.totalorder %v1644, %v153
    %vm1685 = vcmp.eq.s32.totalorder %v1651, %v153
    %vm1686 = vcmp.eq.s32.totalorder %v1658, %v153
    %vm1687 = vcmp.eq.s32.totalorder %v1665, %v153
    %vm1688 = vcmp.eq.s32.totalorder %v1672, %v153
    %v1689 = vsel %vm1673, 1, 0
    %v1690 = vsel %vm1674, 1, 0
    %v1691 = vsel %vm1675, 1, 0
    %v1692 = vsel %vm1676, 1, 0
    %v1693 = vsel %vm1677, 1, 0
    %v1694 = vsel %vm1678, 1, 0
    %v1695 = vsel %vm1679, 1, 0
    %v1696 = vsel %vm1680, 1, 0
    %v1697 = vsel %vm1681, 1, 0
    %v1698 = vsel %vm1682, 1, 0
    %v1699 = vsel %vm1683, 1, 0
    %v1700 = vsel %vm1684, 1, 0
    %v1701 = vsel %vm1685, 1, 0
    %v1702 = vsel %vm1686, 1, 0
    %v1703 = vsel %vm1687, 1, 0
    %v1704 = vsel %vm1688, 1, 0
    %v1705 = vcvt.s32.f32 %v1689
    %v1706 = vcvt.s32.f32 %v1690
    %v1707 = vcvt.s32.f32 %v1691
    %v1708 = vcvt.s32.f32 %v1692
    %v1709 = vcvt.s32.f32 %v1693
    %v1710 = vcvt.s32.f32 %v1694
    %v1711 = vcvt.s32.f32 %v1695
    %v1712 = vcvt.s32.f32 %v1696
    %v1713 = vcvt.s32.f32 %v1697
    %v1714 = vcvt.s32.f32 %v1698
    %v1715 = vcvt.s32.f32 %v1699
    %v1716 = vcvt.s32.f32 %v1700
    %v1717 = vcvt.s32.f32 %v1701
    %v1718 = vcvt.s32.f32 %v1702
    %v1719 = vcvt.s32.f32 %v1703
    %v1720 = vcvt.s32.f32 %v1704
    %v1721 = vld [vmem:[%s3] sm:$0xff]
    %v1722 = vld [vmem:[%s3 + $0x8] sm:$0xff]
    %v1723 = vld [vmem:[%s3 + $0x10] sm:$0xff]
    %v1724 = vld [vmem:[%s3 + $0x18] sm:$0xff]
    %v1725 = vld [vmem:[%s3 + $0x20] sm:$0xff]
    %v1726 = vld [vmem:[%s3 + $0x28] sm:$0xff]
    %v1727 = vld [vmem:[%s3 + $0x30] sm:$0xff]
    %v1728 = vld [vmem:[%s3 + $0x38] sm:$0xff]
    %v1729 = vld [vmem:[%s5] sm:$0x1]
    %v1731 = vlaneseq
    %v1732 = vshrl.u32 %v1731, 7
    %v1733 = vsub.s32 0, %v1732
    %v1734 = vrot.slane %v1729, %v1733
    %v1737 = vsel %vm298, %v1705, 0
    %v1740 = vsel %vm298, %v1706, 0
    %v1743 = vsel %vm298, %v1707, 0
    %v1746 = vsel %vm298, %v1708, 0
    %v1749 = vsel %vm298, %v1709, 0
    %v1752 = vsel %vm298, %v1710, 0
    %v1755 = vsel %vm298, %v1711, 0
    %v1758 = vsel %vm298, %v1712, 0
    %v1761 = vsel %vm298, %v1713, 0
    %v1764 = vsel %vm298, %v1714, 0
    %v1767 = vsel %vm298, %v1715, 0
    %v1770 = vsel %vm298, %v1716, 0
    %v1773 = vsel %vm298, %v1717, 0
    %v1776 = vsel %vm298, %v1718, 0
    %v1779 = vsel %vm298, %v1719, 0
    %v1782 = vsel %vm298, %v1720, 0
    %1784 = vmatprep.subr.mxu0 0.0
    %1785 = vmatpush1.msra.mxu0 0.0
    %1786 = vmatprep.subr.mxu0 0.0
    %1787 = vmatpush1.msra.mxu0 0.0
    %1788 = vmatprep.subr.mxu0 0.0
    %1789 = vmatpush1.msra.mxu0 0.0
    %1790 = vmatprep.subr.mxu0 0.0
    %1791 = vmatpush1.msra.mxu0 0.0
    %1792 = vmatprep.subr.mxu0 0.0
    %1793 = vmatpush1.msra.mxu0 0.0
    %1794 = vmatprep.subr.mxu0 0.0
    %1795 = vmatpush1.msra.mxu0 0.0
    %1796 = vmatprep.subr.mxu0 0.0
    %1797 = vmatpush1.msra.mxu0 0.0
    %1798 = vmatprep.subr.mxu0 0.0
    %1799 = vmatpush1.msra.mxu0 0.0
    %1800 = vmatprep.subr.mxu0 0.0
    %v1801 = vand.u32 %v1728, 4294901760
    %1802 = vmatpush1.msra.mxu0 %v1801
    %1803 = vmatprep.subr.mxu0 0.0
    %v1804 = vand.u32 %v1727, 4294901760
    %1805 = vmatpush1.msra.mxu0 %v1804
    %1806 = vmatprep.subr.mxu0 0.0
    %v1807 = vand.u32 %v1726, 4294901760
    %1808 = vmatpush1.msra.mxu0 %v1807
    %1809 = vmatprep.subr.mxu0 0.0
    %v1810 = vand.u32 %v1725, 4294901760
    %1811 = vmatpush1.msra.mxu0 %v1810
    %1812 = vmatprep.subr.mxu0 0.0
    %v1813 = vand.u32 %v1724, 4294901760
    %1814 = vmatpush1.msra.mxu0 %v1813
    %1815 = vmatprep.subr.mxu0 0.0
    %v1816 = vand.u32 %v1723, 4294901760
    %1817 = vmatpush1.msra.mxu0 %v1816
    %1818 = vmatprep.subr.mxu0 0.0
    %v1819 = vand.u32 %v1722, 4294901760
    %1820 = vmatpush1.msra.mxu0 %v1819
    %1821 = vmatprep.subr.mxu0 0.0
    %v1822 = vand.u32 %v1721, 4294901760
    %1823 = vmatpush1.msra.mxu0 %v1822
    %1824 = vmatprep.subr.mxu0 0.0
    %1825 = vmatpush2.msra.mxu0 0.0
    %1826 = vmatprep.subr.mxu0 0.0
    %1827 = vmatpush2.msra.mxu0 0.0
    %1828 = vmatprep.subr.mxu0 0.0
    %1829 = vmatpush2.msra.mxu0 0.0
    %1830 = vmatprep.subr.mxu0 0.0
    %1831 = vmatpush2.msra.mxu0 0.0
    %1832 = vmatprep.subr.mxu0 0.0
    %1833 = vmatpush2.msra.mxu0 0.0
    %1834 = vmatprep.subr.mxu0 0.0
    %1835 = vmatpush2.msra.mxu0 0.0
    %1836 = vmatprep.subr.mxu0 0.0
    %1837 = vmatpush2.msra.mxu0 0.0
    %1838 = vmatprep.subr.mxu0 0.0
    %1839 = vmatpush2.msra.mxu0 0.0
    %1840 = vmatprep.subr.mxu0 0.0
    %1841 = vmatpush2.msra.mxu0 0.0
    %1842 = vmatprep.subr.mxu0 0.0
    %1843 = vmatpush2.msra.mxu0 0.0
    %1844 = vmatprep.subr.mxu0 0.0
    %1845 = vmatpush2.msra.mxu0 0.0
    %1846 = vmatprep.subr.mxu0 0.0
    %1847 = vmatpush2.msra.mxu0 0.0
    %1848 = vmatprep.subr.mxu0 0.0
    %1849 = vmatpush2.msra.mxu0 0.0
    %1850 = vmatprep.subr.mxu0 0.0
    %1851 = vmatpush2.msra.mxu0 0.0
    %1852 = vmatprep.subr.mxu0 0.0
    %1853 = vmatpush2.msra.mxu0 0.0
    %1854 = vmatprep.subr.mxu0 0.0
    %1855 = vmatpush2.msra.mxu0 0.0
    %1856 = vmatprep.mubr.f32.mxu0 0.0
    %v1857 = vand.u32 %v1737, 4294901760
    %v1858 = vsub.f32 %v1737, %v1857
    %v1859 = vand.u32 %v1858, 4294901760
    %v1860 = vsub.f32 %v1858, %v1859
    %v1861 = vand.u32 %v1860, 4294901760
    %1862 = vmatmul.mubr.f32.gmra.mxu0 %v1861
    %v1863 = vpop.f32.mrf.mxu0
    %v1864 = vadd.f32 %v1734, %v1863
    %v1865 = vpop.f32.mrf.mxu0
    %1866 = vmatprep.mubr.f32.mxu0 0.0
    %v1867 = vand.u32 %v1740, 4294901760
    %v1868 = vsub.f32 %v1740, %v1867
    %v1869 = vand.u32 %v1868, 4294901760
    %v1870 = vsub.f32 %v1868, %v1869
    %v1871 = vand.u32 %v1870, 4294901760
    %1872 = vmatmul.mubr.f32.gmra.mxu0 %v1871
    %v1873 = vpop.f32.mrf.mxu0
    %v1874 = vadd.f32 %v1734, %v1873
    %v1875 = vpop.f32.mrf.mxu0
    %1876 = vmatprep.mubr.f32.mxu0 0.0
    %v1877 = vand.u32 %v1743, 4294901760
    %v1878 = vsub.f32 %v1743, %v1877
    %v1879 = vand.u32 %v1878, 4294901760
    %v1880 = vsub.f32 %v1878, %v1879
    %v1881 = vand.u32 %v1880, 4294901760
    %1882 = vmatmul.mubr.f32.gmra.mxu0 %v1881
    %v1883 = vpop.f32.mrf.mxu0
    %v1884 = vadd.f32 %v1734, %v1883
    %v1885 = vpop.f32.mrf.mxu0
    %1886 = vmatprep.mubr.f32.mxu0 0.0
    %v1887 = vand.u32 %v1746, 4294901760
    %v1888 = vsub.f32 %v1746, %v1887
    %v1889 = vand.u32 %v1888, 4294901760
    %v1890 = vsub.f32 %v1888, %v1889
    %v1891 = vand.u32 %v1890, 4294901760
    %1892 = vmatmul.mubr.f32.gmra.mxu0 %v1891
    %v1893 = vpop.f32.mrf.mxu0
    %v1894 = vadd.f32 %v1734, %v1893
    %v1895 = vpop.f32.mrf.mxu0
    %1896 = vmatprep.mubr.f32.mxu0 0.0
    %v1897 = vand.u32 %v1749, 4294901760
    %v1898 = vsub.f32 %v1749, %v1897
    %v1899 = vand.u32 %v1898, 4294901760
    %v1900 = vsub.f32 %v1898, %v1899
    %v1901 = vand.u32 %v1900, 4294901760
    %1902 = vmatmul.mubr.f32.gmra.mxu0 %v1901
    %v1903 = vpop.f32.mrf.mxu0
    %v1904 = vadd.f32 %v1734, %v1903
    %v1905 = vpop.f32.mrf.mxu0
    %1906 = vmatprep.mubr.f32.mxu0 0.0
    %v1907 = vand.u32 %v1752, 4294901760
    %v1908 = vsub.f32 %v1752, %v1907
    %v1909 = vand.u32 %v1908, 4294901760
    %v1910 = vsub.f32 %v1908, %v1909
    %v1911 = vand.u32 %v1910, 4294901760
    %1912 = vmatmul.mubr.f32.gmra.mxu0 %v1911
    %v1913 = vpop.f32.mrf.mxu0
    %v1914 = vadd.f32 %v1734, %v1913
    %v1915 = vpop.f32.mrf.mxu0
    %1916 = vmatprep.mubr.f32.mxu0 0.0
    %v1917 = vand.u32 %v1755, 4294901760
    %v1918 = vsub.f32 %v1755, %v1917
    %v1919 = vand.u32 %v1918, 4294901760
    %v1920 = vsub.f32 %v1918, %v1919
    %v1921 = vand.u32 %v1920, 4294901760
    %1922 = vmatmul.mubr.f32.gmra.mxu0 %v1921
    %v1923 = vpop.f32.mrf.mxu0
    %v1924 = vadd.f32 %v1734, %v1923
    %v1925 = vpop.f32.mrf.mxu0
    %1926 = vmatprep.mubr.f32.mxu0 0.0
    %v1927 = vand.u32 %v1758, 4294901760
    %v1928 = vsub.f32 %v1758, %v1927
    %v1929 = vand.u32 %v1928, 4294901760
    %v1930 = vsub.f32 %v1928, %v1929
    %v1931 = vand.u32 %v1930, 4294901760
    %1932 = vmatmul.mubr.f32.gmra.mxu0 %v1931
    %v1933 = vpop.f32.mrf.mxu0
    %v1934 = vadd.f32 %v1734, %v1933
    %v1935 = vpop.f32.mrf.mxu0
    %1936 = vmatprep.mubr.f32.mxu0 0.0
    %v1937 = vand.u32 %v1761, 4294901760
    %v1938 = vsub.f32 %v1761, %v1937
    %v1939 = vand.u32 %v1938, 4294901760
    %v1940 = vsub.f32 %v1938, %v1939
    %v1941 = vand.u32 %v1940, 4294901760
    %1942 = vmatmul.mubr.f32.gmra.mxu0 %v1941
    %v1943 = vpop.f32.mrf.mxu0
    %v1944 = vadd.f32 %v1734, %v1943
    %v1945 = vpop.f32.mrf.mxu0
    %1946 = vmatprep.mubr.f32.mxu0 0.0
    %v1947 = vand.u32 %v1764, 4294901760
    %v1948 = vsub.f32 %v1764, %v1947
    %v1949 = vand.u32 %v1948, 4294901760
    %v1950 = vsub.f32 %v1948, %v1949
    %v1951 = vand.u32 %v1950, 4294901760
    %1952 = vmatmul.mubr.f32.gmra.mxu0 %v1951
    %v1953 = vpop.f32.mrf.mxu0
    %v1954 = vadd.f32 %v1734, %v1953
    %v1955 = vpop.f32.mrf.mxu0
    %1956 = vmatprep.mubr.f32.mxu0 0.0
    %v1957 = vand.u32 %v1767, 4294901760
    %v1958 = vsub.f32 %v1767, %v1957
    %v1959 = vand.u32 %v1958, 4294901760
    %v1960 = vsub.f32 %v1958, %v1959
    %v1961 = vand.u32 %v1960, 4294901760
    %1962 = vmatmul.mubr.f32.gmra.mxu0 %v1961
    %v1963 = vpop.f32.mrf.mxu0
    %v1964 = vadd.f32 %v1734, %v1963
    %v1965 = vpop.f32.mrf.mxu0
    %1966 = vmatprep.mubr.f32.mxu0 0.0
    %v1967 = vand.u32 %v1770, 4294901760
    %v1968 = vsub.f32 %v1770, %v1967
    %v1969 = vand.u32 %v1968, 4294901760
    %v1970 = vsub.f32 %v1968, %v1969
    %v1971 = vand.u32 %v1970, 4294901760
    %1972 = vmatmul.mubr.f32.gmra.mxu0 %v1971
    %v1973 = vpop.f32.mrf.mxu0
    %v1974 = vadd.f32 %v1734, %v1973
    %v1975 = vpop.f32.mrf.mxu0
    %1976 = vmatprep.mubr.f32.mxu0 0.0
    %v1977 = vand.u32 %v1773, 4294901760
    %v1978 = vsub.f32 %v1773, %v1977
    %v1979 = vand.u32 %v1978, 4294901760
    %v1980 = vsub.f32 %v1978, %v1979
    %v1981 = vand.u32 %v1980, 4294901760
    %1982 = vmatmul.mubr.f32.gmra.mxu0 %v1981
    %v1983 = vpop.f32.mrf.mxu0
    %v1984 = vadd.f32 %v1734, %v1983
    %v1985 = vpop.f32.mrf.mxu0
    %1986 = vmatprep.mubr.f32.mxu0 0.0
    %v1987 = vand.u32 %v1776, 4294901760
    %v1988 = vsub.f32 %v1776, %v1987
    %v1989 = vand.u32 %v1988, 4294901760
    %v1990 = vsub.f32 %v1988, %v1989
    %v1991 = vand.u32 %v1990, 4294901760
    %1992 = vmatmul.mubr.f32.gmra.mxu0 %v1991
    %v1993 = vpop.f32.mrf.mxu0
    %v1994 = vadd.f32 %v1734, %v1993
    %v1995 = vpop.f32.mrf.mxu0
    %1996 = vmatprep.mubr.f32.mxu0 0.0
    %v1997 = vand.u32 %v1779, 4294901760
    %v1998 = vsub.f32 %v1779, %v1997
    %v1999 = vand.u32 %v1998, 4294901760
    %v2000 = vsub.f32 %v1998, %v1999
    %v2001 = vand.u32 %v2000, 4294901760
    %2002 = vmatmul.mubr.f32.gmra.mxu0 %v2001
    %v2003 = vpop.f32.mrf.mxu0
    %v2004 = vadd.f32 %v1734, %v2003
    %v2005 = vpop.f32.mrf.mxu0
    %2006 = vmatprep.mubr.f32.mxu0 0.0
    %v2007 = vand.u32 %v1782, 4294901760
    %v2008 = vsub.f32 %v1782, %v2007
    %v2009 = vand.u32 %v2008, 4294901760
    %v2010 = vsub.f32 %v2008, %v2009
    %v2011 = vand.u32 %v2010, 4294901760
    %2012 = vmatmul.mubr.f32.gmra.mxu0 %v2011
    %v2013 = vpop.f32.mrf.mxu0
    %v2014 = vadd.f32 %v1734, %v2013
    %v2015 = vpop.f32.mrf.mxu0
    %2016 = vdwg.mxu0
    %2017 = vmatprep.subr.mxu0 0.0
    %2018 = vmatpush1.msra.mxu0 0.0
    %2019 = vmatprep.subr.mxu0 0.0
    %2020 = vmatpush1.msra.mxu0 0.0
    %2021 = vmatprep.subr.mxu0 0.0
    %2022 = vmatpush1.msra.mxu0 0.0
    %2023 = vmatprep.subr.mxu0 0.0
    %2024 = vmatpush1.msra.mxu0 0.0
    %2025 = vmatprep.subr.mxu0 0.0
    %2026 = vmatpush1.msra.mxu0 0.0
    %2027 = vmatprep.subr.mxu0 0.0
    %2028 = vmatpush1.msra.mxu0 0.0
    %2029 = vmatprep.subr.mxu0 0.0
    %2030 = vmatpush1.msra.mxu0 0.0
    %2031 = vmatprep.subr.mxu0 0.0
    %2032 = vmatpush1.msra.mxu0 0.0
    %2033 = vmatprep.subr.mxu0 0.0
    %v2034 = vand.u32 %v1728, 4294901760
    %v2035 = vsub.f32 %v1728, %v2034
    %v2036 = vand.u32 %v2035, 4294901760
    %v2037 = vsub.f32 %v2035, %v2036
    %v2038 = vand.u32 %v2037, 4294901760
    %2039 = vmatpush1.msra.mxu0 %v2038
    %2040 = vmatprep.subr.mxu0 0.0
    %v2041 = vand.u32 %v1727, 4294901760
    %v2042 = vsub.f32 %v1727, %v2041
    %v2043 = vand.u32 %v2042, 4294901760
    %v2044 = vsub.f32 %v2042, %v2043
    %v2045 = vand.u32 %v2044, 4294901760
    %2046 = vmatpush1.msra.mxu0 %v2045
    %2047 = vmatprep.subr.mxu0 0.0
    %v2048 = vand.u32 %v1726, 4294901760
    %v2049 = vsub.f32 %v1726, %v2048
    %v2050 = vand.u32 %v2049, 4294901760
    %v2051 = vsub.f32 %v2049, %v2050
    %v2052 = vand.u32 %v2051, 4294901760
    %2053 = vmatpush1.msra.mxu0 %v2052
    %2054 = vmatprep.subr.mxu0 0.0
    %v2055 = vand.u32 %v1725, 4294901760
    %v2056 = vsub.f32 %v1725, %v2055
    %v2057 = vand.u32 %v2056, 4294901760
    %v2058 = vsub.f32 %v2056, %v2057
    %v2059 = vand.u32 %v2058, 4294901760
    %2060 = vmatpush1.msra.mxu0 %v2059
    %2061 = vmatprep.subr.mxu0 0.0
    %v2062 = vand.u32 %v1724, 4294901760
    %v2063 = vsub.f32 %v1724, %v2062
    %v2064 = vand.u32 %v2063, 4294901760
    %v2065 = vsub.f32 %v2063, %v2064
    %v2066 = vand.u32 %v2065, 4294901760
    %2067 = vmatpush1.msra.mxu0 %v2066
    %2068 = vmatprep.subr.mxu0 0.0
    %v2069 = vand.u32 %v1723, 4294901760
    %v2070 = vsub.f32 %v1723, %v2069
    %v2071 = vand.u32 %v2070, 4294901760
    %v2072 = vsub.f32 %v2070, %v2071
    %v2073 = vand.u32 %v2072, 4294901760
    %2074 = vmatpush1.msra.mxu0 %v2073
    %2075 = vmatprep.subr.mxu0 0.0
    %v2076 = vand.u32 %v1722, 4294901760
    %v2077 = vsub.f32 %v1722, %v2076
    %v2078 = vand.u32 %v2077, 4294901760
    %v2079 = vsub.f32 %v2077, %v2078
    %v2080 = vand.u32 %v2079, 4294901760
    %2081 = vmatpush1.msra.mxu0 %v2080
    %2082 = vmatprep.subr.mxu0 0.0
    %v2083 = vand.u32 %v1721, 4294901760
    %v2084 = vsub.f32 %v1721, %v2083
    %v2085 = vand.u32 %v2084, 4294901760
    %v2086 = vsub.f32 %v2084, %v2085
    %v2087 = vand.u32 %v2086, 4294901760
    %2088 = vmatpush1.msra.mxu0 %v2087
    %2089 = vmatprep.subr.mxu0 0.0
    %2090 = vmatpush2.msra.mxu0 0.0
    %2091 = vmatprep.subr.mxu0 0.0
    %2092 = vmatpush2.msra.mxu0 0.0
    %2093 = vmatprep.subr.mxu0 0.0
    %2094 = vmatpush2.msra.mxu0 0.0
    %2095 = vmatprep.subr.mxu0 0.0
    %2096 = vmatpush2.msra.mxu0 0.0
    %2097 = vmatprep.subr.mxu0 0.0
    %2098 = vmatpush2.msra.mxu0 0.0
    %2099 = vmatprep.subr.mxu0 0.0
    %2100 = vmatpush2.msra.mxu0 0.0
    %2101 = vmatprep.subr.mxu0 0.0
    %2102 = vmatpush2.msra.mxu0 0.0
    %2103 = vmatprep.subr.mxu0 0.0
    %2104 = vmatpush2.msra.mxu0 0.0
    %2105 = vmatprep.subr.mxu0 0.0
    %2106 = vmatpush2.msra.mxu0 0.0
    %2107 = vmatprep.subr.mxu0 0.0
    %2108 = vmatpush2.msra.mxu0 0.0
    %2109 = vmatprep.subr.mxu0 0.0
    %2110 = vmatpush2.msra.mxu0 0.0
    %2111 = vmatprep.subr.mxu0 0.0
    %2112 = vmatpush2.msra.mxu0 0.0
    %2113 = vmatprep.subr.mxu0 0.0
    %2114 = vmatpush2.msra.mxu0 0.0
    %2115 = vmatprep.subr.mxu0 0.0
    %2116 = vmatpush2.msra.mxu0 0.0
    %2117 = vmatprep.subr.mxu0 0.0
    %2118 = vmatpush2.msra.mxu0 0.0
    %2119 = vmatprep.subr.mxu0 0.0
    %2120 = vmatpush2.msra.mxu0 0.0
    %2121 = vmatprep.mubr.f32.mxu0 0.0
    %v2122 = vand.u32 %v1737, 4294901760
    %2123 = vmatmul.mubr.f32.gmra.mxu0 %v2122
    %v2124 = vpop.f32.mrf.mxu0
    %v2125 = vadd.f32 %v1864, %v2124
    %v2126 = vpop.f32.mrf.mxu0
    %2127 = vmatprep.mubr.f32.mxu0 0.0
    %v2128 = vand.u32 %v1740, 4294901760
    %2129 = vmatmul.mubr.f32.gmra.mxu0 %v2128
    %v2130 = vpop.f32.mrf.mxu0
    %v2131 = vadd.f32 %v1874, %v2130
    %v2132 = vpop.f32.mrf.mxu0
    %2133 = vmatprep.mubr.f32.mxu0 0.0
    %v2134 = vand.u32 %v1743, 4294901760
    %2135 = vmatmul.mubr.f32.gmra.mxu0 %v2134
    %v2136 = vpop.f32.mrf.mxu0
    %v2137 = vadd.f32 %v1884, %v2136
    %v2138 = vpop.f32.mrf.mxu0
    %2139 = vmatprep.mubr.f32.mxu0 0.0
    %v2140 = vand.u32 %v1746, 4294901760
    %2141 = vmatmul.mubr.f32.gmra.mxu0 %v2140
    %v2142 = vpop.f32.mrf.mxu0
    %v2143 = vadd.f32 %v1894, %v2142
    %v2144 = vpop.f32.mrf.mxu0
    %2145 = vmatprep.mubr.f32.mxu0 0.0
    %v2146 = vand.u32 %v1749, 4294901760
    %2147 = vmatmul.mubr.f32.gmra.mxu0 %v2146
    %v2148 = vpop.f32.mrf.mxu0
    %v2149 = vadd.f32 %v1904, %v2148
    %v2150 = vpop.f32.mrf.mxu0
    %2151 = vmatprep.mubr.f32.mxu0 0.0
    %v2152 = vand.u32 %v1752, 4294901760
    %2153 = vmatmul.mubr.f32.gmra.mxu0 %v2152
    %v2154 = vpop.f32.mrf.mxu0
    %v2155 = vadd.f32 %v1914, %v2154
    %v2156 = vpop.f32.mrf.mxu0
    %2157 = vmatprep.mubr.f32.mxu0 0.0
    %v2158 = vand.u32 %v1755, 4294901760
    %2159 = vmatmul.mubr.f32.gmra.mxu0 %v2158
    %v2160 = vpop.f32.mrf.mxu0
    %v2161 = vadd.f32 %v1924, %v2160
    %v2162 = vpop.f32.mrf.mxu0
    %2163 = vmatprep.mubr.f32.mxu0 0.0
    %v2164 = vand.u32 %v1758, 4294901760
    %2165 = vmatmul.mubr.f32.gmra.mxu0 %v2164
    %v2166 = vpop.f32.mrf.mxu0
    %v2167 = vadd.f32 %v1934, %v2166
    %v2168 = vpop.f32.mrf.mxu0
    %2169 = vmatprep.mubr.f32.mxu0 0.0
    %v2170 = vand.u32 %v1761, 4294901760
    %2171 = vmatmul.mubr.f32.gmra.mxu0 %v2170
    %v2172 = vpop.f32.mrf.mxu0
    %v2173 = vadd.f32 %v1944, %v2172
    %v2174 = vpop.f32.mrf.mxu0
    %2175 = vmatprep.mubr.f32.mxu0 0.0
    %v2176 = vand.u32 %v1764, 4294901760
    %2177 = vmatmul.mubr.f32.gmra.mxu0 %v2176
    %v2178 = vpop.f32.mrf.mxu0
    %v2179 = vadd.f32 %v1954, %v2178
    %v2180 = vpop.f32.mrf.mxu0
    %2181 = vmatprep.mubr.f32.mxu0 0.0
    %v2182 = vand.u32 %v1767, 4294901760
    %2183 = vmatmul.mubr.f32.gmra.mxu0 %v2182
    %v2184 = vpop.f32.mrf.mxu0
    %v2185 = vadd.f32 %v1964, %v2184
    %v2186 = vpop.f32.mrf.mxu0
    %2187 = vmatprep.mubr.f32.mxu0 0.0
    %v2188 = vand.u32 %v1770, 4294901760
    %2189 = vmatmul.mubr.f32.gmra.mxu0 %v2188
    %v2190 = vpop.f32.mrf.mxu0
    %v2191 = vadd.f32 %v1974, %v2190
    %v2192 = vpop.f32.mrf.mxu0
    %2193 = vmatprep.mubr.f32.mxu0 0.0
    %v2194 = vand.u32 %v1773, 4294901760
    %2195 = vmatmul.mubr.f32.gmra.mxu0 %v2194
    %v2196 = vpop.f32.mrf.mxu0
    %v2197 = vadd.f32 %v1984, %v2196
    %v2198 = vpop.f32.mrf.mxu0
    %2199 = vmatprep.mubr.f32.mxu0 0.0
    %v2200 = vand.u32 %v1776, 4294901760
    %2201 = vmatmul.mubr.f32.gmra.mxu0 %v2200
    %v2202 = vpop.f32.mrf.mxu0
    %v2203 = vadd.f32 %v1994, %v2202
    %v2204 = vpop.f32.mrf.mxu0
    %2205 = vmatprep.mubr.f32.mxu0 0.0
    %v2206 = vand.u32 %v1779, 4294901760
    %2207 = vmatmul.mubr.f32.gmra.mxu0 %v2206
    %v2208 = vpop.f32.mrf.mxu0
    %v2209 = vadd.f32 %v2004, %v2208
    %v2210 = vpop.f32.mrf.mxu0
    %2211 = vmatprep.mubr.f32.mxu0 0.0
    %v2212 = vand.u32 %v1782, 4294901760
    %2213 = vmatmul.mubr.f32.gmra.mxu0 %v2212
    %v2214 = vpop.f32.mrf.mxu0
    %v2215 = vadd.f32 %v2014, %v2214
    %v2216 = vpop.f32.mrf.mxu0
    %2217 = vdwg.mxu0
    %2218 = vmatprep.subr.mxu0 0.0
    %2219 = vmatpush1.msra.mxu0 0.0
    %2220 = vmatprep.subr.mxu0 0.0
    %2221 = vmatpush1.msra.mxu0 0.0
    %2222 = vmatprep.subr.mxu0 0.0
    %2223 = vmatpush1.msra.mxu0 0.0
    %2224 = vmatprep.subr.mxu0 0.0
    %2225 = vmatpush1.msra.mxu0 0.0
    %2226 = vmatprep.subr.mxu0 0.0
    %2227 = vmatpush1.msra.mxu0 0.0
    %2228 = vmatprep.subr.mxu0 0.0
    %2229 = vmatpush1.msra.mxu0 0.0
    %2230 = vmatprep.subr.mxu0 0.0
    %2231 = vmatpush1.msra.mxu0 0.0
    %2232 = vmatprep.subr.mxu0 0.0
    %2233 = vmatpush1.msra.mxu0 0.0
    %2234 = vmatprep.subr.mxu0 0.0
    %v2235 = vand.u32 %v1728, 4294901760
    %v2236 = vsub.f32 %v1728, %v2235
    %2237 = vmatpush1.msra.mxu0 %v2236
    %2238 = vmatprep.subr.mxu0 0.0
    %v2239 = vand.u32 %v1727, 4294901760
    %v2240 = vsub.f32 %v1727, %v2239
    %2241 = vmatpush1.msra.mxu0 %v2240
    %2242 = vmatprep.subr.mxu0 0.0
    %v2243 = vand.u32 %v1726, 4294901760
    %v2244 = vsub.f32 %v1726, %v2243
    %2245 = vmatpush1.msra.mxu0 %v2244
    %2246 = vmatprep.subr.mxu0 0.0
    %v2247 = vand.u32 %v1725, 4294901760
    %v2248 = vsub.f32 %v1725, %v2247
    %2249 = vmatpush1.msra.mxu0 %v2248
    %2250 = vmatprep.subr.mxu0 0.0
    %v2251 = vand.u32 %v1724, 4294901760
    %v2252 = vsub.f32 %v1724, %v2251
    %2253 = vmatpush1.msra.mxu0 %v2252
    %2254 = vmatprep.subr.mxu0 0.0
    %v2255 = vand.u32 %v1723, 4294901760
    %v2256 = vsub.f32 %v1723, %v2255
    %2257 = vmatpush1.msra.mxu0 %v2256
    %2258 = vmatprep.subr.mxu0 0.0
    %v2259 = vand.u32 %v1722, 4294901760
    %v2260 = vsub.f32 %v1722, %v2259
    %2261 = vmatpush1.msra.mxu0 %v2260
    %2262 = vmatprep.subr.mxu0 0.0
    %v2263 = vand.u32 %v1721, 4294901760
    %v2264 = vsub.f32 %v1721, %v2263
    %2265 = vmatpush1.msra.mxu0 %v2264
    %2266 = vmatprep.subr.mxu0 0.0
    %2267 = vmatpush2.msra.mxu0 0.0
    %2268 = vmatprep.subr.mxu0 0.0
    %2269 = vmatpush2.msra.mxu0 0.0
    %2270 = vmatprep.subr.mxu0 0.0
    %2271 = vmatpush2.msra.mxu0 0.0
    %2272 = vmatprep.subr.mxu0 0.0
    %2273 = vmatpush2.msra.mxu0 0.0
    %2274 = vmatprep.subr.mxu0 0.0
    %2275 = vmatpush2.msra.mxu0 0.0
    %2276 = vmatprep.subr.mxu0 0.0
    %2277 = vmatpush2.msra.mxu0 0.0
    %2278 = vmatprep.subr.mxu0 0.0
    %2279 = vmatpush2.msra.mxu0 0.0
    %2280 = vmatprep.subr.mxu0 0.0
    %2281 = vmatpush2.msra.mxu0 0.0
    %2282 = vmatprep.subr.mxu0 0.0
    %2283 = vmatpush2.msra.mxu0 0.0
    %2284 = vmatprep.subr.mxu0 0.0
    %2285 = vmatpush2.msra.mxu0 0.0
    %2286 = vmatprep.subr.mxu0 0.0
    %2287 = vmatpush2.msra.mxu0 0.0
    %2288 = vmatprep.subr.mxu0 0.0
    %2289 = vmatpush2.msra.mxu0 0.0
    %2290 = vmatprep.subr.mxu0 0.0
    %2291 = vmatpush2.msra.mxu0 0.0
    %2292 = vmatprep.subr.mxu0 0.0
    %2293 = vmatpush2.msra.mxu0 0.0
    %2294 = vmatprep.subr.mxu0 0.0
    %2295 = vmatpush2.msra.mxu0 0.0
    %2296 = vmatprep.subr.mxu0 0.0
    %2297 = vmatpush2.msra.mxu0 0.0
    %2298 = vmatprep.mubr.f32.mxu0 0.0
    %v2299 = vand.u32 %v1737, 4294901760
    %v2300 = vsub.f32 %v1737, %v2299
    %2301 = vmatmul.mubr.f32.gmra.mxu0 %v2300
    %v2302 = vpop.f32.mrf.mxu0
    %v2303 = vadd.f32 %v2125, %v2302
    %v2304 = vpop.f32.mrf.mxu0
    %2305 = vmatprep.mubr.f32.mxu0 0.0
    %v2306 = vand.u32 %v1740, 4294901760
    %v2307 = vsub.f32 %v1740, %v2306
    %2308 = vmatmul.mubr.f32.gmra.mxu0 %v2307
    %v2309 = vpop.f32.mrf.mxu0
    %v2310 = vadd.f32 %v2131, %v2309
    %v2311 = vpop.f32.mrf.mxu0
    %2312 = vmatprep.mubr.f32.mxu0 0.0
    %v2313 = vand.u32 %v1743, 4294901760
    %v2314 = vsub.f32 %v1743, %v2313
    %2315 = vmatmul.mubr.f32.gmra.mxu0 %v2314
    %v2316 = vpop.f32.mrf.mxu0
    %v2317 = vadd.f32 %v2137, %v2316
    %v2318 = vpop.f32.mrf.mxu0
    %2319 = vmatprep.mubr.f32.mxu0 0.0
    %v2320 = vand.u32 %v1746, 4294901760
    %v2321 = vsub.f32 %v1746, %v2320
    %2322 = vmatmul.mubr.f32.gmra.mxu0 %v2321
    %v2323 = vpop.f32.mrf.mxu0
    %v2324 = vadd.f32 %v2143, %v2323
    %v2325 = vpop.f32.mrf.mxu0
    %2326 = vmatprep.mubr.f32.mxu0 0.0
    %v2327 = vand.u32 %v1749, 4294901760
    %v2328 = vsub.f32 %v1749, %v2327
    %2329 = vmatmul.mubr.f32.gmra.mxu0 %v2328
    %v2330 = vpop.f32.mrf.mxu0
    %v2331 = vadd.f32 %v2149, %v2330
    %v2332 = vpop.f32.mrf.mxu0
    %2333 = vmatprep.mubr.f32.mxu0 0.0
    %v2334 = vand.u32 %v1752, 4294901760
    %v2335 = vsub.f32 %v1752, %v2334
    %2336 = vmatmul.mubr.f32.gmra.mxu0 %v2335
    %v2337 = vpop.f32.mrf.mxu0
    %v2338 = vadd.f32 %v2155, %v2337
    %v2339 = vpop.f32.mrf.mxu0
    %2340 = vmatprep.mubr.f32.mxu0 0.0
    %v2341 = vand.u32 %v1755, 4294901760
    %v2342 = vsub.f32 %v1755, %v2341
    %2343 = vmatmul.mubr.f32.gmra.mxu0 %v2342
    %v2344 = vpop.f32.mrf.mxu0
    %v2345 = vadd.f32 %v2161, %v2344
    %v2346 = vpop.f32.mrf.mxu0
    %2347 = vmatprep.mubr.f32.mxu0 0.0
    %v2348 = vand.u32 %v1758, 4294901760
    %v2349 = vsub.f32 %v1758, %v2348
    %2350 = vmatmul.mubr.f32.gmra.mxu0 %v2349
    %v2351 = vpop.f32.mrf.mxu0
    %v2352 = vadd.f32 %v2167, %v2351
    %v2353 = vpop.f32.mrf.mxu0
    %2354 = vmatprep.mubr.f32.mxu0 0.0
    %v2355 = vand.u32 %v1761, 4294901760
    %v2356 = vsub.f32 %v1761, %v2355
    %2357 = vmatmul.mubr.f32.gmra.mxu0 %v2356
    %v2358 = vpop.f32.mrf.mxu0
    %v2359 = vadd.f32 %v2173, %v2358
    %v2360 = vpop.f32.mrf.mxu0
    %2361 = vmatprep.mubr.f32.mxu0 0.0
    %v2362 = vand.u32 %v1764, 4294901760
    %v2363 = vsub.f32 %v1764, %v2362
    %2364 = vmatmul.mubr.f32.gmra.mxu0 %v2363
    %v2365 = vpop.f32.mrf.mxu0
    %v2366 = vadd.f32 %v2179, %v2365
    %v2367 = vpop.f32.mrf.mxu0
    %2368 = vmatprep.mubr.f32.mxu0 0.0
    %v2369 = vand.u32 %v1767, 4294901760
    %v2370 = vsub.f32 %v1767, %v2369
    %2371 = vmatmul.mubr.f32.gmra.mxu0 %v2370
    %v2372 = vpop.f32.mrf.mxu0
    %v2373 = vadd.f32 %v2185, %v2372
    %v2374 = vpop.f32.mrf.mxu0
    %2375 = vmatprep.mubr.f32.mxu0 0.0
    %v2376 = vand.u32 %v1770, 4294901760
    %v2377 = vsub.f32 %v1770, %v2376
    %2378 = vmatmul.mubr.f32.gmra.mxu0 %v2377
    %v2379 = vpop.f32.mrf.mxu0
    %v2380 = vadd.f32 %v2191, %v2379
    %v2381 = vpop.f32.mrf.mxu0
    %2382 = vmatprep.mubr.f32.mxu0 0.0
    %v2383 = vand.u32 %v1773, 4294901760
    %v2384 = vsub.f32 %v1773, %v2383
    %2385 = vmatmul.mubr.f32.gmra.mxu0 %v2384
    %v2386 = vpop.f32.mrf.mxu0
    %v2387 = vadd.f32 %v2197, %v2386
    %v2388 = vpop.f32.mrf.mxu0
    %2389 = vmatprep.mubr.f32.mxu0 0.0
    %v2390 = vand.u32 %v1776, 4294901760
    %v2391 = vsub.f32 %v1776, %v2390
    %2392 = vmatmul.mubr.f32.gmra.mxu0 %v2391
    %v2393 = vpop.f32.mrf.mxu0
    %v2394 = vadd.f32 %v2203, %v2393
    %v2395 = vpop.f32.mrf.mxu0
    %2396 = vmatprep.mubr.f32.mxu0 0.0
    %v2397 = vand.u32 %v1779, 4294901760
    %v2398 = vsub.f32 %v1779, %v2397
    %2399 = vmatmul.mubr.f32.gmra.mxu0 %v2398
    %v2400 = vpop.f32.mrf.mxu0
    %v2401 = vadd.f32 %v2209, %v2400
    %v2402 = vpop.f32.mrf.mxu0
    %2403 = vmatprep.mubr.f32.mxu0 0.0
    %v2404 = vand.u32 %v1782, 4294901760
    %v2405 = vsub.f32 %v1782, %v2404
    %2406 = vmatmul.mubr.f32.gmra.mxu0 %v2405
    %v2407 = vpop.f32.mrf.mxu0
    %v2408 = vadd.f32 %v2215, %v2407
    %v2409 = vpop.f32.mrf.mxu0
    %2410 = vdwg.mxu0
    %2411 = vmatprep.subr.mxu0 0.0
    %2412 = vmatpush1.msra.mxu0 0.0
    %2413 = vmatprep.subr.mxu0 0.0
    %2414 = vmatpush1.msra.mxu0 0.0
    %2415 = vmatprep.subr.mxu0 0.0
    %2416 = vmatpush1.msra.mxu0 0.0
    %2417 = vmatprep.subr.mxu0 0.0
    %2418 = vmatpush1.msra.mxu0 0.0
    %2419 = vmatprep.subr.mxu0 0.0
    %2420 = vmatpush1.msra.mxu0 0.0
    %2421 = vmatprep.subr.mxu0 0.0
    %2422 = vmatpush1.msra.mxu0 0.0
    %2423 = vmatprep.subr.mxu0 0.0
    %2424 = vmatpush1.msra.mxu0 0.0
    %2425 = vmatprep.subr.mxu0 0.0
    %2426 = vmatpush1.msra.mxu0 0.0
    %2427 = vmatprep.subr.mxu0 0.0
    %v2428 = vand.u32 %v1728, 4294901760
    %2429 = vmatpush1.msra.mxu0 %v2428
    %2430 = vmatprep.subr.mxu0 0.0
    %v2431 = vand.u32 %v1727, 4294901760
    %2432 = vmatpush1.msra.mxu0 %v2431
    %2433 = vmatprep.subr.mxu0 0.0
    %v2434 = vand.u32 %v1726, 4294901760
    %2435 = vmatpush1.msra.mxu0 %v2434
    %2436 = vmatprep.subr.mxu0 0.0
    %v2437 = vand.u32 %v1725, 4294901760
    %2438 = vmatpush1.msra.mxu0 %v2437
    %2439 = vmatprep.subr.mxu0 0.0
    %v2440 = vand.u32 %v1724, 4294901760
    %2441 = vmatpush1.msra.mxu0 %v2440
    %2442 = vmatprep.subr.mxu0 0.0
    %v2443 = vand.u32 %v1723, 4294901760
    %2444 = vmatpush1.msra.mxu0 %v2443
    %2445 = vmatprep.subr.mxu0 0.0
    %v2446 = vand.u32 %v1722, 4294901760
    %2447 = vmatpush1.msra.mxu0 %v2446
    %2448 = vmatprep.subr.mxu0 0.0
    %v2449 = vand.u32 %v1721, 4294901760
    %2450 = vmatpush1.msra.mxu0 %v2449
    %2451 = vmatprep.subr.mxu0 0.0
    %2452 = vmatpush2.msra.mxu0 0.0
    %2453 = vmatprep.subr.mxu0 0.0
    %2454 = vmatpush2.msra.mxu0 0.0
    %2455 = vmatprep.subr.mxu0 0.0
    %2456 = vmatpush2.msra.mxu0 0.0
    %2457 = vmatprep.subr.mxu0 0.0
    %2458 = vmatpush2.msra.mxu0 0.0
    %2459 = vmatprep.subr.mxu0 0.0
    %2460 = vmatpush2.msra.mxu0 0.0
    %2461 = vmatprep.subr.mxu0 0.0
    %2462 = vmatpush2.msra.mxu0 0.0
    %2463 = vmatprep.subr.mxu0 0.0
    %2464 = vmatpush2.msra.mxu0 0.0
    %2465 = vmatprep.subr.mxu0 0.0
    %2466 = vmatpush2.msra.mxu0 0.0
    %2467 = vmatprep.subr.mxu0 0.0
    %2468 = vmatpush2.msra.mxu0 0.0
    %2469 = vmatprep.subr.mxu0 0.0
    %2470 = vmatpush2.msra.mxu0 0.0
    %2471 = vmatprep.subr.mxu0 0.0
    %2472 = vmatpush2.msra.mxu0 0.0
    %2473 = vmatprep.subr.mxu0 0.0
    %2474 = vmatpush2.msra.mxu0 0.0
    %2475 = vmatprep.subr.mxu0 0.0
    %2476 = vmatpush2.msra.mxu0 0.0
    %2477 = vmatprep.subr.mxu0 0.0
    %2478 = vmatpush2.msra.mxu0 0.0
    %2479 = vmatprep.subr.mxu0 0.0
    %2480 = vmatpush2.msra.mxu0 0.0
    %2481 = vmatprep.subr.mxu0 0.0
    %2482 = vmatpush2.msra.mxu0 0.0
    %2483 = vmatprep.mubr.f32.mxu0 0.0
    %v2484 = vand.u32 %v1737, 4294901760
    %v2485 = vsub.f32 %v1737, %v2484
    %v2486 = vand.u32 %v2485, 4294901760
    %2487 = vmatmul.mubr.f32.gmra.mxu0 %v2486
    %v2488 = vpop.f32.mrf.mxu0
    %v2489 = vadd.f32 %v2303, %v2488
    %v2490 = vpop.f32.mrf.mxu0
    %2491 = vmatprep.mubr.f32.mxu0 0.0
    %v2492 = vand.u32 %v1740, 4294901760
    %v2493 = vsub.f32 %v1740, %v2492
    %v2494 = vand.u32 %v2493, 4294901760
    %2495 = vmatmul.mubr.f32.gmra.mxu0 %v2494
    %v2496 = vpop.f32.mrf.mxu0
    %v2497 = vadd.f32 %v2310, %v2496
    %v2498 = vpop.f32.mrf.mxu0
    %2499 = vmatprep.mubr.f32.mxu0 0.0
    %v2500 = vand.u32 %v1743, 4294901760
    %v2501 = vsub.f32 %v1743, %v2500
    %v2502 = vand.u32 %v2501, 4294901760
    %2503 = vmatmul.mubr.f32.gmra.mxu0 %v2502
    %v2504 = vpop.f32.mrf.mxu0
    %v2505 = vadd.f32 %v2317, %v2504
    %v2506 = vpop.f32.mrf.mxu0
    %2507 = vmatprep.mubr.f32.mxu0 0.0
    %v2508 = vand.u32 %v1746, 4294901760
    %v2509 = vsub.f32 %v1746, %v2508
    %v2510 = vand.u32 %v2509, 4294901760
    %2511 = vmatmul.mubr.f32.gmra.mxu0 %v2510
    %v2512 = vpop.f32.mrf.mxu0
    %v2513 = vadd.f32 %v2324, %v2512
    %v2514 = vpop.f32.mrf.mxu0
    %2515 = vmatprep.mubr.f32.mxu0 0.0
    %v2516 = vand.u32 %v1749, 4294901760
    %v2517 = vsub.f32 %v1749, %v2516
    %v2518 = vand.u32 %v2517, 4294901760
    %2519 = vmatmul.mubr.f32.gmra.mxu0 %v2518
    %v2520 = vpop.f32.mrf.mxu0
    %v2521 = vadd.f32 %v2331, %v2520
    %v2522 = vpop.f32.mrf.mxu0
    %2523 = vmatprep.mubr.f32.mxu0 0.0
    %v2524 = vand.u32 %v1752, 4294901760
    %v2525 = vsub.f32 %v1752, %v2524
    %v2526 = vand.u32 %v2525, 4294901760
    %2527 = vmatmul.mubr.f32.gmra.mxu0 %v2526
    %v2528 = vpop.f32.mrf.mxu0
    %v2529 = vadd.f32 %v2338, %v2528
    %v2530 = vpop.f32.mrf.mxu0
    %2531 = vmatprep.mubr.f32.mxu0 0.0
    %v2532 = vand.u32 %v1755, 4294901760
    %v2533 = vsub.f32 %v1755, %v2532
    %v2534 = vand.u32 %v2533, 4294901760
    %2535 = vmatmul.mubr.f32.gmra.mxu0 %v2534
    %v2536 = vpop.f32.mrf.mxu0
    %v2537 = vadd.f32 %v2345, %v2536
    %v2538 = vpop.f32.mrf.mxu0
    %2539 = vmatprep.mubr.f32.mxu0 0.0
    %v2540 = vand.u32 %v1758, 4294901760
    %v2541 = vsub.f32 %v1758, %v2540
    %v2542 = vand.u32 %v2541, 4294901760
    %2543 = vmatmul.mubr.f32.gmra.mxu0 %v2542
    %v2544 = vpop.f32.mrf.mxu0
    %v2545 = vadd.f32 %v2352, %v2544
    %v2546 = vpop.f32.mrf.mxu0
    %2547 = vmatprep.mubr.f32.mxu0 0.0
    %v2548 = vand.u32 %v1761, 4294901760
    %v2549 = vsub.f32 %v1761, %v2548
    %v2550 = vand.u32 %v2549, 4294901760
    %2551 = vmatmul.mubr.f32.gmra.mxu0 %v2550
    %v2552 = vpop.f32.mrf.mxu0
    %v2553 = vadd.f32 %v2359, %v2552
    %v2554 = vpop.f32.mrf.mxu0
    %2555 = vmatprep.mubr.f32.mxu0 0.0
    %v2556 = vand.u32 %v1764, 4294901760
    %v2557 = vsub.f32 %v1764, %v2556
    %v2558 = vand.u32 %v2557, 4294901760
    %2559 = vmatmul.mubr.f32.gmra.mxu0 %v2558
    %v2560 = vpop.f32.mrf.mxu0
    %v2561 = vadd.f32 %v2366, %v2560
    %v2562 = vpop.f32.mrf.mxu0
    %2563 = vmatprep.mubr.f32.mxu0 0.0
    %v2564 = vand.u32 %v1767, 4294901760
    %v2565 = vsub.f32 %v1767, %v2564
    %v2566 = vand.u32 %v2565, 4294901760
    %2567 = vmatmul.mubr.f32.gmra.mxu0 %v2566
    %v2568 = vpop.f32.mrf.mxu0
    %v2569 = vadd.f32 %v2373, %v2568
    %v2570 = vpop.f32.mrf.mxu0
    %2571 = vmatprep.mubr.f32.mxu0 0.0
    %v2572 = vand.u32 %v1770, 4294901760
    %v2573 = vsub.f32 %v1770, %v2572
    %v2574 = vand.u32 %v2573, 4294901760
    %2575 = vmatmul.mubr.f32.gmra.mxu0 %v2574
    %v2576 = vpop.f32.mrf.mxu0
    %v2577 = vadd.f32 %v2380, %v2576
    %v2578 = vpop.f32.mrf.mxu0
    %2579 = vmatprep.mubr.f32.mxu0 0.0
    %v2580 = vand.u32 %v1773, 4294901760
    %v2581 = vsub.f32 %v1773, %v2580
    %v2582 = vand.u32 %v2581, 4294901760
    %2583 = vmatmul.mubr.f32.gmra.mxu0 %v2582
    %v2584 = vpop.f32.mrf.mxu0
    %v2585 = vadd.f32 %v2387, %v2584
    %v2586 = vpop.f32.mrf.mxu0
    %2587 = vmatprep.mubr.f32.mxu0 0.0
    %v2588 = vand.u32 %v1776, 4294901760
    %v2589 = vsub.f32 %v1776, %v2588
    %v2590 = vand.u32 %v2589, 4294901760
    %2591 = vmatmul.mubr.f32.gmra.mxu0 %v2590
    %v2592 = vpop.f32.mrf.mxu0
    %v2593 = vadd.f32 %v2394, %v2592
    %v2594 = vpop.f32.mrf.mxu0
    %2595 = vmatprep.mubr.f32.mxu0 0.0
    %v2596 = vand.u32 %v1779, 4294901760
    %v2597 = vsub.f32 %v1779, %v2596
    %v2598 = vand.u32 %v2597, 4294901760
    %2599 = vmatmul.mubr.f32.gmra.mxu0 %v2598
    %v2600 = vpop.f32.mrf.mxu0
    %v2601 = vadd.f32 %v2401, %v2600
    %v2602 = vpop.f32.mrf.mxu0
    %2603 = vmatprep.mubr.f32.mxu0 0.0
    %v2604 = vand.u32 %v1782, 4294901760
    %v2605 = vsub.f32 %v1782, %v2604
    %v2606 = vand.u32 %v2605, 4294901760
    %2607 = vmatmul.mubr.f32.gmra.mxu0 %v2606
    %v2608 = vpop.f32.mrf.mxu0
    %v2609 = vadd.f32 %v2408, %v2608
    %v2610 = vpop.f32.mrf.mxu0
    %2611 = vdwg.mxu0
    %2612 = vmatprep.subr.mxu0 0.0
    %2613 = vmatpush1.msra.mxu0 0.0
    %2614 = vmatprep.subr.mxu0 0.0
    %2615 = vmatpush1.msra.mxu0 0.0
    %2616 = vmatprep.subr.mxu0 0.0
    %2617 = vmatpush1.msra.mxu0 0.0
    %2618 = vmatprep.subr.mxu0 0.0
    %2619 = vmatpush1.msra.mxu0 0.0
    %2620 = vmatprep.subr.mxu0 0.0
    %2621 = vmatpush1.msra.mxu0 0.0
    %2622 = vmatprep.subr.mxu0 0.0
    %2623 = vmatpush1.msra.mxu0 0.0
    %2624 = vmatprep.subr.mxu0 0.0
    %2625 = vmatpush1.msra.mxu0 0.0
    %2626 = vmatprep.subr.mxu0 0.0
    %2627 = vmatpush1.msra.mxu0 0.0
    %2628 = vmatprep.subr.mxu0 0.0
    %v2629 = vand.u32 %v1728, 4294901760
    %v2630 = vsub.f32 %v1728, %v2629
    %v2631 = vand.u32 %v2630, 4294901760
    %2632 = vmatpush1.msra.mxu0 %v2631
    %2633 = vmatprep.subr.mxu0 0.0
    %v2634 = vand.u32 %v1727, 4294901760
    %v2635 = vsub.f32 %v1727, %v2634
    %v2636 = vand.u32 %v2635, 4294901760
    %2637 = vmatpush1.msra.mxu0 %v2636
    %2638 = vmatprep.subr.mxu0 0.0
    %v2639 = vand.u32 %v1726, 4294901760
    %v2640 = vsub.f32 %v1726, %v2639
    %v2641 = vand.u32 %v2640, 4294901760
    %2642 = vmatpush1.msra.mxu0 %v2641
    %2643 = vmatprep.subr.mxu0 0.0
    %v2644 = vand.u32 %v1725, 4294901760
    %v2645 = vsub.f32 %v1725, %v2644
    %v2646 = vand.u32 %v2645, 4294901760
    %2647 = vmatpush1.msra.mxu0 %v2646
    %2648 = vmatprep.subr.mxu0 0.0
    %v2649 = vand.u32 %v1724, 4294901760
    %v2650 = vsub.f32 %v1724, %v2649
    %v2651 = vand.u32 %v2650, 4294901760
    %2652 = vmatpush1.msra.mxu0 %v2651
    %2653 = vmatprep.subr.mxu0 0.0
    %v2654 = vand.u32 %v1723, 4294901760
    %v2655 = vsub.f32 %v1723, %v2654
    %v2656 = vand.u32 %v2655, 4294901760
    %2657 = vmatpush1.msra.mxu0 %v2656
    %2658 = vmatprep.subr.mxu0 0.0
    %v2659 = vand.u32 %v1722, 4294901760
    %v2660 = vsub.f32 %v1722, %v2659
    %v2661 = vand.u32 %v2660, 4294901760
    %2662 = vmatpush1.msra.mxu0 %v2661
    %2663 = vmatprep.subr.mxu0 0.0
    %v2664 = vand.u32 %v1721, 4294901760
    %v2665 = vsub.f32 %v1721, %v2664
    %v2666 = vand.u32 %v2665, 4294901760
    %2667 = vmatpush1.msra.mxu0 %v2666
    %2668 = vmatprep.subr.mxu0 0.0
    %2669 = vmatpush2.msra.mxu0 0.0
    %2670 = vmatprep.subr.mxu0 0.0
    %2671 = vmatpush2.msra.mxu0 0.0
    %2672 = vmatprep.subr.mxu0 0.0
    %2673 = vmatpush2.msra.mxu0 0.0
    %2674 = vmatprep.subr.mxu0 0.0
    %2675 = vmatpush2.msra.mxu0 0.0
    %2676 = vmatprep.subr.mxu0 0.0
    %2677 = vmatpush2.msra.mxu0 0.0
    %2678 = vmatprep.subr.mxu0 0.0
    %2679 = vmatpush2.msra.mxu0 0.0
    %2680 = vmatprep.subr.mxu0 0.0
    %2681 = vmatpush2.msra.mxu0 0.0
    %2682 = vmatprep.subr.mxu0 0.0
    %2683 = vmatpush2.msra.mxu0 0.0
    %2684 = vmatprep.subr.mxu0 0.0
    %2685 = vmatpush2.msra.mxu0 0.0
    %2686 = vmatprep.subr.mxu0 0.0
    %2687 = vmatpush2.msra.mxu0 0.0
    %2688 = vmatprep.subr.mxu0 0.0
    %2689 = vmatpush2.msra.mxu0 0.0
    %2690 = vmatprep.subr.mxu0 0.0
    %2691 = vmatpush2.msra.mxu0 0.0
    %2692 = vmatprep.subr.mxu0 0.0
    %2693 = vmatpush2.msra.mxu0 0.0
    %2694 = vmatprep.subr.mxu0 0.0
    %2695 = vmatpush2.msra.mxu0 0.0
    %2696 = vmatprep.subr.mxu0 0.0
    %2697 = vmatpush2.msra.mxu0 0.0
    %2698 = vmatprep.subr.mxu0 0.0
    %2699 = vmatpush2.msra.mxu0 0.0
    %2700 = vmatprep.mubr.f32.mxu0 0.0
    %v2701 = vand.u32 %v1737, 4294901760
    %2702 = vmatmul.mubr.f32.gmra.mxu0 %v2701
    %v2703 = vpop.f32.mrf.mxu0
    %v2704 = vadd.f32 %v2489, %v2703
    %v2705 = vpop.f32.mrf.mxu0
    %2706 = vmatprep.mubr.f32.mxu0 0.0
    %v2707 = vand.u32 %v1740, 4294901760
    %2708 = vmatmul.mubr.f32.gmra.mxu0 %v2707
    %v2709 = vpop.f32.mrf.mxu0
    %v2710 = vadd.f32 %v2497, %v2709
    %v2711 = vpop.f32.mrf.mxu0
    %2712 = vmatprep.mubr.f32.mxu0 0.0
    %v2713 = vand.u32 %v1743, 4294901760
    %2714 = vmatmul.mubr.f32.gmra.mxu0 %v2713
    %v2715 = vpop.f32.mrf.mxu0
    %v2716 = vadd.f32 %v2505, %v2715
    %v2717 = vpop.f32.mrf.mxu0
    %2718 = vmatprep.mubr.f32.mxu0 0.0
    %v2719 = vand.u32 %v1746, 4294901760
    %2720 = vmatmul.mubr.f32.gmra.mxu0 %v2719
    %v2721 = vpop.f32.mrf.mxu0
    %v2722 = vadd.f32 %v2513, %v2721
    %v2723 = vpop.f32.mrf.mxu0
    %2724 = vmatprep.mubr.f32.mxu0 0.0
    %v2725 = vand.u32 %v1749, 4294901760
    %2726 = vmatmul.mubr.f32.gmra.mxu0 %v2725
    %v2727 = vpop.f32.mrf.mxu0
    %v2728 = vadd.f32 %v2521, %v2727
    %v2729 = vpop.f32.mrf.mxu0
    %2730 = vmatprep.mubr.f32.mxu0 0.0
    %v2731 = vand.u32 %v1752, 4294901760
    %2732 = vmatmul.mubr.f32.gmra.mxu0 %v2731
    %v2733 = vpop.f32.mrf.mxu0
    %v2734 = vadd.f32 %v2529, %v2733
    %v2735 = vpop.f32.mrf.mxu0
    %2736 = vmatprep.mubr.f32.mxu0 0.0
    %v2737 = vand.u32 %v1755, 4294901760
    %2738 = vmatmul.mubr.f32.gmra.mxu0 %v2737
    %v2739 = vpop.f32.mrf.mxu0
    %v2740 = vadd.f32 %v2537, %v2739
    %v2741 = vpop.f32.mrf.mxu0
    %2742 = vmatprep.mubr.f32.mxu0 0.0
    %v2743 = vand.u32 %v1758, 4294901760
    %2744 = vmatmul.mubr.f32.gmra.mxu0 %v2743
    %v2745 = vpop.f32.mrf.mxu0
    %v2746 = vadd.f32 %v2545, %v2745
    %v2747 = vpop.f32.mrf.mxu0
    %2748 = vmatprep.mubr.f32.mxu0 0.0
    %v2749 = vand.u32 %v1761, 4294901760
    %2750 = vmatmul.mubr.f32.gmra.mxu0 %v2749
    %v2751 = vpop.f32.mrf.mxu0
    %v2752 = vadd.f32 %v2553, %v2751
    %v2753 = vpop.f32.mrf.mxu0
    %2754 = vmatprep.mubr.f32.mxu0 0.0
    %v2755 = vand.u32 %v1764, 4294901760
    %2756 = vmatmul.mubr.f32.gmra.mxu0 %v2755
    %v2757 = vpop.f32.mrf.mxu0
    %v2758 = vadd.f32 %v2561, %v2757
    %v2759 = vpop.f32.mrf.mxu0
    %2760 = vmatprep.mubr.f32.mxu0 0.0
    %v2761 = vand.u32 %v1767, 4294901760
    %2762 = vmatmul.mubr.f32.gmra.mxu0 %v2761
    %v2763 = vpop.f32.mrf.mxu0
    %v2764 = vadd.f32 %v2569, %v2763
    %v2765 = vpop.f32.mrf.mxu0
    %2766 = vmatprep.mubr.f32.mxu0 0.0
    %v2767 = vand.u32 %v1770, 4294901760
    %2768 = vmatmul.mubr.f32.gmra.mxu0 %v2767
    %v2769 = vpop.f32.mrf.mxu0
    %v2770 = vadd.f32 %v2577, %v2769
    %v2771 = vpop.f32.mrf.mxu0
    %2772 = vmatprep.mubr.f32.mxu0 0.0
    %v2773 = vand.u32 %v1773, 4294901760
    %2774 = vmatmul.mubr.f32.gmra.mxu0 %v2773
    %v2775 = vpop.f32.mrf.mxu0
    %v2776 = vadd.f32 %v2585, %v2775
    %v2777 = vpop.f32.mrf.mxu0
    %2778 = vmatprep.mubr.f32.mxu0 0.0
    %v2779 = vand.u32 %v1776, 4294901760
    %2780 = vmatmul.mubr.f32.gmra.mxu0 %v2779
    %v2781 = vpop.f32.mrf.mxu0
    %v2782 = vadd.f32 %v2593, %v2781
    %v2783 = vpop.f32.mrf.mxu0
    %2784 = vmatprep.mubr.f32.mxu0 0.0
    %v2785 = vand.u32 %v1779, 4294901760
    %2786 = vmatmul.mubr.f32.gmra.mxu0 %v2785
    %v2787 = vpop.f32.mrf.mxu0
    %v2788 = vadd.f32 %v2601, %v2787
    %v2789 = vpop.f32.mrf.mxu0
    %2790 = vmatprep.mubr.f32.mxu0 0.0
    %v2791 = vand.u32 %v1782, 4294901760
    %2792 = vmatmul.mubr.f32.gmra.mxu0 %v2791
    %v2793 = vpop.f32.mrf.mxu0
    %v2794 = vadd.f32 %v2609, %v2793
    %v2795 = vpop.f32.mrf.mxu0
    %2796 = vdwg.mxu0
    %2797 = vmatprep.subr.mxu0 0.0
    %2798 = vmatpush1.msra.mxu0 0.0
    %2799 = vmatprep.subr.mxu0 0.0
    %2800 = vmatpush1.msra.mxu0 0.0
    %2801 = vmatprep.subr.mxu0 0.0
    %2802 = vmatpush1.msra.mxu0 0.0
    %2803 = vmatprep.subr.mxu0 0.0
    %2804 = vmatpush1.msra.mxu0 0.0
    %2805 = vmatprep.subr.mxu0 0.0
    %2806 = vmatpush1.msra.mxu0 0.0
    %2807 = vmatprep.subr.mxu0 0.0
    %2808 = vmatpush1.msra.mxu0 0.0
    %2809 = vmatprep.subr.mxu0 0.0
    %2810 = vmatpush1.msra.mxu0 0.0
    %2811 = vmatprep.subr.mxu0 0.0
    %2812 = vmatpush1.msra.mxu0 0.0
    %2813 = vmatprep.subr.mxu0 0.0
    %v2814 = vand.u32 %v1728, 4294901760
    %2815 = vmatpush1.msra.mxu0 %v2814
    %2816 = vmatprep.subr.mxu0 0.0
    %v2817 = vand.u32 %v1727, 4294901760
    %2818 = vmatpush1.msra.mxu0 %v2817
    %2819 = vmatprep.subr.mxu0 0.0
    %v2820 = vand.u32 %v1726, 4294901760
    %2821 = vmatpush1.msra.mxu0 %v2820
    %2822 = vmatprep.subr.mxu0 0.0
    %v2823 = vand.u32 %v1725, 4294901760
    %2824 = vmatpush1.msra.mxu0 %v2823
    %2825 = vmatprep.subr.mxu0 0.0
    %v2826 = vand.u32 %v1724, 4294901760
    %2827 = vmatpush1.msra.mxu0 %v2826
    %2828 = vmatprep.subr.mxu0 0.0
    %v2829 = vand.u32 %v1723, 4294901760
    %2830 = vmatpush1.msra.mxu0 %v2829
    %2831 = vmatprep.subr.mxu0 0.0
    %v2832 = vand.u32 %v1722, 4294901760
    %2833 = vmatpush1.msra.mxu0 %v2832
    %2834 = vmatprep.subr.mxu0 0.0
    %v2835 = vand.u32 %v1721, 4294901760
    %2836 = vmatpush1.msra.mxu0 %v2835
    %2837 = vmatprep.subr.mxu0 0.0
    %2838 = vmatpush2.msra.mxu0 0.0
    %2839 = vmatprep.subr.mxu0 0.0
    %2840 = vmatpush2.msra.mxu0 0.0
    %2841 = vmatprep.subr.mxu0 0.0
    %2842 = vmatpush2.msra.mxu0 0.0
    %2843 = vmatprep.subr.mxu0 0.0
    %2844 = vmatpush2.msra.mxu0 0.0
    %2845 = vmatprep.subr.mxu0 0.0
    %2846 = vmatpush2.msra.mxu0 0.0
    %2847 = vmatprep.subr.mxu0 0.0
    %2848 = vmatpush2.msra.mxu0 0.0
    %2849 = vmatprep.subr.mxu0 0.0
    %2850 = vmatpush2.msra.mxu0 0.0
    %2851 = vmatprep.subr.mxu0 0.0
    %2852 = vmatpush2.msra.mxu0 0.0
    %2853 = vmatprep.subr.mxu0 0.0
    %2854 = vmatpush2.msra.mxu0 0.0
    %2855 = vmatprep.subr.mxu0 0.0
    %2856 = vmatpush2.msra.mxu0 0.0
    %2857 = vmatprep.subr.mxu0 0.0
    %2858 = vmatpush2.msra.mxu0 0.0
    %2859 = vmatprep.subr.mxu0 0.0
    %2860 = vmatpush2.msra.mxu0 0.0
    %2861 = vmatprep.subr.mxu0 0.0
    %2862 = vmatpush2.msra.mxu0 0.0
    %2863 = vmatprep.subr.mxu0 0.0
    %2864 = vmatpush2.msra.mxu0 0.0
    %2865 = vmatprep.subr.mxu0 0.0
    %2866 = vmatpush2.msra.mxu0 0.0
    %2867 = vmatprep.subr.mxu0 0.0
    %2868 = vmatpush2.msra.mxu0 0.0
    %2869 = vmatprep.mubr.f32.mxu0 0.0
    %v2870 = vand.u32 %v1737, 4294901760
    %2871 = vmatmul.mubr.f32.gmra.mxu0 %v2870
    %v2872 = vpop.f32.mrf.mxu0
    %v2873 = vadd.f32 %v2704, %v2872
    %v2874 = vpop.f32.mrf.mxu0
    %2875 = vmatprep.mubr.f32.mxu0 0.0
    %v2876 = vand.u32 %v1740, 4294901760
    %2877 = vmatmul.mubr.f32.gmra.mxu0 %v2876
    %v2878 = vpop.f32.mrf.mxu0
    %v2879 = vadd.f32 %v2710, %v2878
    %v2880 = vpop.f32.mrf.mxu0
    %2881 = vmatprep.mubr.f32.mxu0 0.0
    %v2882 = vand.u32 %v1743, 4294901760
    %2883 = vmatmul.mubr.f32.gmra.mxu0 %v2882
    %v2884 = vpop.f32.mrf.mxu0
    %v2885 = vadd.f32 %v2716, %v2884
    %v2886 = vpop.f32.mrf.mxu0
    %2887 = vmatprep.mubr.f32.mxu0 0.0
    %v2888 = vand.u32 %v1746, 4294901760
    %2889 = vmatmul.mubr.f32.gmra.mxu0 %v2888
    %v2890 = vpop.f32.mrf.mxu0
    %v2891 = vadd.f32 %v2722, %v2890
    %v2892 = vpop.f32.mrf.mxu0
    %2893 = vmatprep.mubr.f32.mxu0 0.0
    %v2894 = vand.u32 %v1749, 4294901760
    %2895 = vmatmul.mubr.f32.gmra.mxu0 %v2894
    %v2896 = vpop.f32.mrf.mxu0
    %v2897 = vadd.f32 %v2728, %v2896
    %v2898 = vpop.f32.mrf.mxu0
    %2899 = vmatprep.mubr.f32.mxu0 0.0
    %v2900 = vand.u32 %v1752, 4294901760
    %2901 = vmatmul.mubr.f32.gmra.mxu0 %v2900
    %v2902 = vpop.f32.mrf.mxu0
    %v2903 = vadd.f32 %v2734, %v2902
    %v2904 = vpop.f32.mrf.mxu0
    %2905 = vmatprep.mubr.f32.mxu0 0.0
    %v2906 = vand.u32 %v1755, 4294901760
    %2907 = vmatmul.mubr.f32.gmra.mxu0 %v2906
    %v2908 = vpop.f32.mrf.mxu0
    %v2909 = vadd.f32 %v2740, %v2908
    %v2910 = vpop.f32.mrf.mxu0
    %2911 = vmatprep.mubr.f32.mxu0 0.0
    %v2912 = vand.u32 %v1758, 4294901760
    %2913 = vmatmul.mubr.f32.gmra.mxu0 %v2912
    %v2914 = vpop.f32.mrf.mxu0
    %v2915 = vadd.f32 %v2746, %v2914
    %v2916 = vpop.f32.mrf.mxu0
    %2917 = vmatprep.mubr.f32.mxu0 0.0
    %v2918 = vand.u32 %v1761, 4294901760
    %2919 = vmatmul.mubr.f32.gmra.mxu0 %v2918
    %v2920 = vpop.f32.mrf.mxu0
    %v2921 = vadd.f32 %v2752, %v2920
    %v2922 = vpop.f32.mrf.mxu0
    %2923 = vmatprep.mubr.f32.mxu0 0.0
    %v2924 = vand.u32 %v1764, 4294901760
    %2925 = vmatmul.mubr.f32.gmra.mxu0 %v2924
    %v2926 = vpop.f32.mrf.mxu0
    %v2927 = vadd.f32 %v2758, %v2926
    %v2928 = vpop.f32.mrf.mxu0
    %2929 = vmatprep.mubr.f32.mxu0 0.0
    %v2930 = vand.u32 %v1767, 4294901760
    %2931 = vmatmul.mubr.f32.gmra.mxu0 %v2930
    %v2932 = vpop.f32.mrf.mxu0
    %v2933 = vadd.f32 %v2764, %v2932
    %v2934 = vpop.f32.mrf.mxu0
    %2935 = vmatprep.mubr.f32.mxu0 0.0
    %v2936 = vand.u32 %v1770, 4294901760
    %2937 = vmatmul.mubr.f32.gmra.mxu0 %v2936
    %v2938 = vpop.f32.mrf.mxu0
    %v2939 = vadd.f32 %v2770, %v2938
    %v2940 = vpop.f32.mrf.mxu0
    %2941 = vmatprep.mubr.f32.mxu0 0.0
    %v2942 = vand.u32 %v1773, 4294901760
    %2943 = vmatmul.mubr.f32.gmra.mxu0 %v2942
    %v2944 = vpop.f32.mrf.mxu0
    %v2945 = vadd.f32 %v2776, %v2944
    %v2946 = vpop.f32.mrf.mxu0
    %2947 = vmatprep.mubr.f32.mxu0 0.0
    %v2948 = vand.u32 %v1776, 4294901760
    %2949 = vmatmul.mubr.f32.gmra.mxu0 %v2948
    %v2950 = vpop.f32.mrf.mxu0
    %v2951 = vadd.f32 %v2782, %v2950
    %v2952 = vpop.f32.mrf.mxu0
    %2953 = vmatprep.mubr.f32.mxu0 0.0
    %v2954 = vand.u32 %v1779, 4294901760
    %2955 = vmatmul.mubr.f32.gmra.mxu0 %v2954
    %v2956 = vpop.f32.mrf.mxu0
    %v2957 = vadd.f32 %v2788, %v2956
    %v2958 = vpop.f32.mrf.mxu0
    %2959 = vmatprep.mubr.f32.mxu0 0.0
    %v2960 = vand.u32 %v1782, 4294901760
    %2961 = vmatmul.mubr.f32.gmra.mxu0 %v2960
    %v2962 = vpop.f32.mrf.mxu0
    %v2963 = vadd.f32 %v2794, %v2962
    %v2964 = vpop.f32.mrf.mxu0
    %2965 = vdwg.mxu0
    %v2966 = vld [vmem:[%s4] sm:$0xff]
    %v2967 = vld [vmem:[%s4 + $0x8] sm:$0xff]
    %v2968 = vld [vmem:[%s4 + $0x10] sm:$0xff]
    %v2969 = vld [vmem:[%s4 + $0x18] sm:$0xff]
    %v2970 = vld [vmem:[%s6] sm:$0x1]
    %v2972 = vlaneseq
    %v2973 = vshrl.u32 %v2972, 7
    %v2974 = vsub.s32 0, %v2973
    %v2975 = vrot.slane %v2970, %v2974
    %vm2977 = vcmask 261120
    %v2979 = vsel %vm2977, 0.0, 0
    %2981 = vmatprep.subr.mxu0 0.0
    %2982 = vmatpush1.msra.mxu0 0.0
    %2983 = vmatprep.subr.mxu0 0.0
    %2984 = vmatpush1.msra.mxu0 0.0
    %2985 = vmatprep.subr.mxu0 0.0
    %2986 = vmatpush1.msra.mxu0 0.0
    %2987 = vmatprep.subr.mxu0 0.0
    %2988 = vmatpush1.msra.mxu0 0.0
    %2989 = vmatprep.subr.mxu0 0.0
    %2990 = vmatpush1.msra.mxu0 0.0
    %2991 = vmatprep.subr.mxu0 0.0
    %2992 = vmatpush1.msra.mxu0 0.0
    %2993 = vmatprep.subr.mxu0 0.0
    %2994 = vmatpush1.msra.mxu0 0.0
    %2995 = vmatprep.subr.mxu0 0.0
    %2996 = vmatpush1.msra.mxu0 0.0
    %2997 = vmatprep.subr.mxu0 0.0
    %2998 = vmatpush1.msra.mxu0 0.0
    %2999 = vmatprep.subr.mxu0 0.0
    %3000 = vmatpush1.msra.mxu0 0.0
    %3001 = vmatprep.subr.mxu0 0.0
    %3002 = vmatpush1.msra.mxu0 0.0
    %3003 = vmatprep.subr.mxu0 0.0
    %3004 = vmatpush1.msra.mxu0 0.0
    %3005 = vmatprep.subr.mxu0 0.0
    %3006 = vmatpush1.msra.mxu0 %v2969
    %3007 = vmatprep.subr.mxu0 0.0
    %3008 = vmatpush1.msra.mxu0 %v2968
    %3009 = vmatprep.subr.mxu0 0.0
    %3010 = vmatpush1.msra.mxu0 %v2967
    %3011 = vmatprep.subr.mxu0 0.0
    %3012 = vmatpush1.msra.mxu0 %v2966
    %3013 = vmatprep.subr.mxu0 0.0
    %3014 = vmatpush2.msra.mxu0 0.0
    %3015 = vmatprep.subr.mxu0 0.0
    %3016 = vmatpush2.msra.mxu0 0.0
    %3017 = vmatprep.subr.mxu0 0.0
    %3018 = vmatpush2.msra.mxu0 0.0
    %3019 = vmatprep.subr.mxu0 0.0
    %3020 = vmatpush2.msra.mxu0 0.0
    %3021 = vmatprep.subr.mxu0 0.0
    %3022 = vmatpush2.msra.mxu0 0.0
    %3023 = vmatprep.subr.mxu0 0.0
    %3024 = vmatpush2.msra.mxu0 0.0
    %3025 = vmatprep.subr.mxu0 0.0
    %3026 = vmatpush2.msra.mxu0 0.0
    %3027 = vmatprep.subr.mxu0 0.0
    %3028 = vmatpush2.msra.mxu0 0.0
    %3029 = vmatprep.subr.mxu0 0.0
    %3030 = vmatpush2.msra.mxu0 0.0
    %3031 = vmatprep.subr.mxu0 0.0
    %3032 = vmatpush2.msra.mxu0 0.0
    %3033 = vmatprep.subr.mxu0 0.0
    %3034 = vmatpush2.msra.mxu0 0.0
    %3035 = vmatprep.subr.mxu0 0.0
    %3036 = vmatpush2.msra.mxu0 0.0
    %3037 = vmatprep.subr.mxu0 0.0
    %3038 = vmatpush2.msra.mxu0 0.0
    %3039 = vmatprep.subr.mxu0 0.0
    %3040 = vmatpush2.msra.mxu0 0.0
    %3041 = vmatprep.subr.mxu0 0.0
    %3042 = vmatpush2.msra.mxu0 0.0
    %3043 = vmatprep.subr.mxu0 0.0
    %3044 = vmatpush2.msra.mxu0 0.0
    %3045 = vmatprep.mubr.f32.mxu0 0.0
    %3046 = vmatmul.mubr.f32.gmra.mxu0 %v2979
    %v3047 = vpop.f32.mrf.mxu0
    %v3048 = vadd.f32 %v2975, %v3047
    %v3049 = vpop.f32.mrf.mxu0
    %3050 = vdwg.mxu0
    %v3051 = vadd.f32 %v2873, %v3048
    %v3052 = vxor.u32 %v3051, 2147483648
    %v3053 = vmul.f32 %v3052, 1.442695
    %v3054 = vpow.pop %v3053
    %v3055 = vadd.f32 %v3054, 1.0
    %v3056 = vrcp.pop %v3055
    %v3057 = vmul.f32 1.0, %v3056
    %3059 = vrot.lane.b32.xlu0 %v3048, 64
    %v3060 = vpop.permute.xlu0 %3059
    %v3062 = vmul.f32 %v3057, %v3060
    %3064 = vrot.lane.b32.xlu0 %v3062, 64
    %v3065 = vpop.permute.xlu0 %3064
    %v3067 = vadd.f32 %v2873, %v3065
    %v3068 = vtanh.pop %v3067
    %v3069 = vsub.f32 1.0, %v3057
    %3071 = vrot.lane.b32.xlu0 %v3068, 96
    %v3072 = vpop.permute.xlu0 %3071
    %v3074 = vmul.f32 %v3069, %v3072
    %v3075 = vmul.f32 %v3057, 0.0
    %v3076 = vadd.f32 %v3074, %v3075
    %v3078 = vcombine.high %v3076, %v3076
    %v3080 = vunpack.c.l.s4 1966171168
    %v3081 = vunpack.c.0.s8 %v3080
    %v3082 = vlaneseq
    %v3083 = vshrl.u32 %v3082, 7
    %v3084 = vsub.s32 %v3081, %v3083
    %v3085 = vrot.slane %v3076, %v3084
    %v3087 = vunpack.c.l.s4 1966171168
    %v3088 = vunpack.c.0.s8 %v3087
    %v3089 = vlaneseq
    %v3090 = vshrl.u32 %v3089, 7
    %v3091 = vsub.s32 %v3088, %v3090
    %v3092 = vrot.slane %v3078, %v3091
    %v3093 = vcombine.high %v3085, %v3085
    %v3094 = vcombine.high %v3092, %v3092
    %v3096 = vunpack.c.l.s4 1966171168
    %v3097 = vunpack.c.0.s8 %v3096
    %v3098 = vlaneseq
    %v3099 = vshrl.u32 %v3098, 7
    %v3100 = vsub.s32 %v3097, %v3099
    %v3101 = vrot.slane %v3085, %v3100
    %v3103 = vunpack.c.l.s4 1966171168
    %v3104 = vunpack.c.0.s8 %v3103
    %v3105 = vlaneseq
    %v3106 = vshrl.u32 %v3105, 7
    %v3107 = vsub.s32 %v3104, %v3106
    %v3108 = vrot.slane %v3092, %v3107
    %v3110 = vunpack.c.l.s4 1966171168
    %v3111 = vunpack.c.0.s8 %v3110
    %v3112 = vlaneseq
    %v3113 = vshrl.u32 %v3112, 7
    %v3114 = vsub.s32 %v3111, %v3113
    %v3115 = vrot.slane %v3093, %v3114
    %v3117 = vunpack.c.l.s4 1966171168
    %v3118 = vunpack.c.0.s8 %v3117
    %v3119 = vlaneseq
    %v3120 = vshrl.u32 %v3119, 7
    %v3121 = vsub.s32 %v3118, %v3120
    %v3122 = vrot.slane %v3094, %v3121
    %v3123 = vcombine.high %v3101, %v3101
    %v3124 = vcombine.high %v3108, %v3108
    %v3125 = vcombine.high %v3115, %v3115
    %v3126 = vcombine.high %v3122, %v3122
    %v3127 = vlaneseq
    %v3128 = vshrl.u32 %v3127, 7
    %v3129 = vsub.s32 0, %v3128
    %v3130 = vrot.slane %v3101, %v3129
    %v3131 = vlaneseq
    %v3132 = vshrl.u32 %v3131, 7
    %v3133 = vsub.s32 0, %v3132
    %v3134 = vrot.slane %v3115, %v3133
    %v3135 = vlaneseq
    %v3136 = vshrl.u32 %v3135, 7
    %v3137 = vsub.s32 0, %v3136
    %v3138 = vrot.slane %v3123, %v3137
    %v3139 = vlaneseq
    %v3140 = vshrl.u32 %v3139, 7
    %v3141 = vsub.s32 0, %v3140
    %v3142 = vrot.slane %v3125, %v3141
    %v3143 = vlaneseq
    %v3144 = vshrl.u32 %v3143, 7
    %v3145 = vsub.s32 0, %v3144
    %v3146 = vrot.slane %v3108, %v3145
    %v3147 = vlaneseq
    %v3148 = vshrl.u32 %v3147, 7
    %v3149 = vsub.s32 0, %v3148
    %v3150 = vrot.slane %v3122, %v3149
    %v3151 = vlaneseq
    %v3152 = vshrl.u32 %v3151, 7
    %v3153 = vsub.s32 0, %v3152
    %v3154 = vrot.slane %v3124, %v3153
    %v3155 = vlaneseq
    %v3156 = vshrl.u32 %v3155, 7
    %v3157 = vsub.s32 0, %v3156
    %v3158 = vrot.slane %v3126, %v3157
    %3159 = vrot.lane.b32.xlu0 %v3130, 96
    %v3160 = vpop.permute.xlu0 %3159
    %3161 = vrot.lane.b32.xlu0 %v3134, 96
    %v3162 = vpop.permute.xlu0 %3161
    %3163 = vrot.lane.b32.xlu0 %v3138, 96
    %v3164 = vpop.permute.xlu0 %3163
    %3165 = vrot.lane.b32.xlu0 %v3142, 96
    %v3166 = vpop.permute.xlu0 %3165
    %3167 = vrot.lane.b32.xlu0 %v3146, 96
    %v3168 = vpop.permute.xlu0 %3167
    %3169 = vrot.lane.b32.xlu0 %v3150, 96
    %v3170 = vpop.permute.xlu0 %3169
    %3171 = vrot.lane.b32.xlu0 %v3154, 96
    %v3172 = vpop.permute.xlu0 %3171
    %3173 = vrot.lane.b32.xlu0 %v3158, 96
    %v3174 = vpop.permute.xlu0 %3173
    %vm3183 = vcmask 253952
    %3184 = vst.msk [vmem:[#allocation2] sm:$0x1] %vm3183, %v3160
    %3185 = vst.msk [vmem:[#allocation2 + $0x10] sm:$0x1] %vm3183, %v3162
    %3186 = vst.msk [vmem:[#allocation2 + $0x20] sm:$0x1] %vm3183, %v3164
    %3187 = vst.msk [vmem:[#allocation2 + $0x30] sm:$0x1] %vm3183, %v3166
    %3188 = vst.msk [vmem:[#allocation2 + $0x40] sm:$0x1] %vm3183, %v3168
    %3189 = vst.msk [vmem:[#allocation2 + $0x50] sm:$0x1] %vm3183, %v3170
    %3190 = vst.msk [vmem:[#allocation2 + $0x60] sm:$0x1] %vm3183, %v3172
    %3191 = vst.msk [vmem:[#allocation2 + $0x70] sm:$0x1] %vm3183, %v3174
    %3192 = vrot.lane.b32.xlu0 %v3076, 96
    %v3193 = vpop.permute.xlu0 %3192
    %v3194 = vsel %vm2977, %v3193, 0
    %3196 = vmatprep.subr.mxu0 0.0
    %3197 = vmatpush1.msra.mxu0 0.0
    %3198 = vmatprep.subr.mxu0 0.0
    %3199 = vmatpush1.msra.mxu0 0.0
    %3200 = vmatprep.subr.mxu0 0.0
    %3201 = vmatpush1.msra.mxu0 0.0
    %3202 = vmatprep.subr.mxu0 0.0
    %3203 = vmatpush1.msra.mxu0 0.0
    %3204 = vmatprep.subr.mxu0 0.0
    %3205 = vmatpush1.msra.mxu0 0.0
    %3206 = vmatprep.subr.mxu0 0.0
    %3207 = vmatpush1.msra.mxu0 0.0
    %3208 = vmatprep.subr.mxu0 0.0
    %3209 = vmatpush1.msra.mxu0 0.0
    %3210 = vmatprep.subr.mxu0 0.0
    %3211 = vmatpush1.msra.mxu0 0.0
    %3212 = vmatprep.subr.mxu0 0.0
    %3213 = vmatpush1.msra.mxu0 0.0
    %3214 = vmatprep.subr.mxu0 0.0
    %3215 = vmatpush1.msra.mxu0 0.0
    %3216 = vmatprep.subr.mxu0 0.0
    %3217 = vmatpush1.msra.mxu0 0.0
    %3218 = vmatprep.subr.mxu0 0.0
    %3219 = vmatpush1.msra.mxu0 0.0
    %3220 = vmatprep.subr.mxu0 0.0
    %3221 = vmatpush1.msra.mxu0 %v2969
    %3222 = vmatprep.subr.mxu0 0.0
    %3223 = vmatpush1.msra.mxu0 %v2968
    %3224 = vmatprep.subr.mxu0 0.0
    %3225 = vmatpush1.msra.mxu0 %v2967
    %3226 = vmatprep.subr.mxu0 0.0
    %3227 = vmatpush1.msra.mxu0 %v2966
    %3228 = vmatprep.subr.mxu0 0.0
    %3229 = vmatpush2.msra.mxu0 0.0
    %3230 = vmatprep.subr.mxu0 0.0
    %3231 = vmatpush2.msra.mxu0 0.0
    %3232 = vmatprep.subr.mxu0 0.0
    %3233 = vmatpush2.msra.mxu0 0.0
    %3234 = vmatprep.subr.mxu0 0.0
    %3235 = vmatpush2.msra.mxu0 0.0
    %3236 = vmatprep.subr.mxu0 0.0
    %3237 = vmatpush2.msra.mxu0 0.0
    %3238 = vmatprep.subr.mxu0 0.0
    %3239 = vmatpush2.msra.mxu0 0.0
    %3240 = vmatprep.subr.mxu0 0.0
    %3241 = vmatpush2.msra.mxu0 0.0
    %3242 = vmatprep.subr.mxu0 0.0
    %3243 = vmatpush2.msra.mxu0 0.0
    %3244 = vmatprep.subr.mxu0 0.0
    %3245 = vmatpush2.msra.mxu0 0.0
    %3246 = vmatprep.subr.mxu0 0.0
    %3247 = vmatpush2.msra.mxu0 0.0
    %3248 = vmatprep.subr.mxu0 0.0
    %3249 = vmatpush2.msra.mxu0 0.0
    %3250 = vmatprep.subr.mxu0 0.0
    %3251 = vmatpush2.msra.mxu0 0.0
    %3252 = vmatprep.subr.mxu0 0.0
    %3253 = vmatpush2.msra.mxu0 0.0
    %3254 = vmatprep.subr.mxu0 0.0
    %3255 = vmatpush2.msra.mxu0 0.0
    %3256 = vmatprep.subr.mxu0 0.0
    %3257 = vmatpush2.msra.mxu0 0.0
    %3258 = vmatprep.subr.mxu0 0.0
    %3259 = vmatpush2.msra.mxu0 0.0
    %3260 = vmatprep.mubr.f32.mxu0 0.0
    %3261 = vmatmul.mubr.f32.gmra.mxu0 %v3194
    %v3262 = vpop.f32.mrf.mxu0
    %v3263 = vadd.f32 %v2975, %v3262
    %v3264 = vpop.f32.mrf.mxu0
    %3265 = vdwg.mxu0
    %v3266 = vadd.f32 %v2879, %v3263
    %v3267 = vxor.u32 %v3266, 2147483648
    %v3268 = vmul.f32 %v3267, 1.442695
    %v3269 = vpow.pop %v3268
    %v3270 = vadd.f32 %v3269, 1.0
    %v3271 = vrcp.pop %v3270
    %v3272 = vmul.f32 1.0, %v3271
    %3274 = vrot.lane.b32.xlu0 %v3263, 64
    %v3275 = vpop.permute.xlu0 %3274
    %v3277 = vmul.f32 %v3272, %v3275
    %3279 = vrot.lane.b32.xlu0 %v3277, 64
    %v3280 = vpop.permute.xlu0 %3279
    %v3282 = vadd.f32 %v2879, %v3280
    %v3283 = vtanh.pop %v3282
    %v3284 = vsub.f32 1.0, %v3272
    %3286 = vrot.lane.b32.xlu0 %v3283, 96
    %v3287 = vpop.permute.xlu0 %3286
    %v3289 = vmul.f32 %v3284, %v3287
    %v3290 = vmul.f32 %v3272, %v3076
    %v3291 = vadd.f32 %v3289, %v3290
    %v3293 = vcombine.high %v3291, %v3291
    %v3295 = vunpack.c.l.s4 1966171168
    %v3296 = vunpack.c.0.s8 %v3295
    %v3297 = vlaneseq
    %v3298 = vshrl.u32 %v3297, 7
    %v3299 = vsub.s32 %v3296, %v3298
    %v3300 = vrot.slane %v3291, %v3299
    %v3302 = vunpack.c.l.s4 1966171168
    %v3303 = vunpack.c.0.s8 %v3302
    %v3304 = vlaneseq
    %v3305 = vshrl.u32 %v3304, 7
    %v3306 = vsub.s32 %v3303, %v3305
    %v3307 = vrot.slane %v3293, %v3306
    %v3308 = vcombine.high %v3300, %v3300
    %v3309 = vcombine.high %v3307, %v3307
    %v3311 = vunpack.c.l.s4 1966171168
    %v3312 = vunpack.c.0.s8 %v3311
    %v3313 = vlaneseq
    %v3314 = vshrl.u32 %v3313, 7
    %v3315 = vsub.s32 %v3312, %v3314
    %v3316 = vrot.slane %v3300, %v3315
    %v3318 = vunpack.c.l.s4 1966171168
    %v3319 = vunpack.c.0.s8 %v3318
    %v3320 = vlaneseq
    %v3321 = vshrl.u32 %v3320, 7
    %v3322 = vsub.s32 %v3319, %v3321
    %v3323 = vrot.slane %v3307, %v3322
    %v3325 = vunpack.c.l.s4 1966171168
    %v3326 = vunpack.c.0.s8 %v3325
    %v3327 = vlaneseq
    %v3328 = vshrl.u32 %v3327, 7
    %v3329 = vsub.s32 %v3326, %v3328
    %v3330 = vrot.slane %v3308, %v3329
    %v3332 = vunpack.c.l.s4 1966171168
    %v3333 = vunpack.c.0.s8 %v3332
    %v3334 = vlaneseq
    %v3335 = vshrl.u32 %v3334, 7
    %v3336 = vsub.s32 %v3333, %v3335
    %v3337 = vrot.slane %v3309, %v3336
    %v3338 = vcombine.high %v3316, %v3316
    %v3339 = vcombine.high %v3323, %v3323
    %v3340 = vcombine.high %v3330, %v3330
    %v3341 = vcombine.high %v3337, %v3337
    %v3342 = vlaneseq
    %v3343 = vshrl.u32 %v3342, 7
    %v3344 = vsub.s32 0, %v3343
    %v3345 = vrot.slane %v3316, %v3344
    %v3346 = vlaneseq
    %v3347 = vshrl.u32 %v3346, 7
    %v3348 = vsub.s32 0, %v3347
    %v3349 = vrot.slane %v3330, %v3348
    %v3350 = vlaneseq
    %v3351 = vshrl.u32 %v3350, 7
    %v3352 = vsub.s32 0, %v3351
    %v3353 = vrot.slane %v3338, %v3352
    %v3354 = vlaneseq
    %v3355 = vshrl.u32 %v3354, 7
    %v3356 = vsub.s32 0, %v3355
    %v3357 = vrot.slane %v3340, %v3356
    %v3358 = vlaneseq
    %v3359 = vshrl.u32 %v3358, 7
    %v3360 = vsub.s32 0, %v3359
    %v3361 = vrot.slane %v3323, %v3360
    %v3362 = vlaneseq
    %v3363 = vshrl.u32 %v3362, 7
    %v3364 = vsub.s32 0, %v3363
    %v3365 = vrot.slane %v3337, %v3364
    %v3366 = vlaneseq
    %v3367 = vshrl.u32 %v3366, 7
    %v3368 = vsub.s32 0, %v3367
    %v3369 = vrot.slane %v3339, %v3368
    %v3370 = vlaneseq
    %v3371 = vshrl.u32 %v3370, 7
    %v3372 = vsub.s32 0, %v3371
    %v3373 = vrot.slane %v3341, %v3372
    %3374 = vrot.lane.b32.xlu0 %v3345, 96
    %v3375 = vpop.permute.xlu0 %3374
    %3376 = vrot.lane.b32.xlu0 %v3349, 96
    %v3377 = vpop.permute.xlu0 %3376
    %3378 = vrot.lane.b32.xlu0 %v3353, 96
    %v3379 = vpop.permute.xlu0 %3378
    %3380 = vrot.lane.b32.xlu0 %v3357, 96
    %v3381 = vpop.permute.xlu0 %3380
    %3382 = vrot.lane.b32.xlu0 %v3361, 96
    %v3383 = vpop.permute.xlu0 %3382
    %3384 = vrot.lane.b32.xlu0 %v3365, 96
    %v3385 = vpop.permute.xlu0 %3384
    %3386 = vrot.lane.b32.xlu0 %v3369, 96
    %v3387 = vpop.permute.xlu0 %3386
    %3388 = vrot.lane.b32.xlu0 %v3373, 96
    %v3389 = vpop.permute.xlu0 %3388
    %3398 = vst.msk [vmem:[#allocation2 + $0x1] sm:$0x1] %vm3183, %v3375
    %3399 = vst.msk [vmem:[#allocation2 + $0x11] sm:$0x1] %vm3183, %v3377
    %3400 = vst.msk [vmem:[#allocation2 + $0x21] sm:$0x1] %vm3183, %v3379
    %3401 = vst.msk [vmem:[#allocation2 + $0x31] sm:$0x1] %vm3183, %v3381
    %3402 = vst.msk [vmem:[#allocation2 + $0x41] sm:$0x1] %vm3183, %v3383
    %3403 = vst.msk [vmem:[#allocation2 + $0x51] sm:$0x1] %vm3183, %v3385
    %3404 = vst.msk [vmem:[#allocation2 + $0x61] sm:$0x1] %vm3183, %v3387
    %3405 = vst.msk [vmem:[#allocation2 + $0x71] sm:$0x1] %vm3183, %v3389
    %3406 = vrot.lane.b32.xlu0 %v3291, 96
    %v3407 = vpop.permute.xlu0 %3406
    %v3408 = vsel %vm2977, %v3407, 0
    %3410 = vmatprep.subr.mxu0 0.0
    %3411 = vmatpush1.msra.mxu0 0.0
    %3412 = vmatprep.subr.mxu0 0.0
    %3413 = vmatpush1.msra.mxu0 0.0
    %3414 = vmatprep.subr.mxu0 0.0
    %3415 = vmatpush1.msra.mxu0 0.0
    %3416 = vmatprep.subr.mxu0 0.0
    %3417 = vmatpush1.msra.mxu0 0.0
    %3418 = vmatprep.subr.mxu0 0.0
    %3419 = vmatpush1.msra.mxu0 0.0
    %3420 = vmatprep.subr.mxu0 0.0
    %3421 = vmatpush1.msra.mxu0 0.0
    %3422 = vmatprep.subr.mxu0 0.0
    %3423 = vmatpush1.msra.mxu0 0.0
    %3424 = vmatprep.subr.mxu0 0.0
    %3425 = vmatpush1.msra.mxu0 0.0
    %3426 = vmatprep.subr.mxu0 0.0
    %3427 = vmatpush1.msra.mxu0 0.0
    %3428 = vmatprep.subr.mxu0 0.0
    %3429 = vmatpush1.msra.mxu0 0.0
    %3430 = vmatprep.subr.mxu0 0.0
    %3431 = vmatpush1.msra.mxu0 0.0
    %3432 = vmatprep.subr.mxu0 0.0
    %3433 = vmatpush1.msra.mxu0 0.0
    %3434 = vmatprep.subr.mxu0 0.0
    %3435 = vmatpush1.msra.mxu0 %v2969
    %3436 = vmatprep.subr.mxu0 0.0
    %3437 = vmatpush1.msra.mxu0 %v2968
    %3438 = vmatprep.subr.mxu0 0.0
    %3439 = vmatpush1.msra.mxu0 %v2967
    %3440 = vmatprep.subr.mxu0 0.0
    %3441 = vmatpush1.msra.mxu0 %v2966
    %3442 = vmatprep.subr.mxu0 0.0
    %3443 = vmatpush2.msra.mxu0 0.0
    %3444 = vmatprep.subr.mxu0 0.0
    %3445 = vmatpush2.msra.mxu0 0.0
    %3446 = vmatprep.subr.mxu0 0.0
    %3447 = vmatpush2.msra.mxu0 0.0
    %3448 = vmatprep.subr.mxu0 0.0
    %3449 = vmatpush2.msra.mxu0 0.0
    %3450 = vmatprep.subr.mxu0 0.0
    %3451 = vmatpush2.msra.mxu0 0.0
    %3452 = vmatprep.subr.mxu0 0.0
    %3453 = vmatpush2.msra.mxu0 0.0
    %3454 = vmatprep.subr.mxu0 0.0
    %3455 = vmatpush2.msra.mxu0 0.0
    %3456 = vmatprep.subr.mxu0 0.0
    %3457 = vmatpush2.msra.mxu0 0.0
    %3458 = vmatprep.subr.mxu0 0.0
    %3459 = vmatpush2.msra.mxu0 0.0
    %3460 = vmatprep.subr.mxu0 0.0
    %3461 = vmatpush2.msra.mxu0 0.0
    %3462 = vmatprep.subr.mxu0 0.0
    %3463 = vmatpush2.msra.mxu0 0.0
    %3464 = vmatprep.subr.mxu0 0.0
    %3465 = vmatpush2.msra.mxu0 0.0
    %3466 = vmatprep.subr.mxu0 0.0
    %3467 = vmatpush2.msra.mxu0 0.0
    %3468 = vmatprep.subr.mxu0 0.0
    %3469 = vmatpush2.msra.mxu0 0.0
    %3470 = vmatprep.subr.mxu0 0.0
    %3471 = vmatpush2.msra.mxu0 0.0
    %3472 = vmatprep.subr.mxu0 0.0
    %3473 = vmatpush2.msra.mxu0 0.0
    %3474 = vmatprep.mubr.f32.mxu0 0.0
    %3475 = vmatmul.mubr.f32.gmra.mxu0 %v3408
    %v3476 = vpop.f32.mrf.mxu0
    %v3477 = vadd.f32 %v2975, %v3476
    %v3478 = vpop.f32.mrf.mxu0
    %3479 = vdwg.mxu0
    %v3480 = vadd.f32 %v2885, %v3477
    %v3481 = vxor.u32 %v3480, 2147483648
    %v3482 = vmul.f32 %v3481, 1.442695
    %v3483 = vpow.pop %v3482
    %v3484 = vadd.f32 %v3483, 1.0
    %v3485 = vrcp.pop %v3484
    %v3486 = vmul.f32 1.0, %v3485
    %3488 = vrot.lane.b32.xlu0 %v3477, 64
    %v3489 = vpop.permute.xlu0 %3488
    %v3491 = vmul.f32 %v3486, %v3489
    %3493 = vrot.lane.b32.xlu0 %v3491, 64
    %v3494 = vpop.permute.xlu0 %3493
    %v3496 = vadd.f32 %v2885, %v3494
    %v3497 = vtanh.pop %v3496
    %v3498 = vsub.f32 1.0, %v3486
    %3500 = vrot.lane.b32.xlu0 %v3497, 96
    %v3501 = vpop.permute.xlu0 %3500
    %v3503 = vmul.f32 %v3498, %v3501
    %v3504 = vmul.f32 %v3486, %v3291
    %v3505 = vadd.f32 %v3503, %v3504
    %v3507 = vcombine.high %v3505, %v3505
    %v3509 = vunpack.c.l.s4 1966171168
    %v3510 = vunpack.c.0.s8 %v3509
    %v3511 = vlaneseq
    %v3512 = vshrl.u32 %v3511, 7
    %v3513 = vsub.s32 %v3510, %v3512
    %v3514 = vrot.slane %v3505, %v3513
    %v3516 = vunpack.c.l.s4 1966171168
    %v3517 = vunpack.c.0.s8 %v3516
    %v3518 = vlaneseq
    %v3519 = vshrl.u32 %v3518, 7
    %v3520 = vsub.s32 %v3517, %v3519
    %v3521 = vrot.slane %v3507, %v3520
    %v3522 = vcombine.high %v3514, %v3514
    %v3523 = vcombine.high %v3521, %v3521
    %v3525 = vunpack.c.l.s4 1966171168
    %v3526 = vunpack.c.0.s8 %v3525
    %v3527 = vlaneseq
    %v3528 = vshrl.u32 %v3527, 7
    %v3529 = vsub.s32 %v3526, %v3528
    %v3530 = vrot.slane %v3514, %v3529
    %v3532 = vunpack.c.l.s4 1966171168
    %v3533 = vunpack.c.0.s8 %v3532
    %v3534 = vlaneseq
    %v3535 = vshrl.u32 %v3534, 7
    %v3536 = vsub.s32 %v3533, %v3535
    %v3537 = vrot.slane %v3521, %v3536
    %v3539 = vunpack.c.l.s4 1966171168
    %v3540 = vunpack.c.0.s8 %v3539
    %v3541 = vlaneseq
    %v3542 = vshrl.u32 %v3541, 7
    %v3543 = vsub.s32 %v3540, %v3542
    %v3544 = vrot.slane %v3522, %v3543
    %v3546 = vunpack.c.l.s4 1966171168
    %v3547 = vunpack.c.0.s8 %v3546
    %v3548 = vlaneseq
    %v3549 = vshrl.u32 %v3548, 7
    %v3550 = vsub.s32 %v3547, %v3549
    %v3551 = vrot.slane %v3523, %v3550
    %v3552 = vcombine.high %v3530, %v3530
    %v3553 = vcombine.high %v3537, %v3537
    %v3554 = vcombine.high %v3544, %v3544
    %v3555 = vcombine.high %v3551, %v3551
    %v3556 = vlaneseq
    %v3557 = vshrl.u32 %v3556, 7
    %v3558 = vsub.s32 0, %v3557
    %v3559 = vrot.slane %v3530, %v3558
    %v3560 = vlaneseq
    %v3561 = vshrl.u32 %v3560, 7
    %v3562 = vsub.s32 0, %v3561
    %v3563 = vrot.slane %v3544, %v3562
    %v3564 = vlaneseq
    %v3565 = vshrl.u32 %v3564, 7
    %v3566 = vsub.s32 0, %v3565
    %v3567 = vrot.slane %v3552, %v3566
    %v3568 = vlaneseq
    %v3569 = vshrl.u32 %v3568, 7
    %v3570 = vsub.s32 0, %v3569
    %v3571 = vrot.slane %v3554, %v3570
    %v3572 = vlaneseq
    %v3573 = vshrl.u32 %v3572, 7
    %v3574 = vsub.s32 0, %v3573
    %v3575 = vrot.slane %v3537, %v3574
    %v3576 = vlaneseq
    %v3577 = vshrl.u32 %v3576, 7
    %v3578 = vsub.s32 0, %v3577
    %v3579 = vrot.slane %v3551, %v3578
    %v3580 = vlaneseq
    %v3581 = vshrl.u32 %v3580, 7
    %v3582 = vsub.s32 0, %v3581
    %v3583 = vrot.slane %v3553, %v3582
    %v3584 = vlaneseq
    %v3585 = vshrl.u32 %v3584, 7
    %v3586 = vsub.s32 0, %v3585
    %v3587 = vrot.slane %v3555, %v3586
    %3588 = vrot.lane.b32.xlu0 %v3559, 96
    %v3589 = vpop.permute.xlu0 %3588
    %3590 = vrot.lane.b32.xlu0 %v3563, 96
    %v3591 = vpop.permute.xlu0 %3590
    %3592 = vrot.lane.b32.xlu0 %v3567, 96
    %v3593 = vpop.permute.xlu0 %3592
    %3594 = vrot.lane.b32.xlu0 %v3571, 96
    %v3595 = vpop.permute.xlu0 %3594
    %3596 = vrot.lane.b32.xlu0 %v3575, 96
    %v3597 = vpop.permute.xlu0 %3596
    %3598 = vrot.lane.b32.xlu0 %v3579, 96
    %v3599 = vpop.permute.xlu0 %3598
    %3600 = vrot.lane.b32.xlu0 %v3583, 96
    %v3601 = vpop.permute.xlu0 %3600
    %3602 = vrot.lane.b32.xlu0 %v3587, 96
    %v3603 = vpop.permute.xlu0 %3602
    %3612 = vst.msk [vmem:[#allocation2 + $0x2] sm:$0x1] %vm3183, %v3589
    %3613 = vst.msk [vmem:[#allocation2 + $0x12] sm:$0x1] %vm3183, %v3591
    %3614 = vst.msk [vmem:[#allocation2 + $0x22] sm:$0x1] %vm3183, %v3593
    %3615 = vst.msk [vmem:[#allocation2 + $0x32] sm:$0x1] %vm3183, %v3595
    %3616 = vst.msk [vmem:[#allocation2 + $0x42] sm:$0x1] %vm3183, %v3597
    %3617 = vst.msk [vmem:[#allocation2 + $0x52] sm:$0x1] %vm3183, %v3599
    %3618 = vst.msk [vmem:[#allocation2 + $0x62] sm:$0x1] %vm3183, %v3601
    %3619 = vst.msk [vmem:[#allocation2 + $0x72] sm:$0x1] %vm3183, %v3603
    %3620 = vrot.lane.b32.xlu0 %v3505, 96
    %v3621 = vpop.permute.xlu0 %3620
    %v3622 = vsel %vm2977, %v3621, 0
    %3624 = vmatprep.subr.mxu0 0.0
    %3625 = vmatpush1.msra.mxu0 0.0
    %3626 = vmatprep.subr.mxu0 0.0
    %3627 = vmatpush1.msra.mxu0 0.0
    %3628 = vmatprep.subr.mxu0 0.0
    %3629 = vmatpush1.msra.mxu0 0.0
    %3630 = vmatprep.subr.mxu0 0.0
    %3631 = vmatpush1.msra.mxu0 0.0
    %3632 = vmatprep.subr.mxu0 0.0
    %3633 = vmatpush1.msra.mxu0 0.0
    %3634 = vmatprep.subr.mxu0 0.0
    %3635 = vmatpush1.msra.mxu0 0.0
    %3636 = vmatprep.subr.mxu0 0.0
    %3637 = vmatpush1.msra.mxu0 0.0
    %3638 = vmatprep.subr.mxu0 0.0
    %3639 = vmatpush1.msra.mxu0 0.0
    %3640 = vmatprep.subr.mxu0 0.0
    %3641 = vmatpush1.msra.mxu0 0.0
    %3642 = vmatprep.subr.mxu0 0.0
    %3643 = vmatpush1.msra.mxu0 0.0
    %3644 = vmatprep.subr.mxu0 0.0
    %3645 = vmatpush1.msra.mxu0 0.0
    %3646 = vmatprep.subr.mxu0 0.0
    %3647 = vmatpush1.msra.mxu0 0.0
    %3648 = vmatprep.subr.mxu0 0.0
    %3649 = vmatpush1.msra.mxu0 %v2969
    %3650 = vmatprep.subr.mxu0 0.0
    %3651 = vmatpush1.msra.mxu0 %v2968
    %3652 = vmatprep.subr.mxu0 0.0
    %3653 = vmatpush1.msra.mxu0 %v2967
    %3654 = vmatprep.subr.mxu0 0.0
    %3655 = vmatpush1.msra.mxu0 %v2966
    %3656 = vmatprep.subr.mxu0 0.0
    %3657 = vmatpush2.msra.mxu0 0.0
    %3658 = vmatprep.subr.mxu0 0.0
    %3659 = vmatpush2.msra.mxu0 0.0
    %3660 = vmatprep.subr.mxu0 0.0
    %3661 = vmatpush2.msra.mxu0 0.0
    %3662 = vmatprep.subr.mxu0 0.0
    %3663 = vmatpush2.msra.mxu0 0.0
    %3664 = vmatprep.subr.mxu0 0.0
    %3665 = vmatpush2.msra.mxu0 0.0
    %3666 = vmatprep.subr.mxu0 0.0
    %3667 = vmatpush2.msra.mxu0 0.0
    %3668 = vmatprep.subr.mxu0 0.0
    %3669 = vmatpush2.msra.mxu0 0.0
    %3670 = vmatprep.subr.mxu0 0.0
    %3671 = vmatpush2.msra.mxu0 0.0
    %3672 = vmatprep.subr.mxu0 0.0
    %3673 = vmatpush2.msra.mxu0 0.0
    %3674 = vmatprep.subr.mxu0 0.0
    %3675 = vmatpush2.msra.mxu0 0.0
    %3676 = vmatprep.subr.mxu0 0.0
    %3677 = vmatpush2.msra.mxu0 0.0
    %3678 = vmatprep.subr.mxu0 0.0
    %3679 = vmatpush2.msra.mxu0 0.0
    %3680 = vmatprep.subr.mxu0 0.0
    %3681 = vmatpush2.msra.mxu0 0.0
    %3682 = vmatprep.subr.mxu0 0.0
    %3683 = vmatpush2.msra.mxu0 0.0
    %3684 = vmatprep.subr.mxu0 0.0
    %3685 = vmatpush2.msra.mxu0 0.0
    %3686 = vmatprep.subr.mxu0 0.0
    %3687 = vmatpush2.msra.mxu0 0.0
    %3688 = vmatprep.mubr.f32.mxu0 0.0
    %3689 = vmatmul.mubr.f32.gmra.mxu0 %v3622
    %v3690 = vpop.f32.mrf.mxu0
    %v3691 = vadd.f32 %v2975, %v3690
    %v3692 = vpop.f32.mrf.mxu0
    %3693 = vdwg.mxu0
    %v3694 = vadd.f32 %v2891, %v3691
    %v3695 = vxor.u32 %v3694, 2147483648
    %v3696 = vmul.f32 %v3695, 1.442695
    %v3697 = vpow.pop %v3696
    %v3698 = vadd.f32 %v3697, 1.0
    %v3699 = vrcp.pop %v3698
    %v3700 = vmul.f32 1.0, %v3699
    %3702 = vrot.lane.b32.xlu0 %v3691, 64
    %v3703 = vpop.permute.xlu0 %3702
    %v3705 = vmul.f32 %v3700, %v3703
    %3707 = vrot.lane.b32.xlu0 %v3705, 64
    %v3708 = vpop.permute.xlu0 %3707
    %v3710 = vadd.f32 %v2891, %v3708
    %v3711 = vtanh.pop %v3710
    %v3712 = vsub.f32 1.0, %v3700
    %3714 = vrot.lane.b32.xlu0 %v3711, 96
    %v3715 = vpop.permute.xlu0 %3714
    %v3717 = vmul.f32 %v3712, %v3715
    %v3718 = vmul.f32 %v3700, %v3505
    %v3719 = vadd.f32 %v3717, %v3718
    %v3721 = vcombine.high %v3719, %v3719
    %v3723 = vunpack.c.l.s4 1966171168
    %v3724 = vunpack.c.0.s8 %v3723
    %v3725 = vlaneseq
    %v3726 = vshrl.u32 %v3725, 7
    %v3727 = vsub.s32 %v3724, %v3726
    %v3728 = vrot.slane %v3719, %v3727
    %v3730 = vunpack.c.l.s4 1966171168
    %v3731 = vunpack.c.0.s8 %v3730
    %v3732 = vlaneseq
    %v3733 = vshrl.u32 %v3732, 7
    %v3734 = vsub.s32 %v3731, %v3733
    %v3735 = vrot.slane %v3721, %v3734
    %v3736 = vcombine.high %v3728, %v3728
    %v3737 = vcombine.high %v3735, %v3735
    %v3739 = vunpack.c.l.s4 1966171168
    %v3740 = vunpack.c.0.s8 %v3739
    %v3741 = vlaneseq
    %v3742 = vshrl.u32 %v3741, 7
    %v3743 = vsub.s32 %v3740, %v3742
    %v3744 = vrot.slane %v3728, %v3743
    %v3746 = vunpack.c.l.s4 1966171168
    %v3747 = vunpack.c.0.s8 %v3746
    %v3748 = vlaneseq
    %v3749 = vshrl.u32 %v3748, 7
    %v3750 = vsub.s32 %v3747, %v3749
    %v3751 = vrot.slane %v3735, %v3750
    %v3753 = vunpack.c.l.s4 1966171168
    %v3754 = vunpack.c.0.s8 %v3753
    %v3755 = vlaneseq
    %v3756 = vshrl.u32 %v3755, 7
    %v3757 = vsub.s32 %v3754, %v3756
    %v3758 = vrot.slane %v3736, %v3757
    %v3760 = vunpack.c.l.s4 1966171168
    %v3761 = vunpack.c.0.s8 %v3760
    %v3762 = vlaneseq
    %v3763 = vshrl.u32 %v3762, 7
    %v3764 = vsub.s32 %v3761, %v3763
    %v3765 = vrot.slane %v3737, %v3764
    %v3766 = vcombine.high %v3744, %v3744
    %v3767 = vcombine.high %v3751, %v3751
    %v3768 = vcombine.high %v3758, %v3758
    %v3769 = vcombine.high %v3765, %v3765
    %v3770 = vlaneseq
    %v3771 = vshrl.u32 %v3770, 7
    %v3772 = vsub.s32 0, %v3771
    %v3773 = vrot.slane %v3744, %v3772
    %v3774 = vlaneseq
    %v3775 = vshrl.u32 %v3774, 7
    %v3776 = vsub.s32 0, %v3775
    %v3777 = vrot.slane %v3758, %v3776
    %v3778 = vlaneseq
    %v3779 = vshrl.u32 %v3778, 7
    %v3780 = vsub.s32 0, %v3779
    %v3781 = vrot.slane %v3766, %v3780
    %v3782 = vlaneseq
    %v3783 = vshrl.u32 %v3782, 7
    %v3784 = vsub.s32 0, %v3783
    %v3785 = vrot.slane %v3768, %v3784
    %v3786 = vlaneseq
    %v3787 = vshrl.u32 %v3786, 7
    %v3788 = vsub.s32 0, %v3787
    %v3789 = vrot.slane %v3751, %v3788
    %v3790 = vlaneseq
    %v3791 = vshrl.u32 %v3790, 7
    %v3792 = vsub.s32 0, %v3791
    %v3793 = vrot.slane %v3765, %v3792
    %v3794 = vlaneseq
    %v3795 = vshrl.u32 %v3794, 7
    %v3796 = vsub.s32 0, %v3795
    %v3797 = vrot.slane %v3767, %v3796
    %v3798 = vlaneseq
    %v3799 = vshrl.u32 %v3798, 7
    %v3800 = vsub.s32 0, %v3799
    %v3801 = vrot.slane %v3769, %v3800
    %3802 = vrot.lane.b32.xlu0 %v3773, 96
    %v3803 = vpop.permute.xlu0 %3802
    %3804 = vrot.lane.b32.xlu0 %v3777, 96
    %v3805 = vpop.permute.xlu0 %3804
    %3806 = vrot.lane.b32.xlu0 %v3781, 96
    %v3807 = vpop.permute.xlu0 %3806
    %3808 = vrot.lane.b32.xlu0 %v3785, 96
    %v3809 = vpop.permute.xlu0 %3808
    %3810 = vrot.lane.b32.xlu0 %v3789, 96
    %v3811 = vpop.permute.xlu0 %3810
    %3812 = vrot.lane.b32.xlu0 %v3793, 96
    %v3813 = vpop.permute.xlu0 %3812
    %3814 = vrot.lane.b32.xlu0 %v3797, 96
    %v3815 = vpop.permute.xlu0 %3814
    %3816 = vrot.lane.b32.xlu0 %v3801, 96
    %v3817 = vpop.permute.xlu0 %3816
    %3826 = vst.msk [vmem:[#allocation2 + $0x3] sm:$0x1] %vm3183, %v3803
    %3827 = vst.msk [vmem:[#allocation2 + $0x13] sm:$0x1] %vm3183, %v3805
    %3828 = vst.msk [vmem:[#allocation2 + $0x23] sm:$0x1] %vm3183, %v3807
    %3829 = vst.msk [vmem:[#allocation2 + $0x33] sm:$0x1] %vm3183, %v3809
    %3830 = vst.msk [vmem:[#allocation2 + $0x43] sm:$0x1] %vm3183, %v3811
    %3831 = vst.msk [vmem:[#allocation2 + $0x53] sm:$0x1] %vm3183, %v3813
    %3832 = vst.msk [vmem:[#allocation2 + $0x63] sm:$0x1] %vm3183, %v3815
    %3833 = vst.msk [vmem:[#allocation2 + $0x73] sm:$0x1] %vm3183, %v3817
    %3834 = vrot.lane.b32.xlu0 %v3719, 96
    %v3835 = vpop.permute.xlu0 %3834
    %v3836 = vsel %vm2977, %v3835, 0
    %3838 = vmatprep.subr.mxu0 0.0
    %3839 = vmatpush1.msra.mxu0 0.0
    %3840 = vmatprep.subr.mxu0 0.0
    %3841 = vmatpush1.msra.mxu0 0.0
    %3842 = vmatprep.subr.mxu0 0.0
    %3843 = vmatpush1.msra.mxu0 0.0
    %3844 = vmatprep.subr.mxu0 0.0
    %3845 = vmatpush1.msra.mxu0 0.0
    %3846 = vmatprep.subr.mxu0 0.0
    %3847 = vmatpush1.msra.mxu0 0.0
    %3848 = vmatprep.subr.mxu0 0.0
    %3849 = vmatpush1.msra.mxu0 0.0
    %3850 = vmatprep.subr.mxu0 0.0
    %3851 = vmatpush1.msra.mxu0 0.0
    %3852 = vmatprep.subr.mxu0 0.0
    %3853 = vmatpush1.msra.mxu0 0.0
    %3854 = vmatprep.subr.mxu0 0.0
    %3855 = vmatpush1.msra.mxu0 0.0
    %3856 = vmatprep.subr.mxu0 0.0
    %3857 = vmatpush1.msra.mxu0 0.0
    %3858 = vmatprep.subr.mxu0 0.0
    %3859 = vmatpush1.msra.mxu0 0.0
    %3860 = vmatprep.subr.mxu0 0.0
    %3861 = vmatpush1.msra.mxu0 0.0
    %3862 = vmatprep.subr.mxu0 0.0
    %3863 = vmatpush1.msra.mxu0 %v2969
    %3864 = vmatprep.subr.mxu0 0.0
    %3865 = vmatpush1.msra.mxu0 %v2968
    %3866 = vmatprep.subr.mxu0 0.0
    %3867 = vmatpush1.msra.mxu0 %v2967
    %3868 = vmatprep.subr.mxu0 0.0
    %3869 = vmatpush1.msra.mxu0 %v2966
    %3870 = vmatprep.subr.mxu0 0.0
    %3871 = vmatpush2.msra.mxu0 0.0
    %3872 = vmatprep.subr.mxu0 0.0
    %3873 = vmatpush2.msra.mxu0 0.0
    %3874 = vmatprep.subr.mxu0 0.0
    %3875 = vmatpush2.msra.mxu0 0.0
    %3876 = vmatprep.subr.mxu0 0.0
    %3877 = vmatpush2.msra.mxu0 0.0
    %3878 = vmatprep.subr.mxu0 0.0
    %3879 = vmatpush2.msra.mxu0 0.0
    %3880 = vmatprep.subr.mxu0 0.0
    %3881 = vmatpush2.msra.mxu0 0.0
    %3882 = vmatprep.subr.mxu0 0.0
    %3883 = vmatpush2.msra.mxu0 0.0
    %3884 = vmatprep.subr.mxu0 0.0
    %3885 = vmatpush2.msra.mxu0 0.0
    %3886 = vmatprep.subr.mxu0 0.0
    %3887 = vmatpush2.msra.mxu0 0.0
    %3888 = vmatprep.subr.mxu0 0.0
    %3889 = vmatpush2.msra.mxu0 0.0
    %3890 = vmatprep.subr.mxu0 0.0
    %3891 = vmatpush2.msra.mxu0 0.0
    %3892 = vmatprep.subr.mxu0 0.0
    %3893 = vmatpush2.msra.mxu0 0.0
    %3894 = vmatprep.subr.mxu0 0.0
    %3895 = vmatpush2.msra.mxu0 0.0
    %3896 = vmatprep.subr.mxu0 0.0
    %3897 = vmatpush2.msra.mxu0 0.0
    %3898 = vmatprep.subr.mxu0 0.0
    %3899 = vmatpush2.msra.mxu0 0.0
    %3900 = vmatprep.subr.mxu0 0.0
    %3901 = vmatpush2.msra.mxu0 0.0
    %3902 = vmatprep.mubr.f32.mxu0 0.0
    %3903 = vmatmul.mubr.f32.gmra.mxu0 %v3836
    %v3904 = vpop.f32.mrf.mxu0
    %v3905 = vadd.f32 %v2975, %v3904
    %v3906 = vpop.f32.mrf.mxu0
    %3907 = vdwg.mxu0
    %v3908 = vadd.f32 %v2897, %v3905
    %v3909 = vxor.u32 %v3908, 2147483648
    %v3910 = vmul.f32 %v3909, 1.442695
    %v3911 = vpow.pop %v3910
    %v3912 = vadd.f32 %v3911, 1.0
    %v3913 = vrcp.pop %v3912
    %v3914 = vmul.f32 1.0, %v3913
    %3916 = vrot.lane.b32.xlu0 %v3905, 64
    %v3917 = vpop.permute.xlu0 %3916
    %v3919 = vmul.f32 %v3914, %v3917
    %3921 = vrot.lane.b32.xlu0 %v3919, 64
    %v3922 = vpop.permute.xlu0 %3921
    %v3924 = vadd.f32 %v2897, %v3922
    %v3925 = vtanh.pop %v3924
    %v3926 = vsub.f32 1.0, %v3914
    %3928 = vrot.lane.b32.xlu0 %v3925, 96
    %v3929 = vpop.permute.xlu0 %3928
    %v3931 = vmul.f32 %v3926, %v3929
    %v3932 = vmul.f32 %v3914, %v3719
    %v3933 = vadd.f32 %v3931, %v3932
    %v3935 = vcombine.high %v3933, %v3933
    %v3937 = vunpack.c.l.s4 1966171168
    %v3938 = vunpack.c.0.s8 %v3937
    %v3939 = vlaneseq
    %v3940 = vshrl.u32 %v3939, 7
    %v3941 = vsub.s32 %v3938, %v3940
    %v3942 = vrot.slane %v3933, %v3941
    %v3944 = vunpack.c.l.s4 1966171168
    %v3945 = vunpack.c.0.s8 %v3944
    %v3946 = vlaneseq
    %v3947 = vshrl.u32 %v3946, 7
    %v3948 = vsub.s32 %v3945, %v3947
    %v3949 = vrot.slane %v3935, %v3948
    %v3950 = vcombine.high %v3942, %v3942
    %v3951 = vcombine.high %v3949, %v3949
    %v3953 = vunpack.c.l.s4 1966171168
    %v3954 = vunpack.c.0.s8 %v3953
    %v3955 = vlaneseq
    %v3956 = vshrl.u32 %v3955, 7
    %v3957 = vsub.s32 %v3954, %v3956
    %v3958 = vrot.slane %v3942, %v3957
    %v3960 = vunpack.c.l.s4 1966171168
    %v3961 = vunpack.c.0.s8 %v3960
    %v3962 = vlaneseq
    %v3963 = vshrl.u32 %v3962, 7
    %v3964 = vsub.s32 %v3961, %v3963
    %v3965 = vrot.slane %v3949, %v3964
    %v3967 = vunpack.c.l.s4 1966171168
    %v3968 = vunpack.c.0.s8 %v3967
    %v3969 = vlaneseq
    %v3970 = vshrl.u32 %v3969, 7
    %v3971 = vsub.s32 %v3968, %v3970
    %v3972 = vrot.slane %v3950, %v3971
    %v3974 = vunpack.c.l.s4 1966171168
    %v3975 = vunpack.c.0.s8 %v3974
    %v3976 = vlaneseq
    %v3977 = vshrl.u32 %v3976, 7
    %v3978 = vsub.s32 %v3975, %v3977
    %v3979 = vrot.slane %v3951, %v3978
    %v3980 = vcombine.high %v3958, %v3958
    %v3981 = vcombine.high %v3965, %v3965
    %v3982 = vcombine.high %v3972, %v3972
    %v3983 = vcombine.high %v3979, %v3979
    %v3984 = vlaneseq
    %v3985 = vshrl.u32 %v3984, 7
    %v3986 = vsub.s32 0, %v3985
    %v3987 = vrot.slane %v3958, %v3986
    %v3988 = vlaneseq
    %v3989 = vshrl.u32 %v3988, 7
    %v3990 = vsub.s32 0, %v3989
    %v3991 = vrot.slane %v3972, %v3990
    %v3992 = vlaneseq
    %v3993 = vshrl.u32 %v3992, 7
    %v3994 = vsub.s32 0, %v3993
    %v3995 = vrot.slane %v3980, %v3994
    %v3996 = vlaneseq
    %v3997 = vshrl.u32 %v3996, 7
    %v3998 = vsub.s32 0, %v3997
    %v3999 = vrot.slane %v3982, %v3998
    %v4000 = vlaneseq
    %v4001 = vshrl.u32 %v4000, 7
    %v4002 = vsub.s32 0, %v4001
    %v4003 = vrot.slane %v3965, %v4002
    %v4004 = vlaneseq
    %v4005 = vshrl.u32 %v4004, 7
    %v4006 = vsub.s32 0, %v4005
    %v4007 = vrot.slane %v3979, %v4006
    %v4008 = vlaneseq
    %v4009 = vshrl.u32 %v4008, 7
    %v4010 = vsub.s32 0, %v4009
    %v4011 = vrot.slane %v3981, %v4010
    %v4012 = vlaneseq
    %v4013 = vshrl.u32 %v4012, 7
    %v4014 = vsub.s32 0, %v4013
    %v4015 = vrot.slane %v3983, %v4014
    %4016 = vrot.lane.b32.xlu0 %v3987, 96
    %v4017 = vpop.permute.xlu0 %4016
    %4018 = vrot.lane.b32.xlu0 %v3991, 96
    %v4019 = vpop.permute.xlu0 %4018
    %4020 = vrot.lane.b32.xlu0 %v3995, 96
    %v4021 = vpop.permute.xlu0 %4020
    %4022 = vrot.lane.b32.xlu0 %v3999, 96
    %v4023 = vpop.permute.xlu0 %4022
    %4024 = vrot.lane.b32.xlu0 %v4003, 96
    %v4025 = vpop.permute.xlu0 %4024
    %4026 = vrot.lane.b32.xlu0 %v4007, 96
    %v4027 = vpop.permute.xlu0 %4026
    %4028 = vrot.lane.b32.xlu0 %v4011, 96
    %v4029 = vpop.permute.xlu0 %4028
    %4030 = vrot.lane.b32.xlu0 %v4015, 96
    %v4031 = vpop.permute.xlu0 %4030
    %4040 = vst.msk [vmem:[#allocation2 + $0x4] sm:$0x1] %vm3183, %v4017
    %4041 = vst.msk [vmem:[#allocation2 + $0x14] sm:$0x1] %vm3183, %v4019
    %4042 = vst.msk [vmem:[#allocation2 + $0x24] sm:$0x1] %vm3183, %v4021
    %4043 = vst.msk [vmem:[#allocation2 + $0x34] sm:$0x1] %vm3183, %v4023
    %4044 = vst.msk [vmem:[#allocation2 + $0x44] sm:$0x1] %vm3183, %v4025
    %4045 = vst.msk [vmem:[#allocation2 + $0x54] sm:$0x1] %vm3183, %v4027
    %4046 = vst.msk [vmem:[#allocation2 + $0x64] sm:$0x1] %vm3183, %v4029
    %4047 = vst.msk [vmem:[#allocation2 + $0x74] sm:$0x1] %vm3183, %v4031
    %4048 = vrot.lane.b32.xlu0 %v3933, 96
    %v4049 = vpop.permute.xlu0 %4048
    %v4050 = vsel %vm2977, %v4049, 0
    %4052 = vmatprep.subr.mxu0 0.0
    %4053 = vmatpush1.msra.mxu0 0.0
    %4054 = vmatprep.subr.mxu0 0.0
    %4055 = vmatpush1.msra.mxu0 0.0
    %4056 = vmatprep.subr.mxu0 0.0
    %4057 = vmatpush1.msra.mxu0 0.0
    %4058 = vmatprep.subr.mxu0 0.0
    %4059 = vmatpush1.msra.mxu0 0.0
    %4060 = vmatprep.subr.mxu0 0.0
    %4061 = vmatpush1.msra.mxu0 0.0
    %4062 = vmatprep.subr.mxu0 0.0
    %4063 = vmatpush1.msra.mxu0 0.0
    %4064 = vmatprep.subr.mxu0 0.0
    %4065 = vmatpush1.msra.mxu0 0.0
    %4066 = vmatprep.subr.mxu0 0.0
    %4067 = vmatpush1.msra.mxu0 0.0
    %4068 = vmatprep.subr.mxu0 0.0
    %4069 = vmatpush1.msra.mxu0 0.0
    %4070 = vmatprep.subr.mxu0 0.0
    %4071 = vmatpush1.msra.mxu0 0.0
    %4072 = vmatprep.subr.mxu0 0.0
    %4073 = vmatpush1.msra.mxu0 0.0
    %4074 = vmatprep.subr.mxu0 0.0
    %4075 = vmatpush1.msra.mxu0 0.0
    %4076 = vmatprep.subr.mxu0 0.0
    %4077 = vmatpush1.msra.mxu0 %v2969
    %4078 = vmatprep.subr.mxu0 0.0
    %4079 = vmatpush1.msra.mxu0 %v2968
    %4080 = vmatprep.subr.mxu0 0.0
    %4081 = vmatpush1.msra.mxu0 %v2967
    %4082 = vmatprep.subr.mxu0 0.0
    %4083 = vmatpush1.msra.mxu0 %v2966
    %4084 = vmatprep.subr.mxu0 0.0
    %4085 = vmatpush2.msra.mxu0 0.0
    %4086 = vmatprep.subr.mxu0 0.0
    %4087 = vmatpush2.msra.mxu0 0.0
    %4088 = vmatprep.subr.mxu0 0.0
    %4089 = vmatpush2.msra.mxu0 0.0
    %4090 = vmatprep.subr.mxu0 0.0
    %4091 = vmatpush2.msra.mxu0 0.0
    %4092 = vmatprep.subr.mxu0 0.0
    %4093 = vmatpush2.msra.mxu0 0.0
    %4094 = vmatprep.subr.mxu0 0.0
    %4095 = vmatpush2.msra.mxu0 0.0
    %4096 = vmatprep.subr.mxu0 0.0
    %4097 = vmatpush2.msra.mxu0 0.0
    %4098 = vmatprep.subr.mxu0 0.0
    %4099 = vmatpush2.msra.mxu0 0.0
    %4100 = vmatprep.subr.mxu0 0.0
    %4101 = vmatpush2.msra.mxu0 0.0
    %4102 = vmatprep.subr.mxu0 0.0
    %4103 = vmatpush2.msra.mxu0 0.0
    %4104 = vmatprep.subr.mxu0 0.0
    %4105 = vmatpush2.msra.mxu0 0.0
    %4106 = vmatprep.subr.mxu0 0.0
    %4107 = vmatpush2.msra.mxu0 0.0
    %4108 = vmatprep.subr.mxu0 0.0
    %4109 = vmatpush2.msra.mxu0 0.0
    %4110 = vmatprep.subr.mxu0 0.0
    %4111 = vmatpush2.msra.mxu0 0.0
    %4112 = vmatprep.subr.mxu0 0.0
    %4113 = vmatpush2.msra.mxu0 0.0
    %4114 = vmatprep.subr.mxu0 0.0
    %4115 = vmatpush2.msra.mxu0 0.0
    %4116 = vmatprep.mubr.f32.mxu0 0.0
    %4117 = vmatmul.mubr.f32.gmra.mxu0 %v4050
    %v4118 = vpop.f32.mrf.mxu0
    %v4119 = vadd.f32 %v2975, %v4118
    %v4120 = vpop.f32.mrf.mxu0
    %4121 = vdwg.mxu0
    %v4122 = vadd.f32 %v2903, %v4119
    %v4123 = vxor.u32 %v4122, 2147483648
    %v4124 = vmul.f32 %v4123, 1.442695
    %v4125 = vpow.pop %v4124
    %v4126 = vadd.f32 %v4125, 1.0
    %v4127 = vrcp.pop %v4126
    %v4128 = vmul.f32 1.0, %v4127
    %4130 = vrot.lane.b32.xlu0 %v4119, 64
    %v4131 = vpop.permute.xlu0 %4130
    %v4133 = vmul.f32 %v4128, %v4131
    %4135 = vrot.lane.b32.xlu0 %v4133, 64
    %v4136 = vpop.permute.xlu0 %4135
    %v4138 = vadd.f32 %v2903, %v4136
    %v4139 = vtanh.pop %v4138
    %v4140 = vsub.f32 1.0, %v4128
    %4142 = vrot.lane.b32.xlu0 %v4139, 96
    %v4143 = vpop.permute.xlu0 %4142
    %v4145 = vmul.f32 %v4140, %v4143
    %v4146 = vmul.f32 %v4128, %v3933
    %v4147 = vadd.f32 %v4145, %v4146
    %v4149 = vcombine.high %v4147, %v4147
    %v4151 = vunpack.c.l.s4 1966171168
    %v4152 = vunpack.c.0.s8 %v4151
    %v4153 = vlaneseq
    %v4154 = vshrl.u32 %v4153, 7
    %v4155 = vsub.s32 %v4152, %v4154
    %v4156 = vrot.slane %v4147, %v4155
    %v4158 = vunpack.c.l.s4 1966171168
    %v4159 = vunpack.c.0.s8 %v4158
    %v4160 = vlaneseq
    %v4161 = vshrl.u32 %v4160, 7
    %v4162 = vsub.s32 %v4159, %v4161
    %v4163 = vrot.slane %v4149, %v4162
    %v4164 = vcombine.high %v4156, %v4156
    %v4165 = vcombine.high %v4163, %v4163
    %v4167 = vunpack.c.l.s4 1966171168
    %v4168 = vunpack.c.0.s8 %v4167
    %v4169 = vlaneseq
    %v4170 = vshrl.u32 %v4169, 7
    %v4171 = vsub.s32 %v4168, %v4170
    %v4172 = vrot.slane %v4156, %v4171
    %v4174 = vunpack.c.l.s4 1966171168
    %v4175 = vunpack.c.0.s8 %v4174
    %v4176 = vlaneseq
    %v4177 = vshrl.u32 %v4176, 7
    %v4178 = vsub.s32 %v4175, %v4177
    %v4179 = vrot.slane %v4163, %v4178
    %v4181 = vunpack.c.l.s4 1966171168
    %v4182 = vunpack.c.0.s8 %v4181
    %v4183 = vlaneseq
    %v4184 = vshrl.u32 %v4183, 7
    %v4185 = vsub.s32 %v4182, %v4184
    %v4186 = vrot.slane %v4164, %v4185
    %v4188 = vunpack.c.l.s4 1966171168
    %v4189 = vunpack.c.0.s8 %v4188
    %v4190 = vlaneseq
    %v4191 = vshrl.u32 %v4190, 7
    %v4192 = vsub.s32 %v4189, %v4191
    %v4193 = vrot.slane %v4165, %v4192
    %v4194 = vcombine.high %v4172, %v4172
    %v4195 = vcombine.high %v4179, %v4179
    %v4196 = vcombine.high %v4186, %v4186
    %v4197 = vcombine.high %v4193, %v4193
    %v4198 = vlaneseq
    %v4199 = vshrl.u32 %v4198, 7
    %v4200 = vsub.s32 0, %v4199
    %v4201 = vrot.slane %v4172, %v4200
    %v4202 = vlaneseq
    %v4203 = vshrl.u32 %v4202, 7
    %v4204 = vsub.s32 0, %v4203
    %v4205 = vrot.slane %v4186, %v4204
    %v4206 = vlaneseq
    %v4207 = vshrl.u32 %v4206, 7
    %v4208 = vsub.s32 0, %v4207
    %v4209 = vrot.slane %v4194, %v4208
    %v4210 = vlaneseq
    %v4211 = vshrl.u32 %v4210, 7
    %v4212 = vsub.s32 0, %v4211
    %v4213 = vrot.slane %v4196, %v4212
    %v4214 = vlaneseq
    %v4215 = vshrl.u32 %v4214, 7
    %v4216 = vsub.s32 0, %v4215
    %v4217 = vrot.slane %v4179, %v4216
    %v4218 = vlaneseq
    %v4219 = vshrl.u32 %v4218, 7
    %v4220 = vsub.s32 0, %v4219
    %v4221 = vrot.slane %v4193, %v4220
    %v4222 = vlaneseq
    %v4223 = vshrl.u32 %v4222, 7
    %v4224 = vsub.s32 0, %v4223
    %v4225 = vrot.slane %v4195, %v4224
    %v4226 = vlaneseq
    %v4227 = vshrl.u32 %v4226, 7
    %v4228 = vsub.s32 0, %v4227
    %v4229 = vrot.slane %v4197, %v4228
    %4230 = vrot.lane.b32.xlu0 %v4201, 96
    %v4231 = vpop.permute.xlu0 %4230
    %4232 = vrot.lane.b32.xlu0 %v4205, 96
    %v4233 = vpop.permute.xlu0 %4232
    %4234 = vrot.lane.b32.xlu0 %v4209, 96
    %v4235 = vpop.permute.xlu0 %4234
    %4236 = vrot.lane.b32.xlu0 %v4213, 96
    %v4237 = vpop.permute.xlu0 %4236
    %4238 = vrot.lane.b32.xlu0 %v4217, 96
    %v4239 = vpop.permute.xlu0 %4238
    %4240 = vrot.lane.b32.xlu0 %v4221, 96
    %v4241 = vpop.permute.xlu0 %4240
    %4242 = vrot.lane.b32.xlu0 %v4225, 96
    %v4243 = vpop.permute.xlu0 %4242
    %4244 = vrot.lane.b32.xlu0 %v4229, 96
    %v4245 = vpop.permute.xlu0 %4244
    %4254 = vst.msk [vmem:[#allocation2 + $0x5] sm:$0x1] %vm3183, %v4231
    %4255 = vst.msk [vmem:[#allocation2 + $0x15] sm:$0x1] %vm3183, %v4233
    %4256 = vst.msk [vmem:[#allocation2 + $0x25] sm:$0x1] %vm3183, %v4235
    %4257 = vst.msk [vmem:[#allocation2 + $0x35] sm:$0x1] %vm3183, %v4237
    %4258 = vst.msk [vmem:[#allocation2 + $0x45] sm:$0x1] %vm3183, %v4239
    %4259 = vst.msk [vmem:[#allocation2 + $0x55] sm:$0x1] %vm3183, %v4241
    %4260 = vst.msk [vmem:[#allocation2 + $0x65] sm:$0x1] %vm3183, %v4243
    %4261 = vst.msk [vmem:[#allocation2 + $0x75] sm:$0x1] %vm3183, %v4245
    %4262 = vrot.lane.b32.xlu0 %v4147, 96
    %v4263 = vpop.permute.xlu0 %4262
    %v4264 = vsel %vm2977, %v4263, 0
    %4266 = vmatprep.subr.mxu0 0.0
    %4267 = vmatpush1.msra.mxu0 0.0
    %4268 = vmatprep.subr.mxu0 0.0
    %4269 = vmatpush1.msra.mxu0 0.0
    %4270 = vmatprep.subr.mxu0 0.0
    %4271 = vmatpush1.msra.mxu0 0.0
    %4272 = vmatprep.subr.mxu0 0.0
    %4273 = vmatpush1.msra.mxu0 0.0
    %4274 = vmatprep.subr.mxu0 0.0
    %4275 = vmatpush1.msra.mxu0 0.0
    %4276 = vmatprep.subr.mxu0 0.0
    %4277 = vmatpush1.msra.mxu0 0.0
    %4278 = vmatprep.subr.mxu0 0.0
    %4279 = vmatpush1.msra.mxu0 0.0
    %4280 = vmatprep.subr.mxu0 0.0
    %4281 = vmatpush1.msra.mxu0 0.0
    %4282 = vmatprep.subr.mxu0 0.0
    %4283 = vmatpush1.msra.mxu0 0.0
    %4284 = vmatprep.subr.mxu0 0.0
    %4285 = vmatpush1.msra.mxu0 0.0
    %4286 = vmatprep.subr.mxu0 0.0
    %4287 = vmatpush1.msra.mxu0 0.0
    %4288 = vmatprep.subr.mxu0 0.0
    %4289 = vmatpush1.msra.mxu0 0.0
    %4290 = vmatprep.subr.mxu0 0.0
    %4291 = vmatpush1.msra.mxu0 %v2969
    %4292 = vmatprep.subr.mxu0 0.0
    %4293 = vmatpush1.msra.mxu0 %v2968
    %4294 = vmatprep.subr.mxu0 0.0
    %4295 = vmatpush1.msra.mxu0 %v2967
    %4296 = vmatprep.subr.mxu0 0.0
    %4297 = vmatpush1.msra.mxu0 %v2966
    %4298 = vmatprep.subr.mxu0 0.0
    %4299 = vmatpush2.msra.mxu0 0.0
    %4300 = vmatprep.subr.mxu0 0.0
    %4301 = vmatpush2.msra.mxu0 0.0
    %4302 = vmatprep.subr.mxu0 0.0
    %4303 = vmatpush2.msra.mxu0 0.0
    %4304 = vmatprep.subr.mxu0 0.0
    %4305 = vmatpush2.msra.mxu0 0.0
    %4306 = vmatprep.subr.mxu0 0.0
    %4307 = vmatpush2.msra.mxu0 0.0
    %4308 = vmatprep.subr.mxu0 0.0
    %4309 = vmatpush2.msra.mxu0 0.0
    %4310 = vmatprep.subr.mxu0 0.0
    %4311 = vmatpush2.msra.mxu0 0.0
    %4312 = vmatprep.subr.mxu0 0.0
    %4313 = vmatpush2.msra.mxu0 0.0
    %4314 = vmatprep.subr.mxu0 0.0
    %4315 = vmatpush2.msra.mxu0 0.0
    %4316 = vmatprep.subr.mxu0 0.0
    %4317 = vmatpush2.msra.mxu0 0.0
    %4318 = vmatprep.subr.mxu0 0.0
    %4319 = vmatpush2.msra.mxu0 0.0
    %4320 = vmatprep.subr.mxu0 0.0
    %4321 = vmatpush2.msra.mxu0 0.0
    %4322 = vmatprep.subr.mxu0 0.0
    %4323 = vmatpush2.msra.mxu0 0.0
    %4324 = vmatprep.subr.mxu0 0.0
    %4325 = vmatpush2.msra.mxu0 0.0
    %4326 = vmatprep.subr.mxu0 0.0
    %4327 = vmatpush2.msra.mxu0 0.0
    %4328 = vmatprep.subr.mxu0 0.0
    %4329 = vmatpush2.msra.mxu0 0.0
    %4330 = vmatprep.mubr.f32.mxu0 0.0
    %4331 = vmatmul.mubr.f32.gmra.mxu0 %v4264
    %v4332 = vpop.f32.mrf.mxu0
    %v4333 = vadd.f32 %v2975, %v4332
    %v4334 = vpop.f32.mrf.mxu0
    %4335 = vdwg.mxu0
    %v4336 = vadd.f32 %v2909, %v4333
    %v4337 = vxor.u32 %v4336, 2147483648
    %v4338 = vmul.f32 %v4337, 1.442695
    %v4339 = vpow.pop %v4338
    %v4340 = vadd.f32 %v4339, 1.0
    %v4341 = vrcp.pop %v4340
    %v4342 = vmul.f32 1.0, %v4341
    %4344 = vrot.lane.b32.xlu0 %v4333, 64
    %v4345 = vpop.permute.xlu0 %4344
    %v4347 = vmul.f32 %v4342, %v4345
    %4349 = vrot.lane.b32.xlu0 %v4347, 64
    %v4350 = vpop.permute.xlu0 %4349
    %v4352 = vadd.f32 %v2909, %v4350
    %v4353 = vtanh.pop %v4352
    %v4354 = vsub.f32 1.0, %v4342
    %4356 = vrot.lane.b32.xlu0 %v4353, 96
    %v4357 = vpop.permute.xlu0 %4356
    %v4359 = vmul.f32 %v4354, %v4357
    %v4360 = vmul.f32 %v4342, %v4147
    %v4361 = vadd.f32 %v4359, %v4360
    %v4363 = vcombine.high %v4361, %v4361
    %v4365 = vunpack.c.l.s4 1966171168
    %v4366 = vunpack.c.0.s8 %v4365
    %v4367 = vlaneseq
    %v4368 = vshrl.u32 %v4367, 7
    %v4369 = vsub.s32 %v4366, %v4368
    %v4370 = vrot.slane %v4361, %v4369
    %v4372 = vunpack.c.l.s4 1966171168
    %v4373 = vunpack.c.0.s8 %v4372
    %v4374 = vlaneseq
    %v4375 = vshrl.u32 %v4374, 7
    %v4376 = vsub.s32 %v4373, %v4375
    %v4377 = vrot.slane %v4363, %v4376
    %v4378 = vcombine.high %v4370, %v4370
    %v4379 = vcombine.high %v4377, %v4377
    %v4381 = vunpack.c.l.s4 1966171168
    %v4382 = vunpack.c.0.s8 %v4381
    %v4383 = vlaneseq
    %v4384 = vshrl.u32 %v4383, 7
    %v4385 = vsub.s32 %v4382, %v4384
    %v4386 = vrot.slane %v4370, %v4385
    %v4388 = vunpack.c.l.s4 1966171168
    %v4389 = vunpack.c.0.s8 %v4388
    %v4390 = vlaneseq
    %v4391 = vshrl.u32 %v4390, 7
    %v4392 = vsub.s32 %v4389, %v4391
    %v4393 = vrot.slane %v4377, %v4392
    %v4395 = vunpack.c.l.s4 1966171168
    %v4396 = vunpack.c.0.s8 %v4395
    %v4397 = vlaneseq
    %v4398 = vshrl.u32 %v4397, 7
    %v4399 = vsub.s32 %v4396, %v4398
    %v4400 = vrot.slane %v4378, %v4399
    %v4402 = vunpack.c.l.s4 1966171168
    %v4403 = vunpack.c.0.s8 %v4402
    %v4404 = vlaneseq
    %v4405 = vshrl.u32 %v4404, 7
    %v4406 = vsub.s32 %v4403, %v4405
    %v4407 = vrot.slane %v4379, %v4406
    %v4408 = vcombine.high %v4386, %v4386
    %v4409 = vcombine.high %v4393, %v4393
    %v4410 = vcombine.high %v4400, %v4400
    %v4411 = vcombine.high %v4407, %v4407
    %v4412 = vlaneseq
    %v4413 = vshrl.u32 %v4412, 7
    %v4414 = vsub.s32 0, %v4413
    %v4415 = vrot.slane %v4386, %v4414
    %v4416 = vlaneseq
    %v4417 = vshrl.u32 %v4416, 7
    %v4418 = vsub.s32 0, %v4417
    %v4419 = vrot.slane %v4400, %v4418
    %v4420 = vlaneseq
    %v4421 = vshrl.u32 %v4420, 7
    %v4422 = vsub.s32 0, %v4421
    %v4423 = vrot.slane %v4408, %v4422
    %v4424 = vlaneseq
    %v4425 = vshrl.u32 %v4424, 7
    %v4426 = vsub.s32 0, %v4425
    %v4427 = vrot.slane %v4410, %v4426
    %v4428 = vlaneseq
    %v4429 = vshrl.u32 %v4428, 7
    %v4430 = vsub.s32 0, %v4429
    %v4431 = vrot.slane %v4393, %v4430
    %v4432 = vlaneseq
    %v4433 = vshrl.u32 %v4432, 7
    %v4434 = vsub.s32 0, %v4433
    %v4435 = vrot.slane %v4407, %v4434
    %v4436 = vlaneseq
    %v4437 = vshrl.u32 %v4436, 7
    %v4438 = vsub.s32 0, %v4437
    %v4439 = vrot.slane %v4409, %v4438
    %v4440 = vlaneseq
    %v4441 = vshrl.u32 %v4440, 7
    %v4442 = vsub.s32 0, %v4441
    %v4443 = vrot.slane %v4411, %v4442
    %4444 = vrot.lane.b32.xlu0 %v4415, 96
    %v4445 = vpop.permute.xlu0 %4444
    %4446 = vrot.lane.b32.xlu0 %v4419, 96
    %v4447 = vpop.permute.xlu0 %4446
    %4448 = vrot.lane.b32.xlu0 %v4423, 96
    %v4449 = vpop.permute.xlu0 %4448
    %4450 = vrot.lane.b32.xlu0 %v4427, 96
    %v4451 = vpop.permute.xlu0 %4450
    %4452 = vrot.lane.b32.xlu0 %v4431, 96
    %v4453 = vpop.permute.xlu0 %4452
    %4454 = vrot.lane.b32.xlu0 %v4435, 96
    %v4455 = vpop.permute.xlu0 %4454
    %4456 = vrot.lane.b32.xlu0 %v4439, 96
    %v4457 = vpop.permute.xlu0 %4456
    %4458 = vrot.lane.b32.xlu0 %v4443, 96
    %v4459 = vpop.permute.xlu0 %4458
    %4468 = vst.msk [vmem:[#allocation2 + $0x6] sm:$0x1] %vm3183, %v4445
    %4469 = vst.msk [vmem:[#allocation2 + $0x16] sm:$0x1] %vm3183, %v4447
    %4470 = vst.msk [vmem:[#allocation2 + $0x26] sm:$0x1] %vm3183, %v4449
    %4471 = vst.msk [vmem:[#allocation2 + $0x36] sm:$0x1] %vm3183, %v4451
    %4472 = vst.msk [vmem:[#allocation2 + $0x46] sm:$0x1] %vm3183, %v4453
    %4473 = vst.msk [vmem:[#allocation2 + $0x56] sm:$0x1] %vm3183, %v4455
    %4474 = vst.msk [vmem:[#allocation2 + $0x66] sm:$0x1] %vm3183, %v4457
    %4475 = vst.msk [vmem:[#allocation2 + $0x76] sm:$0x1] %vm3183, %v4459
    %4476 = vrot.lane.b32.xlu0 %v4361, 96
    %v4477 = vpop.permute.xlu0 %4476
    %v4478 = vsel %vm2977, %v4477, 0
    %4480 = vmatprep.subr.mxu0 0.0
    %4481 = vmatpush1.msra.mxu0 0.0
    %4482 = vmatprep.subr.mxu0 0.0
    %4483 = vmatpush1.msra.mxu0 0.0
    %4484 = vmatprep.subr.mxu0 0.0
    %4485 = vmatpush1.msra.mxu0 0.0
    %4486 = vmatprep.subr.mxu0 0.0
    %4487 = vmatpush1.msra.mxu0 0.0
    %4488 = vmatprep.subr.mxu0 0.0
    %4489 = vmatpush1.msra.mxu0 0.0
    %4490 = vmatprep.subr.mxu0 0.0
    %4491 = vmatpush1.msra.mxu0 0.0
    %4492 = vmatprep.subr.mxu0 0.0
    %4493 = vmatpush1.msra.mxu0 0.0
    %4494 = vmatprep.subr.mxu0 0.0
    %4495 = vmatpush1.msra.mxu0 0.0
    %4496 = vmatprep.subr.mxu0 0.0
    %4497 = vmatpush1.msra.mxu0 0.0
    %4498 = vmatprep.subr.mxu0 0.0
    %4499 = vmatpush1.msra.mxu0 0.0
    %4500 = vmatprep.subr.mxu0 0.0
    %4501 = vmatpush1.msra.mxu0 0.0
    %4502 = vmatprep.subr.mxu0 0.0
    %4503 = vmatpush1.msra.mxu0 0.0
    %4504 = vmatprep.subr.mxu0 0.0
    %4505 = vmatpush1.msra.mxu0 %v2969
    %4506 = vmatprep.subr.mxu0 0.0
    %4507 = vmatpush1.msra.mxu0 %v2968
    %4508 = vmatprep.subr.mxu0 0.0
    %4509 = vmatpush1.msra.mxu0 %v2967
    %4510 = vmatprep.subr.mxu0 0.0
    %4511 = vmatpush1.msra.mxu0 %v2966
    %4512 = vmatprep.subr.mxu0 0.0
    %4513 = vmatpush2.msra.mxu0 0.0
    %4514 = vmatprep.subr.mxu0 0.0
    %4515 = vmatpush2.msra.mxu0 0.0
    %4516 = vmatprep.subr.mxu0 0.0
    %4517 = vmatpush2.msra.mxu0 0.0
    %4518 = vmatprep.subr.mxu0 0.0
    %4519 = vmatpush2.msra.mxu0 0.0
    %4520 = vmatprep.subr.mxu0 0.0
    %4521 = vmatpush2.msra.mxu0 0.0
    %4522 = vmatprep.subr.mxu0 0.0
    %4523 = vmatpush2.msra.mxu0 0.0
    %4524 = vmatprep.subr.mxu0 0.0
    %4525 = vmatpush2.msra.mxu0 0.0
    %4526 = vmatprep.subr.mxu0 0.0
    %4527 = vmatpush2.msra.mxu0 0.0
    %4528 = vmatprep.subr.mxu0 0.0
    %4529 = vmatpush2.msra.mxu0 0.0
    %4530 = vmatprep.subr.mxu0 0.0
    %4531 = vmatpush2.msra.mxu0 0.0
    %4532 = vmatprep.subr.mxu0 0.0
    %4533 = vmatpush2.msra.mxu0 0.0
    %4534 = vmatprep.subr.mxu0 0.0
    %4535 = vmatpush2.msra.mxu0 0.0
    %4536 = vmatprep.subr.mxu0 0.0
    %4537 = vmatpush2.msra.mxu0 0.0
    %4538 = vmatprep.subr.mxu0 0.0
    %4539 = vmatpush2.msra.mxu0 0.0
    %4540 = vmatprep.subr.mxu0 0.0
    %4541 = vmatpush2.msra.mxu0 0.0
    %4542 = vmatprep.subr.mxu0 0.0
    %4543 = vmatpush2.msra.mxu0 0.0
    %4544 = vmatprep.mubr.f32.mxu0 0.0
    %4545 = vmatmul.mubr.f32.gmra.mxu0 %v4478
    %v4546 = vpop.f32.mrf.mxu0
    %v4547 = vadd.f32 %v2975, %v4546
    %v4548 = vpop.f32.mrf.mxu0
    %4549 = vdwg.mxu0
    %v4550 = vadd.f32 %v2915, %v4547
    %v4551 = vxor.u32 %v4550, 2147483648
    %v4552 = vmul.f32 %v4551, 1.442695
    %v4553 = vpow.pop %v4552
    %v4554 = vadd.f32 %v4553, 1.0
    %v4555 = vrcp.pop %v4554
    %v4556 = vmul.f32 1.0, %v4555
    %4558 = vrot.lane.b32.xlu0 %v4547, 64
    %v4559 = vpop.permute.xlu0 %4558
    %v4561 = vmul.f32 %v4556, %v4559
    %4563 = vrot.lane.b32.xlu0 %v4561, 64
    %v4564 = vpop.permute.xlu0 %4563
    %v4566 = vadd.f32 %v2915, %v4564
    %v4567 = vtanh.pop %v4566
    %v4568 = vsub.f32 1.0, %v4556
    %4570 = vrot.lane.b32.xlu0 %v4567, 96
    %v4571 = vpop.permute.xlu0 %4570
    %v4573 = vmul.f32 %v4568, %v4571
    %v4574 = vmul.f32 %v4556, %v4361
    %v4575 = vadd.f32 %v4573, %v4574
    %v4577 = vcombine.high %v4575, %v4575
    %v4579 = vunpack.c.l.s4 1966171168
    %v4580 = vunpack.c.0.s8 %v4579
    %v4581 = vlaneseq
    %v4582 = vshrl.u32 %v4581, 7
    %v4583 = vsub.s32 %v4580, %v4582
    %v4584 = vrot.slane %v4575, %v4583
    %v4586 = vunpack.c.l.s4 1966171168
    %v4587 = vunpack.c.0.s8 %v4586
    %v4588 = vlaneseq
    %v4589 = vshrl.u32 %v4588, 7
    %v4590 = vsub.s32 %v4587, %v4589
    %v4591 = vrot.slane %v4577, %v4590
    %v4592 = vcombine.high %v4584, %v4584
    %v4593 = vcombine.high %v4591, %v4591
    %v4595 = vunpack.c.l.s4 1966171168
    %v4596 = vunpack.c.0.s8 %v4595
    %v4597 = vlaneseq
    %v4598 = vshrl.u32 %v4597, 7
    %v4599 = vsub.s32 %v4596, %v4598
    %v4600 = vrot.slane %v4584, %v4599
    %v4602 = vunpack.c.l.s4 1966171168
    %v4603 = vunpack.c.0.s8 %v4602
    %v4604 = vlaneseq
    %v4605 = vshrl.u32 %v4604, 7
    %v4606 = vsub.s32 %v4603, %v4605
    %v4607 = vrot.slane %v4591, %v4606
    %v4609 = vunpack.c.l.s4 1966171168
    %v4610 = vunpack.c.0.s8 %v4609
    %v4611 = vlaneseq
    %v4612 = vshrl.u32 %v4611, 7
    %v4613 = vsub.s32 %v4610, %v4612
    %v4614 = vrot.slane %v4592, %v4613
    %v4616 = vunpack.c.l.s4 1966171168
    %v4617 = vunpack.c.0.s8 %v4616
    %v4618 = vlaneseq
    %v4619 = vshrl.u32 %v4618, 7
    %v4620 = vsub.s32 %v4617, %v4619
    %v4621 = vrot.slane %v4593, %v4620
    %v4622 = vcombine.high %v4600, %v4600
    %v4623 = vcombine.high %v4607, %v4607
    %v4624 = vcombine.high %v4614, %v4614
    %v4625 = vcombine.high %v4621, %v4621
    %v4626 = vlaneseq
    %v4627 = vshrl.u32 %v4626, 7
    %v4628 = vsub.s32 0, %v4627
    %v4629 = vrot.slane %v4600, %v4628
    %v4630 = vlaneseq
    %v4631 = vshrl.u32 %v4630, 7
    %v4632 = vsub.s32 0, %v4631
    %v4633 = vrot.slane %v4614, %v4632
    %v4634 = vlaneseq
    %v4635 = vshrl.u32 %v4634, 7
    %v4636 = vsub.s32 0, %v4635
    %v4637 = vrot.slane %v4622, %v4636
    %v4638 = vlaneseq
    %v4639 = vshrl.u32 %v4638, 7
    %v4640 = vsub.s32 0, %v4639
    %v4641 = vrot.slane %v4624, %v4640
    %v4642 = vlaneseq
    %v4643 = vshrl.u32 %v4642, 7
    %v4644 = vsub.s32 0, %v4643
    %v4645 = vrot.slane %v4607, %v4644
    %v4646 = vlaneseq
    %v4647 = vshrl.u32 %v4646, 7
    %v4648 = vsub.s32 0, %v4647
    %v4649 = vrot.slane %v4621, %v4648
    %v4650 = vlaneseq
    %v4651 = vshrl.u32 %v4650, 7
    %v4652 = vsub.s32 0, %v4651
    %v4653 = vrot.slane %v4623, %v4652
    %v4654 = vlaneseq
    %v4655 = vshrl.u32 %v4654, 7
    %v4656 = vsub.s32 0, %v4655
    %v4657 = vrot.slane %v4625, %v4656
    %4658 = vrot.lane.b32.xlu0 %v4629, 96
    %v4659 = vpop.permute.xlu0 %4658
    %4660 = vrot.lane.b32.xlu0 %v4633, 96
    %v4661 = vpop.permute.xlu0 %4660
    %4662 = vrot.lane.b32.xlu0 %v4637, 96
    %v4663 = vpop.permute.xlu0 %4662
    %4664 = vrot.lane.b32.xlu0 %v4641, 96
    %v4665 = vpop.permute.xlu0 %4664
    %4666 = vrot.lane.b32.xlu0 %v4645, 96
    %v4667 = vpop.permute.xlu0 %4666
    %4668 = vrot.lane.b32.xlu0 %v4649, 96
    %v4669 = vpop.permute.xlu0 %4668
    %4670 = vrot.lane.b32.xlu0 %v4653, 96
    %v4671 = vpop.permute.xlu0 %4670
    %4672 = vrot.lane.b32.xlu0 %v4657, 96
    %v4673 = vpop.permute.xlu0 %4672
    %4682 = vst.msk [vmem:[#allocation2 + $0x7] sm:$0x1] %vm3183, %v4659
    %4683 = vst.msk [vmem:[#allocation2 + $0x17] sm:$0x1] %vm3183, %v4661
    %4684 = vst.msk [vmem:[#allocation2 + $0x27] sm:$0x1] %vm3183, %v4663
    %4685 = vst.msk [vmem:[#allocation2 + $0x37] sm:$0x1] %vm3183, %v4665
    %4686 = vst.msk [vmem:[#allocation2 + $0x47] sm:$0x1] %vm3183, %v4667
    %4687 = vst.msk [vmem:[#allocation2 + $0x57] sm:$0x1] %vm3183, %v4669
    %4688 = vst.msk [vmem:[#allocation2 + $0x67] sm:$0x1] %vm3183, %v4671
    %4689 = vst.msk [vmem:[#allocation2 + $0x77] sm:$0x1] %vm3183, %v4673
    %4690 = vrot.lane.b32.xlu0 %v4575, 96
    %v4691 = vpop.permute.xlu0 %4690
    %v4692 = vsel %vm2977, %v4691, 0
    %4694 = vmatprep.subr.mxu0 0.0
    %4695 = vmatpush1.msra.mxu0 0.0
    %4696 = vmatprep.subr.mxu0 0.0
    %4697 = vmatpush1.msra.mxu0 0.0
    %4698 = vmatprep.subr.mxu0 0.0
    %4699 = vmatpush1.msra.mxu0 0.0
    %4700 = vmatprep.subr.mxu0 0.0
    %4701 = vmatpush1.msra.mxu0 0.0
    %4702 = vmatprep.subr.mxu0 0.0
    %4703 = vmatpush1.msra.mxu0 0.0
    %4704 = vmatprep.subr.mxu0 0.0
    %4705 = vmatpush1.msra.mxu0 0.0
    %4706 = vmatprep.subr.mxu0 0.0
    %4707 = vmatpush1.msra.mxu0 0.0
    %4708 = vmatprep.subr.mxu0 0.0
    %4709 = vmatpush1.msra.mxu0 0.0
    %4710 = vmatprep.subr.mxu0 0.0
    %4711 = vmatpush1.msra.mxu0 0.0
    %4712 = vmatprep.subr.mxu0 0.0
    %4713 = vmatpush1.msra.mxu0 0.0
    %4714 = vmatprep.subr.mxu0 0.0
    %4715 = vmatpush1.msra.mxu0 0.0
    %4716 = vmatprep.subr.mxu0 0.0
    %4717 = vmatpush1.msra.mxu0 0.0
    %4718 = vmatprep.subr.mxu0 0.0
    %4719 = vmatpush1.msra.mxu0 %v2969
    %4720 = vmatprep.subr.mxu0 0.0
    %4721 = vmatpush1.msra.mxu0 %v2968
    %4722 = vmatprep.subr.mxu0 0.0
    %4723 = vmatpush1.msra.mxu0 %v2967
    %4724 = vmatprep.subr.mxu0 0.0
    %4725 = vmatpush1.msra.mxu0 %v2966
    %4726 = vmatprep.subr.mxu0 0.0
    %4727 = vmatpush2.msra.mxu0 0.0
    %4728 = vmatprep.subr.mxu0 0.0
    %4729 = vmatpush2.msra.mxu0 0.0
    %4730 = vmatprep.subr.mxu0 0.0
    %4731 = vmatpush2.msra.mxu0 0.0
    %4732 = vmatprep.subr.mxu0 0.0
    %4733 = vmatpush2.msra.mxu0 0.0
    %4734 = vmatprep.subr.mxu0 0.0
    %4735 = vmatpush2.msra.mxu0 0.0
    %4736 = vmatprep.subr.mxu0 0.0
    %4737 = vmatpush2.msra.mxu0 0.0
    %4738 = vmatprep.subr.mxu0 0.0
    %4739 = vmatpush2.msra.mxu0 0.0
    %4740 = vmatprep.subr.mxu0 0.0
    %4741 = vmatpush2.msra.mxu0 0.0
    %4742 = vmatprep.subr.mxu0 0.0
    %4743 = vmatpush2.msra.mxu0 0.0
    %4744 = vmatprep.subr.mxu0 0.0
    %4745 = vmatpush2.msra.mxu0 0.0
    %4746 = vmatprep.subr.mxu0 0.0
    %4747 = vmatpush2.msra.mxu0 0.0
    %4748 = vmatprep.subr.mxu0 0.0
    %4749 = vmatpush2.msra.mxu0 0.0
    %4750 = vmatprep.subr.mxu0 0.0
    %4751 = vmatpush2.msra.mxu0 0.0
    %4752 = vmatprep.subr.mxu0 0.0
    %4753 = vmatpush2.msra.mxu0 0.0
    %4754 = vmatprep.subr.mxu0 0.0
    %4755 = vmatpush2.msra.mxu0 0.0
    %4756 = vmatprep.subr.mxu0 0.0
    %4757 = vmatpush2.msra.mxu0 0.0
    %4758 = vmatprep.mubr.f32.mxu0 0.0
    %4759 = vmatmul.mubr.f32.gmra.mxu0 %v4692
    %v4760 = vpop.f32.mrf.mxu0
    %v4761 = vadd.f32 %v2975, %v4760
    %v4762 = vpop.f32.mrf.mxu0
    %4763 = vdwg.mxu0
    %v4764 = vadd.f32 %v2921, %v4761
    %v4765 = vxor.u32 %v4764, 2147483648
    %v4766 = vmul.f32 %v4765, 1.442695
    %v4767 = vpow.pop %v4766
    %v4768 = vadd.f32 %v4767, 1.0
    %v4769 = vrcp.pop %v4768
    %v4770 = vmul.f32 1.0, %v4769
    %4772 = vrot.lane.b32.xlu0 %v4761, 64
    %v4773 = vpop.permute.xlu0 %4772
    %v4775 = vmul.f32 %v4770, %v4773
    %4777 = vrot.lane.b32.xlu0 %v4775, 64
    %v4778 = vpop.permute.xlu0 %4777
    %v4780 = vadd.f32 %v2921, %v4778
    %v4781 = vtanh.pop %v4780
    %v4782 = vsub.f32 1.0, %v4770
    %4784 = vrot.lane.b32.xlu0 %v4781, 96
    %v4785 = vpop.permute.xlu0 %4784
    %v4787 = vmul.f32 %v4782, %v4785
    %v4788 = vmul.f32 %v4770, %v4575
    %v4789 = vadd.f32 %v4787, %v4788
    %v4791 = vcombine.high %v4789, %v4789
    %v4793 = vunpack.c.l.s4 1966171168
    %v4794 = vunpack.c.0.s8 %v4793
    %v4795 = vlaneseq
    %v4796 = vshrl.u32 %v4795, 7
    %v4797 = vsub.s32 %v4794, %v4796
    %v4798 = vrot.slane %v4789, %v4797
    %v4800 = vunpack.c.l.s4 1966171168
    %v4801 = vunpack.c.0.s8 %v4800
    %v4802 = vlaneseq
    %v4803 = vshrl.u32 %v4802, 7
    %v4804 = vsub.s32 %v4801, %v4803
    %v4805 = vrot.slane %v4791, %v4804
    %v4806 = vcombine.high %v4798, %v4798
    %v4807 = vcombine.high %v4805, %v4805
    %v4809 = vunpack.c.l.s4 1966171168
    %v4810 = vunpack.c.0.s8 %v4809
    %v4811 = vlaneseq
    %v4812 = vshrl.u32 %v4811, 7
    %v4813 = vsub.s32 %v4810, %v4812
    %v4814 = vrot.slane %v4798, %v4813
    %v4816 = vunpack.c.l.s4 1966171168
    %v4817 = vunpack.c.0.s8 %v4816
    %v4818 = vlaneseq
    %v4819 = vshrl.u32 %v4818, 7
    %v4820 = vsub.s32 %v4817, %v4819
    %v4821 = vrot.slane %v4805, %v4820
    %v4823 = vunpack.c.l.s4 1966171168
    %v4824 = vunpack.c.0.s8 %v4823
    %v4825 = vlaneseq
    %v4826 = vshrl.u32 %v4825, 7
    %v4827 = vsub.s32 %v4824, %v4826
    %v4828 = vrot.slane %v4806, %v4827
    %v4830 = vunpack.c.l.s4 1966171168
    %v4831 = vunpack.c.0.s8 %v4830
    %v4832 = vlaneseq
    %v4833 = vshrl.u32 %v4832, 7
    %v4834 = vsub.s32 %v4831, %v4833
    %v4835 = vrot.slane %v4807, %v4834
    %v4836 = vcombine.high %v4814, %v4814
    %v4837 = vcombine.high %v4821, %v4821
    %v4838 = vcombine.high %v4828, %v4828
    %v4839 = vcombine.high %v4835, %v4835
    %v4840 = vlaneseq
    %v4841 = vshrl.u32 %v4840, 7
    %v4842 = vsub.s32 0, %v4841
    %v4843 = vrot.slane %v4814, %v4842
    %v4844 = vlaneseq
    %v4845 = vshrl.u32 %v4844, 7
    %v4846 = vsub.s32 0, %v4845
    %v4847 = vrot.slane %v4828, %v4846
    %v4848 = vlaneseq
    %v4849 = vshrl.u32 %v4848, 7
    %v4850 = vsub.s32 0, %v4849
    %v4851 = vrot.slane %v4836, %v4850
    %v4852 = vlaneseq
    %v4853 = vshrl.u32 %v4852, 7
    %v4854 = vsub.s32 0, %v4853
    %v4855 = vrot.slane %v4838, %v4854
    %v4856 = vlaneseq
    %v4857 = vshrl.u32 %v4856, 7
    %v4858 = vsub.s32 0, %v4857
    %v4859 = vrot.slane %v4821, %v4858
    %v4860 = vlaneseq
    %v4861 = vshrl.u32 %v4860, 7
    %v4862 = vsub.s32 0, %v4861
    %v4863 = vrot.slane %v4835, %v4862
    %v4864 = vlaneseq
    %v4865 = vshrl.u32 %v4864, 7
    %v4866 = vsub.s32 0, %v4865
    %v4867 = vrot.slane %v4837, %v4866
    %v4868 = vlaneseq
    %v4869 = vshrl.u32 %v4868, 7
    %v4870 = vsub.s32 0, %v4869
    %v4871 = vrot.slane %v4839, %v4870
    %4872 = vrot.lane.b32.xlu0 %v4843, 96
    %v4873 = vpop.permute.xlu0 %4872
    %4874 = vrot.lane.b32.xlu0 %v4847, 96
    %v4875 = vpop.permute.xlu0 %4874
    %4876 = vrot.lane.b32.xlu0 %v4851, 96
    %v4877 = vpop.permute.xlu0 %4876
    %4878 = vrot.lane.b32.xlu0 %v4855, 96
    %v4879 = vpop.permute.xlu0 %4878
    %4880 = vrot.lane.b32.xlu0 %v4859, 96
    %v4881 = vpop.permute.xlu0 %4880
    %4882 = vrot.lane.b32.xlu0 %v4863, 96
    %v4883 = vpop.permute.xlu0 %4882
    %4884 = vrot.lane.b32.xlu0 %v4867, 96
    %v4885 = vpop.permute.xlu0 %4884
    %4886 = vrot.lane.b32.xlu0 %v4871, 96
    %v4887 = vpop.permute.xlu0 %4886
    %4896 = vst.msk [vmem:[#allocation2 + $0x8] sm:$0x1] %vm3183, %v4873
    %4897 = vst.msk [vmem:[#allocation2 + $0x18] sm:$0x1] %vm3183, %v4875
    %4898 = vst.msk [vmem:[#allocation2 + $0x28] sm:$0x1] %vm3183, %v4877
    %4899 = vst.msk [vmem:[#allocation2 + $0x38] sm:$0x1] %vm3183, %v4879
    %4900 = vst.msk [vmem:[#allocation2 + $0x48] sm:$0x1] %vm3183, %v4881
    %4901 = vst.msk [vmem:[#allocation2 + $0x58] sm:$0x1] %vm3183, %v4883
    %4902 = vst.msk [vmem:[#allocation2 + $0x68] sm:$0x1] %vm3183, %v4885
    %4903 = vst.msk [vmem:[#allocation2 + $0x78] sm:$0x1] %vm3183, %v4887
    %4904 = vrot.lane.b32.xlu0 %v4789, 96
    %v4905 = vpop.permute.xlu0 %4904
    %v4906 = vsel %vm2977, %v4905, 0
    %4908 = vmatprep.subr.mxu0 0.0
    %4909 = vmatpush1.msra.mxu0 0.0
    %4910 = vmatprep.subr.mxu0 0.0
    %4911 = vmatpush1.msra.mxu0 0.0
    %4912 = vmatprep.subr.mxu0 0.0
    %4913 = vmatpush1.msra.mxu0 0.0
    %4914 = vmatprep.subr.mxu0 0.0
    %4915 = vmatpush1.msra.mxu0 0.0
    %4916 = vmatprep.subr.mxu0 0.0
    %4917 = vmatpush1.msra.mxu0 0.0
    %4918 = vmatprep.subr.mxu0 0.0
    %4919 = vmatpush1.msra.mxu0 0.0
    %4920 = vmatprep.subr.mxu0 0.0
    %4921 = vmatpush1.msra.mxu0 0.0
    %4922 = vmatprep.subr.mxu0 0.0
    %4923 = vmatpush1.msra.mxu0 0.0
    %4924 = vmatprep.subr.mxu0 0.0
    %4925 = vmatpush1.msra.mxu0 0.0
    %4926 = vmatprep.subr.mxu0 0.0
    %4927 = vmatpush1.msra.mxu0 0.0
    %4928 = vmatprep.subr.mxu0 0.0
    %4929 = vmatpush1.msra.mxu0 0.0
    %4930 = vmatprep.subr.mxu0 0.0
    %4931 = vmatpush1.msra.mxu0 0.0
    %4932 = vmatprep.subr.mxu0 0.0
    %4933 = vmatpush1.msra.mxu0 %v2969
    %4934 = vmatprep.subr.mxu0 0.0
    %4935 = vmatpush1.msra.mxu0 %v2968
    %4936 = vmatprep.subr.mxu0 0.0
    %4937 = vmatpush1.msra.mxu0 %v2967
    %4938 = vmatprep.subr.mxu0 0.0
    %4939 = vmatpush1.msra.mxu0 %v2966
    %4940 = vmatprep.subr.mxu0 0.0
    %4941 = vmatpush2.msra.mxu0 0.0
    %4942 = vmatprep.subr.mxu0 0.0
    %4943 = vmatpush2.msra.mxu0 0.0
    %4944 = vmatprep.subr.mxu0 0.0
    %4945 = vmatpush2.msra.mxu0 0.0
    %4946 = vmatprep.subr.mxu0 0.0
    %4947 = vmatpush2.msra.mxu0 0.0
    %4948 = vmatprep.subr.mxu0 0.0
    %4949 = vmatpush2.msra.mxu0 0.0
    %4950 = vmatprep.subr.mxu0 0.0
    %4951 = vmatpush2.msra.mxu0 0.0
    %4952 = vmatprep.subr.mxu0 0.0
    %4953 = vmatpush2.msra.mxu0 0.0
    %4954 = vmatprep.subr.mxu0 0.0
    %4955 = vmatpush2.msra.mxu0 0.0
    %4956 = vmatprep.subr.mxu0 0.0
    %4957 = vmatpush2.msra.mxu0 0.0
    %4958 = vmatprep.subr.mxu0 0.0
    %4959 = vmatpush2.msra.mxu0 0.0
    %4960 = vmatprep.subr.mxu0 0.0
    %4961 = vmatpush2.msra.mxu0 0.0
    %4962 = vmatprep.subr.mxu0 0.0
    %4963 = vmatpush2.msra.mxu0 0.0
    %4964 = vmatprep.subr.mxu0 0.0
    %4965 = vmatpush2.msra.mxu0 0.0
    %4966 = vmatprep.subr.mxu0 0.0
    %4967 = vmatpush2.msra.mxu0 0.0
    %4968 = vmatprep.subr.mxu0 0.0
    %4969 = vmatpush2.msra.mxu0 0.0
    %4970 = vmatprep.subr.mxu0 0.0
    %4971 = vmatpush2.msra.mxu0 0.0
    %4972 = vmatprep.mubr.f32.mxu0 0.0
    %4973 = vmatmul.mubr.f32.gmra.mxu0 %v4906
    %v4974 = vpop.f32.mrf.mxu0
    %v4975 = vadd.f32 %v2975, %v4974
    %v4976 = vpop.f32.mrf.mxu0
    %4977 = vdwg.mxu0
    %v4978 = vadd.f32 %v2927, %v4975
    %v4979 = vxor.u32 %v4978, 2147483648
    %v4980 = vmul.f32 %v4979, 1.442695
    %v4981 = vpow.pop %v4980
    %v4982 = vadd.f32 %v4981, 1.0
    %v4983 = vrcp.pop %v4982
    %v4984 = vmul.f32 1.0, %v4983
    %4986 = vrot.lane.b32.xlu0 %v4975, 64
    %v4987 = vpop.permute.xlu0 %4986
    %v4989 = vmul.f32 %v4984, %v4987
    %4991 = vrot.lane.b32.xlu0 %v4989, 64
    %v4992 = vpop.permute.xlu0 %4991
    %v4994 = vadd.f32 %v2927, %v4992
    %v4995 = vtanh.pop %v4994
    %v4996 = vsub.f32 1.0, %v4984
    %4998 = vrot.lane.b32.xlu0 %v4995, 96
    %v4999 = vpop.permute.xlu0 %4998
    %v5001 = vmul.f32 %v4996, %v4999
    %v5002 = vmul.f32 %v4984, %v4789
    %v5003 = vadd.f32 %v5001, %v5002
    %v5005 = vcombine.high %v5003, %v5003
    %v5007 = vunpack.c.l.s4 1966171168
    %v5008 = vunpack.c.0.s8 %v5007
    %v5009 = vlaneseq
    %v5010 = vshrl.u32 %v5009, 7
    %v5011 = vsub.s32 %v5008, %v5010
    %v5012 = vrot.slane %v5003, %v5011
    %v5014 = vunpack.c.l.s4 1966171168
    %v5015 = vunpack.c.0.s8 %v5014
    %v5016 = vlaneseq
    %v5017 = vshrl.u32 %v5016, 7
    %v5018 = vsub.s32 %v5015, %v5017
    %v5019 = vrot.slane %v5005, %v5018
    %v5020 = vcombine.high %v5012, %v5012
    %v5021 = vcombine.high %v5019, %v5019
    %v5023 = vunpack.c.l.s4 1966171168
    %v5024 = vunpack.c.0.s8 %v5023
    %v5025 = vlaneseq
    %v5026 = vshrl.u32 %v5025, 7
    %v5027 = vsub.s32 %v5024, %v5026
    %v5028 = vrot.slane %v5012, %v5027
    %v5030 = vunpack.c.l.s4 1966171168
    %v5031 = vunpack.c.0.s8 %v5030
    %v5032 = vlaneseq
    %v5033 = vshrl.u32 %v5032, 7
    %v5034 = vsub.s32 %v5031, %v5033
    %v5035 = vrot.slane %v5019, %v5034
    %v5037 = vunpack.c.l.s4 1966171168
    %v5038 = vunpack.c.0.s8 %v5037
    %v5039 = vlaneseq
    %v5040 = vshrl.u32 %v5039, 7
    %v5041 = vsub.s32 %v5038, %v5040
    %v5042 = vrot.slane %v5020, %v5041
    %v5044 = vunpack.c.l.s4 1966171168
    %v5045 = vunpack.c.0.s8 %v5044
    %v5046 = vlaneseq
    %v5047 = vshrl.u32 %v5046, 7
    %v5048 = vsub.s32 %v5045, %v5047
    %v5049 = vrot.slane %v5021, %v5048
    %v5050 = vcombine.high %v5028, %v5028
    %v5051 = vcombine.high %v5035, %v5035
    %v5052 = vcombine.high %v5042, %v5042
    %v5053 = vcombine.high %v5049, %v5049
    %v5054 = vlaneseq
    %v5055 = vshrl.u32 %v5054, 7
    %v5056 = vsub.s32 0, %v5055
    %v5057 = vrot.slane %v5028, %v5056
    %v5058 = vlaneseq
    %v5059 = vshrl.u32 %v5058, 7
    %v5060 = vsub.s32 0, %v5059
    %v5061 = vrot.slane %v5042, %v5060
    %v5062 = vlaneseq
    %v5063 = vshrl.u32 %v5062, 7
    %v5064 = vsub.s32 0, %v5063
    %v5065 = vrot.slane %v5050, %v5064
    %v5066 = vlaneseq
    %v5067 = vshrl.u32 %v5066, 7
    %v5068 = vsub.s32 0, %v5067
    %v5069 = vrot.slane %v5052, %v5068
    %v5070 = vlaneseq
    %v5071 = vshrl.u32 %v5070, 7
    %v5072 = vsub.s32 0, %v5071
    %v5073 = vrot.slane %v5035, %v5072
    %v5074 = vlaneseq
    %v5075 = vshrl.u32 %v5074, 7
    %v5076 = vsub.s32 0, %v5075
    %v5077 = vrot.slane %v5049, %v5076
    %v5078 = vlaneseq
    %v5079 = vshrl.u32 %v5078, 7
    %v5080 = vsub.s32 0, %v5079
    %v5081 = vrot.slane %v5051, %v5080
    %v5082 = vlaneseq
    %v5083 = vshrl.u32 %v5082, 7
    %v5084 = vsub.s32 0, %v5083
    %v5085 = vrot.slane %v5053, %v5084
    %5086 = vrot.lane.b32.xlu0 %v5057, 96
    %v5087 = vpop.permute.xlu0 %5086
    %5088 = vrot.lane.b32.xlu0 %v5061, 96
    %v5089 = vpop.permute.xlu0 %5088
    %5090 = vrot.lane.b32.xlu0 %v5065, 96
    %v5091 = vpop.permute.xlu0 %5090
    %5092 = vrot.lane.b32.xlu0 %v5069, 96
    %v5093 = vpop.permute.xlu0 %5092
    %5094 = vrot.lane.b32.xlu0 %v5073, 96
    %v5095 = vpop.permute.xlu0 %5094
    %5096 = vrot.lane.b32.xlu0 %v5077, 96
    %v5097 = vpop.permute.xlu0 %5096
    %5098 = vrot.lane.b32.xlu0 %v5081, 96
    %v5099 = vpop.permute.xlu0 %5098
    %5100 = vrot.lane.b32.xlu0 %v5085, 96
    %v5101 = vpop.permute.xlu0 %5100
    %5110 = vst.msk [vmem:[#allocation2 + $0x9] sm:$0x1] %vm3183, %v5087
    %5111 = vst.msk [vmem:[#allocation2 + $0x19] sm:$0x1] %vm3183, %v5089
    %5112 = vst.msk [vmem:[#allocation2 + $0x29] sm:$0x1] %vm3183, %v5091
    %5113 = vst.msk [vmem:[#allocation2 + $0x39] sm:$0x1] %vm3183, %v5093
    %5114 = vst.msk [vmem:[#allocation2 + $0x49] sm:$0x1] %vm3183, %v5095
    %5115 = vst.msk [vmem:[#allocation2 + $0x59] sm:$0x1] %vm3183, %v5097
    %5116 = vst.msk [vmem:[#allocation2 + $0x69] sm:$0x1] %vm3183, %v5099
    %5117 = vst.msk [vmem:[#allocation2 + $0x79] sm:$0x1] %vm3183, %v5101
    %5118 = vrot.lane.b32.xlu0 %v5003, 96
    %v5119 = vpop.permute.xlu0 %5118
    %v5120 = vsel %vm2977, %v5119, 0
    %5122 = vmatprep.subr.mxu0 0.0
    %5123 = vmatpush1.msra.mxu0 0.0
    %5124 = vmatprep.subr.mxu0 0.0
    %5125 = vmatpush1.msra.mxu0 0.0
    %5126 = vmatprep.subr.mxu0 0.0
    %5127 = vmatpush1.msra.mxu0 0.0
    %5128 = vmatprep.subr.mxu0 0.0
    %5129 = vmatpush1.msra.mxu0 0.0
    %5130 = vmatprep.subr.mxu0 0.0
    %5131 = vmatpush1.msra.mxu0 0.0
    %5132 = vmatprep.subr.mxu0 0.0
    %5133 = vmatpush1.msra.mxu0 0.0
    %5134 = vmatprep.subr.mxu0 0.0
    %5135 = vmatpush1.msra.mxu0 0.0
    %5136 = vmatprep.subr.mxu0 0.0
    %5137 = vmatpush1.msra.mxu0 0.0
    %5138 = vmatprep.subr.mxu0 0.0
    %5139 = vmatpush1.msra.mxu0 0.0
    %5140 = vmatprep.subr.mxu0 0.0
    %5141 = vmatpush1.msra.mxu0 0.0
    %5142 = vmatprep.subr.mxu0 0.0
    %5143 = vmatpush1.msra.mxu0 0.0
    %5144 = vmatprep.subr.mxu0 0.0
    %5145 = vmatpush1.msra.mxu0 0.0
    %5146 = vmatprep.subr.mxu0 0.0
    %5147 = vmatpush1.msra.mxu0 %v2969
    %5148 = vmatprep.subr.mxu0 0.0
    %5149 = vmatpush1.msra.mxu0 %v2968
    %5150 = vmatprep.subr.mxu0 0.0
    %5151 = vmatpush1.msra.mxu0 %v2967
    %5152 = vmatprep.subr.mxu0 0.0
    %5153 = vmatpush1.msra.mxu0 %v2966
    %5154 = vmatprep.subr.mxu0 0.0
    %5155 = vmatpush2.msra.mxu0 0.0
    %5156 = vmatprep.subr.mxu0 0.0
    %5157 = vmatpush2.msra.mxu0 0.0
    %5158 = vmatprep.subr.mxu0 0.0
    %5159 = vmatpush2.msra.mxu0 0.0
    %5160 = vmatprep.subr.mxu0 0.0
    %5161 = vmatpush2.msra.mxu0 0.0
    %5162 = vmatprep.subr.mxu0 0.0
    %5163 = vmatpush2.msra.mxu0 0.0
    %5164 = vmatprep.subr.mxu0 0.0
    %5165 = vmatpush2.msra.mxu0 0.0
    %5166 = vmatprep.subr.mxu0 0.0
    %5167 = vmatpush2.msra.mxu0 0.0
    %5168 = vmatprep.subr.mxu0 0.0
    %5169 = vmatpush2.msra.mxu0 0.0
    %5170 = vmatprep.subr.mxu0 0.0
    %5171 = vmatpush2.msra.mxu0 0.0
    %5172 = vmatprep.subr.mxu0 0.0
    %5173 = vmatpush2.msra.mxu0 0.0
    %5174 = vmatprep.subr.mxu0 0.0
    %5175 = vmatpush2.msra.mxu0 0.0
    %5176 = vmatprep.subr.mxu0 0.0
    %5177 = vmatpush2.msra.mxu0 0.0
    %5178 = vmatprep.subr.mxu0 0.0
    %5179 = vmatpush2.msra.mxu0 0.0
    %5180 = vmatprep.subr.mxu0 0.0
    %5181 = vmatpush2.msra.mxu0 0.0
    %5182 = vmatprep.subr.mxu0 0.0
    %5183 = vmatpush2.msra.mxu0 0.0
    %5184 = vmatprep.subr.mxu0 0.0
    %5185 = vmatpush2.msra.mxu0 0.0
    %5186 = vmatprep.mubr.f32.mxu0 0.0
    %5187 = vmatmul.mubr.f32.gmra.mxu0 %v5120
    %v5188 = vpop.f32.mrf.mxu0
    %v5189 = vadd.f32 %v2975, %v5188
    %v5190 = vpop.f32.mrf.mxu0
    %5191 = vdwg.mxu0
    %v5192 = vadd.f32 %v2933, %v5189
    %v5193 = vxor.u32 %v5192, 2147483648
    %v5194 = vmul.f32 %v5193, 1.442695
    %v5195 = vpow.pop %v5194
    %v5196 = vadd.f32 %v5195, 1.0
    %v5197 = vrcp.pop %v5196
    %v5198 = vmul.f32 1.0, %v5197
    %5200 = vrot.lane.b32.xlu0 %v5189, 64
    %v5201 = vpop.permute.xlu0 %5200
    %v5203 = vmul.f32 %v5198, %v5201
    %5205 = vrot.lane.b32.xlu0 %v5203, 64
    %v5206 = vpop.permute.xlu0 %5205
    %v5208 = vadd.f32 %v2933, %v5206
    %v5209 = vtanh.pop %v5208
    %v5210 = vsub.f32 1.0, %v5198
    %5212 = vrot.lane.b32.xlu0 %v5209, 96
    %v5213 = vpop.permute.xlu0 %5212
    %v5215 = vmul.f32 %v5210, %v5213
    %v5216 = vmul.f32 %v5198, %v5003
    %v5217 = vadd.f32 %v5215, %v5216
    %v5219 = vcombine.high %v5217, %v5217
    %v5221 = vunpack.c.l.s4 1966171168
    %v5222 = vunpack.c.0.s8 %v5221
    %v5223 = vlaneseq
    %v5224 = vshrl.u32 %v5223, 7
    %v5225 = vsub.s32 %v5222, %v5224
    %v5226 = vrot.slane %v5217, %v5225
    %v5228 = vunpack.c.l.s4 1966171168
    %v5229 = vunpack.c.0.s8 %v5228
    %v5230 = vlaneseq
    %v5231 = vshrl.u32 %v5230, 7
    %v5232 = vsub.s32 %v5229, %v5231
    %v5233 = vrot.slane %v5219, %v5232
    %v5234 = vcombine.high %v5226, %v5226
    %v5235 = vcombine.high %v5233, %v5233
    %v5237 = vunpack.c.l.s4 1966171168
    %v5238 = vunpack.c.0.s8 %v5237
    %v5239 = vlaneseq
    %v5240 = vshrl.u32 %v5239, 7
    %v5241 = vsub.s32 %v5238, %v5240
    %v5242 = vrot.slane %v5226, %v5241
    %v5244 = vunpack.c.l.s4 1966171168
    %v5245 = vunpack.c.0.s8 %v5244
    %v5246 = vlaneseq
    %v5247 = vshrl.u32 %v5246, 7
    %v5248 = vsub.s32 %v5245, %v5247
    %v5249 = vrot.slane %v5233, %v5248
    %v5251 = vunpack.c.l.s4 1966171168
    %v5252 = vunpack.c.0.s8 %v5251
    %v5253 = vlaneseq
    %v5254 = vshrl.u32 %v5253, 7
    %v5255 = vsub.s32 %v5252, %v5254
    %v5256 = vrot.slane %v5234, %v5255
    %v5258 = vunpack.c.l.s4 1966171168
    %v5259 = vunpack.c.0.s8 %v5258
    %v5260 = vlaneseq
    %v5261 = vshrl.u32 %v5260, 7
    %v5262 = vsub.s32 %v5259, %v5261
    %v5263 = vrot.slane %v5235, %v5262
    %v5264 = vcombine.high %v5242, %v5242
    %v5265 = vcombine.high %v5249, %v5249
    %v5266 = vcombine.high %v5256, %v5256
    %v5267 = vcombine.high %v5263, %v5263
    %v5268 = vlaneseq
    %v5269 = vshrl.u32 %v5268, 7
    %v5270 = vsub.s32 0, %v5269
    %v5271 = vrot.slane %v5242, %v5270
    %v5272 = vlaneseq
    %v5273 = vshrl.u32 %v5272, 7
    %v5274 = vsub.s32 0, %v5273
    %v5275 = vrot.slane %v5256, %v5274
    %v5276 = vlaneseq
    %v5277 = vshrl.u32 %v5276, 7
    %v5278 = vsub.s32 0, %v5277
    %v5279 = vrot.slane %v5264, %v5278
    %v5280 = vlaneseq
    %v5281 = vshrl.u32 %v5280, 7
    %v5282 = vsub.s32 0, %v5281
    %v5283 = vrot.slane %v5266, %v5282
    %v5284 = vlaneseq
    %v5285 = vshrl.u32 %v5284, 7
    %v5286 = vsub.s32 0, %v5285
    %v5287 = vrot.slane %v5249, %v5286
    %v5288 = vlaneseq
    %v5289 = vshrl.u32 %v5288, 7
    %v5290 = vsub.s32 0, %v5289
    %v5291 = vrot.slane %v5263, %v5290
    %v5292 = vlaneseq
    %v5293 = vshrl.u32 %v5292, 7
    %v5294 = vsub.s32 0, %v5293
    %v5295 = vrot.slane %v5265, %v5294
    %v5296 = vlaneseq
    %v5297 = vshrl.u32 %v5296, 7
    %v5298 = vsub.s32 0, %v5297
    %v5299 = vrot.slane %v5267, %v5298
    %5300 = vrot.lane.b32.xlu0 %v5271, 96
    %v5301 = vpop.permute.xlu0 %5300
    %5302 = vrot.lane.b32.xlu0 %v5275, 96
    %v5303 = vpop.permute.xlu0 %5302
    %5304 = vrot.lane.b32.xlu0 %v5279, 96
    %v5305 = vpop.permute.xlu0 %5304
    %5306 = vrot.lane.b32.xlu0 %v5283, 96
    %v5307 = vpop.permute.xlu0 %5306
    %5308 = vrot.lane.b32.xlu0 %v5287, 96
    %v5309 = vpop.permute.xlu0 %5308
    %5310 = vrot.lane.b32.xlu0 %v5291, 96
    %v5311 = vpop.permute.xlu0 %5310
    %5312 = vrot.lane.b32.xlu0 %v5295, 96
    %v5313 = vpop.permute.xlu0 %5312
    %5314 = vrot.lane.b32.xlu0 %v5299, 96
    %v5315 = vpop.permute.xlu0 %5314
    %5324 = vst.msk [vmem:[#allocation2 + $0xa] sm:$0x1] %vm3183, %v5301
    %5325 = vst.msk [vmem:[#allocation2 + $0x1a] sm:$0x1] %vm3183, %v5303
    %5326 = vst.msk [vmem:[#allocation2 + $0x2a] sm:$0x1] %vm3183, %v5305
    %5327 = vst.msk [vmem:[#allocation2 + $0x3a] sm:$0x1] %vm3183, %v5307
    %5328 = vst.msk [vmem:[#allocation2 + $0x4a] sm:$0x1] %vm3183, %v5309
    %5329 = vst.msk [vmem:[#allocation2 + $0x5a] sm:$0x1] %vm3183, %v5311
    %5330 = vst.msk [vmem:[#allocation2 + $0x6a] sm:$0x1] %vm3183, %v5313
    %5331 = vst.msk [vmem:[#allocation2 + $0x7a] sm:$0x1] %vm3183, %v5315
    %5332 = vrot.lane.b32.xlu0 %v5217, 96
    %v5333 = vpop.permute.xlu0 %5332
    %v5334 = vsel %vm2977, %v5333, 0
    %5336 = vmatprep.subr.mxu0 0.0
    %5337 = vmatpush1.msra.mxu0 0.0
    %5338 = vmatprep.subr.mxu0 0.0
    %5339 = vmatpush1.msra.mxu0 0.0
    %5340 = vmatprep.subr.mxu0 0.0
    %5341 = vmatpush1.msra.mxu0 0.0
    %5342 = vmatprep.subr.mxu0 0.0
    %5343 = vmatpush1.msra.mxu0 0.0
    %5344 = vmatprep.subr.mxu0 0.0
    %5345 = vmatpush1.msra.mxu0 0.0
    %5346 = vmatprep.subr.mxu0 0.0
    %5347 = vmatpush1.msra.mxu0 0.0
    %5348 = vmatprep.subr.mxu0 0.0
    %5349 = vmatpush1.msra.mxu0 0.0
    %5350 = vmatprep.subr.mxu0 0.0
    %5351 = vmatpush1.msra.mxu0 0.0
    %5352 = vmatprep.subr.mxu0 0.0
    %5353 = vmatpush1.msra.mxu0 0.0
    %5354 = vmatprep.subr.mxu0 0.0
    %5355 = vmatpush1.msra.mxu0 0.0
    %5356 = vmatprep.subr.mxu0 0.0
    %5357 = vmatpush1.msra.mxu0 0.0
    %5358 = vmatprep.subr.mxu0 0.0
    %5359 = vmatpush1.msra.mxu0 0.0
    %5360 = vmatprep.subr.mxu0 0.0
    %5361 = vmatpush1.msra.mxu0 %v2969
    %5362 = vmatprep.subr.mxu0 0.0
    %5363 = vmatpush1.msra.mxu0 %v2968
    %5364 = vmatprep.subr.mxu0 0.0
    %5365 = vmatpush1.msra.mxu0 %v2967
    %5366 = vmatprep.subr.mxu0 0.0
    %5367 = vmatpush1.msra.mxu0 %v2966
    %5368 = vmatprep.subr.mxu0 0.0
    %5369 = vmatpush2.msra.mxu0 0.0
    %5370 = vmatprep.subr.mxu0 0.0
    %5371 = vmatpush2.msra.mxu0 0.0
    %5372 = vmatprep.subr.mxu0 0.0
    %5373 = vmatpush2.msra.mxu0 0.0
    %5374 = vmatprep.subr.mxu0 0.0
    %5375 = vmatpush2.msra.mxu0 0.0
    %5376 = vmatprep.subr.mxu0 0.0
    %5377 = vmatpush2.msra.mxu0 0.0
    %5378 = vmatprep.subr.mxu0 0.0
    %5379 = vmatpush2.msra.mxu0 0.0
    %5380 = vmatprep.subr.mxu0 0.0
    %5381 = vmatpush2.msra.mxu0 0.0
    %5382 = vmatprep.subr.mxu0 0.0
    %5383 = vmatpush2.msra.mxu0 0.0
    %5384 = vmatprep.subr.mxu0 0.0
    %5385 = vmatpush2.msra.mxu0 0.0
    %5386 = vmatprep.subr.mxu0 0.0
    %5387 = vmatpush2.msra.mxu0 0.0
    %5388 = vmatprep.subr.mxu0 0.0
    %5389 = vmatpush2.msra.mxu0 0.0
    %5390 = vmatprep.subr.mxu0 0.0
    %5391 = vmatpush2.msra.mxu0 0.0
    %5392 = vmatprep.subr.mxu0 0.0
    %5393 = vmatpush2.msra.mxu0 0.0
    %5394 = vmatprep.subr.mxu0 0.0
    %5395 = vmatpush2.msra.mxu0 0.0
    %5396 = vmatprep.subr.mxu0 0.0
    %5397 = vmatpush2.msra.mxu0 0.0
    %5398 = vmatprep.subr.mxu0 0.0
    %5399 = vmatpush2.msra.mxu0 0.0
    %5400 = vmatprep.mubr.f32.mxu0 0.0
    %5401 = vmatmul.mubr.f32.gmra.mxu0 %v5334
    %v5402 = vpop.f32.mrf.mxu0
    %v5403 = vadd.f32 %v2975, %v5402
    %v5404 = vpop.f32.mrf.mxu0
    %5405 = vdwg.mxu0
    %v5406 = vadd.f32 %v2939, %v5403
    %v5407 = vxor.u32 %v5406, 2147483648
    %v5408 = vmul.f32 %v5407, 1.442695
    %v5409 = vpow.pop %v5408
    %v5410 = vadd.f32 %v5409, 1.0
    %v5411 = vrcp.pop %v5410
    %v5412 = vmul.f32 1.0, %v5411
    %5414 = vrot.lane.b32.xlu0 %v5403, 64
    %v5415 = vpop.permute.xlu0 %5414
    %v5417 = vmul.f32 %v5412, %v5415
    %5419 = vrot.lane.b32.xlu0 %v5417, 64
    %v5420 = vpop.permute.xlu0 %5419
    %v5422 = vadd.f32 %v2939, %v5420
    %v5423 = vtanh.pop %v5422
    %v5424 = vsub.f32 1.0, %v5412
    %5426 = vrot.lane.b32.xlu0 %v5423, 96
    %v5427 = vpop.permute.xlu0 %5426
    %v5429 = vmul.f32 %v5424, %v5427
    %v5430 = vmul.f32 %v5412, %v5217
    %v5431 = vadd.f32 %v5429, %v5430
    %v5433 = vcombine.high %v5431, %v5431
    %v5435 = vunpack.c.l.s4 1966171168
    %v5436 = vunpack.c.0.s8 %v5435
    %v5437 = vlaneseq
    %v5438 = vshrl.u32 %v5437, 7
    %v5439 = vsub.s32 %v5436, %v5438
    %v5440 = vrot.slane %v5431, %v5439
    %v5442 = vunpack.c.l.s4 1966171168
    %v5443 = vunpack.c.0.s8 %v5442
    %v5444 = vlaneseq
    %v5445 = vshrl.u32 %v5444, 7
    %v5446 = vsub.s32 %v5443, %v5445
    %v5447 = vrot.slane %v5433, %v5446
    %v5448 = vcombine.high %v5440, %v5440
    %v5449 = vcombine.high %v5447, %v5447
    %v5451 = vunpack.c.l.s4 1966171168
    %v5452 = vunpack.c.0.s8 %v5451
    %v5453 = vlaneseq
    %v5454 = vshrl.u32 %v5453, 7
    %v5455 = vsub.s32 %v5452, %v5454
    %v5456 = vrot.slane %v5440, %v5455
    %v5458 = vunpack.c.l.s4 1966171168
    %v5459 = vunpack.c.0.s8 %v5458
    %v5460 = vlaneseq
    %v5461 = vshrl.u32 %v5460, 7
    %v5462 = vsub.s32 %v5459, %v5461
    %v5463 = vrot.slane %v5447, %v5462
    %v5465 = vunpack.c.l.s4 1966171168
    %v5466 = vunpack.c.0.s8 %v5465
    %v5467 = vlaneseq
    %v5468 = vshrl.u32 %v5467, 7
    %v5469 = vsub.s32 %v5466, %v5468
    %v5470 = vrot.slane %v5448, %v5469
    %v5472 = vunpack.c.l.s4 1966171168
    %v5473 = vunpack.c.0.s8 %v5472
    %v5474 = vlaneseq
    %v5475 = vshrl.u32 %v5474, 7
    %v5476 = vsub.s32 %v5473, %v5475
    %v5477 = vrot.slane %v5449, %v5476
    %v5478 = vcombine.high %v5456, %v5456
    %v5479 = vcombine.high %v5463, %v5463
    %v5480 = vcombine.high %v5470, %v5470
    %v5481 = vcombine.high %v5477, %v5477
    %v5482 = vlaneseq
    %v5483 = vshrl.u32 %v5482, 7
    %v5484 = vsub.s32 0, %v5483
    %v5485 = vrot.slane %v5456, %v5484
    %v5486 = vlaneseq
    %v5487 = vshrl.u32 %v5486, 7
    %v5488 = vsub.s32 0, %v5487
    %v5489 = vrot.slane %v5470, %v5488
    %v5490 = vlaneseq
    %v5491 = vshrl.u32 %v5490, 7
    %v5492 = vsub.s32 0, %v5491
    %v5493 = vrot.slane %v5478, %v5492
    %v5494 = vlaneseq
    %v5495 = vshrl.u32 %v5494, 7
    %v5496 = vsub.s32 0, %v5495
    %v5497 = vrot.slane %v5480, %v5496
    %v5498 = vlaneseq
    %v5499 = vshrl.u32 %v5498, 7
    %v5500 = vsub.s32 0, %v5499
    %v5501 = vrot.slane %v5463, %v5500
    %v5502 = vlaneseq
    %v5503 = vshrl.u32 %v5502, 7
    %v5504 = vsub.s32 0, %v5503
    %v5505 = vrot.slane %v5477, %v5504
    %v5506 = vlaneseq
    %v5507 = vshrl.u32 %v5506, 7
    %v5508 = vsub.s32 0, %v5507
    %v5509 = vrot.slane %v5479, %v5508
    %v5510 = vlaneseq
    %v5511 = vshrl.u32 %v5510, 7
    %v5512 = vsub.s32 0, %v5511
    %v5513 = vrot.slane %v5481, %v5512
    %5514 = vrot.lane.b32.xlu0 %v5485, 96
    %v5515 = vpop.permute.xlu0 %5514
    %5516 = vrot.lane.b32.xlu0 %v5489, 96
    %v5517 = vpop.permute.xlu0 %5516
    %5518 = vrot.lane.b32.xlu0 %v5493, 96
    %v5519 = vpop.permute.xlu0 %5518
    %5520 = vrot.lane.b32.xlu0 %v5497, 96
    %v5521 = vpop.permute.xlu0 %5520
    %5522 = vrot.lane.b32.xlu0 %v5501, 96
    %v5523 = vpop.permute.xlu0 %5522
    %5524 = vrot.lane.b32.xlu0 %v5505, 96
    %v5525 = vpop.permute.xlu0 %5524
    %5526 = vrot.lane.b32.xlu0 %v5509, 96
    %v5527 = vpop.permute.xlu0 %5526
    %5528 = vrot.lane.b32.xlu0 %v5513, 96
    %v5529 = vpop.permute.xlu0 %5528
    %5538 = vst.msk [vmem:[#allocation2 + $0xb] sm:$0x1] %vm3183, %v5515
    %5539 = vst.msk [vmem:[#allocation2 + $0x1b] sm:$0x1] %vm3183, %v5517
    %5540 = vst.msk [vmem:[#allocation2 + $0x2b] sm:$0x1] %vm3183, %v5519
    %5541 = vst.msk [vmem:[#allocation2 + $0x3b] sm:$0x1] %vm3183, %v5521
    %5542 = vst.msk [vmem:[#allocation2 + $0x4b] sm:$0x1] %vm3183, %v5523
    %5543 = vst.msk [vmem:[#allocation2 + $0x5b] sm:$0x1] %vm3183, %v5525
    %5544 = vst.msk [vmem:[#allocation2 + $0x6b] sm:$0x1] %vm3183, %v5527
    %5545 = vst.msk [vmem:[#allocation2 + $0x7b] sm:$0x1] %vm3183, %v5529
    %5546 = vrot.lane.b32.xlu0 %v5431, 96
    %v5547 = vpop.permute.xlu0 %5546
    %v5548 = vsel %vm2977, %v5547, 0
    %5550 = vmatprep.subr.mxu0 0.0
    %5551 = vmatpush1.msra.mxu0 0.0
    %5552 = vmatprep.subr.mxu0 0.0
    %5553 = vmatpush1.msra.mxu0 0.0
    %5554 = vmatprep.subr.mxu0 0.0
    %5555 = vmatpush1.msra.mxu0 0.0
    %5556 = vmatprep.subr.mxu0 0.0
    %5557 = vmatpush1.msra.mxu0 0.0
    %5558 = vmatprep.subr.mxu0 0.0
    %5559 = vmatpush1.msra.mxu0 0.0
    %5560 = vmatprep.subr.mxu0 0.0
    %5561 = vmatpush1.msra.mxu0 0.0
    %5562 = vmatprep.subr.mxu0 0.0
    %5563 = vmatpush1.msra.mxu0 0.0
    %5564 = vmatprep.subr.mxu0 0.0
    %5565 = vmatpush1.msra.mxu0 0.0
    %5566 = vmatprep.subr.mxu0 0.0
    %5567 = vmatpush1.msra.mxu0 0.0
    %5568 = vmatprep.subr.mxu0 0.0
    %5569 = vmatpush1.msra.mxu0 0.0
    %5570 = vmatprep.subr.mxu0 0.0
    %5571 = vmatpush1.msra.mxu0 0.0
    %5572 = vmatprep.subr.mxu0 0.0
    %5573 = vmatpush1.msra.mxu0 0.0
    %5574 = vmatprep.subr.mxu0 0.0
    %5575 = vmatpush1.msra.mxu0 %v2969
    %5576 = vmatprep.subr.mxu0 0.0
    %5577 = vmatpush1.msra.mxu0 %v2968
    %5578 = vmatprep.subr.mxu0 0.0
    %5579 = vmatpush1.msra.mxu0 %v2967
    %5580 = vmatprep.subr.mxu0 0.0
    %5581 = vmatpush1.msra.mxu0 %v2966
    %5582 = vmatprep.subr.mxu0 0.0
    %5583 = vmatpush2.msra.mxu0 0.0
    %5584 = vmatprep.subr.mxu0 0.0
    %5585 = vmatpush2.msra.mxu0 0.0
    %5586 = vmatprep.subr.mxu0 0.0
    %5587 = vmatpush2.msra.mxu0 0.0
    %5588 = vmatprep.subr.mxu0 0.0
    %5589 = vmatpush2.msra.mxu0 0.0
    %5590 = vmatprep.subr.mxu0 0.0
    %5591 = vmatpush2.msra.mxu0 0.0
    %5592 = vmatprep.subr.mxu0 0.0
    %5593 = vmatpush2.msra.mxu0 0.0
    %5594 = vmatprep.subr.mxu0 0.0
    %5595 = vmatpush2.msra.mxu0 0.0
    %5596 = vmatprep.subr.mxu0 0.0
    %5597 = vmatpush2.msra.mxu0 0.0
    %5598 = vmatprep.subr.mxu0 0.0
    %5599 = vmatpush2.msra.mxu0 0.0
    %5600 = vmatprep.subr.mxu0 0.0
    %5601 = vmatpush2.msra.mxu0 0.0
    %5602 = vmatprep.subr.mxu0 0.0
    %5603 = vmatpush2.msra.mxu0 0.0
    %5604 = vmatprep.subr.mxu0 0.0
    %5605 = vmatpush2.msra.mxu0 0.0
    %5606 = vmatprep.subr.mxu0 0.0
    %5607 = vmatpush2.msra.mxu0 0.0
    %5608 = vmatprep.subr.mxu0 0.0
    %5609 = vmatpush2.msra.mxu0 0.0
    %5610 = vmatprep.subr.mxu0 0.0
    %5611 = vmatpush2.msra.mxu0 0.0
    %5612 = vmatprep.subr.mxu0 0.0
    %5613 = vmatpush2.msra.mxu0 0.0
    %5614 = vmatprep.mubr.f32.mxu0 0.0
    %5615 = vmatmul.mubr.f32.gmra.mxu0 %v5548
    %v5616 = vpop.f32.mrf.mxu0
    %v5617 = vadd.f32 %v2975, %v5616
    %v5618 = vpop.f32.mrf.mxu0
    %5619 = vdwg.mxu0
    %v5620 = vadd.f32 %v2945, %v5617
    %v5621 = vxor.u32 %v5620, 2147483648
    %v5622 = vmul.f32 %v5621, 1.442695
    %v5623 = vpow.pop %v5622
    %v5624 = vadd.f32 %v5623, 1.0
    %v5625 = vrcp.pop %v5624
    %v5626 = vmul.f32 1.0, %v5625
    %5628 = vrot.lane.b32.xlu0 %v5617, 64
    %v5629 = vpop.permute.xlu0 %5628
    %v5631 = vmul.f32 %v5626, %v5629
    %5633 = vrot.lane.b32.xlu0 %v5631, 64
    %v5634 = vpop.permute.xlu0 %5633
    %v5636 = vadd.f32 %v2945, %v5634
    %v5637 = vtanh.pop %v5636
    %v5638 = vsub.f32 1.0, %v5626
    %5640 = vrot.lane.b32.xlu0 %v5637, 96
    %v5641 = vpop.permute.xlu0 %5640
    %v5643 = vmul.f32 %v5638, %v5641
    %v5644 = vmul.f32 %v5626, %v5431
    %v5645 = vadd.f32 %v5643, %v5644
    %v5647 = vcombine.high %v5645, %v5645
    %v5649 = vunpack.c.l.s4 1966171168
    %v5650 = vunpack.c.0.s8 %v5649
    %v5651 = vlaneseq
    %v5652 = vshrl.u32 %v5651, 7
    %v5653 = vsub.s32 %v5650, %v5652
    %v5654 = vrot.slane %v5645, %v5653
    %v5656 = vunpack.c.l.s4 1966171168
    %v5657 = vunpack.c.0.s8 %v5656
    %v5658 = vlaneseq
    %v5659 = vshrl.u32 %v5658, 7
    %v5660 = vsub.s32 %v5657, %v5659
    %v5661 = vrot.slane %v5647, %v5660
    %v5662 = vcombine.high %v5654, %v5654
    %v5663 = vcombine.high %v5661, %v5661
    %v5665 = vunpack.c.l.s4 1966171168
    %v5666 = vunpack.c.0.s8 %v5665
    %v5667 = vlaneseq
    %v5668 = vshrl.u32 %v5667, 7
    %v5669 = vsub.s32 %v5666, %v5668
    %v5670 = vrot.slane %v5654, %v5669
    %v5672 = vunpack.c.l.s4 1966171168
    %v5673 = vunpack.c.0.s8 %v5672
    %v5674 = vlaneseq
    %v5675 = vshrl.u32 %v5674, 7
    %v5676 = vsub.s32 %v5673, %v5675
    %v5677 = vrot.slane %v5661, %v5676
    %v5679 = vunpack.c.l.s4 1966171168
    %v5680 = vunpack.c.0.s8 %v5679
    %v5681 = vlaneseq
    %v5682 = vshrl.u32 %v5681, 7
    %v5683 = vsub.s32 %v5680, %v5682
    %v5684 = vrot.slane %v5662, %v5683
    %v5686 = vunpack.c.l.s4 1966171168
    %v5687 = vunpack.c.0.s8 %v5686
    %v5688 = vlaneseq
    %v5689 = vshrl.u32 %v5688, 7
    %v5690 = vsub.s32 %v5687, %v5689
    %v5691 = vrot.slane %v5663, %v5690
    %v5692 = vcombine.high %v5670, %v5670
    %v5693 = vcombine.high %v5677, %v5677
    %v5694 = vcombine.high %v5684, %v5684
    %v5695 = vcombine.high %v5691, %v5691
    %v5696 = vlaneseq
    %v5697 = vshrl.u32 %v5696, 7
    %v5698 = vsub.s32 0, %v5697
    %v5699 = vrot.slane %v5670, %v5698
    %v5700 = vlaneseq
    %v5701 = vshrl.u32 %v5700, 7
    %v5702 = vsub.s32 0, %v5701
    %v5703 = vrot.slane %v5684, %v5702
    %v5704 = vlaneseq
    %v5705 = vshrl.u32 %v5704, 7
    %v5706 = vsub.s32 0, %v5705
    %v5707 = vrot.slane %v5692, %v5706
    %v5708 = vlaneseq
    %v5709 = vshrl.u32 %v5708, 7
    %v5710 = vsub.s32 0, %v5709
    %v5711 = vrot.slane %v5694, %v5710
    %v5712 = vlaneseq
    %v5713 = vshrl.u32 %v5712, 7
    %v5714 = vsub.s32 0, %v5713
    %v5715 = vrot.slane %v5677, %v5714
    %v5716 = vlaneseq
    %v5717 = vshrl.u32 %v5716, 7
    %v5718 = vsub.s32 0, %v5717
    %v5719 = vrot.slane %v5691, %v5718
    %v5720 = vlaneseq
    %v5721 = vshrl.u32 %v5720, 7
    %v5722 = vsub.s32 0, %v5721
    %v5723 = vrot.slane %v5693, %v5722
    %v5724 = vlaneseq
    %v5725 = vshrl.u32 %v5724, 7
    %v5726 = vsub.s32 0, %v5725
    %v5727 = vrot.slane %v5695, %v5726
    %5728 = vrot.lane.b32.xlu0 %v5699, 96
    %v5729 = vpop.permute.xlu0 %5728
    %5730 = vrot.lane.b32.xlu0 %v5703, 96
    %v5731 = vpop.permute.xlu0 %5730
    %5732 = vrot.lane.b32.xlu0 %v5707, 96
    %v5733 = vpop.permute.xlu0 %5732
    %5734 = vrot.lane.b32.xlu0 %v5711, 96
    %v5735 = vpop.permute.xlu0 %5734
    %5736 = vrot.lane.b32.xlu0 %v5715, 96
    %v5737 = vpop.permute.xlu0 %5736
    %5738 = vrot.lane.b32.xlu0 %v5719, 96
    %v5739 = vpop.permute.xlu0 %5738
    %5740 = vrot.lane.b32.xlu0 %v5723, 96
    %v5741 = vpop.permute.xlu0 %5740
    %5742 = vrot.lane.b32.xlu0 %v5727, 96
    %v5743 = vpop.permute.xlu0 %5742
    %5752 = vst.msk [vmem:[#allocation2 + $0xc] sm:$0x1] %vm3183, %v5729
    %5753 = vst.msk [vmem:[#allocation2 + $0x1c] sm:$0x1] %vm3183, %v5731
    %5754 = vst.msk [vmem:[#allocation2 + $0x2c] sm:$0x1] %vm3183, %v5733
    %5755 = vst.msk [vmem:[#allocation2 + $0x3c] sm:$0x1] %vm3183, %v5735
    %5756 = vst.msk [vmem:[#allocation2 + $0x4c] sm:$0x1] %vm3183, %v5737
    %5757 = vst.msk [vmem:[#allocation2 + $0x5c] sm:$0x1] %vm3183, %v5739
    %5758 = vst.msk [vmem:[#allocation2 + $0x6c] sm:$0x1] %vm3183, %v5741
    %5759 = vst.msk [vmem:[#allocation2 + $0x7c] sm:$0x1] %vm3183, %v5743
    %5760 = vrot.lane.b32.xlu0 %v5645, 96
    %v5761 = vpop.permute.xlu0 %5760
    %v5762 = vsel %vm2977, %v5761, 0
    %5764 = vmatprep.subr.mxu0 0.0
    %5765 = vmatpush1.msra.mxu0 0.0
    %5766 = vmatprep.subr.mxu0 0.0
    %5767 = vmatpush1.msra.mxu0 0.0
    %5768 = vmatprep.subr.mxu0 0.0
    %5769 = vmatpush1.msra.mxu0 0.0
    %5770 = vmatprep.subr.mxu0 0.0
    %5771 = vmatpush1.msra.mxu0 0.0
    %5772 = vmatprep.subr.mxu0 0.0
    %5773 = vmatpush1.msra.mxu0 0.0
    %5774 = vmatprep.subr.mxu0 0.0
    %5775 = vmatpush1.msra.mxu0 0.0
    %5776 = vmatprep.subr.mxu0 0.0
    %5777 = vmatpush1.msra.mxu0 0.0
    %5778 = vmatprep.subr.mxu0 0.0
    %5779 = vmatpush1.msra.mxu0 0.0
    %5780 = vmatprep.subr.mxu0 0.0
    %5781 = vmatpush1.msra.mxu0 0.0
    %5782 = vmatprep.subr.mxu0 0.0
    %5783 = vmatpush1.msra.mxu0 0.0
    %5784 = vmatprep.subr.mxu0 0.0
    %5785 = vmatpush1.msra.mxu0 0.0
    %5786 = vmatprep.subr.mxu0 0.0
    %5787 = vmatpush1.msra.mxu0 0.0
    %5788 = vmatprep.subr.mxu0 0.0
    %5789 = vmatpush1.msra.mxu0 %v2969
    %5790 = vmatprep.subr.mxu0 0.0
    %5791 = vmatpush1.msra.mxu0 %v2968
    %5792 = vmatprep.subr.mxu0 0.0
    %5793 = vmatpush1.msra.mxu0 %v2967
    %5794 = vmatprep.subr.mxu0 0.0
    %5795 = vmatpush1.msra.mxu0 %v2966
    %5796 = vmatprep.subr.mxu0 0.0
    %5797 = vmatpush2.msra.mxu0 0.0
    %5798 = vmatprep.subr.mxu0 0.0
    %5799 = vmatpush2.msra.mxu0 0.0
    %5800 = vmatprep.subr.mxu0 0.0
    %5801 = vmatpush2.msra.mxu0 0.0
    %5802 = vmatprep.subr.mxu0 0.0
    %5803 = vmatpush2.msra.mxu0 0.0
    %5804 = vmatprep.subr.mxu0 0.0
    %5805 = vmatpush2.msra.mxu0 0.0
    %5806 = vmatprep.subr.mxu0 0.0
    %5807 = vmatpush2.msra.mxu0 0.0
    %5808 = vmatprep.subr.mxu0 0.0
    %5809 = vmatpush2.msra.mxu0 0.0
    %5810 = vmatprep.subr.mxu0 0.0
    %5811 = vmatpush2.msra.mxu0 0.0
    %5812 = vmatprep.subr.mxu0 0.0
    %5813 = vmatpush2.msra.mxu0 0.0
    %5814 = vmatprep.subr.mxu0 0.0
    %5815 = vmatpush2.msra.mxu0 0.0
    %5816 = vmatprep.subr.mxu0 0.0
    %5817 = vmatpush2.msra.mxu0 0.0
    %5818 = vmatprep.subr.mxu0 0.0
    %5819 = vmatpush2.msra.mxu0 0.0
    %5820 = vmatprep.subr.mxu0 0.0
    %5821 = vmatpush2.msra.mxu0 0.0
    %5822 = vmatprep.subr.mxu0 0.0
    %5823 = vmatpush2.msra.mxu0 0.0
    %5824 = vmatprep.subr.mxu0 0.0
    %5825 = vmatpush2.msra.mxu0 0.0
    %5826 = vmatprep.subr.mxu0 0.0
    %5827 = vmatpush2.msra.mxu0 0.0
    %5828 = vmatprep.mubr.f32.mxu0 0.0
    %5829 = vmatmul.mubr.f32.gmra.mxu0 %v5762
    %v5830 = vpop.f32.mrf.mxu0
    %v5831 = vadd.f32 %v2975, %v5830
    %v5832 = vpop.f32.mrf.mxu0
    %5833 = vdwg.mxu0
    %v5834 = vadd.f32 %v2951, %v5831
    %v5835 = vxor.u32 %v5834, 2147483648
    %v5836 = vmul.f32 %v5835, 1.442695
    %v5837 = vpow.pop %v5836
    %v5838 = vadd.f32 %v5837, 1.0
    %v5839 = vrcp.pop %v5838
    %v5840 = vmul.f32 1.0, %v5839
    %5842 = vrot.lane.b32.xlu0 %v5831, 64
    %v5843 = vpop.permute.xlu0 %5842
    %v5845 = vmul.f32 %v5840, %v5843
    %5847 = vrot.lane.b32.xlu0 %v5845, 64
    %v5848 = vpop.permute.xlu0 %5847
    %v5850 = vadd.f32 %v2951, %v5848
    %v5851 = vtanh.pop %v5850
    %v5852 = vsub.f32 1.0, %v5840
    %5854 = vrot.lane.b32.xlu0 %v5851, 96
    %v5855 = vpop.permute.xlu0 %5854
    %v5857 = vmul.f32 %v5852, %v5855
    %v5858 = vmul.f32 %v5840, %v5645
    %v5859 = vadd.f32 %v5857, %v5858
    %v5861 = vcombine.high %v5859, %v5859
    %v5863 = vunpack.c.l.s4 1966171168
    %v5864 = vunpack.c.0.s8 %v5863
    %v5865 = vlaneseq
    %v5866 = vshrl.u32 %v5865, 7
    %v5867 = vsub.s32 %v5864, %v5866
    %v5868 = vrot.slane %v5859, %v5867
    %v5870 = vunpack.c.l.s4 1966171168
    %v5871 = vunpack.c.0.s8 %v5870
    %v5872 = vlaneseq
    %v5873 = vshrl.u32 %v5872, 7
    %v5874 = vsub.s32 %v5871, %v5873
    %v5875 = vrot.slane %v5861, %v5874
    %v5876 = vcombine.high %v5868, %v5868
    %v5877 = vcombine.high %v5875, %v5875
    %v5879 = vunpack.c.l.s4 1966171168
    %v5880 = vunpack.c.0.s8 %v5879
    %v5881 = vlaneseq
    %v5882 = vshrl.u32 %v5881, 7
    %v5883 = vsub.s32 %v5880, %v5882
    %v5884 = vrot.slane %v5868, %v5883
    %v5886 = vunpack.c.l.s4 1966171168
    %v5887 = vunpack.c.0.s8 %v5886
    %v5888 = vlaneseq
    %v5889 = vshrl.u32 %v5888, 7
    %v5890 = vsub.s32 %v5887, %v5889
    %v5891 = vrot.slane %v5875, %v5890
    %v5893 = vunpack.c.l.s4 1966171168
    %v5894 = vunpack.c.0.s8 %v5893
    %v5895 = vlaneseq
    %v5896 = vshrl.u32 %v5895, 7
    %v5897 = vsub.s32 %v5894, %v5896
    %v5898 = vrot.slane %v5876, %v5897
    %v5900 = vunpack.c.l.s4 1966171168
    %v5901 = vunpack.c.0.s8 %v5900
    %v5902 = vlaneseq
    %v5903 = vshrl.u32 %v5902, 7
    %v5904 = vsub.s32 %v5901, %v5903
    %v5905 = vrot.slane %v5877, %v5904
    %v5906 = vcombine.high %v5884, %v5884
    %v5907 = vcombine.high %v5891, %v5891
    %v5908 = vcombine.high %v5898, %v5898
    %v5909 = vcombine.high %v5905, %v5905
    %v5910 = vlaneseq
    %v5911 = vshrl.u32 %v5910, 7
    %v5912 = vsub.s32 0, %v5911
    %v5913 = vrot.slane %v5884, %v5912
    %v5914 = vlaneseq
    %v5915 = vshrl.u32 %v5914, 7
    %v5916 = vsub.s32 0, %v5915
    %v5917 = vrot.slane %v5898, %v5916
    %v5918 = vlaneseq
    %v5919 = vshrl.u32 %v5918, 7
    %v5920 = vsub.s32 0, %v5919
    %v5921 = vrot.slane %v5906, %v5920
    %v5922 = vlaneseq
    %v5923 = vshrl.u32 %v5922, 7
    %v5924 = vsub.s32 0, %v5923
    %v5925 = vrot.slane %v5908, %v5924
    %v5926 = vlaneseq
    %v5927 = vshrl.u32 %v5926, 7
    %v5928 = vsub.s32 0, %v5927
    %v5929 = vrot.slane %v5891, %v5928
    %v5930 = vlaneseq
    %v5931 = vshrl.u32 %v5930, 7
    %v5932 = vsub.s32 0, %v5931
    %v5933 = vrot.slane %v5905, %v5932
    %v5934 = vlaneseq
    %v5935 = vshrl.u32 %v5934, 7
    %v5936 = vsub.s32 0, %v5935
    %v5937 = vrot.slane %v5907, %v5936
    %v5938 = vlaneseq
    %v5939 = vshrl.u32 %v5938, 7
    %v5940 = vsub.s32 0, %v5939
    %v5941 = vrot.slane %v5909, %v5940
    %5942 = vrot.lane.b32.xlu0 %v5913, 96
    %v5943 = vpop.permute.xlu0 %5942
    %5944 = vrot.lane.b32.xlu0 %v5917, 96
    %v5945 = vpop.permute.xlu0 %5944
    %5946 = vrot.lane.b32.xlu0 %v5921, 96
    %v5947 = vpop.permute.xlu0 %5946
    %5948 = vrot.lane.b32.xlu0 %v5925, 96
    %v5949 = vpop.permute.xlu0 %5948
    %5950 = vrot.lane.b32.xlu0 %v5929, 96
    %v5951 = vpop.permute.xlu0 %5950
    %5952 = vrot.lane.b32.xlu0 %v5933, 96
    %v5953 = vpop.permute.xlu0 %5952
    %5954 = vrot.lane.b32.xlu0 %v5937, 96
    %v5955 = vpop.permute.xlu0 %5954
    %5956 = vrot.lane.b32.xlu0 %v5941, 96
    %v5957 = vpop.permute.xlu0 %5956
    %5966 = vst.msk [vmem:[#allocation2 + $0xd] sm:$0x1] %vm3183, %v5943
    %5967 = vst.msk [vmem:[#allocation2 + $0x1d] sm:$0x1] %vm3183, %v5945
    %5968 = vst.msk [vmem:[#allocation2 + $0x2d] sm:$0x1] %vm3183, %v5947
    %5969 = vst.msk [vmem:[#allocation2 + $0x3d] sm:$0x1] %vm3183, %v5949
    %5970 = vst.msk [vmem:[#allocation2 + $0x4d] sm:$0x1] %vm3183, %v5951
    %5971 = vst.msk [vmem:[#allocation2 + $0x5d] sm:$0x1] %vm3183, %v5953
    %5972 = vst.msk [vmem:[#allocation2 + $0x6d] sm:$0x1] %vm3183, %v5955
    %5973 = vst.msk [vmem:[#allocation2 + $0x7d] sm:$0x1] %vm3183, %v5957
    %5974 = vrot.lane.b32.xlu0 %v5859, 96
    %v5975 = vpop.permute.xlu0 %5974
    %v5976 = vsel %vm2977, %v5975, 0
    %5978 = vmatprep.subr.mxu0 0.0
    %5979 = vmatpush1.msra.mxu0 0.0
    %5980 = vmatprep.subr.mxu0 0.0
    %5981 = vmatpush1.msra.mxu0 0.0
    %5982 = vmatprep.subr.mxu0 0.0
    %5983 = vmatpush1.msra.mxu0 0.0
    %5984 = vmatprep.subr.mxu0 0.0
    %5985 = vmatpush1.msra.mxu0 0.0
    %5986 = vmatprep.subr.mxu0 0.0
    %5987 = vmatpush1.msra.mxu0 0.0
    %5988 = vmatprep.subr.mxu0 0.0
    %5989 = vmatpush1.msra.mxu0 0.0
    %5990 = vmatprep.subr.mxu0 0.0
    %5991 = vmatpush1.msra.mxu0 0.0
    %5992 = vmatprep.subr.mxu0 0.0
    %5993 = vmatpush1.msra.mxu0 0.0
    %5994 = vmatprep.subr.mxu0 0.0
    %5995 = vmatpush1.msra.mxu0 0.0
    %5996 = vmatprep.subr.mxu0 0.0
    %5997 = vmatpush1.msra.mxu0 0.0
    %5998 = vmatprep.subr.mxu0 0.0
    %5999 = vmatpush1.msra.mxu0 0.0
    %6000 = vmatprep.subr.mxu0 0.0
    %6001 = vmatpush1.msra.mxu0 0.0
    %6002 = vmatprep.subr.mxu0 0.0
    %6003 = vmatpush1.msra.mxu0 %v2969
    %6004 = vmatprep.subr.mxu0 0.0
    %6005 = vmatpush1.msra.mxu0 %v2968
    %6006 = vmatprep.subr.mxu0 0.0
    %6007 = vmatpush1.msra.mxu0 %v2967
    %6008 = vmatprep.subr.mxu0 0.0
    %6009 = vmatpush1.msra.mxu0 %v2966
    %6010 = vmatprep.subr.mxu0 0.0
    %6011 = vmatpush2.msra.mxu0 0.0
    %6012 = vmatprep.subr.mxu0 0.0
    %6013 = vmatpush2.msra.mxu0 0.0
    %6014 = vmatprep.subr.mxu0 0.0
    %6015 = vmatpush2.msra.mxu0 0.0
    %6016 = vmatprep.subr.mxu0 0.0
    %6017 = vmatpush2.msra.mxu0 0.0
    %6018 = vmatprep.subr.mxu0 0.0
    %6019 = vmatpush2.msra.mxu0 0.0
    %6020 = vmatprep.subr.mxu0 0.0
    %6021 = vmatpush2.msra.mxu0 0.0
    %6022 = vmatprep.subr.mxu0 0.0
    %6023 = vmatpush2.msra.mxu0 0.0
    %6024 = vmatprep.subr.mxu0 0.0
    %6025 = vmatpush2.msra.mxu0 0.0
    %6026 = vmatprep.subr.mxu0 0.0
    %6027 = vmatpush2.msra.mxu0 0.0
    %6028 = vmatprep.subr.mxu0 0.0
    %6029 = vmatpush2.msra.mxu0 0.0
    %6030 = vmatprep.subr.mxu0 0.0
    %6031 = vmatpush2.msra.mxu0 0.0
    %6032 = vmatprep.subr.mxu0 0.0
    %6033 = vmatpush2.msra.mxu0 0.0
    %6034 = vmatprep.subr.mxu0 0.0
    %6035 = vmatpush2.msra.mxu0 0.0
    %6036 = vmatprep.subr.mxu0 0.0
    %6037 = vmatpush2.msra.mxu0 0.0
    %6038 = vmatprep.subr.mxu0 0.0
    %6039 = vmatpush2.msra.mxu0 0.0
    %6040 = vmatprep.subr.mxu0 0.0
    %6041 = vmatpush2.msra.mxu0 0.0
    %6042 = vmatprep.mubr.f32.mxu0 0.0
    %6043 = vmatmul.mubr.f32.gmra.mxu0 %v5976
    %v6044 = vpop.f32.mrf.mxu0
    %v6045 = vadd.f32 %v2975, %v6044
    %v6046 = vpop.f32.mrf.mxu0
    %6047 = vdwg.mxu0
    %v6048 = vadd.f32 %v2957, %v6045
    %v6049 = vxor.u32 %v6048, 2147483648
    %v6050 = vmul.f32 %v6049, 1.442695
    %v6051 = vpow.pop %v6050
    %v6052 = vadd.f32 %v6051, 1.0
    %v6053 = vrcp.pop %v6052
    %v6054 = vmul.f32 1.0, %v6053
    %6056 = vrot.lane.b32.xlu0 %v6045, 64
    %v6057 = vpop.permute.xlu0 %6056
    %v6059 = vmul.f32 %v6054, %v6057
    %6061 = vrot.lane.b32.xlu0 %v6059, 64
    %v6062 = vpop.permute.xlu0 %6061
    %v6064 = vadd.f32 %v2957, %v6062
    %v6065 = vtanh.pop %v6064
    %v6066 = vsub.f32 1.0, %v6054
    %6068 = vrot.lane.b32.xlu0 %v6065, 96
    %v6069 = vpop.permute.xlu0 %6068
    %v6071 = vmul.f32 %v6066, %v6069
    %v6072 = vmul.f32 %v6054, %v5859
    %v6073 = vadd.f32 %v6071, %v6072
    %v6075 = vcombine.high %v6073, %v6073
    %v6077 = vunpack.c.l.s4 1966171168
    %v6078 = vunpack.c.0.s8 %v6077
    %v6079 = vlaneseq
    %v6080 = vshrl.u32 %v6079, 7
    %v6081 = vsub.s32 %v6078, %v6080
    %v6082 = vrot.slane %v6073, %v6081
    %v6084 = vunpack.c.l.s4 1966171168
    %v6085 = vunpack.c.0.s8 %v6084
    %v6086 = vlaneseq
    %v6087 = vshrl.u32 %v6086, 7
    %v6088 = vsub.s32 %v6085, %v6087
    %v6089 = vrot.slane %v6075, %v6088
    %v6090 = vcombine.high %v6082, %v6082
    %v6091 = vcombine.high %v6089, %v6089
    %v6093 = vunpack.c.l.s4 1966171168
    %v6094 = vunpack.c.0.s8 %v6093
    %v6095 = vlaneseq
    %v6096 = vshrl.u32 %v6095, 7
    %v6097 = vsub.s32 %v6094, %v6096
    %v6098 = vrot.slane %v6082, %v6097
    %v6100 = vunpack.c.l.s4 1966171168
    %v6101 = vunpack.c.0.s8 %v6100
    %v6102 = vlaneseq
    %v6103 = vshrl.u32 %v6102, 7
    %v6104 = vsub.s32 %v6101, %v6103
    %v6105 = vrot.slane %v6089, %v6104
    %v6107 = vunpack.c.l.s4 1966171168
    %v6108 = vunpack.c.0.s8 %v6107
    %v6109 = vlaneseq
    %v6110 = vshrl.u32 %v6109, 7
    %v6111 = vsub.s32 %v6108, %v6110
    %v6112 = vrot.slane %v6090, %v6111
    %v6114 = vunpack.c.l.s4 1966171168
    %v6115 = vunpack.c.0.s8 %v6114
    %v6116 = vlaneseq
    %v6117 = vshrl.u32 %v6116, 7
    %v6118 = vsub.s32 %v6115, %v6117
    %v6119 = vrot.slane %v6091, %v6118
    %v6120 = vcombine.high %v6098, %v6098
    %v6121 = vcombine.high %v6105, %v6105
    %v6122 = vcombine.high %v6112, %v6112
    %v6123 = vcombine.high %v6119, %v6119
    %v6124 = vlaneseq
    %v6125 = vshrl.u32 %v6124, 7
    %v6126 = vsub.s32 0, %v6125
    %v6127 = vrot.slane %v6098, %v6126
    %v6128 = vlaneseq
    %v6129 = vshrl.u32 %v6128, 7
    %v6130 = vsub.s32 0, %v6129
    %v6131 = vrot.slane %v6112, %v6130
    %v6132 = vlaneseq
    %v6133 = vshrl.u32 %v6132, 7
    %v6134 = vsub.s32 0, %v6133
    %v6135 = vrot.slane %v6120, %v6134
    %v6136 = vlaneseq
    %v6137 = vshrl.u32 %v6136, 7
    %v6138 = vsub.s32 0, %v6137
    %v6139 = vrot.slane %v6122, %v6138
    %v6140 = vlaneseq
    %v6141 = vshrl.u32 %v6140, 7
    %v6142 = vsub.s32 0, %v6141
    %v6143 = vrot.slane %v6105, %v6142
    %v6144 = vlaneseq
    %v6145 = vshrl.u32 %v6144, 7
    %v6146 = vsub.s32 0, %v6145
    %v6147 = vrot.slane %v6119, %v6146
    %v6148 = vlaneseq
    %v6149 = vshrl.u32 %v6148, 7
    %v6150 = vsub.s32 0, %v6149
    %v6151 = vrot.slane %v6121, %v6150
    %v6152 = vlaneseq
    %v6153 = vshrl.u32 %v6152, 7
    %v6154 = vsub.s32 0, %v6153
    %v6155 = vrot.slane %v6123, %v6154
    %6156 = vrot.lane.b32.xlu0 %v6127, 96
    %v6157 = vpop.permute.xlu0 %6156
    %6158 = vrot.lane.b32.xlu0 %v6131, 96
    %v6159 = vpop.permute.xlu0 %6158
    %6160 = vrot.lane.b32.xlu0 %v6135, 96
    %v6161 = vpop.permute.xlu0 %6160
    %6162 = vrot.lane.b32.xlu0 %v6139, 96
    %v6163 = vpop.permute.xlu0 %6162
    %6164 = vrot.lane.b32.xlu0 %v6143, 96
    %v6165 = vpop.permute.xlu0 %6164
    %6166 = vrot.lane.b32.xlu0 %v6147, 96
    %v6167 = vpop.permute.xlu0 %6166
    %6168 = vrot.lane.b32.xlu0 %v6151, 96
    %v6169 = vpop.permute.xlu0 %6168
    %6170 = vrot.lane.b32.xlu0 %v6155, 96
    %v6171 = vpop.permute.xlu0 %6170
    %6180 = vst.msk [vmem:[#allocation2 + $0xe] sm:$0x1] %vm3183, %v6157
    %6181 = vst.msk [vmem:[#allocation2 + $0x1e] sm:$0x1] %vm3183, %v6159
    %6182 = vst.msk [vmem:[#allocation2 + $0x2e] sm:$0x1] %vm3183, %v6161
    %6183 = vst.msk [vmem:[#allocation2 + $0x3e] sm:$0x1] %vm3183, %v6163
    %6184 = vst.msk [vmem:[#allocation2 + $0x4e] sm:$0x1] %vm3183, %v6165
    %6185 = vst.msk [vmem:[#allocation2 + $0x5e] sm:$0x1] %vm3183, %v6167
    %6186 = vst.msk [vmem:[#allocation2 + $0x6e] sm:$0x1] %vm3183, %v6169
    %6187 = vst.msk [vmem:[#allocation2 + $0x7e] sm:$0x1] %vm3183, %v6171
    %6188 = vrot.lane.b32.xlu0 %v6073, 96
    %v6189 = vpop.permute.xlu0 %6188
    %v6190 = vsel %vm2977, %v6189, 0
    %6192 = vmatprep.subr.mxu0 0.0
    %6193 = vmatpush1.msra.mxu0 0.0
    %6194 = vmatprep.subr.mxu0 0.0
    %6195 = vmatpush1.msra.mxu0 0.0
    %6196 = vmatprep.subr.mxu0 0.0
    %6197 = vmatpush1.msra.mxu0 0.0
    %6198 = vmatprep.subr.mxu0 0.0
    %6199 = vmatpush1.msra.mxu0 0.0
    %6200 = vmatprep.subr.mxu0 0.0
    %6201 = vmatpush1.msra.mxu0 0.0
    %6202 = vmatprep.subr.mxu0 0.0
    %6203 = vmatpush1.msra.mxu0 0.0
    %6204 = vmatprep.subr.mxu0 0.0
    %6205 = vmatpush1.msra.mxu0 0.0
    %6206 = vmatprep.subr.mxu0 0.0
    %6207 = vmatpush1.msra.mxu0 0.0
    %6208 = vmatprep.subr.mxu0 0.0
    %6209 = vmatpush1.msra.mxu0 0.0
    %6210 = vmatprep.subr.mxu0 0.0
    %6211 = vmatpush1.msra.mxu0 0.0
    %6212 = vmatprep.subr.mxu0 0.0
    %6213 = vmatpush1.msra.mxu0 0.0
    %6214 = vmatprep.subr.mxu0 0.0
    %6215 = vmatpush1.msra.mxu0 0.0
    %6216 = vmatprep.subr.mxu0 0.0
    %6217 = vmatpush1.msra.mxu0 %v2969
    %6218 = vmatprep.subr.mxu0 0.0
    %6219 = vmatpush1.msra.mxu0 %v2968
    %6220 = vmatprep.subr.mxu0 0.0
    %6221 = vmatpush1.msra.mxu0 %v2967
    %6222 = vmatprep.subr.mxu0 0.0
    %6223 = vmatpush1.msra.mxu0 %v2966
    %6224 = vmatprep.subr.mxu0 0.0
    %6225 = vmatpush2.msra.mxu0 0.0
    %6226 = vmatprep.subr.mxu0 0.0
    %6227 = vmatpush2.msra.mxu0 0.0
    %6228 = vmatprep.subr.mxu0 0.0
    %6229 = vmatpush2.msra.mxu0 0.0
    %6230 = vmatprep.subr.mxu0 0.0
    %6231 = vmatpush2.msra.mxu0 0.0
    %6232 = vmatprep.subr.mxu0 0.0
    %6233 = vmatpush2.msra.mxu0 0.0
    %6234 = vmatprep.subr.mxu0 0.0
    %6235 = vmatpush2.msra.mxu0 0.0
    %6236 = vmatprep.subr.mxu0 0.0
    %6237 = vmatpush2.msra.mxu0 0.0
    %6238 = vmatprep.subr.mxu0 0.0
    %6239 = vmatpush2.msra.mxu0 0.0
    %6240 = vmatprep.subr.mxu0 0.0
    %6241 = vmatpush2.msra.mxu0 0.0
    %6242 = vmatprep.subr.mxu0 0.0
    %6243 = vmatpush2.msra.mxu0 0.0
    %6244 = vmatprep.subr.mxu0 0.0
    %6245 = vmatpush2.msra.mxu0 0.0
    %6246 = vmatprep.subr.mxu0 0.0
    %6247 = vmatpush2.msra.mxu0 0.0
    %6248 = vmatprep.subr.mxu0 0.0
    %6249 = vmatpush2.msra.mxu0 0.0
    %6250 = vmatprep.subr.mxu0 0.0
    %6251 = vmatpush2.msra.mxu0 0.0
    %6252 = vmatprep.subr.mxu0 0.0
    %6253 = vmatpush2.msra.mxu0 0.0
    %6254 = vmatprep.subr.mxu0 0.0
    %6255 = vmatpush2.msra.mxu0 0.0
    %6256 = vmatprep.mubr.f32.mxu0 0.0
    %6257 = vmatmul.mubr.f32.gmra.mxu0 %v6190
    %v6258 = vpop.f32.mrf.mxu0
    %v6259 = vadd.f32 %v2975, %v6258
    %v6260 = vpop.f32.mrf.mxu0
    %6261 = vdwg.mxu0
    %v6262 = vadd.f32 %v2963, %v6259
    %v6263 = vxor.u32 %v6262, 2147483648
    %v6264 = vmul.f32 %v6263, 1.442695
    %v6265 = vpow.pop %v6264
    %v6266 = vadd.f32 %v6265, 1.0
    %v6267 = vrcp.pop %v6266
    %v6268 = vmul.f32 1.0, %v6267
    %6270 = vrot.lane.b32.xlu0 %v6259, 64
    %v6271 = vpop.permute.xlu0 %6270
    %v6273 = vmul.f32 %v6268, %v6271
    %6275 = vrot.lane.b32.xlu0 %v6273, 64
    %v6276 = vpop.permute.xlu0 %6275
    %v6278 = vadd.f32 %v2963, %v6276
    %v6279 = vtanh.pop %v6278
    %v6280 = vsub.f32 1.0, %v6268
    %6282 = vrot.lane.b32.xlu0 %v6279, 96
    %v6283 = vpop.permute.xlu0 %6282
    %v6285 = vmul.f32 %v6280, %v6283
    %v6286 = vmul.f32 %v6268, %v6073
    %v6287 = vadd.f32 %v6285, %v6286
    %v6289 = vcombine.high %v6287, %v6287
    %v6291 = vunpack.c.l.s4 1966171168
    %v6292 = vunpack.c.0.s8 %v6291
    %v6293 = vlaneseq
    %v6294 = vshrl.u32 %v6293, 7
    %v6295 = vsub.s32 %v6292, %v6294
    %v6296 = vrot.slane %v6287, %v6295
    %v6298 = vunpack.c.l.s4 1966171168
    %v6299 = vunpack.c.0.s8 %v6298
    %v6300 = vlaneseq
    %v6301 = vshrl.u32 %v6300, 7
    %v6302 = vsub.s32 %v6299, %v6301
    %v6303 = vrot.slane %v6289, %v6302
    %v6304 = vcombine.high %v6296, %v6296
    %v6305 = vcombine.high %v6303, %v6303
    %v6307 = vunpack.c.l.s4 1966171168
    %v6308 = vunpack.c.0.s8 %v6307
    %v6309 = vlaneseq
    %v6310 = vshrl.u32 %v6309, 7
    %v6311 = vsub.s32 %v6308, %v6310
    %v6312 = vrot.slane %v6296, %v6311
    %v6314 = vunpack.c.l.s4 1966171168
    %v6315 = vunpack.c.0.s8 %v6314
    %v6316 = vlaneseq
    %v6317 = vshrl.u32 %v6316, 7
    %v6318 = vsub.s32 %v6315, %v6317
    %v6319 = vrot.slane %v6303, %v6318
    %v6321 = vunpack.c.l.s4 1966171168
    %v6322 = vunpack.c.0.s8 %v6321
    %v6323 = vlaneseq
    %v6324 = vshrl.u32 %v6323, 7
    %v6325 = vsub.s32 %v6322, %v6324
    %v6326 = vrot.slane %v6304, %v6325
    %v6328 = vunpack.c.l.s4 1966171168
    %v6329 = vunpack.c.0.s8 %v6328
    %v6330 = vlaneseq
    %v6331 = vshrl.u32 %v6330, 7
    %v6332 = vsub.s32 %v6329, %v6331
    %v6333 = vrot.slane %v6305, %v6332
    %v6334 = vcombine.high %v6312, %v6312
    %v6335 = vcombine.high %v6319, %v6319
    %v6336 = vcombine.high %v6326, %v6326
    %v6337 = vcombine.high %v6333, %v6333
    %v6338 = vlaneseq
    %v6339 = vshrl.u32 %v6338, 7
    %v6340 = vsub.s32 0, %v6339
    %v6341 = vrot.slane %v6312, %v6340
    %v6342 = vlaneseq
    %v6343 = vshrl.u32 %v6342, 7
    %v6344 = vsub.s32 0, %v6343
    %v6345 = vrot.slane %v6326, %v6344
    %v6346 = vlaneseq
    %v6347 = vshrl.u32 %v6346, 7
    %v6348 = vsub.s32 0, %v6347
    %v6349 = vrot.slane %v6334, %v6348
    %v6350 = vlaneseq
    %v6351 = vshrl.u32 %v6350, 7
    %v6352 = vsub.s32 0, %v6351
    %v6353 = vrot.slane %v6336, %v6352
    %v6354 = vlaneseq
    %v6355 = vshrl.u32 %v6354, 7
    %v6356 = vsub.s32 0, %v6355
    %v6357 = vrot.slane %v6319, %v6356
    %v6358 = vlaneseq
    %v6359 = vshrl.u32 %v6358, 7
    %v6360 = vsub.s32 0, %v6359
    %v6361 = vrot.slane %v6333, %v6360
    %v6362 = vlaneseq
    %v6363 = vshrl.u32 %v6362, 7
    %v6364 = vsub.s32 0, %v6363
    %v6365 = vrot.slane %v6335, %v6364
    %v6366 = vlaneseq
    %v6367 = vshrl.u32 %v6366, 7
    %v6368 = vsub.s32 0, %v6367
    %v6369 = vrot.slane %v6337, %v6368
    %6370 = vrot.lane.b32.xlu0 %v6341, 96
    %v6371 = vpop.permute.xlu0 %6370
    %6372 = vrot.lane.b32.xlu0 %v6345, 96
    %v6373 = vpop.permute.xlu0 %6372
    %6374 = vrot.lane.b32.xlu0 %v6349, 96
    %v6375 = vpop.permute.xlu0 %6374
    %6376 = vrot.lane.b32.xlu0 %v6353, 96
    %v6377 = vpop.permute.xlu0 %6376
    %6378 = vrot.lane.b32.xlu0 %v6357, 96
    %v6379 = vpop.permute.xlu0 %6378
    %6380 = vrot.lane.b32.xlu0 %v6361, 96
    %v6381 = vpop.permute.xlu0 %6380
    %6382 = vrot.lane.b32.xlu0 %v6365, 96
    %v6383 = vpop.permute.xlu0 %6382
    %6384 = vrot.lane.b32.xlu0 %v6369, 96
    %v6385 = vpop.permute.xlu0 %6384
    %6394 = vst.msk [vmem:[#allocation2 + $0xf] sm:$0x1] %vm3183, %v6371
    %6395 = vst.msk [vmem:[#allocation2 + $0x1f] sm:$0x1] %vm3183, %v6373
    %6396 = vst.msk [vmem:[#allocation2 + $0x2f] sm:$0x1] %vm3183, %v6375
    %6397 = vst.msk [vmem:[#allocation2 + $0x3f] sm:$0x1] %vm3183, %v6377
    %6398 = vst.msk [vmem:[#allocation2 + $0x4f] sm:$0x1] %vm3183, %v6379
    %6399 = vst.msk [vmem:[#allocation2 + $0x5f] sm:$0x1] %vm3183, %v6381
    %6400 = vst.msk [vmem:[#allocation2 + $0x6f] sm:$0x1] %vm3183, %v6383
    %6401 = vst.msk [vmem:[#allocation2 + $0x7f] sm:$0x1] %vm3183, %v6385
    %v6402 = vld [vmem:[#allocation2] sm:$0xff]
    %v6403 = vld [vmem:[#allocation2 + $0x8] sm:$0xff]
    %v6404 = vld [vmem:[#allocation2 + $0x10] sm:$0xff]
    %v6405 = vld [vmem:[#allocation2 + $0x18] sm:$0xff]
    %v6406 = vld [vmem:[#allocation2 + $0x20] sm:$0xff]
    %v6407 = vld [vmem:[#allocation2 + $0x28] sm:$0xff]
    %v6408 = vld [vmem:[#allocation2 + $0x30] sm:$0xff]
    %v6409 = vld [vmem:[#allocation2 + $0x38] sm:$0xff]
    %v6410 = vld [vmem:[#allocation2 + $0x40] sm:$0xff]
    %v6411 = vld [vmem:[#allocation2 + $0x48] sm:$0xff]
    %v6412 = vld [vmem:[#allocation2 + $0x50] sm:$0xff]
    %v6413 = vld [vmem:[#allocation2 + $0x58] sm:$0xff]
    %v6414 = vld [vmem:[#allocation2 + $0x60] sm:$0xff]
    %v6415 = vld [vmem:[#allocation2 + $0x68] sm:$0xff]
    %v6416 = vld [vmem:[#allocation2 + $0x70] sm:$0xff]
    %v6417 = vld [vmem:[#allocation2 + $0x78] sm:$0xff]
    %v6418 = vld [vmem:[%s7] sm:$0xff]
    %v6419 = vld [vmem:[%s7 + $0x8] sm:$0xff]
    %v6420 = vld [vmem:[%s7 + $0x10] sm:$0xff]
    %v6421 = vld [vmem:[%s7 + $0x18] sm:$0xff]
    %v6423 = vsel %vm2977, %v6406, 0
    %v6426 = vsel %vm2977, %v6407, 0
    %v6429 = vsel %vm2977, %v6408, 0
    %v6432 = vsel %vm2977, %v6409, 0
    %v6435 = vsel %vm2977, %v6410, 0
    %v6438 = vsel %vm2977, %v6411, 0
    %v6441 = vsel %vm2977, %v6412, 0
    %v6444 = vsel %vm2977, %v6413, 0
    %v6447 = vsel %vm2977, %v6414, 0
    %v6450 = vsel %vm2977, %v6415, 0
    %v6453 = vsel %vm2977, %v6416, 0
    %v6456 = vsel %vm2977, %v6417, 0
    %6458 = vmatprep.subr.mxu0 0.0
    %6459 = vmatpush1.msra.mxu0 0.0
    %6460 = vmatprep.subr.mxu0 0.0
    %6461 = vmatpush1.msra.mxu0 0.0
    %6462 = vmatprep.subr.mxu0 0.0
    %6463 = vmatpush1.msra.mxu0 0.0
    %6464 = vmatprep.subr.mxu0 0.0
    %6465 = vmatpush1.msra.mxu0 0.0
    %6466 = vmatprep.subr.mxu0 0.0
    %6467 = vmatpush1.msra.mxu0 0.0
    %6468 = vmatprep.subr.mxu0 0.0
    %6469 = vmatpush1.msra.mxu0 0.0
    %6470 = vmatprep.subr.mxu0 0.0
    %6471 = vmatpush1.msra.mxu0 0.0
    %6472 = vmatprep.subr.mxu0 0.0
    %6473 = vmatpush1.msra.mxu0 0.0
    %6474 = vmatprep.subr.mxu0 0.0
    %6475 = vmatpush1.msra.mxu0 0.0
    %6476 = vmatprep.subr.mxu0 0.0
    %6477 = vmatpush1.msra.mxu0 0.0
    %6478 = vmatprep.subr.mxu0 0.0
    %6479 = vmatpush1.msra.mxu0 0.0
    %6480 = vmatprep.subr.mxu0 0.0
    %6481 = vmatpush1.msra.mxu0 0.0
    %6482 = vmatprep.subr.mxu0 0.0
    %6483 = vmatpush1.msra.mxu0 %v6421
    %6484 = vmatprep.subr.mxu0 0.0
    %6485 = vmatpush1.msra.mxu0 %v6420
    %6486 = vmatprep.subr.mxu0 0.0
    %6487 = vmatpush1.msra.mxu0 %v6419
    %6488 = vmatprep.subr.mxu0 0.0
    %6489 = vmatpush1.msra.mxu0 %v6418
    %6490 = vmatprep.subr.mxu0 0.0
    %6491 = vmatpush2.msra.mxu0 0.0
    %6492 = vmatprep.subr.mxu0 0.0
    %6493 = vmatpush2.msra.mxu0 0.0
    %6494 = vmatprep.subr.mxu0 0.0
    %6495 = vmatpush2.msra.mxu0 0.0
    %6496 = vmatprep.subr.mxu0 0.0
    %6497 = vmatpush2.msra.mxu0 0.0
    %6498 = vmatprep.subr.mxu0 0.0
    %6499 = vmatpush2.msra.mxu0 0.0
    %6500 = vmatprep.subr.mxu0 0.0
    %6501 = vmatpush2.msra.mxu0 0.0
    %6502 = vmatprep.subr.mxu0 0.0
    %6503 = vmatpush2.msra.mxu0 0.0
    %6504 = vmatprep.subr.mxu0 0.0
    %6505 = vmatpush2.msra.mxu0 0.0
    %6506 = vmatprep.subr.mxu0 0.0
    %6507 = vmatpush2.msra.mxu0 0.0
    %6508 = vmatprep.subr.mxu0 0.0
    %6509 = vmatpush2.msra.mxu0 0.0
    %6510 = vmatprep.subr.mxu0 0.0
    %6511 = vmatpush2.msra.mxu0 0.0
    %6512 = vmatprep.subr.mxu0 0.0
    %6513 = vmatpush2.msra.mxu0 0.0
    %6514 = vmatprep.subr.mxu0 0.0
    %6515 = vmatpush2.msra.mxu0 0.0
    %6516 = vmatprep.subr.mxu0 0.0
    %6517 = vmatpush2.msra.mxu0 0.0
    %6518 = vmatprep.subr.mxu0 0.0
    %6519 = vmatpush2.msra.mxu0 0.0
    %6520 = vmatprep.subr.mxu0 0.0
    %6521 = vmatpush2.msra.mxu0 0.0
    %6522 = vmatprep.mubr.f32.mxu0 0.0
    %6523 = vmatmul.mubr.f32.gmra.mxu0 %v6423
    %v6524 = vpop.f32.mrf.mxu0
    %v6525 = vadd.f32 0.0, %v6524
    %v6526 = vpop.f32.mrf.mxu0
    %6527 = vmatprep.mubr.f32.mxu0 0.0
    %6528 = vmatmul.mubr.f32.gmra.mxu0 %v6426
    %v6529 = vpop.f32.mrf.mxu0
    %v6530 = vadd.f32 0.0, %v6529
    %v6531 = vpop.f32.mrf.mxu0
    %6532 = vmatprep.mubr.f32.mxu0 0.0
    %6533 = vmatmul.mubr.f32.gmra.mxu0 %v6429
    %v6534 = vpop.f32.mrf.mxu0
    %v6535 = vadd.f32 0.0, %v6534
    %v6536 = vpop.f32.mrf.mxu0
    %6537 = vmatprep.mubr.f32.mxu0 0.0
    %6538 = vmatmul.mubr.f32.gmra.mxu0 %v6432
    %v6539 = vpop.f32.mrf.mxu0
    %v6540 = vadd.f32 0.0, %v6539
    %v6541 = vpop.f32.mrf.mxu0
    %6542 = vmatprep.mubr.f32.mxu0 0.0
    %6543 = vmatmul.mubr.f32.gmra.mxu0 %v6435
    %v6544 = vpop.f32.mrf.mxu0
    %v6545 = vadd.f32 0.0, %v6544
    %v6546 = vpop.f32.mrf.mxu0
    %6547 = vmatprep.mubr.f32.mxu0 0.0
    %6548 = vmatmul.mubr.f32.gmra.mxu0 %v6438
    %v6549 = vpop.f32.mrf.mxu0
    %v6550 = vadd.f32 0.0, %v6549
    %v6551 = vpop.f32.mrf.mxu0
    %6552 = vmatprep.mubr.f32.mxu0 0.0
    %6553 = vmatmul.mubr.f32.gmra.mxu0 %v6441
    %v6554 = vpop.f32.mrf.mxu0
    %v6555 = vadd.f32 0.0, %v6554
    %v6556 = vpop.f32.mrf.mxu0
    %6557 = vmatprep.mubr.f32.mxu0 0.0
    %6558 = vmatmul.mubr.f32.gmra.mxu0 %v6444
    %v6559 = vpop.f32.mrf.mxu0
    %v6560 = vadd.f32 0.0, %v6559
    %v6561 = vpop.f32.mrf.mxu0
    %6562 = vmatprep.mubr.f32.mxu0 0.0
    %6563 = vmatmul.mubr.f32.gmra.mxu0 %v6447
    %v6564 = vpop.f32.mrf.mxu0
    %v6565 = vadd.f32 0.0, %v6564
    %v6566 = vpop.f32.mrf.mxu0
    %6567 = vmatprep.mubr.f32.mxu0 0.0
    %6568 = vmatmul.mubr.f32.gmra.mxu0 %v6450
    %v6569 = vpop.f32.mrf.mxu0
    %v6570 = vadd.f32 0.0, %v6569
    %v6571 = vpop.f32.mrf.mxu0
    %6572 = vmatprep.mubr.f32.mxu0 0.0
    %6573 = vmatmul.mubr.f32.gmra.mxu0 %v6453
    %v6574 = vpop.f32.mrf.mxu0
    %v6575 = vadd.f32 0.0, %v6574
    %v6576 = vpop.f32.mrf.mxu0
    %6577 = vmatprep.mubr.f32.mxu0 0.0
    %6578 = vmatmul.mubr.f32.gmra.mxu0 %v6456
    %v6579 = vpop.f32.mrf.mxu0
    %v6580 = vadd.f32 0.0, %v6579
    %v6581 = vpop.f32.mrf.mxu0
    %6582 = vdwg.mxu0
    %v6584 = vsel %vm2977, %v1460, 0
    %v6587 = vsel %vm2977, %v1466, 0
    %v6590 = vsel %vm2977, %v1472, 0
    %v6593 = vsel %vm2977, %v1478, 0
    %v6596 = vsel %vm2977, %v1484, 0
    %v6599 = vsel %vm2977, %v1490, 0
    %v6602 = vsel %vm2977, %v1436, 0
    %v6605 = vsel %vm2977, %v1442, 0
    %6607 = vmatprep.subr.mxu0 0.0
    %6608 = vmatpush1.xpose.msra.mxu0 0.0
    %6609 = vmatprep.subr.mxu0 0.0
    %6610 = vmatpush1.xpose.msra.mxu0 0.0
    %6611 = vmatprep.subr.mxu0 0.0
    %6612 = vmatpush1.xpose.msra.mxu0 0.0
    %6613 = vmatprep.subr.mxu0 0.0
    %6614 = vmatpush1.xpose.msra.mxu0 0.0
    %6615 = vmatprep.subr.mxu0 0.0
    %6616 = vmatpush1.xpose.msra.mxu0 0.0
    %6617 = vmatprep.subr.mxu0 0.0
    %6618 = vmatpush1.xpose.msra.mxu0 0.0
    %6619 = vmatprep.subr.mxu0 0.0
    %6620 = vmatpush1.xpose.msra.mxu0 0.0
    %6621 = vmatprep.subr.mxu0 0.0
    %6622 = vmatpush1.xpose.msra.mxu0 0.0
    %6623 = vmatprep.subr.mxu0 0.0
    %6624 = vmatpush1.xpose.msra.mxu0 0.0
    %6625 = vmatprep.subr.mxu0 0.0
    %6626 = vmatpush1.xpose.msra.mxu0 0.0
    %6627 = vmatprep.subr.mxu0 0.0
    %6628 = vmatpush1.xpose.msra.mxu0 0.0
    %6629 = vmatprep.subr.mxu0 0.0
    %6630 = vmatpush1.xpose.msra.mxu0 0.0
    %6631 = vmatprep.subr.mxu0 0.0
    %6632 = vmatpush1.xpose.msra.mxu0 0.0
    %6633 = vmatprep.subr.mxu0 0.0
    %6634 = vmatpush1.xpose.msra.mxu0 0.0
    %6635 = vmatprep.subr.mxu0 0.0
    %6636 = vmatpush1.xpose.msra.mxu0 %v6605
    %6637 = vmatprep.subr.mxu0 0.0
    %6638 = vmatpush1.xpose.msra.mxu0 %v6602
    %6639 = vmatprep.subr.mxu0 0.0
    %6640 = vmatpush2.xpose.msra.mxu0 0.0
    %6641 = vmatprep.subr.mxu0 0.0
    %6642 = vmatpush2.xpose.msra.mxu0 0.0
    %6643 = vmatprep.subr.mxu0 0.0
    %6644 = vmatpush2.xpose.msra.mxu0 0.0
    %6645 = vmatprep.subr.mxu0 0.0
    %6646 = vmatpush2.xpose.msra.mxu0 0.0
    %6647 = vmatprep.subr.mxu0 0.0
    %6648 = vmatpush2.xpose.msra.mxu0 0.0
    %6649 = vmatprep.subr.mxu0 0.0
    %6650 = vmatpush2.xpose.msra.mxu0 0.0
    %6651 = vmatprep.subr.mxu0 0.0
    %6652 = vmatpush2.xpose.msra.mxu0 0.0
    %6653 = vmatprep.subr.mxu0 0.0
    %6654 = vmatpush2.xpose.msra.mxu0 0.0
    %6655 = vmatprep.subr.mxu0 0.0
    %6656 = vmatpush2.xpose.msra.mxu0 0.0
    %6657 = vmatprep.subr.mxu0 0.0
    %6658 = vmatpush2.xpose.msra.mxu0 0.0
    %6659 = vmatprep.subr.mxu0 0.0
    %6660 = vmatpush2.xpose.msra.mxu0 0.0
    %6661 = vmatprep.subr.mxu0 0.0
    %6662 = vmatpush2.xpose.msra.mxu0 0.0
    %6663 = vmatprep.subr.mxu0 0.0
    %6664 = vmatpush2.xpose.msra.mxu0 0.0
    %6665 = vmatprep.subr.mxu0 0.0
    %6666 = vmatpush2.xpose.msra.mxu0 0.0
    %6667 = vmatprep.subr.mxu0 0.0
    %6668 = vmatpush2.xpose.msra.mxu0 0.0
    %6669 = vmatprep.subr.mxu0 0.0
    %6670 = vmatpush2.xpose.msra.mxu0 0.0
    %6671 = vmatprep.mubr.f32.mxu0 0.0
    %6672 = vmatmul.mubr.f32.gmra.mxu0 %v6584
    %v6673 = vpop.f32.mrf.mxu0
    %v6674 = vadd.f32 0.0, %v6673
    %v6675 = vpop.f32.mrf.mxu0
    %6676 = vmatprep.mubr.f32.mxu0 0.0
    %6677 = vmatmul.mubr.f32.gmra.mxu0 %v6587
    %v6678 = vpop.f32.mrf.mxu0
    %v6679 = vadd.f32 0.0, %v6678
    %v6680 = vpop.f32.mrf.mxu0
    %6681 = vmatprep.mubr.f32.mxu0 0.0
    %6682 = vmatmul.mubr.f32.gmra.mxu0 %v6590
    %v6683 = vpop.f32.mrf.mxu0
    %v6684 = vadd.f32 0.0, %v6683
    %v6685 = vpop.f32.mrf.mxu0
    %6686 = vmatprep.mubr.f32.mxu0 0.0
    %6687 = vmatmul.mubr.f32.gmra.mxu0 %v6593
    %v6688 = vpop.f32.mrf.mxu0
    %v6689 = vadd.f32 0.0, %v6688
    %v6690 = vpop.f32.mrf.mxu0
    %6691 = vmatprep.mubr.f32.mxu0 0.0
    %6692 = vmatmul.mubr.f32.gmra.mxu0 %v6596
    %v6693 = vpop.f32.mrf.mxu0
    %v6694 = vadd.f32 0.0, %v6693
    %v6695 = vpop.f32.mrf.mxu0
    %6696 = vmatprep.mubr.f32.mxu0 0.0
    %6697 = vmatmul.mubr.f32.gmra.mxu0 %v6599
    %v6698 = vpop.f32.mrf.mxu0
    %v6699 = vadd.f32 0.0, %v6698
    %v6700 = vpop.f32.mrf.mxu0
    %6701 = vdwg.mxu0
    %v6703 = vsel %vm2977, %v6525, 0
    %v6706 = vsel %vm2977, %v6530, 0
    %v6709 = vsel %vm2977, %v6535, 0
    %v6712 = vsel %vm2977, %v6540, 0
    %v6715 = vsel %vm2977, %v6545, 0
    %v6718 = vsel %vm2977, %v6550, 0
    %v6721 = vsel %vm2977, %v6402, 0
    %v6724 = vsel %vm2977, %v6403, 0
    %6726 = vmatprep.subr.mxu0 0.0
    %6727 = vmatpush1.xpose.msra.mxu0 0.0
    %6728 = vmatprep.subr.mxu0 0.0
    %6729 = vmatpush1.xpose.msra.mxu0 0.0
    %6730 = vmatprep.subr.mxu0 0.0
    %6731 = vmatpush1.xpose.msra.mxu0 0.0
    %6732 = vmatprep.subr.mxu0 0.0
    %6733 = vmatpush1.xpose.msra.mxu0 0.0
    %6734 = vmatprep.subr.mxu0 0.0
    %6735 = vmatpush1.xpose.msra.mxu0 0.0
    %6736 = vmatprep.subr.mxu0 0.0
    %6737 = vmatpush1.xpose.msra.mxu0 0.0
    %6738 = vmatprep.subr.mxu0 0.0
    %6739 = vmatpush1.xpose.msra.mxu0 0.0
    %6740 = vmatprep.subr.mxu0 0.0
    %6741 = vmatpush1.xpose.msra.mxu0 0.0
    %6742 = vmatprep.subr.mxu0 0.0
    %6743 = vmatpush1.xpose.msra.mxu0 0.0
    %6744 = vmatprep.subr.mxu0 0.0
    %6745 = vmatpush1.xpose.msra.mxu0 0.0
    %6746 = vmatprep.subr.mxu0 0.0
    %6747 = vmatpush1.xpose.msra.mxu0 0.0
    %6748 = vmatprep.subr.mxu0 0.0
    %6749 = vmatpush1.xpose.msra.mxu0 0.0
    %6750 = vmatprep.subr.mxu0 0.0
    %6751 = vmatpush1.xpose.msra.mxu0 0.0
    %6752 = vmatprep.subr.mxu0 0.0
    %6753 = vmatpush1.xpose.msra.mxu0 0.0
    %6754 = vmatprep.subr.mxu0 0.0
    %6755 = vmatpush1.xpose.msra.mxu0 %v6724
    %6756 = vmatprep.subr.mxu0 0.0
    %6757 = vmatpush1.xpose.msra.mxu0 %v6721
    %6758 = vmatprep.subr.mxu0 0.0
    %6759 = vmatpush2.xpose.msra.mxu0 0.0
    %6760 = vmatprep.subr.mxu0 0.0
    %6761 = vmatpush2.xpose.msra.mxu0 0.0
    %6762 = vmatprep.subr.mxu0 0.0
    %6763 = vmatpush2.xpose.msra.mxu0 0.0
    %6764 = vmatprep.subr.mxu0 0.0
    %6765 = vmatpush2.xpose.msra.mxu0 0.0
    %6766 = vmatprep.subr.mxu0 0.0
    %6767 = vmatpush2.xpose.msra.mxu0 0.0
    %6768 = vmatprep.subr.mxu0 0.0
    %6769 = vmatpush2.xpose.msra.mxu0 0.0
    %6770 = vmatprep.subr.mxu0 0.0
    %6771 = vmatpush2.xpose.msra.mxu0 0.0
    %6772 = vmatprep.subr.mxu0 0.0
    %6773 = vmatpush2.xpose.msra.mxu0 0.0
    %6774 = vmatprep.subr.mxu0 0.0
    %6775 = vmatpush2.xpose.msra.mxu0 0.0
    %6776 = vmatprep.subr.mxu0 0.0
    %6777 = vmatpush2.xpose.msra.mxu0 0.0
    %6778 = vmatprep.subr.mxu0 0.0
    %6779 = vmatpush2.xpose.msra.mxu0 0.0
    %6780 = vmatprep.subr.mxu0 0.0
    %6781 = vmatpush2.xpose.msra.mxu0 0.0
    %6782 = vmatprep.subr.mxu0 0.0
    %6783 = vmatpush2.xpose.msra.mxu0 0.0
    %6784 = vmatprep.subr.mxu0 0.0
    %6785 = vmatpush2.xpose.msra.mxu0 0.0
    %6786 = vmatprep.subr.mxu0 0.0
    %6787 = vmatpush2.xpose.msra.mxu0 0.0
    %6788 = vmatprep.subr.mxu0 0.0
    %6789 = vmatpush2.xpose.msra.mxu0 0.0
    %6790 = vmatprep.mubr.f32.mxu0 0.0
    %6791 = vmatmul.mubr.f32.gmra.mxu0 %v6703
    %v6792 = vpop.f32.mrf.mxu0
    %v6793 = vadd.f32 0.0, %v6792
    %v6794 = vpop.f32.mrf.mxu0
    %6795 = vmatprep.mubr.f32.mxu0 0.0
    %6796 = vmatmul.mubr.f32.gmra.mxu0 %v6706
    %v6797 = vpop.f32.mrf.mxu0
    %v6798 = vadd.f32 0.0, %v6797
    %v6799 = vpop.f32.mrf.mxu0
    %6800 = vmatprep.mubr.f32.mxu0 0.0
    %6801 = vmatmul.mubr.f32.gmra.mxu0 %v6709
    %v6802 = vpop.f32.mrf.mxu0
    %v6803 = vadd.f32 0.0, %v6802
    %v6804 = vpop.f32.mrf.mxu0
    %6805 = vmatprep.mubr.f32.mxu0 0.0
    %6806 = vmatmul.mubr.f32.gmra.mxu0 %v6712
    %v6807 = vpop.f32.mrf.mxu0
    %v6808 = vadd.f32 0.0, %v6807
    %v6809 = vpop.f32.mrf.mxu0
    %6810 = vmatprep.mubr.f32.mxu0 0.0
    %6811 = vmatmul.mubr.f32.gmra.mxu0 %v6715
    %v6812 = vpop.f32.mrf.mxu0
    %v6813 = vadd.f32 0.0, %v6812
    %v6814 = vpop.f32.mrf.mxu0
    %6815 = vmatprep.mubr.f32.mxu0 0.0
    %6816 = vmatmul.mubr.f32.gmra.mxu0 %v6718
    %v6817 = vpop.f32.mrf.mxu0
    %v6818 = vadd.f32 0.0, %v6817
    %v6819 = vpop.f32.mrf.mxu0
    %6820 = vdwg.mxu0
    %6827 = vrot.lane.b32.xlu0 %v6793, 16
    %v6828 = vpop.permute.xlu0 %6827
    %6829 = vrot.lane.b32.xlu0 %v6798, 16
    %v6830 = vpop.permute.xlu0 %6829
    %6831 = vrot.lane.b32.xlu0 %v6803, 16
    %v6832 = vpop.permute.xlu0 %6831
    %6833 = vrot.lane.b32.xlu0 %v6808, 16
    %v6834 = vpop.permute.xlu0 %6833
    %6835 = vrot.lane.b32.xlu0 %v6813, 16
    %v6836 = vpop.permute.xlu0 %6835
    %6837 = vrot.lane.b32.xlu0 %v6818, 16
    %v6838 = vpop.permute.xlu0 %6837
    %vm6845 = vcmask 130048
    %v6846 = vsel %vm6845, %v6674, %v6828
    %v6847 = vsel %vm6845, %v6679, %v6830
    %v6848 = vsel %vm6845, %v6684, %v6832
    %v6849 = vsel %vm6845, %v6689, %v6834
    %v6850 = vsel %vm6845, %v6694, %v6836
    %v6851 = vsel %vm6845, %v6699, %v6838
    %v6853 = vsel %vm2977, %v1496, 0
    %v6856 = vsel %vm2977, %v1502, 0
    %v6859 = vsel %vm2977, %v1508, 0
    %v6862 = vsel %vm2977, %v1514, 0
    %v6865 = vsel %vm2977, %v1520, 0
    %v6868 = vsel %vm2977, %v1526, 0
    %v6871 = vsel %vm2977, %v1448, 0
    %v6874 = vsel %vm2977, %v1454, 0
    %6876 = vmatprep.subr.mxu0 0.0
    %6877 = vmatpush1.xpose.msra.mxu0 0.0
    %6878 = vmatprep.subr.mxu0 0.0
    %6879 = vmatpush1.xpose.msra.mxu0 0.0
    %6880 = vmatprep.subr.mxu0 0.0
    %6881 = vmatpush1.xpose.msra.mxu0 0.0
    %6882 = vmatprep.subr.mxu0 0.0
    %6883 = vmatpush1.xpose.msra.mxu0 0.0
    %6884 = vmatprep.subr.mxu0 0.0
    %6885 = vmatpush1.xpose.msra.mxu0 0.0
    %6886 = vmatprep.subr.mxu0 0.0
    %6887 = vmatpush1.xpose.msra.mxu0 0.0
    %6888 = vmatprep.subr.mxu0 0.0
    %6889 = vmatpush1.xpose.msra.mxu0 0.0
    %6890 = vmatprep.subr.mxu0 0.0
    %6891 = vmatpush1.xpose.msra.mxu0 0.0
    %6892 = vmatprep.subr.mxu0 0.0
    %6893 = vmatpush1.xpose.msra.mxu0 0.0
    %6894 = vmatprep.subr.mxu0 0.0
    %6895 = vmatpush1.xpose.msra.mxu0 0.0
    %6896 = vmatprep.subr.mxu0 0.0
    %6897 = vmatpush1.xpose.msra.mxu0 0.0
    %6898 = vmatprep.subr.mxu0 0.0
    %6899 = vmatpush1.xpose.msra.mxu0 0.0
    %6900 = vmatprep.subr.mxu0 0.0
    %6901 = vmatpush1.xpose.msra.mxu0 0.0
    %6902 = vmatprep.subr.mxu0 0.0
    %6903 = vmatpush1.xpose.msra.mxu0 0.0
    %6904 = vmatprep.subr.mxu0 0.0
    %6905 = vmatpush1.xpose.msra.mxu0 %v6874
    %6906 = vmatprep.subr.mxu0 0.0
    %6907 = vmatpush1.xpose.msra.mxu0 %v6871
    %6908 = vmatprep.subr.mxu0 0.0
    %6909 = vmatpush2.xpose.msra.mxu0 0.0
    %6910 = vmatprep.subr.mxu0 0.0
    %6911 = vmatpush2.xpose.msra.mxu0 0.0
    %6912 = vmatprep.subr.mxu0 0.0
    %6913 = vmatpush2.xpose.msra.mxu0 0.0
    %6914 = vmatprep.subr.mxu0 0.0
    %6915 = vmatpush2.xpose.msra.mxu0 0.0
    %6916 = vmatprep.subr.mxu0 0.0
    %6917 = vmatpush2.xpose.msra.mxu0 0.0
    %6918 = vmatprep.subr.mxu0 0.0
    %6919 = vmatpush2.xpose.msra.mxu0 0.0
    %6920 = vmatprep.subr.mxu0 0.0
    %6921 = vmatpush2.xpose.msra.mxu0 0.0
    %6922 = vmatprep.subr.mxu0 0.0
    %6923 = vmatpush2.xpose.msra.mxu0 0.0
    %6924 = vmatprep.subr.mxu0 0.0
    %6925 = vmatpush2.xpose.msra.mxu0 0.0
    %6926 = vmatprep.subr.mxu0 0.0
    %6927 = vmatpush2.xpose.msra.mxu0 0.0
    %6928 = vmatprep.subr.mxu0 0.0
    %6929 = vmatpush2.xpose.msra.mxu0 0.0
    %6930 = vmatprep.subr.mxu0 0.0
    %6931 = vmatpush2.xpose.msra.mxu0 0.0
    %6932 = vmatprep.subr.mxu0 0.0
    %6933 = vmatpush2.xpose.msra.mxu0 0.0
    %6934 = vmatprep.subr.mxu0 0.0
    %6935 = vmatpush2.xpose.msra.mxu0 0.0
    %6936 = vmatprep.subr.mxu0 0.0
    %6937 = vmatpush2.xpose.msra.mxu0 0.0
    %6938 = vmatprep.subr.mxu0 0.0
    %6939 = vmatpush2.xpose.msra.mxu0 0.0
    %6940 = vmatprep.mubr.f32.mxu0 0.0
    %6941 = vmatmul.mubr.f32.gmra.mxu0 %v6853
    %v6942 = vpop.f32.mrf.mxu0
    %v6943 = vadd.f32 0.0, %v6942
    %v6944 = vpop.f32.mrf.mxu0
    %6945 = vmatprep.mubr.f32.mxu0 0.0
    %6946 = vmatmul.mubr.f32.gmra.mxu0 %v6856
    %v6947 = vpop.f32.mrf.mxu0
    %v6948 = vadd.f32 0.0, %v6947
    %v6949 = vpop.f32.mrf.mxu0
    %6950 = vmatprep.mubr.f32.mxu0 0.0
    %6951 = vmatmul.mubr.f32.gmra.mxu0 %v6859
    %v6952 = vpop.f32.mrf.mxu0
    %v6953 = vadd.f32 0.0, %v6952
    %v6954 = vpop.f32.mrf.mxu0
    %6955 = vmatprep.mubr.f32.mxu0 0.0
    %6956 = vmatmul.mubr.f32.gmra.mxu0 %v6862
    %v6957 = vpop.f32.mrf.mxu0
    %v6958 = vadd.f32 0.0, %v6957
    %v6959 = vpop.f32.mrf.mxu0
    %6960 = vmatprep.mubr.f32.mxu0 0.0
    %6961 = vmatmul.mubr.f32.gmra.mxu0 %v6865
    %v6962 = vpop.f32.mrf.mxu0
    %v6963 = vadd.f32 0.0, %v6962
    %v6964 = vpop.f32.mrf.mxu0
    %6965 = vmatprep.mubr.f32.mxu0 0.0
    %6966 = vmatmul.mubr.f32.gmra.mxu0 %v6868
    %v6967 = vpop.f32.mrf.mxu0
    %v6968 = vadd.f32 0.0, %v6967
    %v6969 = vpop.f32.mrf.mxu0
    %6970 = vdwg.mxu0
    %v6972 = vsel %vm2977, %v6555, 0
    %v6975 = vsel %vm2977, %v6560, 0
    %v6978 = vsel %vm2977, %v6565, 0
    %v6981 = vsel %vm2977, %v6570, 0
    %v6984 = vsel %vm2977, %v6575, 0
    %v6987 = vsel %vm2977, %v6580, 0
    %v6990 = vsel %vm2977, %v6404, 0
    %v6993 = vsel %vm2977, %v6405, 0
    %6995 = vmatprep.subr.mxu0 0.0
    %6996 = vmatpush1.xpose.msra.mxu0 0.0
    %6997 = vmatprep.subr.mxu0 0.0
    %6998 = vmatpush1.xpose.msra.mxu0 0.0
    %6999 = vmatprep.subr.mxu0 0.0
    %7000 = vmatpush1.xpose.msra.mxu0 0.0
    %7001 = vmatprep.subr.mxu0 0.0
    %7002 = vmatpush1.xpose.msra.mxu0 0.0
    %7003 = vmatprep.subr.mxu0 0.0
    %7004 = vmatpush1.xpose.msra.mxu0 0.0
    %7005 = vmatprep.subr.mxu0 0.0
    %7006 = vmatpush1.xpose.msra.mxu0 0.0
    %7007 = vmatprep.subr.mxu0 0.0
    %7008 = vmatpush1.xpose.msra.mxu0 0.0
    %7009 = vmatprep.subr.mxu0 0.0
    %7010 = vmatpush1.xpose.msra.mxu0 0.0
    %7011 = vmatprep.subr.mxu0 0.0
    %7012 = vmatpush1.xpose.msra.mxu0 0.0
    %7013 = vmatprep.subr.mxu0 0.0
    %7014 = vmatpush1.xpose.msra.mxu0 0.0
    %7015 = vmatprep.subr.mxu0 0.0
    %7016 = vmatpush1.xpose.msra.mxu0 0.0
    %7017 = vmatprep.subr.mxu0 0.0
    %7018 = vmatpush1.xpose.msra.mxu0 0.0
    %7019 = vmatprep.subr.mxu0 0.0
    %7020 = vmatpush1.xpose.msra.mxu0 0.0
    %7021 = vmatprep.subr.mxu0 0.0
    %7022 = vmatpush1.xpose.msra.mxu0 0.0
    %7023 = vmatprep.subr.mxu0 0.0
    %7024 = vmatpush1.xpose.msra.mxu0 %v6993
    %7025 = vmatprep.subr.mxu0 0.0
    %7026 = vmatpush1.xpose.msra.mxu0 %v6990
    %7027 = vmatprep.subr.mxu0 0.0
    %7028 = vmatpush2.xpose.msra.mxu0 0.0
    %7029 = vmatprep.subr.mxu0 0.0
    %7030 = vmatpush2.xpose.msra.mxu0 0.0
    %7031 = vmatprep.subr.mxu0 0.0
    %7032 = vmatpush2.xpose.msra.mxu0 0.0
    %7033 = vmatprep.subr.mxu0 0.0
    %7034 = vmatpush2.xpose.msra.mxu0 0.0
    %7035 = vmatprep.subr.mxu0 0.0
    %7036 = vmatpush2.xpose.msra.mxu0 0.0
    %7037 = vmatprep.subr.mxu0 0.0
    %7038 = vmatpush2.xpose.msra.mxu0 0.0
    %7039 = vmatprep.subr.mxu0 0.0
    %7040 = vmatpush2.xpose.msra.mxu0 0.0
    %7041 = vmatprep.subr.mxu0 0.0
    %7042 = vmatpush2.xpose.msra.mxu0 0.0
    %7043 = vmatprep.subr.mxu0 0.0
    %7044 = vmatpush2.xpose.msra.mxu0 0.0
    %7045 = vmatprep.subr.mxu0 0.0
    %7046 = vmatpush2.xpose.msra.mxu0 0.0
    %7047 = vmatprep.subr.mxu0 0.0
    %7048 = vmatpush2.xpose.msra.mxu0 0.0
    %7049 = vmatprep.subr.mxu0 0.0
    %7050 = vmatpush2.xpose.msra.mxu0 0.0
    %7051 = vmatprep.subr.mxu0 0.0
    %7052 = vmatpush2.xpose.msra.mxu0 0.0
    %7053 = vmatprep.subr.mxu0 0.0
    %7054 = vmatpush2.xpose.msra.mxu0 0.0
    %7055 = vmatprep.subr.mxu0 0.0
    %7056 = vmatpush2.xpose.msra.mxu0 0.0
    %7057 = vmatprep.subr.mxu0 0.0
    %7058 = vmatpush2.xpose.msra.mxu0 0.0
    %7059 = vmatprep.mubr.f32.mxu0 0.0
    %7060 = vmatmul.mubr.f32.gmra.mxu0 %v6972
    %v7061 = vpop.f32.mrf.mxu0
    %v7062 = vadd.f32 0.0, %v7061
    %v7063 = vpop.f32.mrf.mxu0
    %7064 = vmatprep.mubr.f32.mxu0 0.0
    %7065 = vmatmul.mubr.f32.gmra.mxu0 %v6975
    %v7066 = vpop.f32.mrf.mxu0
    %v7067 = vadd.f32 0.0, %v7066
    %v7068 = vpop.f32.mrf.mxu0
    %7069 = vmatprep.mubr.f32.mxu0 0.0
    %7070 = vmatmul.mubr.f32.gmra.mxu0 %v6978
    %v7071 = vpop.f32.mrf.mxu0
    %v7072 = vadd.f32 0.0, %v7071
    %v7073 = vpop.f32.mrf.mxu0
    %7074 = vmatprep.mubr.f32.mxu0 0.0
    %7075 = vmatmul.mubr.f32.gmra.mxu0 %v6981
    %v7076 = vpop.f32.mrf.mxu0
    %v7077 = vadd.f32 0.0, %v7076
    %v7078 = vpop.f32.mrf.mxu0
    %7079 = vmatprep.mubr.f32.mxu0 0.0
    %7080 = vmatmul.mubr.f32.gmra.mxu0 %v6984
    %v7081 = vpop.f32.mrf.mxu0
    %v7082 = vadd.f32 0.0, %v7081
    %v7083 = vpop.f32.mrf.mxu0
    %7084 = vmatprep.mubr.f32.mxu0 0.0
    %7085 = vmatmul.mubr.f32.gmra.mxu0 %v6987
    %v7086 = vpop.f32.mrf.mxu0
    %v7087 = vadd.f32 0.0, %v7086
    %v7088 = vpop.f32.mrf.mxu0
    %7089 = vdwg.mxu0
    %7096 = vrot.lane.b32.xlu0 %v7062, 16
    %v7097 = vpop.permute.xlu0 %7096
    %7098 = vrot.lane.b32.xlu0 %v7067, 16
    %v7099 = vpop.permute.xlu0 %7098
    %7100 = vrot.lane.b32.xlu0 %v7072, 16
    %v7101 = vpop.permute.xlu0 %7100
    %7102 = vrot.lane.b32.xlu0 %v7077, 16
    %v7103 = vpop.permute.xlu0 %7102
    %7104 = vrot.lane.b32.xlu0 %v7082, 16
    %v7105 = vpop.permute.xlu0 %7104
    %7106 = vrot.lane.b32.xlu0 %v7087, 16
    %v7107 = vpop.permute.xlu0 %7106
    %v7114 = vsel %vm6845, %v6943, %v7097
    %v7115 = vsel %vm6845, %v6948, %v7099
    %v7116 = vsel %vm6845, %v6953, %v7101
    %v7117 = vsel %vm6845, %v6958, %v7103
    %v7118 = vsel %vm6845, %v6963, %v7105
    %v7119 = vsel %vm6845, %v6968, %v7107
    %v7132 = vcombine.high %v6846, %v6846
    %v7134 = vunpack.c.l.s4 1983009808
    %v7135 = vunpack.c.0.s8 %v7134
    %v7136 = vlaneseq
    %v7137 = vshrl.u32 %v7136, 7
    %v7138 = vsub.s32 %v7135, %v7137
    %v7139 = vrot.slane %v6846, %v7138
    %v7141 = vunpack.c.l.s4 1983009808
    %v7142 = vunpack.c.0.s8 %v7141
    %v7143 = vlaneseq
    %v7144 = vshrl.u32 %v7143, 7
    %v7145 = vsub.s32 %v7142, %v7144
    %v7146 = vrot.slane %v7132, %v7145
    %v7147 = vcombine.high %v7139, %v7139
    %v7148 = vcombine.high %v7146, %v7146
    %v7149 = vcombine.high %v6847, %v6847
    %v7151 = vunpack.c.l.s4 1983009808
    %v7152 = vunpack.c.0.s8 %v7151
    %v7153 = vlaneseq
    %v7154 = vshrl.u32 %v7153, 7
    %v7155 = vsub.s32 %v7152, %v7154
    %v7156 = vrot.slane %v6847, %v7155
    %v7158 = vunpack.c.l.s4 1983009808
    %v7159 = vunpack.c.0.s8 %v7158
    %v7160 = vlaneseq
    %v7161 = vshrl.u32 %v7160, 7
    %v7162 = vsub.s32 %v7159, %v7161
    %v7163 = vrot.slane %v7149, %v7162
    %v7164 = vcombine.high %v7156, %v7156
    %v7165 = vcombine.high %v6848, %v6848
    %v7167 = vunpack.c.l.s4 1983009808
    %v7168 = vunpack.c.0.s8 %v7167
    %v7169 = vlaneseq
    %v7170 = vshrl.u32 %v7169, 7
    %v7171 = vsub.s32 %v7168, %v7170
    %v7172 = vrot.slane %v6848, %v7171
    %v7174 = vunpack.c.l.s4 1983009808
    %v7175 = vunpack.c.0.s8 %v7174
    %v7176 = vlaneseq
    %v7177 = vshrl.u32 %v7176, 7
    %v7178 = vsub.s32 %v7175, %v7177
    %v7179 = vrot.slane %v7165, %v7178
    %v7180 = vcombine.high %v7172, %v7172
    %v7181 = vcombine.high %v7179, %v7179
    %v7182 = vcombine.high %v6849, %v6849
    %v7184 = vunpack.c.l.s4 1983009808
    %v7185 = vunpack.c.0.s8 %v7184
    %v7186 = vlaneseq
    %v7187 = vshrl.u32 %v7186, 7
    %v7188 = vsub.s32 %v7185, %v7187
    %v7189 = vrot.slane %v6849, %v7188
    %v7191 = vunpack.c.l.s4 1983009808
    %v7192 = vunpack.c.0.s8 %v7191
    %v7193 = vlaneseq
    %v7194 = vshrl.u32 %v7193, 7
    %v7195 = vsub.s32 %v7192, %v7194
    %v7196 = vrot.slane %v7182, %v7195
    %v7197 = vcombine.high %v7189, %v7189
    %v7198 = vcombine.high %v6850, %v6850
    %v7200 = vunpack.c.l.s4 1983009808
    %v7201 = vunpack.c.0.s8 %v7200
    %v7202 = vlaneseq
    %v7203 = vshrl.u32 %v7202, 7
    %v7204 = vsub.s32 %v7201, %v7203
    %v7205 = vrot.slane %v6850, %v7204
    %v7207 = vunpack.c.l.s4 1983009808
    %v7208 = vunpack.c.0.s8 %v7207
    %v7209 = vlaneseq
    %v7210 = vshrl.u32 %v7209, 7
    %v7211 = vsub.s32 %v7208, %v7210
    %v7212 = vrot.slane %v7198, %v7211
    %v7213 = vcombine.high %v7205, %v7205
    %v7214 = vcombine.high %v7212, %v7212
    %v7215 = vcombine.high %v6851, %v6851
    %v7217 = vunpack.c.l.s4 1983009808
    %v7218 = vunpack.c.0.s8 %v7217
    %v7219 = vlaneseq
    %v7220 = vshrl.u32 %v7219, 7
    %v7221 = vsub.s32 %v7218, %v7220
    %v7222 = vrot.slane %v6851, %v7221
    %v7224 = vunpack.c.l.s4 1983009808
    %v7225 = vunpack.c.0.s8 %v7224
    %v7226 = vlaneseq
    %v7227 = vshrl.u32 %v7226, 7
    %v7228 = vsub.s32 %v7225, %v7227
    %v7229 = vrot.slane %v7215, %v7228
    %v7230 = vcombine.high %v7222, %v7222
    %v7231 = vcombine.high %v7114, %v7114
    %v7233 = vunpack.c.l.s4 1983009808
    %v7234 = vunpack.c.0.s8 %v7233
    %v7235 = vlaneseq
    %v7236 = vshrl.u32 %v7235, 7
    %v7237 = vsub.s32 %v7234, %v7236
    %v7238 = vrot.slane %v7114, %v7237
    %v7240 = vunpack.c.l.s4 1983009808
    %v7241 = vunpack.c.0.s8 %v7240
    %v7242 = vlaneseq
    %v7243 = vshrl.u32 %v7242, 7
    %v7244 = vsub.s32 %v7241, %v7243
    %v7245 = vrot.slane %v7231, %v7244
    %v7246 = vcombine.high %v7238, %v7238
    %v7247 = vcombine.high %v7245, %v7245
    %v7248 = vcombine.high %v7115, %v7115
    %v7250 = vunpack.c.l.s4 1983009808
    %v7251 = vunpack.c.0.s8 %v7250
    %v7252 = vlaneseq
    %v7253 = vshrl.u32 %v7252, 7
    %v7254 = vsub.s32 %v7251, %v7253
    %v7255 = vrot.slane %v7115, %v7254
    %v7257 = vunpack.c.l.s4 1983009808
    %v7258 = vunpack.c.0.s8 %v7257
    %v7259 = vlaneseq
    %v7260 = vshrl.u32 %v7259, 7
    %v7261 = vsub.s32 %v7258, %v7260
    %v7262 = vrot.slane %v7248, %v7261
    %v7263 = vcombine.high %v7255, %v7255
    %v7264 = vcombine.high %v7116, %v7116
    %v7266 = vunpack.c.l.s4 1983009808
    %v7267 = vunpack.c.0.s8 %v7266
    %v7268 = vlaneseq
    %v7269 = vshrl.u32 %v7268, 7
    %v7270 = vsub.s32 %v7267, %v7269
    %v7271 = vrot.slane %v7116, %v7270
    %v7273 = vunpack.c.l.s4 1983009808
    %v7274 = vunpack.c.0.s8 %v7273
    %v7275 = vlaneseq
    %v7276 = vshrl.u32 %v7275, 7
    %v7277 = vsub.s32 %v7274, %v7276
    %v7278 = vrot.slane %v7264, %v7277
    %v7279 = vcombine.high %v7271, %v7271
    %v7280 = vcombine.high %v7278, %v7278
    %v7281 = vcombine.high %v7117, %v7117
    %v7283 = vunpack.c.l.s4 1983009808
    %v7284 = vunpack.c.0.s8 %v7283
    %v7285 = vlaneseq
    %v7286 = vshrl.u32 %v7285, 7
    %v7287 = vsub.s32 %v7284, %v7286
    %v7288 = vrot.slane %v7117, %v7287
    %v7290 = vunpack.c.l.s4 1983009808
    %v7291 = vunpack.c.0.s8 %v7290
    %v7292 = vlaneseq
    %v7293 = vshrl.u32 %v7292, 7
    %v7294 = vsub.s32 %v7291, %v7293
    %v7295 = vrot.slane %v7281, %v7294
    %v7296 = vcombine.high %v7288, %v7288
    %v7297 = vcombine.high %v7118, %v7118
    %v7299 = vunpack.c.l.s4 1983009808
    %v7300 = vunpack.c.0.s8 %v7299
    %v7301 = vlaneseq
    %v7302 = vshrl.u32 %v7301, 7
    %v7303 = vsub.s32 %v7300, %v7302
    %v7304 = vrot.slane %v7118, %v7303
    %v7306 = vunpack.c.l.s4 1983009808
    %v7307 = vunpack.c.0.s8 %v7306
    %v7308 = vlaneseq
    %v7309 = vshrl.u32 %v7308, 7
    %v7310 = vsub.s32 %v7307, %v7309
    %v7311 = vrot.slane %v7297, %v7310
    %v7312 = vcombine.high %v7304, %v7304
    %v7313 = vcombine.high %v7311, %v7311
    %v7314 = vcombine.high %v7119, %v7119
    %v7316 = vunpack.c.l.s4 1983009808
    %v7317 = vunpack.c.0.s8 %v7316
    %v7318 = vlaneseq
    %v7319 = vshrl.u32 %v7318, 7
    %v7320 = vsub.s32 %v7317, %v7319
    %v7321 = vrot.slane %v7119, %v7320
    %v7323 = vunpack.c.l.s4 1983009808
    %v7324 = vunpack.c.0.s8 %v7323
    %v7325 = vlaneseq
    %v7326 = vshrl.u32 %v7325, 7
    %v7327 = vsub.s32 %v7324, %v7326
    %v7328 = vrot.slane %v7314, %v7327
    %v7329 = vcombine.high %v7321, %v7321
    %v7330 = vld [vmem:[%s8] sm:$0xff]
    %v7331 = vld [vmem:[%s8 + $0x8] sm:$0xff]
    %v7332 = vld [vmem:[%s8 + $0x10] sm:$0xff]
    %v7333 = vld [vmem:[%s8 + $0x18] sm:$0xff]
    %v7334 = vcombine.high %v7163, %v7163
    %v7335 = vcombine.high %v7196, %v7196
    %v7336 = vcombine.high %v7229, %v7229
    %v7337 = vcombine.high %v7262, %v7262
    %v7338 = vcombine.high %v7295, %v7295
    %v7339 = vcombine.high %v7328, %v7328
    %vm7340 = vcmask 1040384
    %vm7341 = vcmask 1042434
    %vm7342 = vmor %vm7340, %vm7341
    %vm7343 = vcmask 1044484
    %vm7344 = vmor %vm7342, %vm7343
    %vm7345 = vcmask 1046534
    %vm7346 = vmor %vm7344, %vm7345
    %v7347 = vrot.slane %v7139, 7
    %v7348 = vrot.slane %v7347, 2
    %v7349 = vrot.slane %v7147, 7
    %v7350 = vsel %vm7346, %v7348, %v7349
    %v7351 = vrot.slane %v7349, 2
    %v7352 = vrot.slane %v7146, 7
    %v7353 = vsel %vm7346, %v7351, %v7352
    %v7354 = vrot.slane %v7352, 2
    %v7355 = vrot.slane %v7148, 7
    %v7356 = vsel %vm7346, %v7354, %v7355
    %v7357 = vrot.slane %v7355, 2
    %v7358 = vrot.slane %v7156, 7
    %v7359 = vsel %vm7346, %v7357, %v7358
    %v7360 = vrot.slane %v7358, 2
    %v7361 = vrot.slane %v7164, 7
    %v7362 = vsel %vm7346, %v7360, %v7361
    %v7363 = vrot.slane %v7361, 2
    %v7364 = vrot.slane %v7163, 7
    %v7365 = vsel %vm7346, %v7363, %v7364
    %v7366 = vrot.slane %v7364, 2
    %v7367 = vrot.slane %v7334, 7
    %v7368 = vsel %vm7346, %v7366, %v7367
    %v7369 = vrot.slane %v7172, 7
    %v7370 = vrot.slane %v7369, 2
    %v7371 = vrot.slane %v7180, 7
    %v7372 = vsel %vm7346, %v7370, %v7371
    %v7373 = vrot.slane %v7371, 2
    %v7374 = vrot.slane %v7179, 7
    %v7375 = vsel %vm7346, %v7373, %v7374
    %v7376 = vrot.slane %v7374, 2
    %v7377 = vrot.slane %v7181, 7
    %v7378 = vsel %vm7346, %v7376, %v7377
    %v7379 = vrot.slane %v7377, 2
    %v7380 = vrot.slane %v7189, 7
    %v7381 = vsel %vm7346, %v7379, %v7380
    %v7382 = vrot.slane %v7380, 2
    %v7383 = vrot.slane %v7197, 7
    %v7384 = vsel %vm7346, %v7382, %v7383
    %v7385 = vrot.slane %v7383, 2
    %v7386 = vrot.slane %v7196, 7
    %v7387 = vsel %vm7346, %v7385, %v7386
    %v7388 = vrot.slane %v7386, 2
    %v7389 = vrot.slane %v7335, 7
    %v7390 = vsel %vm7346, %v7388, %v7389
    %v7391 = vrot.slane %v7205, 7
    %v7392 = vrot.slane %v7391, 2
    %v7393 = vrot.slane %v7213, 7
    %v7394 = vsel %vm7346, %v7392, %v7393
    %v7395 = vrot.slane %v7393, 2
    %v7396 = vrot.slane %v7212, 7
    %v7397 = vsel %vm7346, %v7395, %v7396
    %v7398 = vrot.slane %v7396, 2
    %v7399 = vrot.slane %v7214, 7
    %v7400 = vsel %vm7346, %v7398, %v7399
    %v7401 = vrot.slane %v7399, 2
    %v7402 = vrot.slane %v7222, 7
    %v7403 = vsel %vm7346, %v7401, %v7402
    %v7404 = vrot.slane %v7402, 2
    %v7405 = vrot.slane %v7230, 7
    %v7406 = vsel %vm7346, %v7404, %v7405
    %v7407 = vrot.slane %v7405, 2
    %v7408 = vrot.slane %v7229, 7
    %v7409 = vsel %vm7346, %v7407, %v7408
    %v7410 = vrot.slane %v7408, 2
    %v7411 = vrot.slane %v7336, 7
    %v7412 = vsel %vm7346, %v7410, %v7411
    %v7413 = vrot.slane %v7238, 7
    %v7414 = vrot.slane %v7413, 2
    %v7415 = vrot.slane %v7246, 7
    %v7416 = vsel %vm7346, %v7414, %v7415
    %v7417 = vrot.slane %v7415, 2
    %v7418 = vrot.slane %v7245, 7
    %v7419 = vsel %vm7346, %v7417, %v7418
    %v7420 = vrot.slane %v7418, 2
    %v7421 = vrot.slane %v7247, 7
    %v7422 = vsel %vm7346, %v7420, %v7421
    %v7423 = vrot.slane %v7421, 2
    %v7424 = vrot.slane %v7255, 7
    %v7425 = vsel %vm7346, %v7423, %v7424
    %v7426 = vrot.slane %v7424, 2
    %v7427 = vrot.slane %v7263, 7
    %v7428 = vsel %vm7346, %v7426, %v7427
    %v7429 = vrot.slane %v7427, 2
    %v7430 = vrot.slane %v7262, 7
    %v7431 = vsel %vm7346, %v7429, %v7430
    %v7432 = vrot.slane %v7430, 2
    %v7433 = vrot.slane %v7337, 7
    %v7434 = vsel %vm7346, %v7432, %v7433
    %v7435 = vrot.slane %v7271, 7
    %v7436 = vrot.slane %v7435, 2
    %v7437 = vrot.slane %v7279, 7
    %v7438 = vsel %vm7346, %v7436, %v7437
    %v7439 = vrot.slane %v7437, 2
    %v7440 = vrot.slane %v7278, 7
    %v7441 = vsel %vm7346, %v7439, %v7440
    %v7442 = vrot.slane %v7440, 2
    %v7443 = vrot.slane %v7280, 7
    %v7444 = vsel %vm7346, %v7442, %v7443
    %v7445 = vrot.slane %v7443, 2
    %v7446 = vrot.slane %v7288, 7
    %v7447 = vsel %vm7346, %v7445, %v7446
    %v7448 = vrot.slane %v7446, 2
    %v7449 = vrot.slane %v7296, 7
    %v7450 = vsel %vm7346, %v7448, %v7449
    %v7451 = vrot.slane %v7449, 2
    %v7452 = vrot.slane %v7295, 7
    %v7453 = vsel %vm7346, %v7451, %v7452
    %v7454 = vrot.slane %v7452, 2
    %v7455 = vrot.slane %v7338, 7
    %v7456 = vsel %vm7346, %v7454, %v7455
    %v7457 = vrot.slane %v7304, 7
    %v7458 = vrot.slane %v7457, 2
    %v7459 = vrot.slane %v7312, 7
    %v7460 = vsel %vm7346, %v7458, %v7459
    %v7461 = vrot.slane %v7459, 2
    %v7462 = vrot.slane %v7311, 7
    %v7463 = vsel %vm7346, %v7461, %v7462
    %v7464 = vrot.slane %v7462, 2
    %v7465 = vrot.slane %v7313, 7
    %v7466 = vsel %vm7346, %v7464, %v7465
    %v7467 = vrot.slane %v7465, 2
    %v7468 = vrot.slane %v7321, 7
    %v7469 = vsel %vm7346, %v7467, %v7468
    %v7470 = vrot.slane %v7468, 2
    %v7471 = vrot.slane %v7329, 7
    %v7472 = vsel %vm7346, %v7470, %v7471
    %v7473 = vrot.slane %v7471, 2
    %v7474 = vrot.slane %v7328, 7
    %v7475 = vsel %vm7346, %v7473, %v7474
    %v7476 = vrot.slane %v7474, 2
    %v7477 = vrot.slane %v7339, 7
    %v7478 = vsel %vm7346, %v7476, %v7477
    %s7479 = scalar_lea.vmem %s8, 32
    %v7480 = vld [vmem:[%s7479] sm:$0xff]
    %v7481 = vld [vmem:[%s7479 + $0x8] sm:$0xff]
    %v7482 = vld [vmem:[%s7479 + $0x10] sm:$0xff]
    %v7483 = vld [vmem:[%s7479 + $0x18] sm:$0xff]
    %v7484 = vcombine.low %v7350, %v7353
    %v7485 = vcombine.low %v7356, %v7359
    %v7487 = vunpack.c.l.s4 1983009808
    %v7488 = vunpack.c.0.s8 %v7487
    %v7489 = vlaneseq
    %v7490 = vshrl.u32 %v7489, 7
    %v7491 = vsub.s32 %v7488, %v7490
    %v7492 = vrot.slane %v7484, %v7491
    %v7494 = vunpack.c.l.s4 1983009808
    %v7495 = vunpack.c.0.s8 %v7494
    %v7496 = vlaneseq
    %v7497 = vshrl.u32 %v7496, 7
    %v7498 = vsub.s32 %v7495, %v7497
    %v7499 = vrot.slane %v7485, %v7498
    %v7500 = vcombine.low %v7492, %v7499
    %v7501 = vcombine.low %v7362, %v7365
    %v7502 = vcombine.low %v7368, %v7372
    %v7504 = vunpack.c.l.s4 1983009808
    %v7505 = vunpack.c.0.s8 %v7504
    %v7506 = vlaneseq
    %v7507 = vshrl.u32 %v7506, 7
    %v7508 = vsub.s32 %v7505, %v7507
    %v7509 = vrot.slane %v7501, %v7508
    %v7511 = vunpack.c.l.s4 1983009808
    %v7512 = vunpack.c.0.s8 %v7511
    %v7513 = vlaneseq
    %v7514 = vshrl.u32 %v7513, 7
    %v7515 = vsub.s32 %v7512, %v7514
    %v7516 = vrot.slane %v7502, %v7515
    %v7517 = vcombine.low %v7509, %v7516
    %v7518 = vcombine.low %v7375, %v7378
    %v7519 = vcombine.low %v7381, %v7384
    %v7521 = vunpack.c.l.s4 1983009808
    %v7522 = vunpack.c.0.s8 %v7521
    %v7523 = vlaneseq
    %v7524 = vshrl.u32 %v7523, 7
    %v7525 = vsub.s32 %v7522, %v7524
    %v7526 = vrot.slane %v7518, %v7525
    %v7528 = vunpack.c.l.s4 1983009808
    %v7529 = vunpack.c.0.s8 %v7528
    %v7530 = vlaneseq
    %v7531 = vshrl.u32 %v7530, 7
    %v7532 = vsub.s32 %v7529, %v7531
    %v7533 = vrot.slane %v7519, %v7532
    %v7534 = vcombine.low %v7526, %v7533
    %v7535 = vcombine.low %v7387, %v7390
    %v7536 = vcombine.low %v7394, %v7397
    %v7538 = vunpack.c.l.s4 1983009808
    %v7539 = vunpack.c.0.s8 %v7538
    %v7540 = vlaneseq
    %v7541 = vshrl.u32 %v7540, 7
    %v7542 = vsub.s32 %v7539, %v7541
    %v7543 = vrot.slane %v7535, %v7542
    %v7545 = vunpack.c.l.s4 1983009808
    %v7546 = vunpack.c.0.s8 %v7545
    %v7547 = vlaneseq
    %v7548 = vshrl.u32 %v7547, 7
    %v7549 = vsub.s32 %v7546, %v7548
    %v7550 = vrot.slane %v7536, %v7549
    %v7551 = vcombine.low %v7543, %v7550
    %v7552 = vcombine.low %v7400, %v7403
    %v7553 = vcombine.low %v7406, %v7409
    %v7555 = vunpack.c.l.s4 1983009808
    %v7556 = vunpack.c.0.s8 %v7555
    %v7557 = vlaneseq
    %v7558 = vshrl.u32 %v7557, 7
    %v7559 = vsub.s32 %v7556, %v7558
    %v7560 = vrot.slane %v7552, %v7559
    %v7562 = vunpack.c.l.s4 1983009808
    %v7563 = vunpack.c.0.s8 %v7562
    %v7564 = vlaneseq
    %v7565 = vshrl.u32 %v7564, 7
    %v7566 = vsub.s32 %v7563, %v7565
    %v7567 = vrot.slane %v7553, %v7566
    %v7568 = vcombine.low %v7560, %v7567
    %v7569 = vcombine.low %v7412, %v7416
    %v7570 = vcombine.low %v7419, %v7422
    %v7572 = vunpack.c.l.s4 1983009808
    %v7573 = vunpack.c.0.s8 %v7572
    %v7574 = vlaneseq
    %v7575 = vshrl.u32 %v7574, 7
    %v7576 = vsub.s32 %v7573, %v7575
    %v7577 = vrot.slane %v7569, %v7576
    %v7579 = vunpack.c.l.s4 1983009808
    %v7580 = vunpack.c.0.s8 %v7579
    %v7581 = vlaneseq
    %v7582 = vshrl.u32 %v7581, 7
    %v7583 = vsub.s32 %v7580, %v7582
    %v7584 = vrot.slane %v7570, %v7583
    %v7585 = vcombine.low %v7577, %v7584
    %v7586 = vcombine.low %v7425, %v7428
    %v7587 = vcombine.low %v7431, %v7434
    %v7589 = vunpack.c.l.s4 1983009808
    %v7590 = vunpack.c.0.s8 %v7589
    %v7591 = vlaneseq
    %v7592 = vshrl.u32 %v7591, 7
    %v7593 = vsub.s32 %v7590, %v7592
    %v7594 = vrot.slane %v7586, %v7593
    %v7596 = vunpack.c.l.s4 1983009808
    %v7597 = vunpack.c.0.s8 %v7596
    %v7598 = vlaneseq
    %v7599 = vshrl.u32 %v7598, 7
    %v7600 = vsub.s32 %v7597, %v7599
    %v7601 = vrot.slane %v7587, %v7600
    %v7602 = vcombine.low %v7594, %v7601
    %v7603 = vcombine.low %v7438, %v7441
    %v7604 = vcombine.low %v7444, %v7447
    %v7606 = vunpack.c.l.s4 1983009808
    %v7607 = vunpack.c.0.s8 %v7606
    %v7608 = vlaneseq
    %v7609 = vshrl.u32 %v7608, 7
    %v7610 = vsub.s32 %v7607, %v7609
    %v7611 = vrot.slane %v7603, %v7610
    %v7613 = vunpack.c.l.s4 1983009808
    %v7614 = vunpack.c.0.s8 %v7613
    %v7615 = vlaneseq
    %v7616 = vshrl.u32 %v7615, 7
    %v7617 = vsub.s32 %v7614, %v7616
    %v7618 = vrot.slane %v7604, %v7617
    %v7619 = vcombine.low %v7611, %v7618
    %v7620 = vcombine.low %v7450, %v7453
    %v7621 = vcombine.low %v7456, %v7460
    %v7623 = vunpack.c.l.s4 1983009808
    %v7624 = vunpack.c.0.s8 %v7623
    %v7625 = vlaneseq
    %v7626 = vshrl.u32 %v7625, 7
    %v7627 = vsub.s32 %v7624, %v7626
    %v7628 = vrot.slane %v7620, %v7627
    %v7630 = vunpack.c.l.s4 1983009808
    %v7631 = vunpack.c.0.s8 %v7630
    %v7632 = vlaneseq
    %v7633 = vshrl.u32 %v7632, 7
    %v7634 = vsub.s32 %v7631, %v7633
    %v7635 = vrot.slane %v7621, %v7634
    %v7636 = vcombine.low %v7628, %v7635
    %v7637 = vcombine.low %v7463, %v7466
    %v7638 = vcombine.low %v7469, %v7472
    %v7640 = vunpack.c.l.s4 1983009808
    %v7641 = vunpack.c.0.s8 %v7640
    %v7642 = vlaneseq
    %v7643 = vshrl.u32 %v7642, 7
    %v7644 = vsub.s32 %v7641, %v7643
    %v7645 = vrot.slane %v7637, %v7644
    %v7647 = vunpack.c.l.s4 1983009808
    %v7648 = vunpack.c.0.s8 %v7647
    %v7649 = vlaneseq
    %v7650 = vshrl.u32 %v7649, 7
    %v7651 = vsub.s32 %v7648, %v7650
    %v7652 = vrot.slane %v7638, %v7651
    %v7653 = vcombine.low %v7645, %v7652
    %v7654 = vcombine.low %v7475, %v7478
    %v7656 = vunpack.c.l.s4 1983009808
    %v7657 = vunpack.c.0.s8 %v7656
    %v7658 = vlaneseq
    %v7659 = vshrl.u32 %v7658, 7
    %v7660 = vsub.s32 %v7657, %v7659
    %v7661 = vrot.slane %v7654, %v7660
    %v7662 = vsel %vm2977, %v7500, 0
    %v7664 = vsel %vm2977, %v7517, 0
    %v7666 = vsel %vm2977, %v7534, 0
    %v7668 = vsel %vm2977, %v7551, 0
    %v7670 = vsel %vm2977, %v7568, 0
    %v7672 = vsel %vm2977, %v7585, 0
    %v7674 = vsel %vm2977, %v7602, 0
    %v7676 = vsel %vm2977, %v7619, 0
    %v7678 = vsel %vm2977, %v7636, 0
    %v7680 = vsel %vm2977, %v7653, 0
    %v7682 = vsel %vm2977, %v7661, 0
    %7684 = vmatprep.subr.mxu0 0.0
    %7685 = vmatpush1.msra.mxu0 0.0
    %7686 = vmatprep.subr.mxu0 0.0
    %7687 = vmatpush1.msra.mxu0 0.0
    %7688 = vmatprep.subr.mxu0 0.0
    %7689 = vmatpush1.msra.mxu0 0.0
    %7690 = vmatprep.subr.mxu0 0.0
    %7691 = vmatpush1.msra.mxu0 0.0
    %7692 = vmatprep.subr.mxu0 0.0
    %7693 = vmatpush1.msra.mxu0 0.0
    %7694 = vmatprep.subr.mxu0 0.0
    %7695 = vmatpush1.msra.mxu0 0.0
    %7696 = vmatprep.subr.mxu0 0.0
    %7697 = vmatpush1.msra.mxu0 0.0
    %7698 = vmatprep.subr.mxu0 0.0
    %7699 = vmatpush1.msra.mxu0 0.0
    %7700 = vmatprep.subr.mxu0 0.0
    %7701 = vmatpush1.msra.mxu0 0.0
    %7702 = vmatprep.subr.mxu0 0.0
    %7703 = vmatpush1.msra.mxu0 0.0
    %7704 = vmatprep.subr.mxu0 0.0
    %7705 = vmatpush1.msra.mxu0 0.0
    %7706 = vmatprep.subr.mxu0 0.0
    %7707 = vmatpush1.msra.mxu0 0.0
    %7708 = vmatprep.subr.mxu0 0.0
    %7709 = vmatpush1.msra.mxu0 %v7483
    %7710 = vmatprep.subr.mxu0 0.0
    %7711 = vmatpush1.msra.mxu0 %v7482
    %7712 = vmatprep.subr.mxu0 0.0
    %7713 = vmatpush1.msra.mxu0 %v7481
    %7714 = vmatprep.subr.mxu0 0.0
    %7715 = vmatpush1.msra.mxu0 %v7480
    %7716 = vmatprep.subr.mxu0 0.0
    %7717 = vmatpush2.msra.mxu0 0.0
    %7718 = vmatprep.subr.mxu0 0.0
    %7719 = vmatpush2.msra.mxu0 0.0
    %7720 = vmatprep.subr.mxu0 0.0
    %7721 = vmatpush2.msra.mxu0 0.0
    %7722 = vmatprep.subr.mxu0 0.0
    %7723 = vmatpush2.msra.mxu0 0.0
    %7724 = vmatprep.subr.mxu0 0.0
    %7725 = vmatpush2.msra.mxu0 0.0
    %7726 = vmatprep.subr.mxu0 0.0
    %7727 = vmatpush2.msra.mxu0 0.0
    %7728 = vmatprep.subr.mxu0 0.0
    %7729 = vmatpush2.msra.mxu0 0.0
    %7730 = vmatprep.subr.mxu0 0.0
    %7731 = vmatpush2.msra.mxu0 0.0
    %7732 = vmatprep.subr.mxu0 0.0
    %7733 = vmatpush2.msra.mxu0 0.0
    %7734 = vmatprep.subr.mxu0 0.0
    %7735 = vmatpush2.msra.mxu0 0.0
    %7736 = vmatprep.subr.mxu0 0.0
    %7737 = vmatpush2.msra.mxu0 0.0
    %7738 = vmatprep.subr.mxu0 0.0
    %7739 = vmatpush2.msra.mxu0 0.0
    %7740 = vmatprep.subr.mxu0 0.0
    %7741 = vmatpush2.msra.mxu0 0.0
    %7742 = vmatprep.subr.mxu0 0.0
    %7743 = vmatpush2.msra.mxu0 0.0
    %7744 = vmatprep.subr.mxu0 0.0
    %7745 = vmatpush2.msra.mxu0 0.0
    %7746 = vmatprep.subr.mxu0 0.0
    %7747 = vmatpush2.msra.mxu0 0.0
    %7748 = vmatprep.mubr.f32.mxu0 0.0
    %7749 = vmatmul.mubr.f32.gmra.mxu0 %v7662
    %v7750 = vpop.f32.mrf.mxu0
    %v7751 = vadd.f32 0.0, %v7750
    %v7752 = vpop.f32.mrf.mxu0
    %7753 = vmatprep.mubr.f32.mxu0 0.0
    %7754 = vmatmul.mubr.f32.gmra.mxu0 %v7664
    %v7755 = vpop.f32.mrf.mxu0
    %v7756 = vadd.f32 0.0, %v7755
    %v7757 = vpop.f32.mrf.mxu0
    %7758 = vmatprep.mubr.f32.mxu0 0.0
    %7759 = vmatmul.mubr.f32.gmra.mxu0 %v7666
    %v7760 = vpop.f32.mrf.mxu0
    %v7761 = vadd.f32 0.0, %v7760
    %v7762 = vpop.f32.mrf.mxu0
    %7763 = vmatprep.mubr.f32.mxu0 0.0
    %7764 = vmatmul.mubr.f32.gmra.mxu0 %v7668
    %v7765 = vpop.f32.mrf.mxu0
    %v7766 = vadd.f32 0.0, %v7765
    %v7767 = vpop.f32.mrf.mxu0
    %7768 = vmatprep.mubr.f32.mxu0 0.0
    %7769 = vmatmul.mubr.f32.gmra.mxu0 %v7670
    %v7770 = vpop.f32.mrf.mxu0
    %v7771 = vadd.f32 0.0, %v7770
    %v7772 = vpop.f32.mrf.mxu0
    %7773 = vmatprep.mubr.f32.mxu0 0.0
    %7774 = vmatmul.mubr.f32.gmra.mxu0 %v7672
    %v7775 = vpop.f32.mrf.mxu0
    %v7776 = vadd.f32 0.0, %v7775
    %v7777 = vpop.f32.mrf.mxu0
    %7778 = vmatprep.mubr.f32.mxu0 0.0
    %7779 = vmatmul.mubr.f32.gmra.mxu0 %v7674
    %v7780 = vpop.f32.mrf.mxu0
    %v7781 = vadd.f32 0.0, %v7780
    %v7782 = vpop.f32.mrf.mxu0
    %7783 = vmatprep.mubr.f32.mxu0 0.0
    %7784 = vmatmul.mubr.f32.gmra.mxu0 %v7676
    %v7785 = vpop.f32.mrf.mxu0
    %v7786 = vadd.f32 0.0, %v7785
    %v7787 = vpop.f32.mrf.mxu0
    %7788 = vmatprep.mubr.f32.mxu0 0.0
    %7789 = vmatmul.mubr.f32.gmra.mxu0 %v7678
    %v7790 = vpop.f32.mrf.mxu0
    %v7791 = vadd.f32 0.0, %v7790
    %v7792 = vpop.f32.mrf.mxu0
    %7793 = vmatprep.mubr.f32.mxu0 0.0
    %7794 = vmatmul.mubr.f32.gmra.mxu0 %v7680
    %v7795 = vpop.f32.mrf.mxu0
    %v7796 = vadd.f32 0.0, %v7795
    %v7797 = vpop.f32.mrf.mxu0
    %7798 = vmatprep.mubr.f32.mxu0 0.0
    %7799 = vmatmul.mubr.f32.gmra.mxu0 %v7682
    %v7800 = vpop.f32.mrf.mxu0
    %v7801 = vadd.f32 0.0, %v7800
    %v7802 = vpop.f32.mrf.mxu0
    %7803 = vdwg.mxu0
    %v7804 = vcombine.low %v7139, %v7147
    %v7805 = vcombine.low %v7146, %v7148
    %v7807 = vunpack.c.l.s4 1983009808
    %v7808 = vunpack.c.0.s8 %v7807
    %v7809 = vlaneseq
    %v7810 = vshrl.u32 %v7809, 7
    %v7811 = vsub.s32 %v7808, %v7810
    %v7812 = vrot.slane %v7804, %v7811
    %v7814 = vunpack.c.l.s4 1983009808
    %v7815 = vunpack.c.0.s8 %v7814
    %v7816 = vlaneseq
    %v7817 = vshrl.u32 %v7816, 7
    %v7818 = vsub.s32 %v7815, %v7817
    %v7819 = vrot.slane %v7805, %v7818
    %v7820 = vcombine.low %v7812, %v7819
    %v7821 = vcombine.low %v7156, %v7164
    %v7822 = vcombine.low %v7163, %v7172
    %v7824 = vunpack.c.l.s4 1983009808
    %v7825 = vunpack.c.0.s8 %v7824
    %v7826 = vlaneseq
    %v7827 = vshrl.u32 %v7826, 7
    %v7828 = vsub.s32 %v7825, %v7827
    %v7829 = vrot.slane %v7821, %v7828
    %v7831 = vunpack.c.l.s4 1983009808
    %v7832 = vunpack.c.0.s8 %v7831
    %v7833 = vlaneseq
    %v7834 = vshrl.u32 %v7833, 7
    %v7835 = vsub.s32 %v7832, %v7834
    %v7836 = vrot.slane %v7822, %v7835
    %v7837 = vcombine.low %v7829, %v7836
    %v7838 = vcombine.low %v7180, %v7179
    %v7839 = vcombine.low %v7181, %v7189
    %v7841 = vunpack.c.l.s4 1983009808
    %v7842 = vunpack.c.0.s8 %v7841
    %v7843 = vlaneseq
    %v7844 = vshrl.u32 %v7843, 7
    %v7845 = vsub.s32 %v7842, %v7844
    %v7846 = vrot.slane %v7838, %v7845
    %v7848 = vunpack.c.l.s4 1983009808
    %v7849 = vunpack.c.0.s8 %v7848
    %v7850 = vlaneseq
    %v7851 = vshrl.u32 %v7850, 7
    %v7852 = vsub.s32 %v7849, %v7851
    %v7853 = vrot.slane %v7839, %v7852
    %v7854 = vcombine.low %v7846, %v7853
    %v7855 = vcombine.low %v7197, %v7196
    %v7856 = vcombine.low %v7205, %v7213
    %v7858 = vunpack.c.l.s4 1983009808
    %v7859 = vunpack.c.0.s8 %v7858
    %v7860 = vlaneseq
    %v7861 = vshrl.u32 %v7860, 7
    %v7862 = vsub.s32 %v7859, %v7861
    %v7863 = vrot.slane %v7855, %v7862
    %v7865 = vunpack.c.l.s4 1983009808
    %v7866 = vunpack.c.0.s8 %v7865
    %v7867 = vlaneseq
    %v7868 = vshrl.u32 %v7867, 7
    %v7869 = vsub.s32 %v7866, %v7868
    %v7870 = vrot.slane %v7856, %v7869
    %v7871 = vcombine.low %v7863, %v7870
    %v7872 = vcombine.low %v7212, %v7214
    %v7873 = vcombine.low %v7222, %v7230
    %v7875 = vunpack.c.l.s4 1983009808
    %v7876 = vunpack.c.0.s8 %v7875
    %v7877 = vlaneseq
    %v7878 = vshrl.u32 %v7877, 7
    %v7879 = vsub.s32 %v7876, %v7878
    %v7880 = vrot.slane %v7872, %v7879
    %v7882 = vunpack.c.l.s4 1983009808
    %v7883 = vunpack.c.0.s8 %v7882
    %v7884 = vlaneseq
    %v7885 = vshrl.u32 %v7884, 7
    %v7886 = vsub.s32 %v7883, %v7885
    %v7887 = vrot.slane %v7873, %v7886
    %v7888 = vcombine.low %v7880, %v7887
    %v7889 = vcombine.low %v7229, %v7238
    %v7890 = vcombine.low %v7246, %v7245
    %v7892 = vunpack.c.l.s4 1983009808
    %v7893 = vunpack.c.0.s8 %v7892
    %v7894 = vlaneseq
    %v7895 = vshrl.u32 %v7894, 7
    %v7896 = vsub.s32 %v7893, %v7895
    %v7897 = vrot.slane %v7889, %v7896
    %v7899 = vunpack.c.l.s4 1983009808
    %v7900 = vunpack.c.0.s8 %v7899
    %v7901 = vlaneseq
    %v7902 = vshrl.u32 %v7901, 7
    %v7903 = vsub.s32 %v7900, %v7902
    %v7904 = vrot.slane %v7890, %v7903
    %v7905 = vcombine.low %v7897, %v7904
    %v7906 = vcombine.low %v7247, %v7255
    %v7907 = vcombine.low %v7263, %v7262
    %v7909 = vunpack.c.l.s4 1983009808
    %v7910 = vunpack.c.0.s8 %v7909
    %v7911 = vlaneseq
    %v7912 = vshrl.u32 %v7911, 7
    %v7913 = vsub.s32 %v7910, %v7912
    %v7914 = vrot.slane %v7906, %v7913
    %v7916 = vunpack.c.l.s4 1983009808
    %v7917 = vunpack.c.0.s8 %v7916
    %v7918 = vlaneseq
    %v7919 = vshrl.u32 %v7918, 7
    %v7920 = vsub.s32 %v7917, %v7919
    %v7921 = vrot.slane %v7907, %v7920
    %v7922 = vcombine.low %v7914, %v7921
    %v7923 = vcombine.low %v7271, %v7279
    %v7924 = vcombine.low %v7278, %v7280
    %v7926 = vunpack.c.l.s4 1983009808
    %v7927 = vunpack.c.0.s8 %v7926
    %v7928 = vlaneseq
    %v7929 = vshrl.u32 %v7928, 7
    %v7930 = vsub.s32 %v7927, %v7929
    %v7931 = vrot.slane %v7923, %v7930
    %v7933 = vunpack.c.l.s4 1983009808
    %v7934 = vunpack.c.0.s8 %v7933
    %v7935 = vlaneseq
    %v7936 = vshrl.u32 %v7935, 7
    %v7937 = vsub.s32 %v7934, %v7936
    %v7938 = vrot.slane %v7924, %v7937
    %v7939 = vcombine.low %v7931, %v7938
    %v7940 = vcombine.low %v7288, %v7296
    %v7941 = vcombine.low %v7295, %v7304
    %v7943 = vunpack.c.l.s4 1983009808
    %v7944 = vunpack.c.0.s8 %v7943
    %v7945 = vlaneseq
    %v7946 = vshrl.u32 %v7945, 7
    %v7947 = vsub.s32 %v7944, %v7946
    %v7948 = vrot.slane %v7940, %v7947
    %v7950 = vunpack.c.l.s4 1983009808
    %v7951 = vunpack.c.0.s8 %v7950
    %v7952 = vlaneseq
    %v7953 = vshrl.u32 %v7952, 7
    %v7954 = vsub.s32 %v7951, %v7953
    %v7955 = vrot.slane %v7941, %v7954
    %v7956 = vcombine.low %v7948, %v7955
    %v7957 = vcombine.low %v7312, %v7311
    %v7958 = vcombine.low %v7313, %v7321
    %v7960 = vunpack.c.l.s4 1983009808
    %v7961 = vunpack.c.0.s8 %v7960
    %v7962 = vlaneseq
    %v7963 = vshrl.u32 %v7962, 7
    %v7964 = vsub.s32 %v7961, %v7963
    %v7965 = vrot.slane %v7957, %v7964
    %v7967 = vunpack.c.l.s4 1983009808
    %v7968 = vunpack.c.0.s8 %v7967
    %v7969 = vlaneseq
    %v7970 = vshrl.u32 %v7969, 7
    %v7971 = vsub.s32 %v7968, %v7970
    %v7972 = vrot.slane %v7958, %v7971
    %v7973 = vcombine.low %v7965, %v7972
    %v7974 = vcombine.low %v7329, %v7328
    %v7976 = vunpack.c.l.s4 1983009808
    %v7977 = vunpack.c.0.s8 %v7976
    %v7978 = vlaneseq
    %v7979 = vshrl.u32 %v7978, 7
    %v7980 = vsub.s32 %v7977, %v7979
    %v7981 = vrot.slane %v7974, %v7980
    %v7982 = vsel %vm2977, %v7820, 0
    %v7984 = vsel %vm2977, %v7837, 0
    %v7986 = vsel %vm2977, %v7854, 0
    %v7988 = vsel %vm2977, %v7871, 0
    %v7990 = vsel %vm2977, %v7888, 0
    %v7992 = vsel %vm2977, %v7905, 0
    %v7994 = vsel %vm2977, %v7922, 0
    %v7996 = vsel %vm2977, %v7939, 0
    %v7998 = vsel %vm2977, %v7956, 0
    %v8000 = vsel %vm2977, %v7973, 0
    %v8002 = vsel %vm2977, %v7981, 0
    %8004 = vmatprep.subr.mxu0 0.0
    %8005 = vmatpush1.msra.mxu0 0.0
    %8006 = vmatprep.subr.mxu0 0.0
    %8007 = vmatpush1.msra.mxu0 0.0
    %8008 = vmatprep.subr.mxu0 0.0
    %8009 = vmatpush1.msra.mxu0 0.0
    %8010 = vmatprep.subr.mxu0 0.0
    %8011 = vmatpush1.msra.mxu0 0.0
    %8012 = vmatprep.subr.mxu0 0.0
    %8013 = vmatpush1.msra.mxu0 0.0
    %8014 = vmatprep.subr.mxu0 0.0
    %8015 = vmatpush1.msra.mxu0 0.0
    %8016 = vmatprep.subr.mxu0 0.0
    %8017 = vmatpush1.msra.mxu0 0.0
    %8018 = vmatprep.subr.mxu0 0.0
    %8019 = vmatpush1.msra.mxu0 0.0
    %8020 = vmatprep.subr.mxu0 0.0
    %8021 = vmatpush1.msra.mxu0 0.0
    %8022 = vmatprep.subr.mxu0 0.0
    %8023 = vmatpush1.msra.mxu0 0.0
    %8024 = vmatprep.subr.mxu0 0.0
    %8025 = vmatpush1.msra.mxu0 0.0
    %8026 = vmatprep.subr.mxu0 0.0
    %8027 = vmatpush1.msra.mxu0 0.0
    %8028 = vmatprep.subr.mxu0 0.0
    %8029 = vmatpush1.msra.mxu0 %v7333
    %8030 = vmatprep.subr.mxu0 0.0
    %8031 = vmatpush1.msra.mxu0 %v7332
    %8032 = vmatprep.subr.mxu0 0.0
    %8033 = vmatpush1.msra.mxu0 %v7331
    %8034 = vmatprep.subr.mxu0 0.0
    %8035 = vmatpush1.msra.mxu0 %v7330
    %8036 = vmatprep.subr.mxu0 0.0
    %8037 = vmatpush2.msra.mxu0 0.0
    %8038 = vmatprep.subr.mxu0 0.0
    %8039 = vmatpush2.msra.mxu0 0.0
    %8040 = vmatprep.subr.mxu0 0.0
    %8041 = vmatpush2.msra.mxu0 0.0
    %8042 = vmatprep.subr.mxu0 0.0
    %8043 = vmatpush2.msra.mxu0 0.0
    %8044 = vmatprep.subr.mxu0 0.0
    %8045 = vmatpush2.msra.mxu0 0.0
    %8046 = vmatprep.subr.mxu0 0.0
    %8047 = vmatpush2.msra.mxu0 0.0
    %8048 = vmatprep.subr.mxu0 0.0
    %8049 = vmatpush2.msra.mxu0 0.0
    %8050 = vmatprep.subr.mxu0 0.0
    %8051 = vmatpush2.msra.mxu0 0.0
    %8052 = vmatprep.subr.mxu0 0.0
    %8053 = vmatpush2.msra.mxu0 0.0
    %8054 = vmatprep.subr.mxu0 0.0
    %8055 = vmatpush2.msra.mxu0 0.0
    %8056 = vmatprep.subr.mxu0 0.0
    %8057 = vmatpush2.msra.mxu0 0.0
    %8058 = vmatprep.subr.mxu0 0.0
    %8059 = vmatpush2.msra.mxu0 0.0
    %8060 = vmatprep.subr.mxu0 0.0
    %8061 = vmatpush2.msra.mxu0 0.0
    %8062 = vmatprep.subr.mxu0 0.0
    %8063 = vmatpush2.msra.mxu0 0.0
    %8064 = vmatprep.subr.mxu0 0.0
    %8065 = vmatpush2.msra.mxu0 0.0
    %8066 = vmatprep.subr.mxu0 0.0
    %8067 = vmatpush2.msra.mxu0 0.0
    %8068 = vmatprep.mubr.f32.mxu0 0.0
    %8069 = vmatmul.mubr.f32.gmra.mxu0 %v7982
    %v8070 = vpop.f32.mrf.mxu0
    %v8071 = vadd.f32 %v7751, %v8070
    %v8072 = vpop.f32.mrf.mxu0
    %8073 = vmatprep.mubr.f32.mxu0 0.0
    %8074 = vmatmul.mubr.f32.gmra.mxu0 %v7984
    %v8075 = vpop.f32.mrf.mxu0
    %v8076 = vadd.f32 %v7756, %v8075
    %v8077 = vpop.f32.mrf.mxu0
    %8078 = vmatprep.mubr.f32.mxu0 0.0
    %8079 = vmatmul.mubr.f32.gmra.mxu0 %v7986
    %v8080 = vpop.f32.mrf.mxu0
    %v8081 = vadd.f32 %v7761, %v8080
    %v8082 = vpop.f32.mrf.mxu0
    %8083 = vmatprep.mubr.f32.mxu0 0.0
    %8084 = vmatmul.mubr.f32.gmra.mxu0 %v7988
    %v8085 = vpop.f32.mrf.mxu0
    %v8086 = vadd.f32 %v7766, %v8085
    %v8087 = vpop.f32.mrf.mxu0
    %8088 = vmatprep.mubr.f32.mxu0 0.0
    %8089 = vmatmul.mubr.f32.gmra.mxu0 %v7990
    %v8090 = vpop.f32.mrf.mxu0
    %v8091 = vadd.f32 %v7771, %v8090
    %v8092 = vpop.f32.mrf.mxu0
    %8093 = vmatprep.mubr.f32.mxu0 0.0
    %8094 = vmatmul.mubr.f32.gmra.mxu0 %v7992
    %v8095 = vpop.f32.mrf.mxu0
    %v8096 = vadd.f32 %v7776, %v8095
    %v8097 = vpop.f32.mrf.mxu0
    %8098 = vmatprep.mubr.f32.mxu0 0.0
    %8099 = vmatmul.mubr.f32.gmra.mxu0 %v7994
    %v8100 = vpop.f32.mrf.mxu0
    %v8101 = vadd.f32 %v7781, %v8100
    %v8102 = vpop.f32.mrf.mxu0
    %8103 = vmatprep.mubr.f32.mxu0 0.0
    %8104 = vmatmul.mubr.f32.gmra.mxu0 %v7996
    %v8105 = vpop.f32.mrf.mxu0
    %v8106 = vadd.f32 %v7786, %v8105
    %v8107 = vpop.f32.mrf.mxu0
    %8108 = vmatprep.mubr.f32.mxu0 0.0
    %8109 = vmatmul.mubr.f32.gmra.mxu0 %v7998
    %v8110 = vpop.f32.mrf.mxu0
    %v8111 = vadd.f32 %v7791, %v8110
    %v8112 = vpop.f32.mrf.mxu0
    %8113 = vmatprep.mubr.f32.mxu0 0.0
    %8114 = vmatmul.mubr.f32.gmra.mxu0 %v8000
    %v8115 = vpop.f32.mrf.mxu0
    %v8116 = vadd.f32 %v7796, %v8115
    %v8117 = vpop.f32.mrf.mxu0
    %8118 = vmatprep.mubr.f32.mxu0 0.0
    %8119 = vmatmul.mubr.f32.gmra.mxu0 %v8002
    %v8120 = vpop.f32.mrf.mxu0
    %v8121 = vadd.f32 %v7801, %v8120
    %v8122 = vpop.f32.mrf.mxu0
    %8123 = vdwg.mxu0
    %s8124 = scalar_lea.vmem %s8, 64
    %v8125 = vld [vmem:[%s8124] sm:$0xff]
    %v8126 = vld [vmem:[%s8124 + $0x8] sm:$0xff]
    %v8127 = vld [vmem:[%s8124 + $0x10] sm:$0xff]
    %v8128 = vld [vmem:[%s8124 + $0x18] sm:$0xff]
    %v8129 = vcombine.low %v7147, %v7146
    %v8130 = vcombine.low %v7148, %v7156
    %v8132 = vunpack.c.l.s4 1983009808
    %v8133 = vunpack.c.0.s8 %v8132
    %v8134 = vlaneseq
    %v8135 = vshrl.u32 %v8134, 7
    %v8136 = vsub.s32 %v8133, %v8135
    %v8137 = vrot.slane %v8129, %v8136
    %v8139 = vunpack.c.l.s4 1983009808
    %v8140 = vunpack.c.0.s8 %v8139
    %v8141 = vlaneseq
    %v8142 = vshrl.u32 %v8141, 7
    %v8143 = vsub.s32 %v8140, %v8142
    %v8144 = vrot.slane %v8130, %v8143
    %v8145 = vcombine.low %v8137, %v8144
    %v8146 = vcombine.low %v7164, %v7163
    %v8147 = vcombine.low %v7334, %v7180
    %v8149 = vunpack.c.l.s4 1983009808
    %v8150 = vunpack.c.0.s8 %v8149
    %v8151 = vlaneseq
    %v8152 = vshrl.u32 %v8151, 7
    %v8153 = vsub.s32 %v8150, %v8152
    %v8154 = vrot.slane %v8146, %v8153
    %v8156 = vunpack.c.l.s4 1983009808
    %v8157 = vunpack.c.0.s8 %v8156
    %v8158 = vlaneseq
    %v8159 = vshrl.u32 %v8158, 7
    %v8160 = vsub.s32 %v8157, %v8159
    %v8161 = vrot.slane %v8147, %v8160
    %v8162 = vcombine.low %v8154, %v8161
    %v8163 = vcombine.low %v7179, %v7181
    %v8164 = vcombine.low %v7189, %v7197
    %v8166 = vunpack.c.l.s4 1983009808
    %v8167 = vunpack.c.0.s8 %v8166
    %v8168 = vlaneseq
    %v8169 = vshrl.u32 %v8168, 7
    %v8170 = vsub.s32 %v8167, %v8169
    %v8171 = vrot.slane %v8163, %v8170
    %v8173 = vunpack.c.l.s4 1983009808
    %v8174 = vunpack.c.0.s8 %v8173
    %v8175 = vlaneseq
    %v8176 = vshrl.u32 %v8175, 7
    %v8177 = vsub.s32 %v8174, %v8176
    %v8178 = vrot.slane %v8164, %v8177
    %v8179 = vcombine.low %v8171, %v8178
    %v8180 = vcombine.low %v7196, %v7335
    %v8181 = vcombine.low %v7213, %v7212
    %v8183 = vunpack.c.l.s4 1983009808
    %v8184 = vunpack.c.0.s8 %v8183
    %v8185 = vlaneseq
    %v8186 = vshrl.u32 %v8185, 7
    %v8187 = vsub.s32 %v8184, %v8186
    %v8188 = vrot.slane %v8180, %v8187
    %v8190 = vunpack.c.l.s4 1983009808
    %v8191 = vunpack.c.0.s8 %v8190
    %v8192 = vlaneseq
    %v8193 = vshrl.u32 %v8192, 7
    %v8194 = vsub.s32 %v8191, %v8193
    %v8195 = vrot.slane %v8181, %v8194
    %v8196 = vcombine.low %v8188, %v8195
    %v8197 = vcombine.low %v7214, %v7222
    %v8198 = vcombine.low %v7230, %v7229
    %v8200 = vunpack.c.l.s4 1983009808
    %v8201 = vunpack.c.0.s8 %v8200
    %v8202 = vlaneseq
    %v8203 = vshrl.u32 %v8202, 7
    %v8204 = vsub.s32 %v8201, %v8203
    %v8205 = vrot.slane %v8197, %v8204
    %v8207 = vunpack.c.l.s4 1983009808
    %v8208 = vunpack.c.0.s8 %v8207
    %v8209 = vlaneseq
    %v8210 = vshrl.u32 %v8209, 7
    %v8211 = vsub.s32 %v8208, %v8210
    %v8212 = vrot.slane %v8198, %v8211
    %v8213 = vcombine.low %v8205, %v8212
    %v8214 = vcombine.low %v7336, %v7246
    %v8215 = vcombine.low %v7245, %v7247
    %v8217 = vunpack.c.l.s4 1983009808
    %v8218 = vunpack.c.0.s8 %v8217
    %v8219 = vlaneseq
    %v8220 = vshrl.u32 %v8219, 7
    %v8221 = vsub.s32 %v8218, %v8220
    %v8222 = vrot.slane %v8214, %v8221
    %v8224 = vunpack.c.l.s4 1983009808
    %v8225 = vunpack.c.0.s8 %v8224
    %v8226 = vlaneseq
    %v8227 = vshrl.u32 %v8226, 7
    %v8228 = vsub.s32 %v8225, %v8227
    %v8229 = vrot.slane %v8215, %v8228
    %v8230 = vcombine.low %v8222, %v8229
    %v8231 = vcombine.low %v7255, %v7263
    %v8232 = vcombine.low %v7262, %v7337
    %v8234 = vunpack.c.l.s4 1983009808
    %v8235 = vunpack.c.0.s8 %v8234
    %v8236 = vlaneseq
    %v8237 = vshrl.u32 %v8236, 7
    %v8238 = vsub.s32 %v8235, %v8237
    %v8239 = vrot.slane %v8231, %v8238
    %v8241 = vunpack.c.l.s4 1983009808
    %v8242 = vunpack.c.0.s8 %v8241
    %v8243 = vlaneseq
    %v8244 = vshrl.u32 %v8243, 7
    %v8245 = vsub.s32 %v8242, %v8244
    %v8246 = vrot.slane %v8232, %v8245
    %v8247 = vcombine.low %v8239, %v8246
    %v8248 = vcombine.low %v7279, %v7278
    %v8249 = vcombine.low %v7280, %v7288
    %v8251 = vunpack.c.l.s4 1983009808
    %v8252 = vunpack.c.0.s8 %v8251
    %v8253 = vlaneseq
    %v8254 = vshrl.u32 %v8253, 7
    %v8255 = vsub.s32 %v8252, %v8254
    %v8256 = vrot.slane %v8248, %v8255
    %v8258 = vunpack.c.l.s4 1983009808
    %v8259 = vunpack.c.0.s8 %v8258
    %v8260 = vlaneseq
    %v8261 = vshrl.u32 %v8260, 7
    %v8262 = vsub.s32 %v8259, %v8261
    %v8263 = vrot.slane %v8249, %v8262
    %v8264 = vcombine.low %v8256, %v8263
    %v8265 = vcombine.low %v7296, %v7295
    %v8266 = vcombine.low %v7338, %v7312
    %v8268 = vunpack.c.l.s4 1983009808
    %v8269 = vunpack.c.0.s8 %v8268
    %v8270 = vlaneseq
    %v8271 = vshrl.u32 %v8270, 7
    %v8272 = vsub.s32 %v8269, %v8271
    %v8273 = vrot.slane %v8265, %v8272
    %v8275 = vunpack.c.l.s4 1983009808
    %v8276 = vunpack.c.0.s8 %v8275
    %v8277 = vlaneseq
    %v8278 = vshrl.u32 %v8277, 7
    %v8279 = vsub.s32 %v8276, %v8278
    %v8280 = vrot.slane %v8266, %v8279
    %v8281 = vcombine.low %v8273, %v8280
    %v8282 = vcombine.low %v7311, %v7313
    %v8283 = vcombine.low %v7321, %v7329
    %v8285 = vunpack.c.l.s4 1983009808
    %v8286 = vunpack.c.0.s8 %v8285
    %v8287 = vlaneseq
    %v8288 = vshrl.u32 %v8287, 7
    %v8289 = vsub.s32 %v8286, %v8288
    %v8290 = vrot.slane %v8282, %v8289
    %v8292 = vunpack.c.l.s4 1983009808
    %v8293 = vunpack.c.0.s8 %v8292
    %v8294 = vlaneseq
    %v8295 = vshrl.u32 %v8294, 7
    %v8296 = vsub.s32 %v8293, %v8295
    %v8297 = vrot.slane %v8283, %v8296
    %v8298 = vcombine.low %v8290, %v8297
    %v8299 = vcombine.low %v7328, %v7339
    %v8301 = vunpack.c.l.s4 1983009808
    %v8302 = vunpack.c.0.s8 %v8301
    %v8303 = vlaneseq
    %v8304 = vshrl.u32 %v8303, 7
    %v8305 = vsub.s32 %v8302, %v8304
    %v8306 = vrot.slane %v8299, %v8305
    %v8307 = vsel %vm2977, %v8145, 0
    %v8309 = vsel %vm2977, %v8162, 0
    %v8311 = vsel %vm2977, %v8179, 0
    %v8313 = vsel %vm2977, %v8196, 0
    %v8315 = vsel %vm2977, %v8213, 0
    %v8317 = vsel %vm2977, %v8230, 0
    %v8319 = vsel %vm2977, %v8247, 0
    %v8321 = vsel %vm2977, %v8264, 0
    %v8323 = vsel %vm2977, %v8281, 0
    %v8325 = vsel %vm2977, %v8298, 0
    %v8327 = vsel %vm2977, %v8306, 0
    %8329 = vmatprep.subr.mxu0 0.0
    %8330 = vmatpush1.msra.mxu0 0.0
    %8331 = vmatprep.subr.mxu0 0.0
    %8332 = vmatpush1.msra.mxu0 0.0
    %8333 = vmatprep.subr.mxu0 0.0
    %8334 = vmatpush1.msra.mxu0 0.0
    %8335 = vmatprep.subr.mxu0 0.0
    %8336 = vmatpush1.msra.mxu0 0.0
    %8337 = vmatprep.subr.mxu0 0.0
    %8338 = vmatpush1.msra.mxu0 0.0
    %8339 = vmatprep.subr.mxu0 0.0
    %8340 = vmatpush1.msra.mxu0 0.0
    %8341 = vmatprep.subr.mxu0 0.0
    %8342 = vmatpush1.msra.mxu0 0.0
    %8343 = vmatprep.subr.mxu0 0.0
    %8344 = vmatpush1.msra.mxu0 0.0
    %8345 = vmatprep.subr.mxu0 0.0
    %8346 = vmatpush1.msra.mxu0 0.0
    %8347 = vmatprep.subr.mxu0 0.0
    %8348 = vmatpush1.msra.mxu0 0.0
    %8349 = vmatprep.subr.mxu0 0.0
    %8350 = vmatpush1.msra.mxu0 0.0
    %8351 = vmatprep.subr.mxu0 0.0
    %8352 = vmatpush1.msra.mxu0 0.0
    %8353 = vmatprep.subr.mxu0 0.0
    %8354 = vmatpush1.msra.mxu0 %v8128
    %8355 = vmatprep.subr.mxu0 0.0
    %8356 = vmatpush1.msra.mxu0 %v8127
    %8357 = vmatprep.subr.mxu0 0.0
    %8358 = vmatpush1.msra.mxu0 %v8126
    %8359 = vmatprep.subr.mxu0 0.0
    %8360 = vmatpush1.msra.mxu0 %v8125
    %8361 = vmatprep.subr.mxu0 0.0
    %8362 = vmatpush2.msra.mxu0 0.0
    %8363 = vmatprep.subr.mxu0 0.0
    %8364 = vmatpush2.msra.mxu0 0.0
    %8365 = vmatprep.subr.mxu0 0.0
    %8366 = vmatpush2.msra.mxu0 0.0
    %8367 = vmatprep.subr.mxu0 0.0
    %8368 = vmatpush2.msra.mxu0 0.0
    %8369 = vmatprep.subr.mxu0 0.0
    %8370 = vmatpush2.msra.mxu0 0.0
    %8371 = vmatprep.subr.mxu0 0.0
    %8372 = vmatpush2.msra.mxu0 0.0
    %8373 = vmatprep.subr.mxu0 0.0
    %8374 = vmatpush2.msra.mxu0 0.0
    %8375 = vmatprep.subr.mxu0 0.0
    %8376 = vmatpush2.msra.mxu0 0.0
    %8377 = vmatprep.subr.mxu0 0.0
    %8378 = vmatpush2.msra.mxu0 0.0
    %8379 = vmatprep.subr.mxu0 0.0
    %8380 = vmatpush2.msra.mxu0 0.0
    %8381 = vmatprep.subr.mxu0 0.0
    %8382 = vmatpush2.msra.mxu0 0.0
    %8383 = vmatprep.subr.mxu0 0.0
    %8384 = vmatpush2.msra.mxu0 0.0
    %8385 = vmatprep.subr.mxu0 0.0
    %8386 = vmatpush2.msra.mxu0 0.0
    %8387 = vmatprep.subr.mxu0 0.0
    %8388 = vmatpush2.msra.mxu0 0.0
    %8389 = vmatprep.subr.mxu0 0.0
    %8390 = vmatpush2.msra.mxu0 0.0
    %8391 = vmatprep.subr.mxu0 0.0
    %8392 = vmatpush2.msra.mxu0 0.0
    %8393 = vmatprep.mubr.f32.mxu0 0.0
    %8394 = vmatmul.mubr.f32.gmra.mxu0 %v8307
    %v8395 = vpop.f32.mrf.mxu0
    %v8396 = vadd.f32 0.0, %v8395
    %v8397 = vpop.f32.mrf.mxu0
    %8398 = vmatprep.mubr.f32.mxu0 0.0
    %8399 = vmatmul.mubr.f32.gmra.mxu0 %v8309
    %v8400 = vpop.f32.mrf.mxu0
    %v8401 = vadd.f32 0.0, %v8400
    %v8402 = vpop.f32.mrf.mxu0
    %8403 = vmatprep.mubr.f32.mxu0 0.0
    %8404 = vmatmul.mubr.f32.gmra.mxu0 %v8311
    %v8405 = vpop.f32.mrf.mxu0
    %v8406 = vadd.f32 0.0, %v8405
    %v8407 = vpop.f32.mrf.mxu0
    %8408 = vmatprep.mubr.f32.mxu0 0.0
    %8409 = vmatmul.mubr.f32.gmra.mxu0 %v8313
    %v8410 = vpop.f32.mrf.mxu0
    %v8411 = vadd.f32 0.0, %v8410
    %v8412 = vpop.f32.mrf.mxu0
    %8413 = vmatprep.mubr.f32.mxu0 0.0
    %8414 = vmatmul.mubr.f32.gmra.mxu0 %v8315
    %v8415 = vpop.f32.mrf.mxu0
    %v8416 = vadd.f32 0.0, %v8415
    %v8417 = vpop.f32.mrf.mxu0
    %8418 = vmatprep.mubr.f32.mxu0 0.0
    %8419 = vmatmul.mubr.f32.gmra.mxu0 %v8317
    %v8420 = vpop.f32.mrf.mxu0
    %v8421 = vadd.f32 0.0, %v8420
    %v8422 = vpop.f32.mrf.mxu0
    %8423 = vmatprep.mubr.f32.mxu0 0.0
    %8424 = vmatmul.mubr.f32.gmra.mxu0 %v8319
    %v8425 = vpop.f32.mrf.mxu0
    %v8426 = vadd.f32 0.0, %v8425
    %v8427 = vpop.f32.mrf.mxu0
    %8428 = vmatprep.mubr.f32.mxu0 0.0
    %8429 = vmatmul.mubr.f32.gmra.mxu0 %v8321
    %v8430 = vpop.f32.mrf.mxu0
    %v8431 = vadd.f32 0.0, %v8430
    %v8432 = vpop.f32.mrf.mxu0
    %8433 = vmatprep.mubr.f32.mxu0 0.0
    %8434 = vmatmul.mubr.f32.gmra.mxu0 %v8323
    %v8435 = vpop.f32.mrf.mxu0
    %v8436 = vadd.f32 0.0, %v8435
    %v8437 = vpop.f32.mrf.mxu0
    %8438 = vmatprep.mubr.f32.mxu0 0.0
    %8439 = vmatmul.mubr.f32.gmra.mxu0 %v8325
    %v8440 = vpop.f32.mrf.mxu0
    %v8441 = vadd.f32 0.0, %v8440
    %v8442 = vpop.f32.mrf.mxu0
    %8443 = vmatprep.mubr.f32.mxu0 0.0
    %8444 = vmatmul.mubr.f32.gmra.mxu0 %v8327
    %v8445 = vpop.f32.mrf.mxu0
    %v8446 = vadd.f32 0.0, %v8445
    %v8447 = vpop.f32.mrf.mxu0
    %8448 = vdwg.mxu0
    %v8449 = vadd.f32 %v8071, %v8396
    %v8450 = vadd.f32 %v8076, %v8401
    %v8451 = vadd.f32 %v8081, %v8406
    %v8452 = vadd.f32 %v8086, %v8411
    %v8453 = vadd.f32 %v8091, %v8416
    %v8454 = vadd.f32 %v8096, %v8421
    %v8455 = vadd.f32 %v8101, %v8426
    %v8456 = vadd.f32 %v8106, %v8431
    %v8457 = vadd.f32 %v8111, %v8436
    %v8458 = vadd.f32 %v8116, %v8441
    %v8459 = vadd.f32 %v8121, %v8446
    %v8460 = vld [vmem:[%s9] sm:$0x1]
    %v8462 = vlaneseq
    %v8463 = vshrl.u32 %v8462, 7
    %v8464 = vsub.s32 0, %v8463
    %v8465 = vrot.slane %v8460, %v8464
    %v8467 = vadd.f32 %v8449, %v8465
    %v8468 = vadd.f32 %v8450, %v8465
    %v8469 = vadd.f32 %v8451, %v8465
    %v8470 = vadd.f32 %v8452, %v8465
    %v8471 = vadd.f32 %v8453, %v8465
    %v8472 = vadd.f32 %v8454, %v8465
    %v8473 = vadd.f32 %v8455, %v8465
    %v8474 = vadd.f32 %v8456, %v8465
    %v8475 = vadd.f32 %v8457, %v8465
    %v8476 = vadd.f32 %v8458, %v8465
    %v8477 = vadd.f32 %v8459, %v8465
    %v8478 = vmax.f32 %v8467, 0.0
    %v8479 = vmax.f32 %v8468, 0.0
    %v8480 = vmax.f32 %v8469, 0.0
    %v8481 = vmax.f32 %v8470, 0.0
    %v8482 = vmax.f32 %v8471, 0.0
    %v8483 = vmax.f32 %v8472, 0.0
    %v8484 = vmax.f32 %v8473, 0.0
    %v8485 = vmax.f32 %v8474, 0.0
    %v8486 = vmax.f32 %v8475, 0.0
    %v8487 = vmax.f32 %v8476, 0.0
    %v8488 = vmax.f32 %v8477, 0.0
    %v8500 = vcombine.high %v8478, %v8478
    %v8502 = vunpack.c.l.s4 1983009808
    %v8503 = vunpack.c.0.s8 %v8502
    %v8504 = vlaneseq
    %v8505 = vshrl.u32 %v8504, 7
    %v8506 = vsub.s32 %v8503, %v8505
    %v8507 = vrot.slane %v8478, %v8506
    %v8509 = vunpack.c.l.s4 1983009808
    %v8510 = vunpack.c.0.s8 %v8509
    %v8511 = vlaneseq
    %v8512 = vshrl.u32 %v8511, 7
    %v8513 = vsub.s32 %v8510, %v8512
    %v8514 = vrot.slane %v8500, %v8513
    %v8515 = vcombine.high %v8507, %v8507
    %v8516 = vcombine.high %v8514, %v8514
    %v8517 = vcombine.high %v8479, %v8479
    %v8519 = vunpack.c.l.s4 1983009808
    %v8520 = vunpack.c.0.s8 %v8519
    %v8521 = vlaneseq
    %v8522 = vshrl.u32 %v8521, 7
    %v8523 = vsub.s32 %v8520, %v8522
    %v8524 = vrot.slane %v8479, %v8523
    %v8526 = vunpack.c.l.s4 1983009808
    %v8527 = vunpack.c.0.s8 %v8526
    %v8528 = vlaneseq
    %v8529 = vshrl.u32 %v8528, 7
    %v8530 = vsub.s32 %v8527, %v8529
    %v8531 = vrot.slane %v8517, %v8530
    %v8532 = vcombine.high %v8524, %v8524
    %v8533 = vcombine.high %v8531, %v8531
    %v8534 = vcombine.high %v8480, %v8480
    %v8536 = vunpack.c.l.s4 1983009808
    %v8537 = vunpack.c.0.s8 %v8536
    %v8538 = vlaneseq
    %v8539 = vshrl.u32 %v8538, 7
    %v8540 = vsub.s32 %v8537, %v8539
    %v8541 = vrot.slane %v8480, %v8540
    %v8543 = vunpack.c.l.s4 1983009808
    %v8544 = vunpack.c.0.s8 %v8543
    %v8545 = vlaneseq
    %v8546 = vshrl.u32 %v8545, 7
    %v8547 = vsub.s32 %v8544, %v8546
    %v8548 = vrot.slane %v8534, %v8547
    %v8549 = vcombine.high %v8541, %v8541
    %v8550 = vcombine.high %v8548, %v8548
    %v8551 = vcombine.high %v8481, %v8481
    %v8553 = vunpack.c.l.s4 1983009808
    %v8554 = vunpack.c.0.s8 %v8553
    %v8555 = vlaneseq
    %v8556 = vshrl.u32 %v8555, 7
    %v8557 = vsub.s32 %v8554, %v8556
    %v8558 = vrot.slane %v8481, %v8557
    %v8560 = vunpack.c.l.s4 1983009808
    %v8561 = vunpack.c.0.s8 %v8560
    %v8562 = vlaneseq
    %v8563 = vshrl.u32 %v8562, 7
    %v8564 = vsub.s32 %v8561, %v8563
    %v8565 = vrot.slane %v8551, %v8564
    %v8566 = vcombine.high %v8565, %v8565
    %v8567 = vcombine.high %v8482, %v8482
    %v8569 = vunpack.c.l.s4 1983009808
    %v8570 = vunpack.c.0.s8 %v8569
    %v8571 = vlaneseq
    %v8572 = vshrl.u32 %v8571, 7
    %v8573 = vsub.s32 %v8570, %v8572
    %v8574 = vrot.slane %v8482, %v8573
    %v8576 = vunpack.c.l.s4 1983009808
    %v8577 = vunpack.c.0.s8 %v8576
    %v8578 = vlaneseq
    %v8579 = vshrl.u32 %v8578, 7
    %v8580 = vsub.s32 %v8577, %v8579
    %v8581 = vrot.slane %v8567, %v8580
    %v8582 = vcombine.high %v8574, %v8574
    %v8583 = vcombine.high %v8581, %v8581
    %v8584 = vcombine.high %v8483, %v8483
    %v8586 = vunpack.c.l.s4 1983009808
    %v8587 = vunpack.c.0.s8 %v8586
    %v8588 = vlaneseq
    %v8589 = vshrl.u32 %v8588, 7
    %v8590 = vsub.s32 %v8587, %v8589
    %v8591 = vrot.slane %v8483, %v8590
    %v8593 = vunpack.c.l.s4 1983009808
    %v8594 = vunpack.c.0.s8 %v8593
    %v8595 = vlaneseq
    %v8596 = vshrl.u32 %v8595, 7
    %v8597 = vsub.s32 %v8594, %v8596
    %v8598 = vrot.slane %v8584, %v8597
    %v8599 = vcombine.high %v8591, %v8591
    %v8600 = vcombine.high %v8598, %v8598
    %v8601 = vcombine.high %v8484, %v8484
    %v8603 = vunpack.c.l.s4 1983009808
    %v8604 = vunpack.c.0.s8 %v8603
    %v8605 = vlaneseq
    %v8606 = vshrl.u32 %v8605, 7
    %v8607 = vsub.s32 %v8604, %v8606
    %v8608 = vrot.slane %v8484, %v8607
    %v8610 = vunpack.c.l.s4 1983009808
    %v8611 = vunpack.c.0.s8 %v8610
    %v8612 = vlaneseq
    %v8613 = vshrl.u32 %v8612, 7
    %v8614 = vsub.s32 %v8611, %v8613
    %v8615 = vrot.slane %v8601, %v8614
    %v8616 = vcombine.high %v8608, %v8608
    %v8617 = vcombine.high %v8485, %v8485
    %v8619 = vunpack.c.l.s4 1983009808
    %v8620 = vunpack.c.0.s8 %v8619
    %v8621 = vlaneseq
    %v8622 = vshrl.u32 %v8621, 7
    %v8623 = vsub.s32 %v8620, %v8622
    %v8624 = vrot.slane %v8485, %v8623
    %v8626 = vunpack.c.l.s4 1983009808
    %v8627 = vunpack.c.0.s8 %v8626
    %v8628 = vlaneseq
    %v8629 = vshrl.u32 %v8628, 7
    %v8630 = vsub.s32 %v8627, %v8629
    %v8631 = vrot.slane %v8617, %v8630
    %v8632 = vcombine.high %v8624, %v8624
    %v8633 = vcombine.high %v8631, %v8631
    %v8634 = vcombine.high %v8486, %v8486
    %v8636 = vunpack.c.l.s4 1983009808
    %v8637 = vunpack.c.0.s8 %v8636
    %v8638 = vlaneseq
    %v8639 = vshrl.u32 %v8638, 7
    %v8640 = vsub.s32 %v8637, %v8639
    %v8641 = vrot.slane %v8486, %v8640
    %v8643 = vunpack.c.l.s4 1983009808
    %v8644 = vunpack.c.0.s8 %v8643
    %v8645 = vlaneseq
    %v8646 = vshrl.u32 %v8645, 7
    %v8647 = vsub.s32 %v8644, %v8646
    %v8648 = vrot.slane %v8634, %v8647
    %v8649 = vcombine.high %v8641, %v8641
    %v8650 = vcombine.high %v8648, %v8648
    %v8651 = vcombine.high %v8487, %v8487
    %v8653 = vunpack.c.l.s4 1983009808
    %v8654 = vunpack.c.0.s8 %v8653
    %v8655 = vlaneseq
    %v8656 = vshrl.u32 %v8655, 7
    %v8657 = vsub.s32 %v8654, %v8656
    %v8658 = vrot.slane %v8487, %v8657
    %v8660 = vunpack.c.l.s4 1983009808
    %v8661 = vunpack.c.0.s8 %v8660
    %v8662 = vlaneseq
    %v8663 = vshrl.u32 %v8662, 7
    %v8664 = vsub.s32 %v8661, %v8663
    %v8665 = vrot.slane %v8651, %v8664
    %v8666 = vcombine.high %v8658, %v8658
    %v8667 = vcombine.high %v8665, %v8665
    %v8669 = vunpack.c.l.s4 1983009808
    %v8670 = vunpack.c.0.s8 %v8669
    %v8671 = vlaneseq
    %v8672 = vshrl.u32 %v8671, 7
    %v8673 = vsub.s32 %v8670, %v8672
    %v8674 = vrot.slane %v8488, %v8673
    %v8711 = vld [vmem:[%s10] sm:$0xff]
    %v8712 = vld [vmem:[%s10 + $0x8] sm:$0xff]
    %v8713 = vld [vmem:[%s10 + $0x10] sm:$0xff]
    %v8714 = vld [vmem:[%s10 + $0x18] sm:$0xff]
    %v8715 = vld [vmem:[%s10 + $0x20] sm:$0xff]
    %v8716 = vld [vmem:[%s10 + $0x28] sm:$0xff]
    %v8717 = vld [vmem:[%s10 + $0x30] sm:$0xff]
    %v8718 = vld [vmem:[%s10 + $0x38] sm:$0xff]
    %v8719 = vld [vmem:[%s10 + $0x40] sm:$0xff]
    %v8720 = vld [vmem:[%s10 + $0x48] sm:$0xff]
    %v8721 = vld [vmem:[%s10 + $0x50] sm:$0xff]
    %v8722 = vld [vmem:[%s10 + $0x58] sm:$0xff]
    %v8723 = vld [vmem:[%s10 + $0x60] sm:$0xff]
    %v8724 = vld [vmem:[%s10 + $0x68] sm:$0xff]
    %v8725 = vld [vmem:[%s10 + $0x70] sm:$0xff]
    %v8726 = vld [vmem:[%s10 + $0x78] sm:$0xff]
    %v8727 = vld [vmem:[%s10 + $0x80] sm:$0xff]
    %v8728 = vld [vmem:[%s10 + $0x88] sm:$0xff]
    %v8729 = vld [vmem:[%s10 + $0x90] sm:$0xff]
    %v8730 = vld [vmem:[%s10 + $0x98] sm:$0xff]
    %v8731 = vld [vmem:[%s10 + $0xa0] sm:$0xff]
    %v8732 = vld [vmem:[%s10 + $0xa8] sm:$0xff]
    %v8733 = vld [vmem:[%s10 + $0xb0] sm:$0xff]
    %v8734 = vld [vmem:[%s10 + $0xb8] sm:$0xff]
    %v8735 = vld [vmem:[%s10 + $0xc0] sm:$0xff]
    %v8736 = vld [vmem:[%s10 + $0xc8] sm:$0xff]
    %v8737 = vld [vmem:[%s10 + $0xd0] sm:$0xff]
    %v8738 = vld [vmem:[%s10 + $0xd8] sm:$0xff]
    %v8739 = vld [vmem:[%s10 + $0xe0] sm:$0xff]
    %v8740 = vld [vmem:[%s10 + $0xe8] sm:$0xff]
    %v8741 = vld [vmem:[%s10 + $0xf0] sm:$0xff]
    %v8742 = vld [vmem:[%s10 + $0xf8] sm:$0xff]
    %v8743 = vld [vmem:[%s10 + $0x100] sm:$0xff]
    %v8744 = vld [vmem:[%s10 + $0x108] sm:$0xff]
    %v8745 = vld [vmem:[%s10 + $0x110] sm:$0xff]
    %v8746 = vld [vmem:[%s10 + $0x118] sm:$0xff]
    %v8747 = vld [vmem:[%s10 + $0x120] sm:$0xff]
    %v8748 = vld [vmem:[%s10 + $0x128] sm:$0xff]
    %v8749 = vld [vmem:[%s10 + $0x130] sm:$0xff]
    %v8750 = vld [vmem:[%s10 + $0x138] sm:$0xff]
    %v8751 = vld [vmem:[%s10 + $0x140] sm:$0xff]
    %v8752 = vld [vmem:[%s10 + $0x148] sm:$0xff]
    %v8753 = vld [vmem:[%s10 + $0x150] sm:$0xff]
    %v8754 = vld [vmem:[%s10 + $0x158] sm:$0xff]
    %v8755 = vld [vmem:[%s10 + $0x160] sm:$0xff]
    %v8756 = vld [vmem:[%s10 + $0x168] sm:$0xff]
    %v8757 = vld [vmem:[%s10 + $0x170] sm:$0xff]
    %v8758 = vld [vmem:[%s10 + $0x178] sm:$0xff]
    %v8759 = vrot.slane %v8507, 7
    %v8760 = vrot.slane %v8759, 2
    %v8761 = vrot.slane %v8533, 7
    %v8762 = vrot.slane %v8761, 2
    %v8763 = vrot.slane %v8565, 7
    %v8764 = vrot.slane %v8763, 2
    %v8765 = vrot.slane %v8599, 7
    %v8766 = vrot.slane %v8765, 2
    %v8767 = vrot.slane %v8624, 7
    %v8768 = vrot.slane %v8767, 2
    %v8769 = vrot.slane %v8650, 7
    %v8770 = vrot.slane %v8769, 2
    %v8777 = vmax.f32 %v8507, %v8760
    %v8778 = vmax.f32 %v8533, %v8762
    %v8779 = vmax.f32 %v8565, %v8764
    %v8780 = vmax.f32 %v8599, %v8766
    %v8781 = vmax.f32 %v8624, %v8768
    %v8782 = vmax.f32 %v8650, %v8770
    %v8783 = vmax.f32 %v8777, %v8515
    %v8784 = vmax.f32 %v8778, %v8541
    %v8785 = vmax.f32 %v8779, %v8566
    %v8786 = vmax.f32 %v8780, %v8598
    %v8787 = vmax.f32 %v8781, %v8632
    %v8788 = vmax.f32 %v8782, %v8658
    %8795 = vrot.lane.b32.xlu0 %v8783, 120
    %v8796 = vpop.permute.xlu0 %8795
    %8797 = vrot.lane.b32.xlu0 %v8784, 120
    %v8798 = vpop.permute.xlu0 %8797
    %8799 = vrot.lane.b32.xlu0 %v8785, 120
    %v8800 = vpop.permute.xlu0 %8799
    %8801 = vrot.lane.b32.xlu0 %v8786, 120
    %v8802 = vpop.permute.xlu0 %8801
    %8803 = vrot.lane.b32.xlu0 %v8787, 120
    %v8804 = vpop.permute.xlu0 %8803
    %8805 = vrot.lane.b32.xlu0 %v8788, 120
    %v8806 = vpop.permute.xlu0 %8805
    %v8813 = vmax.f32 %v8783, %v8796
    %v8814 = vmax.f32 %v8784, %v8798
    %v8815 = vmax.f32 %v8785, %v8800
    %v8816 = vmax.f32 %v8786, %v8802
    %v8817 = vmax.f32 %v8787, %v8804
    %v8818 = vmax.f32 %v8788, %v8806
    %8819 = vrot.lane.b32.xlu0 %v8783, 112
    %v8820 = vpop.permute.xlu0 %8819
    %8821 = vrot.lane.b32.xlu0 %v8784, 112
    %v8822 = vpop.permute.xlu0 %8821
    %8823 = vrot.lane.b32.xlu0 %v8785, 112
    %v8824 = vpop.permute.xlu0 %8823
    %8825 = vrot.lane.b32.xlu0 %v8786, 112
    %v8826 = vpop.permute.xlu0 %8825
    %8827 = vrot.lane.b32.xlu0 %v8787, 112
    %v8828 = vpop.permute.xlu0 %8827
    %8829 = vrot.lane.b32.xlu0 %v8788, 112
    %v8830 = vpop.permute.xlu0 %8829
    %v8837 = vmax.f32 %v8813, %v8820
    %v8838 = vmax.f32 %v8814, %v8822
    %v8839 = vmax.f32 %v8815, %v8824
    %v8840 = vmax.f32 %v8816, %v8826
    %v8841 = vmax.f32 %v8817, %v8828
    %v8842 = vmax.f32 %v8818, %v8830
    %v8843 = vrot.slane %v8514, 7
    %v8844 = vrot.slane %v8549, 7
    %v8845 = vrot.slane %v8574, 7
    %v8846 = vrot.slane %v8600, 7
    %v8847 = vrot.slane %v8631, 7
    %v8848 = vrot.slane %v8666, 7
    %v8855 = vmax.f32 %v8515, %v8843
    %v8856 = vmax.f32 %v8541, %v8844
    %v8857 = vmax.f32 %v8566, %v8845
    %v8858 = vmax.f32 %v8598, %v8846
    %v8859 = vmax.f32 %v8632, %v8847
    %v8860 = vmax.f32 %v8658, %v8848
    %v8861 = vmax.f32 %v8855, %v8514
    %v8862 = vmax.f32 %v8856, %v8549
    %v8863 = vmax.f32 %v8857, %v8574
    %v8864 = vmax.f32 %v8858, %v8600
    %v8865 = vmax.f32 %v8859, %v8631
    %v8866 = vmax.f32 %v8860, %v8666
    %8873 = vrot.lane.b32.xlu0 %v8861, 120
    %v8874 = vpop.permute.xlu0 %8873
    %8875 = vrot.lane.b32.xlu0 %v8862, 120
    %v8876 = vpop.permute.xlu0 %8875
    %8877 = vrot.lane.b32.xlu0 %v8863, 120
    %v8878 = vpop.permute.xlu0 %8877
    %8879 = vrot.lane.b32.xlu0 %v8864, 120
    %v8880 = vpop.permute.xlu0 %8879
    %8881 = vrot.lane.b32.xlu0 %v8865, 120
    %v8882 = vpop.permute.xlu0 %8881
    %8883 = vrot.lane.b32.xlu0 %v8866, 120
    %v8884 = vpop.permute.xlu0 %8883
    %v8891 = vmax.f32 %v8861, %v8874
    %v8892 = vmax.f32 %v8862, %v8876
    %v8893 = vmax.f32 %v8863, %v8878
    %v8894 = vmax.f32 %v8864, %v8880
    %v8895 = vmax.f32 %v8865, %v8882
    %v8896 = vmax.f32 %v8866, %v8884
    %8897 = vrot.lane.b32.xlu0 %v8861, 112
    %v8898 = vpop.permute.xlu0 %8897
    %8899 = vrot.lane.b32.xlu0 %v8862, 112
    %v8900 = vpop.permute.xlu0 %8899
    %8901 = vrot.lane.b32.xlu0 %v8863, 112
    %v8902 = vpop.permute.xlu0 %8901
    %8903 = vrot.lane.b32.xlu0 %v8864, 112
    %v8904 = vpop.permute.xlu0 %8903
    %8905 = vrot.lane.b32.xlu0 %v8865, 112
    %v8906 = vpop.permute.xlu0 %8905
    %8907 = vrot.lane.b32.xlu0 %v8866, 112
    %v8908 = vpop.permute.xlu0 %8907
    %v8915 = vmax.f32 %v8891, %v8898
    %v8916 = vmax.f32 %v8892, %v8900
    %v8917 = vmax.f32 %v8893, %v8902
    %v8918 = vmax.f32 %v8894, %v8904
    %v8919 = vmax.f32 %v8895, %v8906
    %v8920 = vmax.f32 %v8896, %v8908
    %v8927 = vlaneseq
    %v8928 = vshrl.u32 %v8927, 7
    %v8929 = vsub.s32 1, %v8928
    %v8930 = vrot.slane %v8915, %v8929
    %v8931 = vlaneseq
    %v8932 = vshrl.u32 %v8931, 7
    %v8933 = vsub.s32 1, %v8932
    %v8934 = vrot.slane %v8916, %v8933
    %v8935 = vlaneseq
    %v8936 = vshrl.u32 %v8935, 7
    %v8937 = vsub.s32 1, %v8936
    %v8938 = vrot.slane %v8917, %v8937
    %v8939 = vlaneseq
    %v8940 = vshrl.u32 %v8939, 7
    %v8941 = vsub.s32 1, %v8940
    %v8942 = vrot.slane %v8918, %v8941
    %v8943 = vlaneseq
    %v8944 = vshrl.u32 %v8943, 7
    %v8945 = vsub.s32 1, %v8944
    %v8946 = vrot.slane %v8919, %v8945
    %v8947 = vlaneseq
    %v8948 = vshrl.u32 %v8947, 7
    %v8949 = vsub.s32 1, %v8948
    %v8950 = vrot.slane %v8920, %v8949
    %vm8951 = vcmask 1041409
    %v8952 = vsel %vm8951, %v8934, %v8930
    %v8953 = vsel %vm7341, %v8938, %v8952
    %vm8954 = vcmask 1043459
    %v8955 = vsel %vm8954, %v8942, %v8953
    %v8956 = vsel %vm7343, %v8946, %v8955
    %vm8957 = vcmask 1045509
    %v8958 = vsel %vm8957, %v8950, %v8956
    %vm8959 = vcmask 785408
    %v8960 = vsel %vm8959, %v8958, 0
    %8962 = vmatprep.subr.mxu0 0.0
    %8963 = vmatpush1.msra.mxu0 0.0
    %8964 = vmatprep.subr.mxu0 0.0
    %8965 = vmatpush1.msra.mxu0 0.0
    %8966 = vmatprep.subr.mxu0 0.0
    %8967 = vmatpush1.msra.mxu0 0.0
    %8968 = vmatprep.subr.mxu0 0.0
    %8969 = vmatpush1.msra.mxu0 0.0
    %8970 = vmatprep.subr.mxu0 0.0
    %8971 = vmatpush1.msra.mxu0 %v8734
    %8972 = vmatprep.subr.mxu0 0.0
    %8973 = vmatpush1.msra.mxu0 %v8733
    %8974 = vmatprep.subr.mxu0 0.0
    %8975 = vmatpush1.msra.mxu0 %v8732
    %8976 = vmatprep.subr.mxu0 0.0
    %8977 = vmatpush1.msra.mxu0 %v8731
    %8978 = vmatprep.subr.mxu0 0.0
    %8979 = vmatpush1.msra.mxu0 %v8730
    %8980 = vmatprep.subr.mxu0 0.0
    %8981 = vmatpush1.msra.mxu0 %v8729
    %8982 = vmatprep.subr.mxu0 0.0
    %8983 = vmatpush1.msra.mxu0 %v8728
    %8984 = vmatprep.subr.mxu0 0.0
    %8985 = vmatpush1.msra.mxu0 %v8727
    %8986 = vmatprep.subr.mxu0 0.0
    %8987 = vmatpush1.msra.mxu0 %v8726
    %8988 = vmatprep.subr.mxu0 0.0
    %8989 = vmatpush1.msra.mxu0 %v8725
    %8990 = vmatprep.subr.mxu0 0.0
    %8991 = vmatpush1.msra.mxu0 %v8724
    %8992 = vmatprep.subr.mxu0 0.0
    %8993 = vmatpush1.msra.mxu0 %v8723
    %8994 = vmatprep.subr.mxu0 0.0
    %8995 = vmatpush2.msra.mxu0 0.0
    %8996 = vmatprep.subr.mxu0 0.0
    %8997 = vmatpush2.msra.mxu0 0.0
    %8998 = vmatprep.subr.mxu0 0.0
    %8999 = vmatpush2.msra.mxu0 0.0
    %9000 = vmatprep.subr.mxu0 0.0
    %9001 = vmatpush2.msra.mxu0 0.0
    %9002 = vmatprep.subr.mxu0 0.0
    %9003 = vmatpush2.msra.mxu0 0.0
    %9004 = vmatprep.subr.mxu0 0.0
    %9005 = vmatpush2.msra.mxu0 0.0
    %9006 = vmatprep.subr.mxu0 0.0
    %9007 = vmatpush2.msra.mxu0 0.0
    %9008 = vmatprep.subr.mxu0 0.0
    %9009 = vmatpush2.msra.mxu0 0.0
    %9010 = vmatprep.subr.mxu0 0.0
    %9011 = vmatpush2.msra.mxu0 0.0
    %9012 = vmatprep.subr.mxu0 0.0
    %9013 = vmatpush2.msra.mxu0 0.0
    %9014 = vmatprep.subr.mxu0 0.0
    %9015 = vmatpush2.msra.mxu0 0.0
    %9016 = vmatprep.subr.mxu0 0.0
    %9017 = vmatpush2.msra.mxu0 0.0
    %9018 = vmatprep.subr.mxu0 0.0
    %9019 = vmatpush2.msra.mxu0 0.0
    %9020 = vmatprep.subr.mxu0 0.0
    %9021 = vmatpush2.msra.mxu0 0.0
    %9022 = vmatprep.subr.mxu0 0.0
    %9023 = vmatpush2.msra.mxu0 0.0
    %9024 = vmatprep.subr.mxu0 0.0
    %9025 = vmatpush2.msra.mxu0 0.0
    %9026 = vmatprep.mubr.f32.mxu0 0.0
    %9027 = vmatmul.mubr.f32.gmra.mxu0 %v8960
    %v9028 = vpop.f32.mrf.mxu0
    %v9029 = vadd.f32 0.0, %v9028
    %v9030 = vpop.f32.mrf.mxu0
    %9031 = vdwg.mxu0
    %v9038 = vlaneseq
    %v9039 = vshrl.u32 %v9038, 7
    %v9040 = vsub.s32 0, %v9039
    %v9041 = vrot.slane %v8837, %v9040
    %v9042 = vlaneseq
    %v9043 = vshrl.u32 %v9042, 7
    %v9044 = vsub.s32 0, %v9043
    %v9045 = vrot.slane %v8838, %v9044
    %v9046 = vlaneseq
    %v9047 = vshrl.u32 %v9046, 7
    %v9048 = vsub.s32 0, %v9047
    %v9049 = vrot.slane %v8839, %v9048
    %v9050 = vlaneseq
    %v9051 = vshrl.u32 %v9050, 7
    %v9052 = vsub.s32 0, %v9051
    %v9053 = vrot.slane %v8840, %v9052
    %v9054 = vlaneseq
    %v9055 = vshrl.u32 %v9054, 7
    %v9056 = vsub.s32 0, %v9055
    %v9057 = vrot.slane %v8841, %v9056
    %v9058 = vlaneseq
    %v9059 = vshrl.u32 %v9058, 7
    %v9060 = vsub.s32 0, %v9059
    %v9061 = vrot.slane %v8842, %v9060
    %v9062 = vsel %vm8951, %v9045, %v9041
    %v9063 = vsel %vm7341, %v9049, %v9062
    %v9064 = vsel %vm8954, %v9053, %v9063
    %v9065 = vsel %vm7343, %v9057, %v9064
    %v9066 = vsel %vm8957, %v9061, %v9065
    %v9067 = vsel %vm8959, %v9066, 0
    %9069 = vmatprep.subr.mxu0 0.0
    %9070 = vmatpush1.msra.mxu0 0.0
    %9071 = vmatprep.subr.mxu0 0.0
    %9072 = vmatpush1.msra.mxu0 0.0
    %9073 = vmatprep.subr.mxu0 0.0
    %9074 = vmatpush1.msra.mxu0 0.0
    %9075 = vmatprep.subr.mxu0 0.0
    %9076 = vmatpush1.msra.mxu0 0.0
    %9077 = vmatprep.subr.mxu0 0.0
    %9078 = vmatpush1.msra.mxu0 %v8722
    %9079 = vmatprep.subr.mxu0 0.0
    %9080 = vmatpush1.msra.mxu0 %v8721
    %9081 = vmatprep.subr.mxu0 0.0
    %9082 = vmatpush1.msra.mxu0 %v8720
    %9083 = vmatprep.subr.mxu0 0.0
    %9084 = vmatpush1.msra.mxu0 %v8719
    %9085 = vmatprep.subr.mxu0 0.0
    %9086 = vmatpush1.msra.mxu0 %v8718
    %9087 = vmatprep.subr.mxu0 0.0
    %9088 = vmatpush1.msra.mxu0 %v8717
    %9089 = vmatprep.subr.mxu0 0.0
    %9090 = vmatpush1.msra.mxu0 %v8716
    %9091 = vmatprep.subr.mxu0 0.0
    %9092 = vmatpush1.msra.mxu0 %v8715
    %9093 = vmatprep.subr.mxu0 0.0
    %9094 = vmatpush1.msra.mxu0 %v8714
    %9095 = vmatprep.subr.mxu0 0.0
    %9096 = vmatpush1.msra.mxu0 %v8713
    %9097 = vmatprep.subr.mxu0 0.0
    %9098 = vmatpush1.msra.mxu0 %v8712
    %9099 = vmatprep.subr.mxu0 0.0
    %9100 = vmatpush1.msra.mxu0 %v8711
    %9101 = vmatprep.subr.mxu0 0.0
    %9102 = vmatpush2.msra.mxu0 0.0
    %9103 = vmatprep.subr.mxu0 0.0
    %9104 = vmatpush2.msra.mxu0 0.0
    %9105 = vmatprep.subr.mxu0 0.0
    %9106 = vmatpush2.msra.mxu0 0.0
    %9107 = vmatprep.subr.mxu0 0.0
    %9108 = vmatpush2.msra.mxu0 0.0
    %9109 = vmatprep.subr.mxu0 0.0
    %9110 = vmatpush2.msra.mxu0 0.0
    %9111 = vmatprep.subr.mxu0 0.0
    %9112 = vmatpush2.msra.mxu0 0.0
    %9113 = vmatprep.subr.mxu0 0.0
    %9114 = vmatpush2.msra.mxu0 0.0
    %9115 = vmatprep.subr.mxu0 0.0
    %9116 = vmatpush2.msra.mxu0 0.0
    %9117 = vmatprep.subr.mxu0 0.0
    %9118 = vmatpush2.msra.mxu0 0.0
    %9119 = vmatprep.subr.mxu0 0.0
    %9120 = vmatpush2.msra.mxu0 0.0
    %9121 = vmatprep.subr.mxu0 0.0
    %9122 = vmatpush2.msra.mxu0 0.0
    %9123 = vmatprep.subr.mxu0 0.0
    %9124 = vmatpush2.msra.mxu0 0.0
    %9125 = vmatprep.subr.mxu0 0.0
    %9126 = vmatpush2.msra.mxu0 0.0
    %9127 = vmatprep.subr.mxu0 0.0
    %9128 = vmatpush2.msra.mxu0 0.0
    %9129 = vmatprep.subr.mxu0 0.0
    %9130 = vmatpush2.msra.mxu0 0.0
    %9131 = vmatprep.subr.mxu0 0.0
    %9132 = vmatpush2.msra.mxu0 0.0
    %9133 = vmatprep.mubr.f32.mxu0 0.0
    %9134 = vmatmul.mubr.f32.gmra.mxu0 %v9067
    %v9135 = vpop.f32.mrf.mxu0
    %v9136 = vadd.f32 %v9029, %v9135
    %v9137 = vpop.f32.mrf.mxu0
    %9138 = vdwg.mxu0
    %v9139 = vrot.slane %v8516, 7
    %v9140 = vrot.slane %v9139, 2
    %v9141 = vrot.slane %v8548, 7
    %v9142 = vrot.slane %v9141, 2
    %v9143 = vrot.slane %v8582, 7
    %v9144 = vrot.slane %v9143, 2
    %v9145 = vrot.slane %v8608, 7
    %v9146 = vrot.slane %v9145, 2
    %v9147 = vrot.slane %v8633, 7
    %v9148 = vrot.slane %v9147, 2
    %v9149 = vrot.slane %v8665, 7
    %v9150 = vrot.slane %v9149, 2
    %v9157 = vmax.f32 %v8516, %v9140
    %v9158 = vmax.f32 %v8548, %v9142
    %v9159 = vmax.f32 %v8582, %v9144
    %v9160 = vmax.f32 %v8608, %v9146
    %v9161 = vmax.f32 %v8633, %v9148
    %v9162 = vmax.f32 %v8665, %v9150
    %v9163 = vmax.f32 %v9157, %v8524
    %v9164 = vmax.f32 %v9158, %v8550
    %v9165 = vmax.f32 %v9159, %v8581
    %v9166 = vmax.f32 %v9160, %v8616
    %v9167 = vmax.f32 %v9161, %v8641
    %v9168 = vmax.f32 %v9162, %v8667
    %9175 = vrot.lane.b32.xlu0 %v9163, 120
    %v9176 = vpop.permute.xlu0 %9175
    %9177 = vrot.lane.b32.xlu0 %v9164, 120
    %v9178 = vpop.permute.xlu0 %9177
    %9179 = vrot.lane.b32.xlu0 %v9165, 120
    %v9180 = vpop.permute.xlu0 %9179
    %9181 = vrot.lane.b32.xlu0 %v9166, 120
    %v9182 = vpop.permute.xlu0 %9181
    %9183 = vrot.lane.b32.xlu0 %v9167, 120
    %v9184 = vpop.permute.xlu0 %9183
    %9185 = vrot.lane.b32.xlu0 %v9168, 120
    %v9186 = vpop.permute.xlu0 %9185
    %v9193 = vmax.f32 %v9163, %v9176
    %v9194 = vmax.f32 %v9164, %v9178
    %v9195 = vmax.f32 %v9165, %v9180
    %v9196 = vmax.f32 %v9166, %v9182
    %v9197 = vmax.f32 %v9167, %v9184
    %v9198 = vmax.f32 %v9168, %v9186
    %9199 = vrot.lane.b32.xlu0 %v9163, 112
    %v9200 = vpop.permute.xlu0 %9199
    %9201 = vrot.lane.b32.xlu0 %v9164, 112
    %v9202 = vpop.permute.xlu0 %9201
    %9203 = vrot.lane.b32.xlu0 %v9165, 112
    %v9204 = vpop.permute.xlu0 %9203
    %9205 = vrot.lane.b32.xlu0 %v9166, 112
    %v9206 = vpop.permute.xlu0 %9205
    %9207 = vrot.lane.b32.xlu0 %v9167, 112
    %v9208 = vpop.permute.xlu0 %9207
    %9209 = vrot.lane.b32.xlu0 %v9168, 112
    %v9210 = vpop.permute.xlu0 %9209
    %v9217 = vmax.f32 %v9193, %v9200
    %v9218 = vmax.f32 %v9194, %v9202
    %v9219 = vmax.f32 %v9195, %v9204
    %v9220 = vmax.f32 %v9196, %v9206
    %v9221 = vmax.f32 %v9197, %v9208
    %v9222 = vmax.f32 %v9198, %v9210
    %v9229 = vlaneseq
    %v9230 = vshrl.u32 %v9229, 7
    %v9231 = vsub.s32 0, %v9230
    %v9232 = vrot.slane %v9217, %v9231
    %v9233 = vlaneseq
    %v9234 = vshrl.u32 %v9233, 7
    %v9235 = vsub.s32 0, %v9234
    %v9236 = vrot.slane %v9218, %v9235
    %v9237 = vlaneseq
    %v9238 = vshrl.u32 %v9237, 7
    %v9239 = vsub.s32 0, %v9238
    %v9240 = vrot.slane %v9219, %v9239
    %v9241 = vlaneseq
    %v9242 = vshrl.u32 %v9241, 7
    %v9243 = vsub.s32 0, %v9242
    %v9244 = vrot.slane %v9220, %v9243
    %v9245 = vlaneseq
    %v9246 = vshrl.u32 %v9245, 7
    %v9247 = vsub.s32 0, %v9246
    %v9248 = vrot.slane %v9221, %v9247
    %v9249 = vlaneseq
    %v9250 = vshrl.u32 %v9249, 7
    %v9251 = vsub.s32 0, %v9250
    %v9252 = vrot.slane %v9222, %v9251
    %v9253 = vsel %vm8951, %v9236, %v9232
    %v9254 = vsel %vm7341, %v9240, %v9253
    %v9255 = vsel %vm8954, %v9244, %v9254
    %v9256 = vsel %vm7343, %v9248, %v9255
    %v9257 = vsel %vm8957, %v9252, %v9256
    %v9258 = vsel %vm8959, %v9257, 0
    %9260 = vmatprep.subr.mxu0 0.0
    %9261 = vmatpush1.msra.mxu0 0.0
    %9262 = vmatprep.subr.mxu0 0.0
    %9263 = vmatpush1.msra.mxu0 0.0
    %9264 = vmatprep.subr.mxu0 0.0
    %9265 = vmatpush1.msra.mxu0 0.0
    %9266 = vmatprep.subr.mxu0 0.0
    %9267 = vmatpush1.msra.mxu0 0.0
    %9268 = vmatprep.subr.mxu0 0.0
    %9269 = vmatpush1.msra.mxu0 %v8746
    %9270 = vmatprep.subr.mxu0 0.0
    %9271 = vmatpush1.msra.mxu0 %v8745
    %9272 = vmatprep.subr.mxu0 0.0
    %9273 = vmatpush1.msra.mxu0 %v8744
    %9274 = vmatprep.subr.mxu0 0.0
    %9275 = vmatpush1.msra.mxu0 %v8743
    %9276 = vmatprep.subr.mxu0 0.0
    %9277 = vmatpush1.msra.mxu0 %v8742
    %9278 = vmatprep.subr.mxu0 0.0
    %9279 = vmatpush1.msra.mxu0 %v8741
    %9280 = vmatprep.subr.mxu0 0.0
    %9281 = vmatpush1.msra.mxu0 %v8740
    %9282 = vmatprep.subr.mxu0 0.0
    %9283 = vmatpush1.msra.mxu0 %v8739
    %9284 = vmatprep.subr.mxu0 0.0
    %9285 = vmatpush1.msra.mxu0 %v8738
    %9286 = vmatprep.subr.mxu0 0.0
    %9287 = vmatpush1.msra.mxu0 %v8737
    %9288 = vmatprep.subr.mxu0 0.0
    %9289 = vmatpush1.msra.mxu0 %v8736
    %9290 = vmatprep.subr.mxu0 0.0
    %9291 = vmatpush1.msra.mxu0 %v8735
    %9292 = vmatprep.subr.mxu0 0.0
    %9293 = vmatpush2.msra.mxu0 0.0
    %9294 = vmatprep.subr.mxu0 0.0
    %9295 = vmatpush2.msra.mxu0 0.0
    %9296 = vmatprep.subr.mxu0 0.0
    %9297 = vmatpush2.msra.mxu0 0.0
    %9298 = vmatprep.subr.mxu0 0.0
    %9299 = vmatpush2.msra.mxu0 0.0
    %9300 = vmatprep.subr.mxu0 0.0
    %9301 = vmatpush2.msra.mxu0 0.0
    %9302 = vmatprep.subr.mxu0 0.0
    %9303 = vmatpush2.msra.mxu0 0.0
    %9304 = vmatprep.subr.mxu0 0.0
    %9305 = vmatpush2.msra.mxu0 0.0
    %9306 = vmatprep.subr.mxu0 0.0
    %9307 = vmatpush2.msra.mxu0 0.0
    %9308 = vmatprep.subr.mxu0 0.0
    %9309 = vmatpush2.msra.mxu0 0.0
    %9310 = vmatprep.subr.mxu0 0.0
    %9311 = vmatpush2.msra.mxu0 0.0
    %9312 = vmatprep.subr.mxu0 0.0
    %9313 = vmatpush2.msra.mxu0 0.0
    %9314 = vmatprep.subr.mxu0 0.0
    %9315 = vmatpush2.msra.mxu0 0.0
    %9316 = vmatprep.subr.mxu0 0.0
    %9317 = vmatpush2.msra.mxu0 0.0
    %9318 = vmatprep.subr.mxu0 0.0
    %9319 = vmatpush2.msra.mxu0 0.0
    %9320 = vmatprep.subr.mxu0 0.0
    %9321 = vmatpush2.msra.mxu0 0.0
    %9322 = vmatprep.subr.mxu0 0.0
    %9323 = vmatpush2.msra.mxu0 0.0
    %9324 = vmatprep.mubr.f32.mxu0 0.0
    %9325 = vmatmul.mubr.f32.gmra.mxu0 %v9258
    %v9326 = vpop.f32.mrf.mxu0
    %v9327 = vadd.f32 0.0, %v9326
    %v9328 = vpop.f32.mrf.mxu0
    %9329 = vdwg.mxu0
    %v9330 = vadd.f32 %v9136, %v9327
    %v9331 = vrot.slane %v8532, 7
    %v9332 = vrot.slane %v8558, 7
    %v9333 = vrot.slane %v8583, 7
    %v9334 = vrot.slane %v8615, 7
    %v9335 = vrot.slane %v8649, 7
    %v9336 = vrot.slane %v8674, 7
    %v9343 = vmax.f32 %v8524, %v9331
    %v9344 = vmax.f32 %v8550, %v9332
    %v9345 = vmax.f32 %v8581, %v9333
    %v9346 = vmax.f32 %v8616, %v9334
    %v9347 = vmax.f32 %v8641, %v9335
    %v9348 = vmax.f32 %v8667, %v9336
    %v9349 = vmax.f32 %v9343, %v8532
    %v9350 = vmax.f32 %v9344, %v8558
    %v9351 = vmax.f32 %v9345, %v8583
    %v9352 = vmax.f32 %v9346, %v8615
    %v9353 = vmax.f32 %v9347, %v8649
    %v9354 = vmax.f32 %v9348, %v8674
    %9361 = vrot.lane.b32.xlu0 %v9349, 120
    %v9362 = vpop.permute.xlu0 %9361
    %9363 = vrot.lane.b32.xlu0 %v9350, 120
    %v9364 = vpop.permute.xlu0 %9363
    %9365 = vrot.lane.b32.xlu0 %v9351, 120
    %v9366 = vpop.permute.xlu0 %9365
    %9367 = vrot.lane.b32.xlu0 %v9352, 120
    %v9368 = vpop.permute.xlu0 %9367
    %9369 = vrot.lane.b32.xlu0 %v9353, 120
    %v9370 = vpop.permute.xlu0 %9369
    %9371 = vrot.lane.b32.xlu0 %v9354, 120
    %v9372 = vpop.permute.xlu0 %9371
    %v9379 = vmax.f32 %v9349, %v9362
    %v9380 = vmax.f32 %v9350, %v9364
    %v9381 = vmax.f32 %v9351, %v9366
    %v9382 = vmax.f32 %v9352, %v9368
    %v9383 = vmax.f32 %v9353, %v9370
    %v9384 = vmax.f32 %v9354, %v9372
    %9385 = vrot.lane.b32.xlu0 %v9349, 112
    %v9386 = vpop.permute.xlu0 %9385
    %9387 = vrot.lane.b32.xlu0 %v9350, 112
    %v9388 = vpop.permute.xlu0 %9387
    %9389 = vrot.lane.b32.xlu0 %v9351, 112
    %v9390 = vpop.permute.xlu0 %9389
    %9391 = vrot.lane.b32.xlu0 %v9352, 112
    %v9392 = vpop.permute.xlu0 %9391
    %9393 = vrot.lane.b32.xlu0 %v9353, 112
    %v9394 = vpop.permute.xlu0 %9393
    %9395 = vrot.lane.b32.xlu0 %v9354, 112
    %v9396 = vpop.permute.xlu0 %9395
    %v9403 = vmax.f32 %v9379, %v9386
    %v9404 = vmax.f32 %v9380, %v9388
    %v9405 = vmax.f32 %v9381, %v9390
    %v9406 = vmax.f32 %v9382, %v9392
    %v9407 = vmax.f32 %v9383, %v9394
    %v9408 = vmax.f32 %v9384, %v9396
    %v9415 = vlaneseq
    %v9416 = vshrl.u32 %v9415, 7
    %v9417 = vsub.s32 1, %v9416
    %v9418 = vrot.slane %v9403, %v9417
    %v9419 = vlaneseq
    %v9420 = vshrl.u32 %v9419, 7
    %v9421 = vsub.s32 1, %v9420
    %v9422 = vrot.slane %v9404, %v9421
    %v9423 = vlaneseq
    %v9424 = vshrl.u32 %v9423, 7
    %v9425 = vsub.s32 1, %v9424
    %v9426 = vrot.slane %v9405, %v9425
    %v9427 = vlaneseq
    %v9428 = vshrl.u32 %v9427, 7
    %v9429 = vsub.s32 1, %v9428
    %v9430 = vrot.slane %v9406, %v9429
    %v9431 = vlaneseq
    %v9432 = vshrl.u32 %v9431, 7
    %v9433 = vsub.s32 1, %v9432
    %v9434 = vrot.slane %v9407, %v9433
    %v9435 = vlaneseq
    %v9436 = vshrl.u32 %v9435, 7
    %v9437 = vsub.s32 1, %v9436
    %v9438 = vrot.slane %v9408, %v9437
    %v9439 = vsel %vm8951, %v9422, %v9418
    %v9440 = vsel %vm7341, %v9426, %v9439
    %v9441 = vsel %vm8954, %v9430, %v9440
    %v9442 = vsel %vm7343, %v9434, %v9441
    %v9443 = vsel %vm8957, %v9438, %v9442
    %v9444 = vsel %vm8959, %v9443, 0
    %9446 = vmatprep.subr.mxu0 0.0
    %9447 = vmatpush1.msra.mxu0 0.0
    %9448 = vmatprep.subr.mxu0 0.0
    %9449 = vmatpush1.msra.mxu0 0.0
    %9450 = vmatprep.subr.mxu0 0.0
    %9451 = vmatpush1.msra.mxu0 0.0
    %9452 = vmatprep.subr.mxu0 0.0
    %9453 = vmatpush1.msra.mxu0 0.0
    %9454 = vmatprep.subr.mxu0 0.0
    %9455 = vmatpush1.msra.mxu0 %v8758
    %9456 = vmatprep.subr.mxu0 0.0
    %9457 = vmatpush1.msra.mxu0 %v8757
    %9458 = vmatprep.subr.mxu0 0.0
    %9459 = vmatpush1.msra.mxu0 %v8756
    %9460 = vmatprep.subr.mxu0 0.0
    %9461 = vmatpush1.msra.mxu0 %v8755
    %9462 = vmatprep.subr.mxu0 0.0
    %9463 = vmatpush1.msra.mxu0 %v8754
    %9464 = vmatprep.subr.mxu0 0.0
    %9465 = vmatpush1.msra.mxu0 %v8753
    %9466 = vmatprep.subr.mxu0 0.0
    %9467 = vmatpush1.msra.mxu0 %v8752
    %9468 = vmatprep.subr.mxu0 0.0
    %9469 = vmatpush1.msra.mxu0 %v8751
    %9470 = vmatprep.subr.mxu0 0.0
    %9471 = vmatpush1.msra.mxu0 %v8750
    %9472 = vmatprep.subr.mxu0 0.0
    %9473 = vmatpush1.msra.mxu0 %v8749
    %9474 = vmatprep.subr.mxu0 0.0
    %9475 = vmatpush1.msra.mxu0 %v8748
    %9476 = vmatprep.subr.mxu0 0.0
    %9477 = vmatpush1.msra.mxu0 %v8747
    %9478 = vmatprep.subr.mxu0 0.0
    %9479 = vmatpush2.msra.mxu0 0.0
    %9480 = vmatprep.subr.mxu0 0.0
    %9481 = vmatpush2.msra.mxu0 0.0
    %9482 = vmatprep.subr.mxu0 0.0
    %9483 = vmatpush2.msra.mxu0 0.0
    %9484 = vmatprep.subr.mxu0 0.0
    %9485 = vmatpush2.msra.mxu0 0.0
    %9486 = vmatprep.subr.mxu0 0.0
    %9487 = vmatpush2.msra.mxu0 0.0
    %9488 = vmatprep.subr.mxu0 0.0
    %9489 = vmatpush2.msra.mxu0 0.0
    %9490 = vmatprep.subr.mxu0 0.0
    %9491 = vmatpush2.msra.mxu0 0.0
    %9492 = vmatprep.subr.mxu0 0.0
    %9493 = vmatpush2.msra.mxu0 0.0
    %9494 = vmatprep.subr.mxu0 0.0
    %9495 = vmatpush2.msra.mxu0 0.0
    %9496 = vmatprep.subr.mxu0 0.0
    %9497 = vmatpush2.msra.mxu0 0.0
    %9498 = vmatprep.subr.mxu0 0.0
    %9499 = vmatpush2.msra.mxu0 0.0
    %9500 = vmatprep.subr.mxu0 0.0
    %9501 = vmatpush2.msra.mxu0 0.0
    %9502 = vmatprep.subr.mxu0 0.0
    %9503 = vmatpush2.msra.mxu0 0.0
    %9504 = vmatprep.subr.mxu0 0.0
    %9505 = vmatpush2.msra.mxu0 0.0
    %9506 = vmatprep.subr.mxu0 0.0
    %9507 = vmatpush2.msra.mxu0 0.0
    %9508 = vmatprep.subr.mxu0 0.0
    %9509 = vmatpush2.msra.mxu0 0.0
    %9510 = vmatprep.mubr.f32.mxu0 0.0
    %9511 = vmatmul.mubr.f32.gmra.mxu0 %v9444
    %v9512 = vpop.f32.mrf.mxu0
    %v9513 = vadd.f32 0.0, %v9512
    %v9514 = vpop.f32.mrf.mxu0
    %9515 = vdwg.mxu0
    %v9516 = vadd.f32 %v9330, %v9513
    %v9517 = vld [vmem:[%s11] sm:$0x1]
    %v9519 = vlaneseq
    %v9520 = vshrl.u32 %v9519, 7
    %v9521 = vsub.s32 0, %v9520
    %v9522 = vrot.slane %v9517, %v9521
    %v9524 = vadd.f32 %v9516, %v9522
    %v9525 = vtanh.pop %v9524
    %v9526 = vld [vmem:[%s12] sm:$0xff]
    %v9527 = vld [vmem:[%s12 + $0x8] sm:$0xff]
    %v9528 = vld [vmem:[%s14] sm:$0x1]
    %v9530 = vlaneseq
    %v9531 = vshrl.u32 %v9530, 7
    %v9532 = vsub.s32 0, %v9531
    %v9533 = vrot.slane %v9528, %v9532
    %v9536 = vsel %vm6845, %v9525, 0
    %9538 = vmatprep.subr.mxu0 0.0
    %9539 = vmatpush1.msra.mxu0 0.0
    %9540 = vmatprep.subr.mxu0 0.0
    %9541 = vmatpush1.msra.mxu0 0.0
    %9542 = vmatprep.subr.mxu0 0.0
    %9543 = vmatpush1.msra.mxu0 0.0
    %9544 = vmatprep.subr.mxu0 0.0
    %9545 = vmatpush1.msra.mxu0 0.0
    %9546 = vmatprep.subr.mxu0 0.0
    %9547 = vmatpush1.msra.mxu0 0.0
    %9548 = vmatprep.subr.mxu0 0.0
    %9549 = vmatpush1.msra.mxu0 0.0
    %9550 = vmatprep.subr.mxu0 0.0
    %9551 = vmatpush1.msra.mxu0 0.0
    %9552 = vmatprep.subr.mxu0 0.0
    %9553 = vmatpush1.msra.mxu0 0.0
    %9554 = vmatprep.subr.mxu0 0.0
    %9555 = vmatpush1.msra.mxu0 0.0
    %9556 = vmatprep.subr.mxu0 0.0
    %9557 = vmatpush1.msra.mxu0 0.0
    %9558 = vmatprep.subr.mxu0 0.0
    %9559 = vmatpush1.msra.mxu0 0.0
    %9560 = vmatprep.subr.mxu0 0.0
    %9561 = vmatpush1.msra.mxu0 0.0
    %9562 = vmatprep.subr.mxu0 0.0
    %9563 = vmatpush1.msra.mxu0 0.0
    %9564 = vmatprep.subr.mxu0 0.0
    %9565 = vmatpush1.msra.mxu0 0.0
    %9566 = vmatprep.subr.mxu0 0.0
    %9567 = vmatpush1.msra.mxu0 %v9527
    %9568 = vmatprep.subr.mxu0 0.0
    %9569 = vmatpush1.msra.mxu0 %v9526
    %9570 = vmatprep.subr.mxu0 0.0
    %9571 = vmatpush2.msra.mxu0 0.0
    %9572 = vmatprep.subr.mxu0 0.0
    %9573 = vmatpush2.msra.mxu0 0.0
    %9574 = vmatprep.subr.mxu0 0.0
    %9575 = vmatpush2.msra.mxu0 0.0
    %9576 = vmatprep.subr.mxu0 0.0
    %9577 = vmatpush2.msra.mxu0 0.0
    %9578 = vmatprep.subr.mxu0 0.0
    %9579 = vmatpush2.msra.mxu0 0.0
    %9580 = vmatprep.subr.mxu0 0.0
    %9581 = vmatpush2.msra.mxu0 0.0
    %9582 = vmatprep.subr.mxu0 0.0
    %9583 = vmatpush2.msra.mxu0 0.0
    %9584 = vmatprep.subr.mxu0 0.0
    %9585 = vmatpush2.msra.mxu0 0.0
    %9586 = vmatprep.subr.mxu0 0.0
    %9587 = vmatpush2.msra.mxu0 0.0
    %9588 = vmatprep.subr.mxu0 0.0
    %9589 = vmatpush2.msra.mxu0 0.0
    %9590 = vmatprep.subr.mxu0 0.0
    %9591 = vmatpush2.msra.mxu0 0.0
    %9592 = vmatprep.subr.mxu0 0.0
    %9593 = vmatpush2.msra.mxu0 0.0
    %9594 = vmatprep.subr.mxu0 0.0
    %9595 = vmatpush2.msra.mxu0 0.0
    %9596 = vmatprep.subr.mxu0 0.0
    %9597 = vmatpush2.msra.mxu0 0.0
    %9598 = vmatprep.subr.mxu0 0.0
    %9599 = vmatpush2.msra.mxu0 0.0
    %9600 = vmatprep.subr.mxu0 0.0
    %9601 = vmatpush2.msra.mxu0 0.0
    %9602 = vmatprep.mubr.f32.mxu0 0.0
    %9603 = vmatmul.mubr.f32.gmra.mxu0 %v9536
    %v9604 = vpop.f32.mrf.mxu0
    %v9605 = vadd.f32 %v9533, %v9604
    %v9606 = vpop.f32.mrf.mxu0
    %9607 = vdwg.mxu0
    %v9608 = vld [vmem:[%s13] sm:$0xff]
    %v9609 = vld [vmem:[%s13 + $0x8] sm:$0xff]
    %v9610 = vld [vmem:[%s13 + $0x10] sm:$0xff]
    %v9611 = vld [vmem:[%s13 + $0x18] sm:$0xff]
    %v9612 = vld [vmem:[%s15] sm:$0x1]
    %v9614 = vrot.slane %v9605, 2
    %v9616 = vsel %vm7340, %v9605, %v9614
    %v9618 = vlaneseq
    %v9619 = vshrl.u32 %v9618, 7
    %v9620 = vsub.s32 0, %v9619
    %v9621 = vrot.slane %v9612, %v9620
    %9623 = vmatprep.subr.mxu0 0.0
    %9624 = vmatpush1.msra.mxu0 0.0
    %9625 = vmatprep.subr.mxu0 0.0
    %9626 = vmatpush1.msra.mxu0 0.0
    %9627 = vmatprep.subr.mxu0 0.0
    %9628 = vmatpush1.msra.mxu0 0.0
    %9629 = vmatprep.subr.mxu0 0.0
    %9630 = vmatpush1.msra.mxu0 0.0
    %9631 = vmatprep.subr.mxu0 0.0
    %9632 = vmatpush1.msra.mxu0 0.0
    %9633 = vmatprep.subr.mxu0 0.0
    %9634 = vmatpush1.msra.mxu0 0.0
    %9635 = vmatprep.subr.mxu0 0.0
    %9636 = vmatpush1.msra.mxu0 0.0
    %9637 = vmatprep.subr.mxu0 0.0
    %9638 = vmatpush1.msra.mxu0 0.0
    %9639 = vmatprep.subr.mxu0 0.0
    %9640 = vmatpush1.msra.mxu0 0.0
    %9641 = vmatprep.subr.mxu0 0.0
    %9642 = vmatpush1.msra.mxu0 0.0
    %9643 = vmatprep.subr.mxu0 0.0
    %9644 = vmatpush1.msra.mxu0 0.0
    %9645 = vmatprep.subr.mxu0 0.0
    %9646 = vmatpush1.msra.mxu0 0.0
    %9647 = vmatprep.subr.mxu0 0.0
    %9648 = vmatpush1.msra.mxu0 %v9611
    %9649 = vmatprep.subr.mxu0 0.0
    %9650 = vmatpush1.msra.mxu0 %v9610
    %9651 = vmatprep.subr.mxu0 0.0
    %9652 = vmatpush1.msra.mxu0 %v9609
    %9653 = vmatprep.subr.mxu0 0.0
    %9654 = vmatpush1.msra.mxu0 %v9608
    %9655 = vmatprep.subr.mxu0 0.0
    %9656 = vmatpush2.msra.mxu0 0.0
    %9657 = vmatprep.subr.mxu0 0.0
    %9658 = vmatpush2.msra.mxu0 0.0
    %9659 = vmatprep.subr.mxu0 0.0
    %9660 = vmatpush2.msra.mxu0 0.0
    %9661 = vmatprep.subr.mxu0 0.0
    %9662 = vmatpush2.msra.mxu0 0.0
    %9663 = vmatprep.subr.mxu0 0.0
    %9664 = vmatpush2.msra.mxu0 0.0
    %9665 = vmatprep.subr.mxu0 0.0
    %9666 = vmatpush2.msra.mxu0 0.0
    %9667 = vmatprep.subr.mxu0 0.0
    %9668 = vmatpush2.msra.mxu0 0.0
    %9669 = vmatprep.subr.mxu0 0.0
    %9670 = vmatpush2.msra.mxu0 0.0
    %9671 = vmatprep.subr.mxu0 0.0
    %9672 = vmatpush2.msra.mxu0 0.0
    %9673 = vmatprep.subr.mxu0 0.0
    %9674 = vmatpush2.msra.mxu0 0.0
    %9675 = vmatprep.subr.mxu0 0.0
    %9676 = vmatpush2.msra.mxu0 0.0
    %9677 = vmatprep.subr.mxu0 0.0
    %9678 = vmatpush2.msra.mxu0 0.0
    %9679 = vmatprep.subr.mxu0 0.0
    %9680 = vmatpush2.msra.mxu0 0.0
    %9681 = vmatprep.subr.mxu0 0.0
    %9682 = vmatpush2.msra.mxu0 0.0
    %9683 = vmatprep.subr.mxu0 0.0
    %9684 = vmatpush2.msra.mxu0 0.0
    %9685 = vmatprep.subr.mxu0 0.0
    %9686 = vmatpush2.msra.mxu0 0.0
    %9687 = vmatprep.mubr.f32.mxu0 0.0
    %9688 = vmatmul.mubr.f32.gmra.mxu0 %v2979
    %v9689 = vpop.f32.mrf.mxu0
    %v9690 = vadd.f32 %v9621, %v9689
    %v9691 = vpop.f32.mrf.mxu0
    %9692 = vdwg.mxu0
    %v9693 = vadd.f32 %v9616, %v9690
    %v9694 = vxor.u32 %v9693, 2147483648
    %v9695 = vmul.f32 %v9694, 1.442695
    %v9696 = vpow.pop %v9695
    %v9697 = vadd.f32 %v9696, 1.0
    %v9698 = vrcp.pop %v9697
    %v9699 = vmul.f32 1.0, %v9698
    %9701 = vrot.lane.b32.xlu0 %v9690, 64
    %v9702 = vpop.permute.xlu0 %9701
    %v9704 = vmul.f32 %v9699, %v9702
    %9706 = vrot.lane.b32.xlu0 %v9704, 64
    %v9707 = vpop.permute.xlu0 %9706
    %v9709 = vadd.f32 %v9616, %v9707
    %v9710 = vtanh.pop %v9709
    %v9711 = vsub.f32 1.0, %v9699
    %9713 = vrot.lane.b32.xlu0 %v9710, 96
    %v9714 = vpop.permute.xlu0 %9713
    %v9716 = vmul.f32 %v9711, %v9714
    %v9717 = vmul.f32 %v9699, 0.0
    %v9718 = vadd.f32 %v9716, %v9717
    %v9719 = vrot.slane %v9605, 1
    %v9721 = vrot.slane %v9605, 3
    %v9723 = vsel %vm7340, %v9719, %v9721
    %9725 = vrot.lane.b32.xlu0 %v9718, 96
    %v9726 = vpop.permute.xlu0 %9725
    %v9727 = vsel %vm2977, %v9726, 0
    %9729 = vmatprep.subr.mxu0 0.0
    %9730 = vmatpush1.msra.mxu0 0.0
    %9731 = vmatprep.subr.mxu0 0.0
    %9732 = vmatpush1.msra.mxu0 0.0
    %9733 = vmatprep.subr.mxu0 0.0
    %9734 = vmatpush1.msra.mxu0 0.0
    %9735 = vmatprep.subr.mxu0 0.0
    %9736 = vmatpush1.msra.mxu0 0.0
    %9737 = vmatprep.subr.mxu0 0.0
    %9738 = vmatpush1.msra.mxu0 0.0
    %9739 = vmatprep.subr.mxu0 0.0
    %9740 = vmatpush1.msra.mxu0 0.0
    %9741 = vmatprep.subr.mxu0 0.0
    %9742 = vmatpush1.msra.mxu0 0.0
    %9743 = vmatprep.subr.mxu0 0.0
    %9744 = vmatpush1.msra.mxu0 0.0
    %9745 = vmatprep.subr.mxu0 0.0
    %9746 = vmatpush1.msra.mxu0 0.0
    %9747 = vmatprep.subr.mxu0 0.0
    %9748 = vmatpush1.msra.mxu0 0.0
    %9749 = vmatprep.subr.mxu0 0.0
    %9750 = vmatpush1.msra.mxu0 0.0
    %9751 = vmatprep.subr.mxu0 0.0
    %9752 = vmatpush1.msra.mxu0 0.0
    %9753 = vmatprep.subr.mxu0 0.0
    %9754 = vmatpush1.msra.mxu0 %v9611
    %9755 = vmatprep.subr.mxu0 0.0
    %9756 = vmatpush1.msra.mxu0 %v9610
    %9757 = vmatprep.subr.mxu0 0.0
    %9758 = vmatpush1.msra.mxu0 %v9609
    %9759 = vmatprep.subr.mxu0 0.0
    %9760 = vmatpush1.msra.mxu0 %v9608
    %9761 = vmatprep.subr.mxu0 0.0
    %9762 = vmatpush2.msra.mxu0 0.0
    %9763 = vmatprep.subr.mxu0 0.0
    %9764 = vmatpush2.msra.mxu0 0.0
    %9765 = vmatprep.subr.mxu0 0.0
    %9766 = vmatpush2.msra.mxu0 0.0
    %9767 = vmatprep.subr.mxu0 0.0
    %9768 = vmatpush2.msra.mxu0 0.0
    %9769 = vmatprep.subr.mxu0 0.0
    %9770 = vmatpush2.msra.mxu0 0.0
    %9771 = vmatprep.subr.mxu0 0.0
    %9772 = vmatpush2.msra.mxu0 0.0
    %9773 = vmatprep.subr.mxu0 0.0
    %9774 = vmatpush2.msra.mxu0 0.0
    %9775 = vmatprep.subr.mxu0 0.0
    %9776 = vmatpush2.msra.mxu0 0.0
    %9777 = vmatprep.subr.mxu0 0.0
    %9778 = vmatpush2.msra.mxu0 0.0
    %9779 = vmatprep.subr.mxu0 0.0
    %9780 = vmatpush2.msra.mxu0 0.0
    %9781 = vmatprep.subr.mxu0 0.0
    %9782 = vmatpush2.msra.mxu0 0.0
    %9783 = vmatprep.subr.mxu0 0.0
    %9784 = vmatpush2.msra.mxu0 0.0
    %9785 = vmatprep.subr.mxu0 0.0
    %9786 = vmatpush2.msra.mxu0 0.0
    %9787 = vmatprep.subr.mxu0 0.0
    %9788 = vmatpush2.msra.mxu0 0.0
    %9789 = vmatprep.subr.mxu0 0.0
    %9790 = vmatpush2.msra.mxu0 0.0
    %9791 = vmatprep.subr.mxu0 0.0
    %9792 = vmatpush2.msra.mxu0 0.0
    %9793 = vmatprep.mubr.f32.mxu0 0.0
    %9794 = vmatmul.mubr.f32.gmra.mxu0 %v9727
    %v9795 = vpop.f32.mrf.mxu0
    %v9796 = vadd.f32 %v9621, %v9795
    %v9797 = vpop.f32.mrf.mxu0
    %9798 = vdwg.mxu0
    %v9799 = vadd.f32 %v9723, %v9796
    %v9800 = vxor.u32 %v9799, 2147483648
    %v9801 = vmul.f32 %v9800, 1.442695
    %v9802 = vpow.pop %v9801
    %v9803 = vadd.f32 %v9802, 1.0
    %v9804 = vrcp.pop %v9803
    %v9805 = vmul.f32 1.0, %v9804
    %9807 = vrot.lane.b32.xlu0 %v9796, 64
    %v9808 = vpop.permute.xlu0 %9807
    %v9810 = vmul.f32 %v9805, %v9808
    %9812 = vrot.lane.b32.xlu0 %v9810, 64
    %v9813 = vpop.permute.xlu0 %9812
    %v9815 = vadd.f32 %v9723, %v9813
    %v9816 = vtanh.pop %v9815
    %v9817 = vsub.f32 1.0, %v9805
    %9819 = vrot.lane.b32.xlu0 %v9816, 96
    %v9820 = vpop.permute.xlu0 %9819
    %v9822 = vmul.f32 %v9817, %v9820
    %v9823 = vmul.f32 %v9805, %v9718
    %v9824 = vadd.f32 %v9822, %v9823
    %v9825 = vrot.slane %v9605, 4
    %v9827 = vsel %vm7340, %v9614, %v9825
    %9829 = vrot.lane.b32.xlu0 %v9824, 96
    %v9830 = vpop.permute.xlu0 %9829
    %v9831 = vsel %vm2977, %v9830, 0
    %9833 = vmatprep.subr.mxu0 0.0
    %9834 = vmatpush1.msra.mxu0 0.0
    %9835 = vmatprep.subr.mxu0 0.0
    %9836 = vmatpush1.msra.mxu0 0.0
    %9837 = vmatprep.subr.mxu0 0.0
    %9838 = vmatpush1.msra.mxu0 0.0
    %9839 = vmatprep.subr.mxu0 0.0
    %9840 = vmatpush1.msra.mxu0 0.0
    %9841 = vmatprep.subr.mxu0 0.0
    %9842 = vmatpush1.msra.mxu0 0.0
    %9843 = vmatprep.subr.mxu0 0.0
    %9844 = vmatpush1.msra.mxu0 0.0
    %9845 = vmatprep.subr.mxu0 0.0
    %9846 = vmatpush1.msra.mxu0 0.0
    %9847 = vmatprep.subr.mxu0 0.0
    %9848 = vmatpush1.msra.mxu0 0.0
    %9849 = vmatprep.subr.mxu0 0.0
    %9850 = vmatpush1.msra.mxu0 0.0
    %9851 = vmatprep.subr.mxu0 0.0
    %9852 = vmatpush1.msra.mxu0 0.0
    %9853 = vmatprep.subr.mxu0 0.0
    %9854 = vmatpush1.msra.mxu0 0.0
    %9855 = vmatprep.subr.mxu0 0.0
    %9856 = vmatpush1.msra.mxu0 0.0
    %9857 = vmatprep.subr.mxu0 0.0
    %9858 = vmatpush1.msra.mxu0 %v9611
    %9859 = vmatprep.subr.mxu0 0.0
    %9860 = vmatpush1.msra.mxu0 %v9610
    %9861 = vmatprep.subr.mxu0 0.0
    %9862 = vmatpush1.msra.mxu0 %v9609
    %9863 = vmatprep.subr.mxu0 0.0
    %9864 = vmatpush1.msra.mxu0 %v9608
    %9865 = vmatprep.subr.mxu0 0.0
    %9866 = vmatpush2.msra.mxu0 0.0
    %9867 = vmatprep.subr.mxu0 0.0
    %9868 = vmatpush2.msra.mxu0 0.0
    %9869 = vmatprep.subr.mxu0 0.0
    %9870 = vmatpush2.msra.mxu0 0.0
    %9871 = vmatprep.subr.mxu0 0.0
    %9872 = vmatpush2.msra.mxu0 0.0
    %9873 = vmatprep.subr.mxu0 0.0
    %9874 = vmatpush2.msra.mxu0 0.0
    %9875 = vmatprep.subr.mxu0 0.0
    %9876 = vmatpush2.msra.mxu0 0.0
    %9877 = vmatprep.subr.mxu0 0.0
    %9878 = vmatpush2.msra.mxu0 0.0
    %9879 = vmatprep.subr.mxu0 0.0
    %9880 = vmatpush2.msra.mxu0 0.0
    %9881 = vmatprep.subr.mxu0 0.0
    %9882 = vmatpush2.msra.mxu0 0.0
    %9883 = vmatprep.subr.mxu0 0.0
    %9884 = vmatpush2.msra.mxu0 0.0
    %9885 = vmatprep.subr.mxu0 0.0
    %9886 = vmatpush2.msra.mxu0 0.0
    %9887 = vmatprep.subr.mxu0 0.0
    %9888 = vmatpush2.msra.mxu0 0.0
    %9889 = vmatprep.subr.mxu0 0.0
    %9890 = vmatpush2.msra.mxu0 0.0
    %9891 = vmatprep.subr.mxu0 0.0
    %9892 = vmatpush2.msra.mxu0 0.0
    %9893 = vmatprep.subr.mxu0 0.0
    %9894 = vmatpush2.msra.mxu0 0.0
    %9895 = vmatprep.subr.mxu0 0.0
    %9896 = vmatpush2.msra.mxu0 0.0
    %9897 = vmatprep.mubr.f32.mxu0 0.0
    %9898 = vmatmul.mubr.f32.gmra.mxu0 %v9831
    %v9899 = vpop.f32.mrf.mxu0
    %v9900 = vadd.f32 %v9621, %v9899
    %v9901 = vpop.f32.mrf.mxu0
    %9902 = vdwg.mxu0
    %v9903 = vadd.f32 %v9827, %v9900
    %v9904 = vxor.u32 %v9903, 2147483648
    %v9905 = vmul.f32 %v9904, 1.442695
    %v9906 = vpow.pop %v9905
    %v9907 = vadd.f32 %v9906, 1.0
    %v9908 = vrcp.pop %v9907
    %v9909 = vmul.f32 1.0, %v9908
    %9911 = vrot.lane.b32.xlu0 %v9900, 64
    %v9912 = vpop.permute.xlu0 %9911
    %v9914 = vmul.f32 %v9909, %v9912
    %9916 = vrot.lane.b32.xlu0 %v9914, 64
    %v9917 = vpop.permute.xlu0 %9916
    %v9919 = vadd.f32 %v9827, %v9917
    %v9920 = vtanh.pop %v9919
    %v9921 = vsub.f32 1.0, %v9909
    %9923 = vrot.lane.b32.xlu0 %v9920, 96
    %v9924 = vpop.permute.xlu0 %9923
    %v9926 = vmul.f32 %v9921, %v9924
    %v9927 = vmul.f32 %v9909, %v9824
    %v9928 = vadd.f32 %v9926, %v9927
    %v9929 = vld [vmem:[%s16] sm:$0xff]
    %v9930 = vld [vmem:[%s16 + $0x8] sm:$0xff]
    %v9931 = vld [vmem:[%s16 + $0x10] sm:$0xff]
    %v9932 = vld [vmem:[%s16 + $0x18] sm:$0xff]
    %v9933 = vld [vmem:[%s17] sm:$0x1]
    %v9935 = vlaneseq
    %v9936 = vshrl.u32 %v9935, 7
    %v9937 = vsub.s32 0, %v9936
    %v9938 = vrot.slane %v9933, %v9937
    %9941 = vrot.lane.b32.xlu0 %v9928, 96
    %v9942 = vpop.permute.xlu0 %9941
    %v9943 = vsel %vm2977, %v9942, 0
    %9945 = vmatprep.subr.mxu0 0.0
    %9946 = vmatpush1.msra.mxu0 0.0
    %9947 = vmatprep.subr.mxu0 0.0
    %9948 = vmatpush1.msra.mxu0 0.0
    %9949 = vmatprep.subr.mxu0 0.0
    %9950 = vmatpush1.msra.mxu0 0.0
    %9951 = vmatprep.subr.mxu0 0.0
    %9952 = vmatpush1.msra.mxu0 0.0
    %9953 = vmatprep.subr.mxu0 0.0
    %9954 = vmatpush1.msra.mxu0 0.0
    %9955 = vmatprep.subr.mxu0 0.0
    %9956 = vmatpush1.msra.mxu0 0.0
    %9957 = vmatprep.subr.mxu0 0.0
    %9958 = vmatpush1.msra.mxu0 0.0
    %9959 = vmatprep.subr.mxu0 0.0
    %9960 = vmatpush1.msra.mxu0 0.0
    %9961 = vmatprep.subr.mxu0 0.0
    %9962 = vmatpush1.msra.mxu0 0.0
    %9963 = vmatprep.subr.mxu0 0.0
    %9964 = vmatpush1.msra.mxu0 0.0
    %9965 = vmatprep.subr.mxu0 0.0
    %9966 = vmatpush1.msra.mxu0 0.0
    %9967 = vmatprep.subr.mxu0 0.0
    %9968 = vmatpush1.msra.mxu0 0.0
    %9969 = vmatprep.subr.mxu0 0.0
    %9970 = vmatpush1.msra.mxu0 %v9932
    %9971 = vmatprep.subr.mxu0 0.0
    %9972 = vmatpush1.msra.mxu0 %v9931
    %9973 = vmatprep.subr.mxu0 0.0
    %9974 = vmatpush1.msra.mxu0 %v9930
    %9975 = vmatprep.subr.mxu0 0.0
    %9976 = vmatpush1.msra.mxu0 %v9929
    %9977 = vmatprep.subr.mxu0 0.0
    %9978 = vmatpush2.msra.mxu0 0.0
    %9979 = vmatprep.subr.mxu0 0.0
    %9980 = vmatpush2.msra.mxu0 0.0
    %9981 = vmatprep.subr.mxu0 0.0
    %9982 = vmatpush2.msra.mxu0 0.0
    %9983 = vmatprep.subr.mxu0 0.0
    %9984 = vmatpush2.msra.mxu0 0.0
    %9985 = vmatprep.subr.mxu0 0.0
    %9986 = vmatpush2.msra.mxu0 0.0
    %9987 = vmatprep.subr.mxu0 0.0
    %9988 = vmatpush2.msra.mxu0 0.0
    %9989 = vmatprep.subr.mxu0 0.0
    %9990 = vmatpush2.msra.mxu0 0.0
    %9991 = vmatprep.subr.mxu0 0.0
    %9992 = vmatpush2.msra.mxu0 0.0
    %9993 = vmatprep.subr.mxu0 0.0
    %9994 = vmatpush2.msra.mxu0 0.0
    %9995 = vmatprep.subr.mxu0 0.0
    %9996 = vmatpush2.msra.mxu0 0.0
    %9997 = vmatprep.subr.mxu0 0.0
    %9998 = vmatpush2.msra.mxu0 0.0
    %9999 = vmatprep.subr.mxu0 0.0
    %10000 = vmatpush2.msra.mxu0 0.0
    %10001 = vmatprep.subr.mxu0 0.0
    %10002 = vmatpush2.msra.mxu0 0.0
    %10003 = vmatprep.subr.mxu0 0.0
    %10004 = vmatpush2.msra.mxu0 0.0
    %10005 = vmatprep.subr.mxu0 0.0
    %10006 = vmatpush2.msra.mxu0 0.0
    %10007 = vmatprep.subr.mxu0 0.0
    %10008 = vmatpush2.msra.mxu0 0.0
    %10009 = vmatprep.mubr.f32.mxu0 0.0
    %10010 = vmatmul.mubr.f32.gmra.mxu0 %v9943
    %v10011 = vpop.f32.mrf.mxu0
    %v10012 = vadd.f32 %v9938, %v10011
    %v10013 = vpop.f32.mrf.mxu0
    %10014 = vdwg.mxu0
    %vm10015 = vcmask 9216
    %10016 = vst.msk [vmem:[#allocation3] sm:$0x3] %vm10015, %v10012
    // Predicated region
    $region74: #{smn_forward_pallas.1} parent=1 // pred_check
      _
    $region75: #{smn_forward_pallas.1} parent=1 // pred_check_branch
      %10018 = sbr.rel (0) target = $region77
    $region76: #{smn_forward_pallas.1} parent=1 // pred_region
      %s10020 = ssub.s32 32, 32
      %10021 = vsyncadd [#allocation4], %s10020
      %s10023 = sshll.u32 [#allocation3], 4
      %s10024 = int_to_ptr.vmem [resolvable:$true] %s10023
      %10026 = dma.vmem_to_hbm [thread:$0]  %s10024, 32, %s18, [#allocation4]
    $region77: #{smn_forward_pallas.1} parent=1 // pred_fallthru
      _
    // Predicated region
    $region78: #{smn_forward_pallas.1} parent=1 // pred_check
      _
    $region79: #{smn_forward_pallas.1} parent=1 // pred_check_branch
      %10028 = sbr.rel (0) target = $region81
    $region80: #{smn_forward_pallas.1} parent=1 // pred_region
      %10029 = dma.done [#allocation4], 32
    $region81: #{smn_forward_pallas.1} parent=1 // pred_fallthru
      _
    %10030 = vsyncpa [#allocation4], 1

</llo_original>
